<compile_context>
chip_gen: v7x
topology: tpu7x:2x2x1
jax: 0.10.0
libtpu: 0.0.40
codegen_flags: <defaults>
</compile_context>

<pallas_src>
import functools
import numpy as np
import jax
import jax.numpy as jnp
from jax.experimental import pallas as pl
from jax.experimental.pallas import tpu as pltpu

BF16 = jnp.bfloat16
F32 = jnp.float32


# ------------------------------ in-kernel helpers ------------------------------

def _layernorm(z, g, b, eps):
    mu = jnp.mean(z, axis=-1, keepdims=True)
    zc = z - mu
    var = jnp.mean(zc * zc, axis=-1, keepdims=True)
    return zc * jax.lax.rsqrt(var + eps) * g + b


# ------------------- fused patch-embedding matmul + LayerNorm ------------------

def _linear_ln_kernel(x_ref, w_ref, b_ref, g_ref, bb_ref, o_ref, *, eps):
    y = jnp.dot(x_ref[...].astype(BF16), w_ref[...],
                preferred_element_type=F32) + b_ref[...]
    o_ref[...] = _layernorm(y, g_ref[...], bb_ref[...], eps)


def fused_linear_ln(x, w_bf16, b, g, bb, *, eps=1e-5, tile_m=256):
    """x: (M, K) fp32 @ w: (K, N) bf16 + b, then LayerNorm(N). Row-tiled over M."""
    M, K = x.shape
    N = w_bf16.shape[1]
    tm = min(tile_m, M)
    tm = max(8, (tm // 8) * 8)
    Mp = ((M + tm - 1) // tm) * tm
    if Mp != M:
        x = jnp.pad(x, ((0, Mp - M), (0, 0)))
    const2 = lambda i: (0, 0)
    out = pl.pallas_call(
        functools.partial(_linear_ln_kernel, eps=eps),
        grid=(Mp // tm,),
        in_specs=[
            pl.BlockSpec((tm, K), lambda i: (i, 0)),
            pl.BlockSpec((K, N), const2),
            pl.BlockSpec((1, N), const2),
            pl.BlockSpec((1, N), const2),
            pl.BlockSpec((1, N), const2),
        ],
        out_specs=pl.BlockSpec((tm, N), lambda i: (i, 0)),
        out_shape=jax.ShapeDtypeStruct((Mp, N), F32),
        compiler_params=pltpu.CompilerParams(dimension_semantics=("parallel",)),
    )(x, w_bf16, b, g, bb)
    return out[:M]


# ------------------------ fused MHA (+ residual + LN) block --------------------

def _mha_body(x, mask_row, wqkv, bqkv, wo, bo, g, b, *, h, d_k, d_v, eps):
    """x: (S, D) fp32. mask_row: None or (1, S) fp32 with 1.0 = padded key."""
    S, D = x.shape
    xb = x.astype(BF16)
    # fused Q|K|V projection: one MXU matmul, fp32 accumulate
    qkv = jnp.dot(xb, wqkv, preferred_element_type=F32) + bqkv   # (S, 2*h*d_k + h*d_v)
    hdk = h * d_k
    scale = 1.0 / float(np.sqrt(d_k))
    acc = jnp.zeros((S, D), F32)
    for hh in range(h):
        qh = qkv[:, hh * d_k:(hh + 1) * d_k].astype(BF16)
        kh = qkv[:, hdk + hh * d_k: hdk + (hh + 1) * d_k].astype(BF16)
        vh = qkv[:, 2 * hdk + hh * d_v: 2 * hdk + (hh + 1) * d_v].astype(BF16)
        s = jax.lax.dot_general(qh, kh, (((1,), (1,)), ((), ())),
                                preferred_element_type=F32) * scale    # (S, S)
        if mask_row is not None:
            s = jnp.where(mask_row > 0.5, -1e9, s)                     # key-padding mask
        s = s - jnp.max(s, axis=-1, keepdims=True)
        e = jnp.exp(s)
        p = e * pl.reciprocal(jnp.sum(e, axis=-1, keepdims=True), approx=False)
        oh = jnp.dot(p.astype(BF16), vh, preferred_element_type=F32)   # (S, d_v)
        # per-head slice of the output projection, accumulated into lane-dense (S, D)
        acc = acc + jnp.dot(oh.astype(BF16), wo[hh * d_v:(hh + 1) * d_v, :],
                            preferred_element_type=F32)
    y = acc + bo
    return _layernorm(x + y, g, b, eps)


def _mha_kernel_nomask(x_ref, wqkv_ref, bqkv_ref, wo_ref, bo_ref, g_ref, b_ref,
                       o_ref, *, h, d_k, d_v, eps):
    o_ref[0] = _mha_body(x_ref[0], None, wqkv_ref[...], bqkv_ref[...],
                         wo_ref[...], bo_ref[...], g_ref[...], b_ref[...],
                         h=h, d_k=d_k, d_v=d_v, eps=eps)


def _mha_kernel_mask(x_ref, m_ref, wqkv_ref, bqkv_ref, wo_ref, bo_ref, g_ref,
                     b_ref, o_ref, *, h, d_k, d_v, eps):
    o_ref[0] = _mha_body(x_ref[0], m_ref[0], wqkv_ref[...], bqkv_ref[...],
                         wo_ref[...], bo_ref[...], g_ref[...], b_ref[...],
                         h=h, d_k=d_k, d_v=d_v, eps=eps)


def mha_block(p, x, key_pad, h, d_k, d_v, eps=1e-5):
    """x: (B, S, D). key_pad: None or (B, 1, S) fp32 (1.0 = pad)."""
    B, S, D = x.shape
    Dqkv = p["wqkv"].shape[1]
    const2 = lambda i: (0, 0)
    in_specs = [pl.BlockSpec((1, S, D), lambda i: (i, 0, 0))]
    args = [x]
    if key_pad is not None:
        in_specs.append(pl.BlockSpec((1, 1, S), lambda i: (i, 0, 0)))
        args.append(key_pad)
        kern = _mha_kernel_mask
    else:
        kern = _mha_kernel_nomask
    in_specs += [
        pl.BlockSpec((D, Dqkv), const2),
        pl.BlockSpec((1, Dqkv), const2),
        pl.BlockSpec((h * d_v, D), const2),
        pl.BlockSpec((1, D), const2),
        pl.BlockSpec((1, D), const2),
        pl.BlockSpec((1, D), const2),
    ]
    args += [p["wqkv"], p["bqkv"], p["wo"], p["bo"], p["ln_g"], p["ln_b"]]
    return pl.pallas_call(
        functools.partial(kern, h=h, d_k=d_k, d_v=d_v, eps=eps),
        grid=(B,),
        in_specs=in_specs,
        out_specs=pl.BlockSpec((1, S, D), lambda i: (i, 0, 0)),
        out_shape=jax.ShapeDtypeStruct((B, S, D), F32),
        compiler_params=pltpu.CompilerParams(dimension_semantics=("parallel",)),
    )(*args)


# ------------------------ fused FFN (+ residual + LN) block --------------------

def _ffn_body(x, keep_col, w1, b1, w2, b2, g, b, *, eps):
    h1 = jnp.maximum(jnp.dot(x.astype(BF16), w1, preferred_element_type=F32) + b1, 0.0)
    h2 = jnp.dot(h1.astype(BF16), w2, preferred_element_type=F32) + b2
    out = _layernorm(x + h2, g, b, eps)
    if keep_col is not None:
        out = out * keep_col                          # zero padded token rows
    return out


def _ffn_kernel_nokeep(x_ref, w1_ref, b1_ref, w2_ref, b2_ref, g_ref, b_ref,
                       o_ref, *, eps):
    o_ref[0] = _ffn_body(x_ref[0], None, w1_ref[...], b1_ref[...], w2_ref[...],
                         b2_ref[...], g_ref[...], b_ref[...], eps=eps)


def _ffn_kernel_keep(x_ref, k_ref, w1_ref, b1_ref, w2_ref, b2_ref, g_ref, b_ref,
                     o_ref, *, eps):
    o_ref[0] = _ffn_body(x_ref[0], k_ref[0], w1_ref[...], b1_ref[...], w2_ref[...],
                         b2_ref[...], g_ref[...], b_ref[...], eps=eps)


def ffn_block(p, x, keep, eps=1e-5):
    """x: (B, S, D). keep: None or (B, S, 1) fp32 (1.0 = real token)."""
    B, S, D = x.shape
    dff = p["w1"].shape[1]
    const2 = lambda i: (0, 0)
    in_specs = [pl.BlockSpec((1, S, D), lambda i: (i, 0, 0))]
    args = [x]
    if keep is not None:
        in_specs.append(pl.BlockSpec((1, S, 1), lambda i: (i, 0, 0)))
        args.append(keep)
        kern = _ffn_kernel_keep
    else:
        kern = _ffn_kernel_nokeep
    in_specs += [
        pl.BlockSpec((D, dff), const2),
        pl.BlockSpec((1, dff), const2),
        pl.BlockSpec((dff, D), const2),
        pl.BlockSpec((1, D), const2),
        pl.BlockSpec((1, D), const2),
        pl.BlockSpec((1, D), const2),
    ]
    args += [p["w1"], p["b1"], p["w2"], p["b2"], p["ln_g"], p["ln_b"]]
    return pl.pallas_call(
        functools.partial(kern, eps=eps),
        grid=(B,),
        in_specs=in_specs,
        out_specs=pl.BlockSpec((1, S, D), lambda i: (i, 0, 0)),
        out_shape=jax.ShapeDtypeStruct((B, S, D), F32),
        compiler_params=pltpu.CompilerParams(dimension_semantics=("parallel",)),
    )(*args)


def self_att_layer(lp, x, key_pad, keep, h, d_k, d_v):
    y = mha_block(lp["mha"], x, key_pad, h, d_k, d_v)
    return ffn_block(lp["ffn"], y, keep)


# ---------------------------------- full forward -------------------------------

def share_fas_forward(params, images, texts, cfg):
    D, h, d_k, d_v = cfg["d_model"], cfg["h"], cfg["d_k"], cfg["d_v"]
    pad = cfg["padding_idx"]

    # ---------------- img_enc ----------------
    B, C, H, W = images.shape
    P = 16
    Hp, Wp = H // P, W // P
    Np = Hp * Wp
    # Conv2d(3, d_model, kernel=16, stride=16) == patch-extract (glue) + fused matmul+LN
    patches = images.reshape(B, C, Hp, P, Wp, P).transpose(0, 2, 4, 1, 3, 5)
    patches = patches.reshape(B * Np, C * P * P)
    img = fused_linear_ln(patches, params["patch_w"], params["patch_b"],
                          params["img_ln_g"], params["img_ln_b"]).reshape(B, Np, D)
    for lp in params["img_encoder"]:
        img = self_att_layer(lp, img, None, None, h, d_k, d_v)

    # ---------------- txt_enc ----------------
    Bt, S = texts.shape
    texts_mask = (texts == pad)                                        # (B, S) bool
    seq = jnp.broadcast_to(jnp.arange(1, S + 1, dtype=texts.dtype)[None, :], (Bt, S))
    seq = jnp.where(texts_mask, 0, seq)
    txt = (jnp.take(params["word_emb"], texts, axis=0)
           + jnp.take(params["pos_emb"], seq, axis=0))                 # (B, S, D)

    key_pad = texts_mask.astype(F32)[:, None, :]                       # (B, 1, S)
    keep = (~texts_mask).astype(F32)[:, :, None]                       # (B, S, 1)

    for lp in params["txt_encoder"]:
        txt = self_att_layer(lp, txt, key_pad, keep, h, d_k, d_v)

    # ---------------- share_enc ----------------
    share_img = img
    for lp in params["share_encoder"]:
        share_img = self_att_layer(lp, share_img, None, None, h, d_k, d_v)
    share_txt = txt
    for lp in params["share_encoder"]:
        share_txt = self_att_layer(lp, share_txt, key_pad, keep, h, d_k, d_v)

    return img, txt, share_img, share_txt


# ---------------------------------- init --------------------------------------

def sinusoid_encoding_table(n_pos, d_model, padding_idx=None):
    pos = np.arange(n_pos)[:, None].astype(np.float64)
    dim = np.arange(d_model)[None, :]
    angle = pos / np.power(10000.0, 2 * (dim // 2) / d_model)
    table = np.zeros((n_pos, d_model), dtype=np.float64)
    table[:, 0::2] = np.sin(angle[:, 0::2])
    table[:, 1::2] = np.cos(angle[:, 1::2])
    if padding_idx is not None:
        table[padding_idx] = 0.0
    return jnp.asarray(table, dtype=F32)


class KeyGen:
    def __init__(self, key):
        self.key, self.i = key, 0

    def __call__(self):
        self.i += 1
        return jax.random.fold_in(self.key, self.i)


def init_att_layer(kg, D, d_k, d_v, h, d_ff):
    def w(din, dout):
        return (jax.random.normal(kg(), (din, dout), F32) * 0.02).astype(BF16)

    dqkv = 2 * h * d_k + h * d_v
    ones, zeros = jnp.ones((1, D), F32), jnp.zeros((1, D), F32)
    return {
        "mha": {"wqkv": w(D, dqkv), "bqkv": jnp.zeros((1, dqkv), F32),
                "wo": w(h * d_v, D), "bo": jnp.zeros((1, D), F32),
                "ln_g": ones, "ln_b": zeros},
        "ffn": {"w1": w(D, d_ff), "b1": jnp.zeros((1, d_ff), F32),
                "w2": w(d_ff, D), "b2": jnp.zeros((1, D), F32),
                "ln_g": ones, "ln_b": zeros},
    }


def init_params(key, cfg):
    kg = KeyGen(key)
    D, d_k, d_v, h, d_ff = cfg["d_model"], cfg["d_k"], cfg["d_v"], cfg["h"], cfg["d_ff"]
    V, L, N, pad = cfg["vocab_size"], cfg["max_len"], cfg["N"], cfg["padding_idx"]

    word_emb = jax.random.normal(kg(), (V, D), F32) * 0.02
    word_emb = word_emb.at[pad].set(0.0)          # nn.Embedding padding_idx row

    return {
        "patch_w": (jax.random.normal(kg(), (3 * 16 * 16, D), F32) * 0.02).astype(BF16),
        "patch_b": jnp.zeros((1, D), F32),
        "img_ln_g": jnp.ones((1, D), F32),
        "img_ln_b": jnp.zeros((1, D), F32),
        "word_emb": word_emb,
        "pos_emb": sinusoid_encoding_table(L + 1, D, padding_idx=0),
        "img_encoder": [init_att_layer(kg, D, d_k, d_v, h, d_ff) for _ in range(N)],
        "txt_encoder": [init_att_layer(kg, D, d_k, d_v, h, d_ff) for _ in range(N)],
        "share_encoder": [init_att_layer(kg, D, d_k, d_v, h, d_ff) for _ in range(N)],
    }


# ---------------------------------- main ---------------------------------------

if __name__ == "__main__":
    # small, lane-dense config: d_model / h*d_v / d_ff are multiples of 128
    cfg = dict(d_model=128, d_k=32, d_v=32, h=4, d_ff=256, N=2,
               vocab_size=50, padding_idx=0, max_len=20)

    root = jax.random.PRNGKey(0)
    k_params, k_img, k_txt = jax.random.split(root, 3)

    params = init_params(k_params, cfg)

    images = jax.random.normal(k_img, (2, 3, 32, 32), F32)            # NCHW
    texts = jax.random.randint(k_txt, (2, 8), 1, cfg["vocab_size"])
    texts = texts.at[0, 6:].set(cfg["padding_idx"]).at[1, 5:].set(cfg["padding_idx"])

    fwd = jax.jit(lambda p, im, tx: share_fas_forward(p, im, tx, cfg))
    img_out, txt_out, share_img, share_txt = fwd(params, images, texts)
    jax.block_until_ready((img_out, txt_out, share_img, share_txt))

    assert img_out.shape == (2, 4, cfg["d_model"])
    assert txt_out.shape == (2, 8, cfg["d_model"])
    assert share_img.shape == (2, 4, cfg["d_model"])
    assert share_txt.shape == (2, 8, cfg["d_model"])
    assert all(bool(jnp.all(jnp.isfinite(t)))
               for t in (img_out, txt_out, share_img, share_txt))

    print("KERNEL_OK")
</pallas_src>

<mosaic_0001>
module attributes {stable_mosaic.version = 11 : i64} {
  func.func @_linear_ln_kernel(%arg0: i32, %arg1: memref<8x768xf32, #tpu.memory_space<vmem>>, %arg2: memref<768x128xbf16, #tpu.memory_space<vmem>>, %arg3: memref<1x128xf32, #tpu.memory_space<vmem>>, %arg4: memref<1x128xf32, #tpu.memory_space<vmem>>, %arg5: memref<1x128xf32, #tpu.memory_space<vmem>>, %arg6: memref<8x128xf32, #tpu.memory_space<vmem>>) attributes {dimension_semantics = [#tpu.dimension_semantics<parallel>], iteration_bounds = array<i64: 1>, scalar_prefetch = 0 : i64, scratch_operands = 0 : i64, tpu.core_type = #tpu.core_type<tc>, window_params = [{transform_indices = @transform_0, window_bounds = array<i64: 8, 768>}, {pipeline_mode = #tpu.pipeline_mode<synchronous>, transform_indices = @transform_1, window_bounds = array<i64: 768, 128>}, {pipeline_mode = #tpu.pipeline_mode<synchronous>, transform_indices = @transform_2, window_bounds = array<i64: 1, 128>}, {pipeline_mode = #tpu.pipeline_mode<synchronous>, transform_indices = @transform_3, window_bounds = array<i64: 1, 128>}, {pipeline_mode = #tpu.pipeline_mode<synchronous>, transform_indices = @transform_4, window_bounds = array<i64: 1, 128>}, {transform_indices = @transform_5, window_bounds = array<i64: 8, 128>}]} {
    %c0 = arith.constant 0 : index
    %c0_0 = arith.constant 0 : index
    %0 = vector.load %arg1[%c0, %c0_0] : memref<8x768xf32, #tpu.memory_space<vmem>>, vector<8x768xf32>
    %1 = arith.truncf %0 : vector<8x768xf32> to vector<8x768xbf16>
    %c0_1 = arith.constant 0 : index
    %c0_2 = arith.constant 0 : index
    %2 = vector.load %arg2[%c0_1, %c0_2] : memref<768x128xbf16, #tpu.memory_space<vmem>>, vector<768x128xbf16>
    %cst = arith.constant dense<0.000000e+00> : vector<8x128xf32>
    %3 = tpu.matmul %1, %2, %cst {dimension_numbers = #tpu.dot_dimension_numbers<[1], [0], [0], [1], [0, 0, 1, 1], [], []>} : vector<8x768xbf16>, vector<768x128xbf16>, vector<8x128xf32> -> vector<8x128xf32>
    %c0_3 = arith.constant 0 : index
    %c0_4 = arith.constant 0 : index
    %4 = vector.load %arg3[%c0_3, %c0_4] : memref<1x128xf32, #tpu.memory_space<vmem>>, vector<1x128xf32>
    %5 = vector.broadcast %4 : vector<1x128xf32> to vector<8x128xf32>
    %6 = arith.addf %3, %5 : vector<8x128xf32>
    %c0_5 = arith.constant 0 : index
    %c0_6 = arith.constant 0 : index
    %7 = vector.load %arg4[%c0_5, %c0_6] : memref<1x128xf32, #tpu.memory_space<vmem>>, vector<1x128xf32>
    %c0_7 = arith.constant 0 : index
    %c0_8 = arith.constant 0 : index
    %8 = vector.load %arg5[%c0_7, %c0_8] : memref<1x128xf32, #tpu.memory_space<vmem>>, vector<1x128xf32>
    %cst_9 = arith.constant dense<0.000000e+00> : vector<8xf32>
    %9 = vector.multi_reduction <add>, %6, %cst_9 [1] : vector<8x128xf32> to vector<8xf32>
    %10 = vector.shape_cast %9 : vector<8xf32> to vector<8x1xf32>
    %cst_10 = arith.constant 1.280000e+02 : f32
    %11 = vector.broadcast %cst_10 : f32 to vector<8x1xf32>
    %12 = arith.divf %10, %11 : vector<8x1xf32>
    %13 = vector.broadcast %12 : vector<8x1xf32> to vector<8x128xf32>
    %14 = arith.subf %6, %13 : vector<8x128xf32>
    %15 = arith.mulf %14, %14 : vector<8x128xf32>
    %cst_11 = arith.constant dense<0.000000e+00> : vector<8xf32>
    %16 = vector.multi_reduction <add>, %15, %cst_11 [1] : vector<8x128xf32> to vector<8xf32>
    %17 = vector.shape_cast %16 : vector<8xf32> to vector<8x1xf32>
    %cst_12 = arith.constant 1.280000e+02 : f32
    %18 = vector.broadcast %cst_12 : f32 to vector<8x1xf32>
    %19 = arith.divf %17, %18 : vector<8x1xf32>
    %cst_13 = arith.constant 9.99999974E-6 : f32
    %20 = vector.broadcast %cst_13 : f32 to vector<8x1xf32>
    %21 = arith.addf %19, %20 : vector<8x1xf32>
    %22 = math.rsqrt %21 : vector<8x1xf32>
    %23 = vector.broadcast %22 : vector<8x1xf32> to vector<8x128xf32>
    %24 = arith.mulf %14, %23 : vector<8x128xf32>
    %25 = vector.broadcast %7 : vector<1x128xf32> to vector<8x128xf32>
    %26 = arith.mulf %24, %25 : vector<8x128xf32>
    %27 = vector.broadcast %8 : vector<1x128xf32> to vector<8x128xf32>
    %28 = arith.addf %26, %27 : vector<8x128xf32>
    %c0_14 = arith.constant 0 : index
    %c0_15 = arith.constant 0 : index
    %29 = vector.load %arg6[%c0_14, %c0_15] : memref<8x128xf32, #tpu.memory_space<vmem>>, vector<8x128xf32>
    tpu.vector_store %arg6[%c0_14, %c0_15], %28 {strides = array<i32>} : memref<8x128xf32, #tpu.memory_space<vmem>>, vector<8x128xf32>,
    return
  }
  func.func @transform_0(%arg0: i32) -> (i32, i32) {
    %c0_i32 = arith.constant 0 : i32
    %c0_i32_0 = arith.constant 0 : i32
    return %arg0, %c0_i32 : i32, i32
  }
  func.func @transform_1(%arg0: i32) -> (i32, i32) {
    %c0_i32 = arith.constant 0 : i32
    %c0_i32_0 = arith.constant 0 : i32
    %c0_i32_1 = arith.constant 0 : i32
    return %c0_i32, %c0_i32_0 : i32, i32
  }
  func.func @transform_2(%arg0: i32) -> (i32, i32) {
    %c0_i32 = arith.constant 0 : i32
    %c0_i32_0 = arith.constant 0 : i32
    %c0_i32_1 = arith.constant 0 : i32
    return %c0_i32, %c0_i32_0 : i32, i32
  }
  func.func @transform_3(%arg0: i32) -> (i32, i32) {
    %c0_i32 = arith.constant 0 : i32
    %c0_i32_0 = arith.constant 0 : i32
    %c0_i32_1 = arith.constant 0 : i32
    return %c0_i32, %c0_i32_0 : i32, i32
  }
  func.func @transform_4(%arg0: i32) -> (i32, i32) {
    %c0_i32 = arith.constant 0 : i32
    %c0_i32_0 = arith.constant 0 : i32
    %c0_i32_1 = arith.constant 0 : i32
    return %c0_i32, %c0_i32_0 : i32, i32
  }
  func.func @transform_5(%arg0: i32) -> (i32, i32) {
    %c0_i32 = arith.constant 0 : i32
    %c0_i32_0 = arith.constant 0 : i32
    return %arg0, %c0_i32 : i32, i32
  }
}

module attributes {stable_mosaic.version = 11 : i64} {
  func.func @_ffn_kernel_nokeep(%arg0: i32, %arg1: memref<1x4x128xf32, #tpu.memory_space<vmem>>, %arg2: memref<128x256xbf16, #tpu.memory_space<vmem>>, %arg3: memref<1x256xf32, #tpu.memory_space<vmem>>, %arg4: memref<256x128xbf16, #tpu.memory_space<vmem>>, %arg5: memref<1x128xf32, #tpu.memory_space<vmem>>, %arg6: memref<1x128xf32, #tpu.memory_space<vmem>>, %arg7: memref<1x128xf32, #tpu.memory_space<vmem>>, %arg8: memref<1x4x128xf32, #tpu.memory_space<vmem>>) attributes {dimension_semantics = [#tpu.dimension_semantics<parallel>], iteration_bounds = array<i64: 2>, scalar_prefetch = 0 : i64, scratch_operands = 0 : i64, tpu.core_type = #tpu.core_type<tc>, window_params = [{transform_indices = @transform_0, window_bounds = array<i64: 1, 4, 128>}, {pipeline_mode = #tpu.pipeline_mode<synchronous>, transform_indices = @transform_1, window_bounds = array<i64: 128, 256>}, {pipeline_mode = #tpu.pipeline_mode<synchronous>, transform_indices = @transform_2, window_bounds = array<i64: 1, 256>}, {pipeline_mode = #tpu.pipeline_mode<synchronous>, transform_indices = @transform_3, window_bounds = array<i64: 256, 128>}, {pipeline_mode = #tpu.pipeline_mode<synchronous>, transform_indices = @transform_4, window_bounds = array<i64: 1, 128>}, {pipeline_mode = #tpu.pipeline_mode<synchronous>, transform_indices = @transform_5, window_bounds = array<i64: 1, 128>}, {pipeline_mode = #tpu.pipeline_mode<synchronous>, transform_indices = @transform_6, window_bounds = array<i64: 1, 128>}, {transform_indices = @transform_7, window_bounds = array<i64: 1, 4, 128>}]} {
    %c0 = arith.constant 0 : index
    %c0_0 = arith.constant 0 : index
    %c0_1 = arith.constant 0 : index
    %0 = vector.load %arg1[%c0, %c0_0, %c0_1] : memref<1x4x128xf32, #tpu.memory_space<vmem>>, vector<1x4x128xf32>
    %1 = vector.shape_cast %0 : vector<1x4x128xf32> to vector<4x128xf32>
    %c0_2 = arith.constant 0 : index
    %c0_3 = arith.constant 0 : index
    %2 = vector.load %arg2[%c0_2, %c0_3] : memref<128x256xbf16, #tpu.memory_space<vmem>>, vector<128x256xbf16>
    %c0_4 = arith.constant 0 : index
    %c0_5 = arith.constant 0 : index
    %3 = vector.load %arg3[%c0_4, %c0_5] : memref<1x256xf32, #tpu.memory_space<vmem>>, vector<1x256xf32>
    %c0_6 = arith.constant 0 : index
    %c0_7 = arith.constant 0 : index
    %4 = vector.load %arg4[%c0_6, %c0_7] : memref<256x128xbf16, #tpu.memory_space<vmem>>, vector<256x128xbf16>
    %c0_8 = arith.constant 0 : index
    %c0_9 = arith.constant 0 : index
    %5 = vector.load %arg5[%c0_8, %c0_9] : memref<1x128xf32, #tpu.memory_space<vmem>>, vector<1x128xf32>
    %c0_10 = arith.constant 0 : index
    %c0_11 = arith.constant 0 : index
    %6 = vector.load %arg6[%c0_10, %c0_11] : memref<1x128xf32, #tpu.memory_space<vmem>>, vector<1x128xf32>
    %c0_12 = arith.constant 0 : index
    %c0_13 = arith.constant 0 : index
    %7 = vector.load %arg7[%c0_12, %c0_13] : memref<1x128xf32, #tpu.memory_space<vmem>>, vector<1x128xf32>
    %8 = arith.truncf %1 : vector<4x128xf32> to vector<4x128xbf16>
    %cst = arith.constant dense<0.000000e+00> : vector<4x256xf32>
    %9 = tpu.matmul %8, %2, %cst {dimension_numbers = #tpu.dot_dimension_numbers<[1], [0], [0], [1], [0, 0, 1, 1], [], []>} : vector<4x128xbf16>, vector<128x256xbf16>, vector<4x256xf32> -> vector<4x256xf32>
    %10 = vector.broadcast %3 : vector<1x256xf32> to vector<4x256xf32>
    %11 = arith.addf %9, %10 : vector<4x256xf32>
    %cst_14 = arith.constant 0.000000e+00 : f32
    %12 = vector.broadcast %cst_14 : f32 to vector<4x256xf32>
    %13 = arith.maximumf %11, %12 : vector<4x256xf32>
    %14 = arith.truncf %13 : vector<4x256xf32> to vector<4x256xbf16>
    %cst_15 = arith.constant dense<0.000000e+00> : vector<4x128xf32>
    %15 = tpu.matmul %14, %4, %cst_15 {dimension_numbers = #tpu.dot_dimension_numbers<[1], [0], [0], [1], [0, 0, 1, 1], [], []>} : vector<4x256xbf16>, vector<256x128xbf16>, vector<4x128xf32> -> vector<4x128xf32>
    %16 = vector.broadcast %5 : vector<1x128xf32> to vector<4x128xf32>
    %17 = arith.addf %15, %16 : vector<4x128xf32>
    %18 = arith.addf %1, %17 : vector<4x128xf32>
    %cst_16 = arith.constant dense<0.000000e+00> : vector<4xf32>
    %19 = vector.multi_reduction <add>, %18, %cst_16 [1] : vector<4x128xf32> to vector<4xf32>
    %20 = vector.shape_cast %19 : vector<4xf32> to vector<4x1xf32>
    %cst_17 = arith.constant 1.280000e+02 : f32
    %21 = vector.broadcast %cst_17 : f32 to vector<4x1xf32>
    %22 = arith.divf %20, %21 : vector<4x1xf32>
    %23 = vector.broadcast %22 : vector<4x1xf32> to vector<4x128xf32>
    %24 = arith.subf %18, %23 : vector<4x128xf32>
    %25 = arith.mulf %24, %24 : vector<4x128xf32>
    %cst_18 = arith.constant dense<0.000000e+00> : vector<4xf32>
    %26 = vector.multi_reduction <add>, %25, %cst_18 [1] : vector<4x128xf32> to vector<4xf32>
    %27 = vector.shape_cast %26 : vector<4xf32> to vector<4x1xf32>
    %cst_19 = arith.constant 1.280000e+02 : f32
    %28 = vector.broadcast %cst_19 : f32 to vector<4x1xf32>
    %29 = arith.divf %27, %28 : vector<4x1xf32>
    %cst_20 = arith.constant 9.99999974E-6 : f32
    %30 = vector.broadcast %cst_20 : f32 to vector<4x1xf32>
    %31 = arith.addf %29, %30 : vector<4x1xf32>
    %32 = math.rsqrt %31 : vector<4x1xf32>
    %33 = vector.broadcast %32 : vector<4x1xf32> to vector<4x128xf32>
    %34 = arith.mulf %24, %33 : vector<4x128xf32>
    %35 = vector.broadcast %6 : vector<1x128xf32> to vector<4x128xf32>
    %36 = arith.mulf %34, %35 : vector<4x128xf32>
    %37 = vector.broadcast %7 : vector<1x128xf32> to vector<4x128xf32>
    %38 = arith.addf %36, %37 : vector<4x128xf32>
    %c0_21 = arith.constant 0 : index
    %c0_22 = arith.constant 0 : index
    %c0_23 = arith.constant 0 : index
    %39 = vector.load %arg8[%c0_21, %c0_22, %c0_23] : memref<1x4x128xf32, #tpu.memory_space<vmem>>, vector<1x4x128xf32>
    %40 = vector.shape_cast %39 : vector<1x4x128xf32> to vector<4x128xf32>
    %41 = vector.shape_cast %38 : vector<4x128xf32> to vector<1x4x128xf32>
    tpu.vector_store %arg8[%c0_21, %c0_22, %c0_23], %41 {strides = array<i32>} : memref<1x4x128xf32, #tpu.memory_space<vmem>>, vector<1x4x128xf32>,
    return
  }
  func.func @transform_0(%arg0: i32) -> (i32, i32, i32) {
    %c0_i32 = arith.constant 0 : i32
    %c0_i32_0 = arith.constant 0 : i32
    %c0_i32_1 = arith.constant 0 : i32
    return %arg0, %c0_i32, %c0_i32_0 : i32, i32, i32
  }
  func.func @transform_1(%arg0: i32) -> (i32, i32) {
    %c0_i32 = arith.constant 0 : i32
    %c0_i32_0 = arith.constant 0 : i32
    %c0_i32_1 = arith.constant 0 : i32
    return %c0_i32, %c0_i32_0 : i32, i32
  }
  func.func @transform_2(%arg0: i32) -> (i32, i32) {
    %c0_i32 = arith.constant 0 : i32
    %c0_i32_0 = arith.constant 0 : i32
    %c0_i32_1 = arith.constant 0 : i32
    return %c0_i32, %c0_i32_0 : i32, i32
  }
  func.func @transform_3(%arg0: i32) -> (i32, i32) {
    %c0_i32 = arith.constant 0 : i32
    %c0_i32_0 = arith.constant 0 : i32
    %c0_i32_1 = arith.constant 0 : i32
    return %c0_i32, %c0_i32_0 : i32, i32
  }
  func.func @transform_4(%arg0: i32) -> (i32, i32) {
    %c0_i32 = arith.constant 0 : i32
    %c0_i32_0 = arith.constant 0 : i32
    %c0_i32_1 = arith.constant 0 : i32
    return %c0_i32, %c0_i32_0 : i32, i32
  }
  func.func @transform_5(%arg0: i32) -> (i32, i32) {
    %c0_i32 = arith.constant 0 : i32
    %c0_i32_0 = arith.constant 0 : i32
    %c0_i32_1 = arith.constant 0 : i32
    return %c0_i32, %c0_i32_0 : i32, i32
  }
  func.func @transform_6(%arg0: i32) -> (i32, i32) {
    %c0_i32 = arith.constant 0 : i32
    %c0_i32_0 = arith.constant 0 : i32
    %c0_i32_1 = arith.constant 0 : i32
    return %c0_i32, %c0_i32_0 : i32, i32
  }
  func.func @transform_7(%arg0: i32) -> (i32, i32, i32) {
    %c0_i32 = arith.constant 0 : i32
    %c0_i32_0 = arith.constant 0 : i32
    %c0_i32_1 = arith.constant 0 : i32
    return %arg0, %c0_i32, %c0_i32_0 : i32, i32, i32
  }
}

module attributes {stable_mosaic.version = 11 : i64} {
  func.func @_mha_kernel_nomask(%arg0: i32, %arg1: memref<1x4x128xf32, #tpu.memory_space<vmem>>, %arg2: memref<128x384xbf16, #tpu.memory_space<vmem>>, %arg3: memref<1x384xf32, #tpu.memory_space<vmem>>, %arg4: memref<128x128xbf16, #tpu.memory_space<vmem>>, %arg5: memref<1x128xf32, #tpu.memory_space<vmem>>, %arg6: memref<1x128xf32, #tpu.memory_space<vmem>>, %arg7: memref<1x128xf32, #tpu.memory_space<vmem>>, %arg8: memref<1x4x128xf32, #tpu.memory_space<vmem>>) attributes {dimension_semantics = [#tpu.dimension_semantics<parallel>], iteration_bounds = array<i64: 2>, scalar_prefetch = 0 : i64, scratch_operands = 0 : i64, tpu.core_type = #tpu.core_type<tc>, window_params = [{transform_indices = @transform_0, window_bounds = array<i64: 1, 4, 128>}, {pipeline_mode = #tpu.pipeline_mode<synchronous>, transform_indices = @transform_1, window_bounds = array<i64: 128, 384>}, {pipeline_mode = #tpu.pipeline_mode<synchronous>, transform_indices = @transform_2, window_bounds = array<i64: 1, 384>}, {pipeline_mode = #tpu.pipeline_mode<synchronous>, transform_indices = @transform_3, window_bounds = array<i64: 128, 128>}, {pipeline_mode = #tpu.pipeline_mode<synchronous>, transform_indices = @transform_4, window_bounds = array<i64: 1, 128>}, {pipeline_mode = #tpu.pipeline_mode<synchronous>, transform_indices = @transform_5, window_bounds = array<i64: 1, 128>}, {pipeline_mode = #tpu.pipeline_mode<synchronous>, transform_indices = @transform_6, window_bounds = array<i64: 1, 128>}, {transform_indices = @transform_7, window_bounds = array<i64: 1, 4, 128>}]} {
    %c0 = arith.constant 0 : index
    %c0_0 = arith.constant 0 : index
    %c0_1 = arith.constant 0 : index
    %0 = vector.load %arg1[%c0, %c0_0, %c0_1] : memref<1x4x128xf32, #tpu.memory_space<vmem>>, vector<1x4x128xf32>
    %1 = vector.shape_cast %0 : vector<1x4x128xf32> to vector<4x128xf32>
    %c0_2 = arith.constant 0 : index
    %c0_3 = arith.constant 0 : index
    %2 = vector.load %arg2[%c0_2, %c0_3] : memref<128x384xbf16, #tpu.memory_space<vmem>>, vector<128x384xbf16>
    %c0_4 = arith.constant 0 : index
    %c0_5 = arith.constant 0 : index
    %3 = vector.load %arg3[%c0_4, %c0_5] : memref<1x384xf32, #tpu.memory_space<vmem>>, vector<1x384xf32>
    %c0_6 = arith.constant 0 : index
    %c0_7 = arith.constant 0 : index
    %4 = vector.load %arg4[%c0_6, %c0_7] : memref<128x128xbf16, #tpu.memory_space<vmem>>, vector<128x128xbf16>
    %c0_8 = arith.constant 0 : index
    %c0_9 = arith.constant 0 : index
    %5 = vector.load %arg5[%c0_8, %c0_9] : memref<1x128xf32, #tpu.memory_space<vmem>>, vector<1x128xf32>
    %c0_10 = arith.constant 0 : index
    %c0_11 = arith.constant 0 : index
    %6 = vector.load %arg6[%c0_10, %c0_11] : memref<1x128xf32, #tpu.memory_space<vmem>>, vector<1x128xf32>
    %c0_12 = arith.constant 0 : index
    %c0_13 = arith.constant 0 : index
    %7 = vector.load %arg7[%c0_12, %c0_13] : memref<1x128xf32, #tpu.memory_space<vmem>>, vector<1x128xf32>
    %8 = arith.truncf %1 : vector<4x128xf32> to vector<4x128xbf16>
    %cst = arith.constant dense<0.000000e+00> : vector<4x384xf32>
    %9 = tpu.matmul %8, %2, %cst {dimension_numbers = #tpu.dot_dimension_numbers<[1], [0], [0], [1], [0, 0, 1, 1], [], []>} : vector<4x128xbf16>, vector<128x384xbf16>, vector<4x384xf32> -> vector<4x384xf32>
    %10 = vector.broadcast %3 : vector<1x384xf32> to vector<4x384xf32>
    %11 = arith.addf %9, %10 : vector<4x384xf32>
    %cst_14 = arith.constant 0.000000e+00 : f32
    %12 = vector.broadcast %cst_14 : f32 to vector<4x128xf32>
    %13 = vector.extract_strided_slice %11 {offsets = [0, 0], sizes = [4, 32], strides = [1, 1]} : vector<4x384xf32> to vector<4x32xf32>
    %14 = arith.truncf %13 : vector<4x32xf32> to vector<4x32xbf16>
    %15 = vector.extract_strided_slice %11 {offsets = [0, 128], sizes = [4, 32], strides = [1, 1]} : vector<4x384xf32> to vector<4x32xf32>
    %16 = arith.truncf %15 : vector<4x32xf32> to vector<4x32xbf16>
    %17 = vector.extract_strided_slice %11 {offsets = [0, 256], sizes = [4, 32], strides = [1, 1]} : vector<4x384xf32> to vector<4x32xf32>
    %18 = arith.truncf %17 : vector<4x32xf32> to vector<4x32xbf16>
    %cst_15 = arith.constant dense<0.000000e+00> : vector<4x4xf32>
    %19 = tpu.matmul %14, %16, %cst_15 {dimension_numbers = #tpu.dot_dimension_numbers<[1], [1], [0], [0], [0, 0, 1, 0], [], []>} : vector<4x32xbf16>, vector<4x32xbf16>, vector<4x4xf32> -> vector<4x4xf32>
    %cst_16 = arith.constant 0.176776692 : f32
    %20 = vector.broadcast %cst_16 : f32 to vector<4x4xf32>
    %21 = arith.mulf %19, %20 : vector<4x4xf32>
    %cst_17 = arith.constant dense<0xFF800000> : vector<4xf32>
    %22 = vector.multi_reduction <maximumf>, %21, %cst_17 [1] : vector<4x4xf32> to vector<4xf32>
    %23 = vector.shape_cast %22 : vector<4xf32> to vector<4x1xf32>
    %24 = vector.broadcast %23 : vector<4x1xf32> to vector<4x4xf32>
    %25 = arith.subf %21, %24 : vector<4x4xf32>
    %26 = math.exp %25 : vector<4x4xf32>
    %cst_18 = arith.constant dense<0.000000e+00> : vector<4xf32>
    %27 = vector.multi_reduction <add>, %26, %cst_18 [1] : vector<4x4xf32> to vector<4xf32>
    %28 = vector.shape_cast %27 : vector<4xf32> to vector<4x1xf32>
    %29 = tpu.reciprocal %28 : vector<4x1xf32> -> vector<4x1xf32>
    %30 = vector.broadcast %29 : vector<4x1xf32> to vector<4x4xf32>
    %31 = arith.mulf %26, %30 : vector<4x4xf32>
    %32 = arith.truncf %31 : vector<4x4xf32> to vector<4x4xbf16>
    %cst_19 = arith.constant dense<0.000000e+00> : vector<4x32xf32>
    %33 = tpu.matmul %32, %18, %cst_19 {dimension_numbers = #tpu.dot_dimension_numbers<[1], [0], [0], [1], [0, 0, 1, 1], [], []>} : vector<4x4xbf16>, vector<4x32xbf16>, vector<4x32xf32> -> vector<4x32xf32>
    %34 = arith.truncf %33 : vector<4x32xf32> to vector<4x32xbf16>
    %35 = vector.extract_strided_slice %4 {offsets = [0, 0], sizes = [32, 128], strides = [1, 1]} : vector<128x128xbf16> to vector<32x128xbf16>
    %cst_20 = arith.constant dense<0.000000e+00> : vector<4x128xf32>
    %36 = tpu.matmul %34, %35, %cst_20 {dimension_numbers = #tpu.dot_dimension_numbers<[1], [0], [0], [1], [0, 0, 1, 1], [], []>} : vector<4x32xbf16>, vector<32x128xbf16>, vector<4x128xf32> -> vector<4x128xf32>
    %37 = arith.addf %12, %36 : vector<4x128xf32>
    %38 = vector.extract_strided_slice %11 {offsets = [0, 32], sizes = [4, 32], strides = [1, 1]} : vector<4x384xf32> to vector<4x32xf32>
    %39 = arith.truncf %38 : vector<4x32xf32> to vector<4x32xbf16>
    %40 = vector.extract_strided_slice %11 {offsets = [0, 160], sizes = [4, 32], strides = [1, 1]} : vector<4x384xf32> to vector<4x32xf32>
    %41 = arith.truncf %40 : vector<4x32xf32> to vector<4x32xbf16>
    %42 = vector.extract_strided_slice %11 {offsets = [0, 288], sizes = [4, 32], strides = [1, 1]} : vector<4x384xf32> to vector<4x32xf32>
    %43 = arith.truncf %42 : vector<4x32xf32> to vector<4x32xbf16>
    %cst_21 = arith.constant dense<0.000000e+00> : vector<4x4xf32>
    %44 = tpu.matmul %39, %41, %cst_21 {dimension_numbers = #tpu.dot_dimension_numbers<[1], [1], [0], [0], [0, 0, 1, 0], [], []>} : vector<4x32xbf16>, vector<4x32xbf16>, vector<4x4xf32> -> vector<4x4xf32>
    %cst_22 = arith.constant 0.176776692 : f32
    %45 = vector.broadcast %cst_22 : f32 to vector<4x4xf32>
    %46 = arith.mulf %44, %45 : vector<4x4xf32>
    %cst_23 = arith.constant dense<0xFF800000> : vector<4xf32>
    %47 = vector.multi_reduction <maximumf>, %46, %cst_23 [1] : vector<4x4xf32> to vector<4xf32>
    %48 = vector.shape_cast %47 : vector<4xf32> to vector<4x1xf32>
    %49 = vector.broadcast %48 : vector<4x1xf32> to vector<4x4xf32>
    %50 = arith.subf %46, %49 : vector<4x4xf32>
    %51 = math.exp %50 : vector<4x4xf32>
    %cst_24 = arith.constant dense<0.000000e+00> : vector<4xf32>
    %52 = vector.multi_reduction <add>, %51, %cst_24 [1] : vector<4x4xf32> to vector<4xf32>
    %53 = vector.shape_cast %52 : vector<4xf32> to vector<4x1xf32>
    %54 = tpu.reciprocal %53 : vector<4x1xf32> -> vector<4x1xf32>
    %55 = vector.broadcast %54 : vector<4x1xf32> to vector<4x4xf32>
    %56 = arith.mulf %51, %55 : vector<4x4xf32>
    %57 = arith.truncf %56 : vector<4x4xf32> to vector<4x4xbf16>
    %cst_25 = arith.constant dense<0.000000e+00> : vector<4x32xf32>
    %58 = tpu.matmul %57, %43, %cst_25 {dimension_numbers = #tpu.dot_dimension_numbers<[1], [0], [0], [1], [0, 0, 1, 1], [], []>} : vector<4x4xbf16>, vector<4x32xbf16>, vector<4x32xf32> -> vector<4x32xf32>
    %59 = arith.truncf %58 : vector<4x32xf32> to vector<4x32xbf16>
    %60 = vector.extract_strided_slice %4 {offsets = [32, 0], sizes = [32, 128], strides = [1, 1]} : vector<128x128xbf16> to vector<32x128xbf16>
    %cst_26 = arith.constant dense<0.000000e+00> : vector<4x128xf32>
    %61 = tpu.matmul %59, %60, %cst_26 {dimension_numbers = #tpu.dot_dimension_numbers<[1], [0], [0], [1], [0, 0, 1, 1], [], []>} : vector<4x32xbf16>, vector<32x128xbf16>, vector<4x128xf32> -> vector<4x128xf32>
    %62 = arith.addf %37, %61 : vector<4x128xf32>
    %63 = vector.extract_strided_slice %11 {offsets = [0, 64], sizes = [4, 32], strides = [1, 1]} : vector<4x384xf32> to vector<4x32xf32>
    %64 = arith.truncf %63 : vector<4x32xf32> to vector<4x32xbf16>
    %65 = vector.extract_strided_slice %11 {offsets = [0, 192], sizes = [4, 32], strides = [1, 1]} : vector<4x384xf32> to vector<4x32xf32>
    %66 = arith.truncf %65 : vector<4x32xf32> to vector<4x32xbf16>
    %67 = vector.extract_strided_slice %11 {offsets = [0, 320], sizes = [4, 32], strides = [1, 1]} : vector<4x384xf32> to vector<4x32xf32>
    %68 = arith.truncf %67 : vector<4x32xf32> to vector<4x32xbf16>
    %cst_27 = arith.constant dense<0.000000e+00> : vector<4x4xf32>
    %69 = tpu.matmul %64, %66, %cst_27 {dimension_numbers = #tpu.dot_dimension_numbers<[1], [1], [0], [0], [0, 0, 1, 0], [], []>} : vector<4x32xbf16>, vector<4x32xbf16>, vector<4x4xf32> -> vector<4x4xf32>
    %cst_28 = arith.constant 0.176776692 : f32
    %70 = vector.broadcast %cst_28 : f32 to vector<4x4xf32>
    %71 = arith.mulf %69, %70 : vector<4x4xf32>
    %cst_29 = arith.constant dense<0xFF800000> : vector<4xf32>
    %72 = vector.multi_reduction <maximumf>, %71, %cst_29 [1] : vector<4x4xf32> to vector<4xf32>
    %73 = vector.shape_cast %72 : vector<4xf32> to vector<4x1xf32>
    %74 = vector.broadcast %73 : vector<4x1xf32> to vector<4x4xf32>
    %75 = arith.subf %71, %74 : vector<4x4xf32>
    %76 = math.exp %75 : vector<4x4xf32>
    %cst_30 = arith.constant dense<0.000000e+00> : vector<4xf32>
    %77 = vector.multi_reduction <add>, %76, %cst_30 [1] : vector<4x4xf32> to vector<4xf32>
    %78 = vector.shape_cast %77 : vector<4xf32> to vector<4x1xf32>
    %79 = tpu.reciprocal %78 : vector<4x1xf32> -> vector<4x1xf32>
    %80 = vector.broadcast %79 : vector<4x1xf32> to vector<4x4xf32>
    %81 = arith.mulf %76, %80 : vector<4x4xf32>
    %82 = arith.truncf %81 : vector<4x4xf32> to vector<4x4xbf16>
    %cst_31 = arith.constant dense<0.000000e+00> : vector<4x32xf32>
    %83 = tpu.matmul %82, %68, %cst_31 {dimension_numbers = #tpu.dot_dimension_numbers<[1], [0], [0], [1], [0, 0, 1, 1], [], []>} : vector<4x4xbf16>, vector<4x32xbf16>, vector<4x32xf32> -> vector<4x32xf32>
    %84 = arith.truncf %83 : vector<4x32xf32> to vector<4x32xbf16>
    %85 = vector.extract_strided_slice %4 {offsets = [64, 0], sizes = [32, 128], strides = [1, 1]} : vector<128x128xbf16> to vector<32x128xbf16>
    %cst_32 = arith.constant dense<0.000000e+00> : vector<4x128xf32>
    %86 = tpu.matmul %84, %85, %cst_32 {dimension_numbers = #tpu.dot_dimension_numbers<[1], [0], [0], [1], [0, 0, 1, 1], [], []>} : vector<4x32xbf16>, vector<32x128xbf16>, vector<4x128xf32> -> vector<4x128xf32>
    %87 = arith.addf %62, %86 : vector<4x128xf32>
    %88 = vector.extract_strided_slice %11 {offsets = [0, 96], sizes = [4, 32], strides = [1, 1]} : vector<4x384xf32> to vector<4x32xf32>
    %89 = arith.truncf %88 : vector<4x32xf32> to vector<4x32xbf16>
    %90 = vector.extract_strided_slice %11 {offsets = [0, 224], sizes = [4, 32], strides = [1, 1]} : vector<4x384xf32> to vector<4x32xf32>
    %91 = arith.truncf %90 : vector<4x32xf32> to vector<4x32xbf16>
    %92 = vector.extract_strided_slice %11 {offsets = [0, 352], sizes = [4, 32], strides = [1, 1]} : vector<4x384xf32> to vector<4x32xf32>
    %93 = arith.truncf %92 : vector<4x32xf32> to vector<4x32xbf16>
    %cst_33 = arith.constant dense<0.000000e+00> : vector<4x4xf32>
    %94 = tpu.matmul %89, %91, %cst_33 {dimension_numbers = #tpu.dot_dimension_numbers<[1], [1], [0], [0], [0, 0, 1, 0], [], []>} : vector<4x32xbf16>, vector<4x32xbf16>, vector<4x4xf32> -> vector<4x4xf32>
    %cst_34 = arith.constant 0.176776692 : f32
    %95 = vector.broadcast %cst_34 : f32 to vector<4x4xf32>
    %96 = arith.mulf %94, %95 : vector<4x4xf32>
    %cst_35 = arith.constant dense<0xFF800000> : vector<4xf32>
    %97 = vector.multi_reduction <maximumf>, %96, %cst_35 [1] : vector<4x4xf32> to vector<4xf32>
    %98 = vector.shape_cast %97 : vector<4xf32> to vector<4x1xf32>
    %99 = vector.broadcast %98 : vector<4x1xf32> to vector<4x4xf32>
    %100 = arith.subf %96, %99 : vector<4x4xf32>
    %101 = math.exp %100 : vector<4x4xf32>
    %cst_36 = arith.constant dense<0.000000e+00> : vector<4xf32>
    %102 = vector.multi_reduction <add>, %101, %cst_36 [1] : vector<4x4xf32> to vector<4xf32>
    %103 = vector.shape_cast %102 : vector<4xf32> to vector<4x1xf32>
    %104 = tpu.reciprocal %103 : vector<4x1xf32> -> vector<4x1xf32>
    %105 = vector.broadcast %104 : vector<4x1xf32> to vector<4x4xf32>
    %106 = arith.mulf %101, %105 : vector<4x4xf32>
    %107 = arith.truncf %106 : vector<4x4xf32> to vector<4x4xbf16>
    %cst_37 = arith.constant dense<0.000000e+00> : vector<4x32xf32>
    %108 = tpu.matmul %107, %93, %cst_37 {dimension_numbers = #tpu.dot_dimension_numbers<[1], [0], [0], [1], [0, 0, 1, 1], [], []>} : vector<4x4xbf16>, vector<4x32xbf16>, vector<4x32xf32> -> vector<4x32xf32>
    %109 = arith.truncf %108 : vector<4x32xf32> to vector<4x32xbf16>
    %110 = vector.extract_strided_slice %4 {offsets = [96, 0], sizes = [32, 128], strides = [1, 1]} : vector<128x128xbf16> to vector<32x128xbf16>
    %cst_38 = arith.constant dense<0.000000e+00> : vector<4x128xf32>
    %111 = tpu.matmul %109, %110, %cst_38 {dimension_numbers = #tpu.dot_dimension_numbers<[1], [0], [0], [1], [0, 0, 1, 1], [], []>} : vector<4x32xbf16>, vector<32x128xbf16>, vector<4x128xf32> -> vector<4x128xf32>
    %112 = arith.addf %87, %111 : vector<4x128xf32>
    %113 = vector.broadcast %5 : vector<1x128xf32> to vector<4x128xf32>
    %114 = arith.addf %112, %113 : vector<4x128xf32>
    %115 = arith.addf %1, %114 : vector<4x128xf32>
    %cst_39 = arith.constant dense<0.000000e+00> : vector<4xf32>
    %116 = vector.multi_reduction <add>, %115, %cst_39 [1] : vector<4x128xf32> to vector<4xf32>
    %117 = vector.shape_cast %116 : vector<4xf32> to vector<4x1xf32>
    %cst_40 = arith.constant 1.280000e+02 : f32
    %118 = vector.broadcast %cst_40 : f32 to vector<4x1xf32>
    %119 = arith.divf %117, %118 : vector<4x1xf32>
    %120 = vector.broadcast %119 : vector<4x1xf32> to vector<4x128xf32>
    %121 = arith.subf %115, %120 : vector<4x128xf32>
    %122 = arith.mulf %121, %121 : vector<4x128xf32>
    %cst_41 = arith.constant dense<0.000000e+00> : vector<4xf32>
    %123 = vector.multi_reduction <add>, %122, %cst_41 [1] : vector<4x128xf32> to vector<4xf32>
    %124 = vector.shape_cast %123 : vector<4xf32> to vector<4x1xf32>
    %cst_42 = arith.constant 1.280000e+02 : f32
    %125 = vector.broadcast %cst_42 : f32 to vector<4x1xf32>
    %126 = arith.divf %124, %125 : vector<4x1xf32>
    %cst_43 = arith.constant 9.99999974E-6 : f32
    %127 = vector.broadcast %cst_43 : f32 to vector<4x1xf32>
    %128 = arith.addf %126, %127 : vector<4x1xf32>
    %129 = math.rsqrt %128 : vector<4x1xf32>
    %130 = vector.broadcast %129 : vector<4x1xf32> to vector<4x128xf32>
    %131 = arith.mulf %121, %130 : vector<4x128xf32>
    %132 = vector.broadcast %6 : vector<1x128xf32> to vector<4x128xf32>
    %133 = arith.mulf %131, %132 : vector<4x128xf32>
    %134 = vector.broadcast %7 : vector<1x128xf32> to vector<4x128xf32>
    %135 = arith.addf %133, %134 : vector<4x128xf32>
    %c0_44 = arith.constant 0 : index
    %c0_45 = arith.constant 0 : index
    %c0_46 = arith.constant 0 : index
    %136 = vector.load %arg8[%c0_44, %c0_45, %c0_46] : memref<1x4x128xf32, #tpu.memory_space<vmem>>, vector<1x4x128xf32>
    %137 = vector.shape_cast %136 : vector<1x4x128xf32> to vector<4x128xf32>
    %138 = vector.shape_cast %135 : vector<4x128xf32> to vector<1x4x128xf32>
    tpu.vector_store %arg8[%c0_44, %c0_45, %c0_46], %138 {strides = array<i32>} : memref<1x4x128xf32, #tpu.memory_space<vmem>>, vector<1x4x128xf32>,
    return
  }
  func.func @transform_0(%arg0: i32) -> (i32, i32, i32) {
    %c0_i32 = arith.constant 0 : i32
    %c0_i32_0 = arith.constant 0 : i32
    %c0_i32_1 = arith.constant 0 : i32
    return %arg0, %c0_i32, %c0_i32_0 : i32, i32, i32
  }
  func.func @transform_1(%arg0: i32) -> (i32, i32) {
    %c0_i32 = arith.constant 0 : i32
    %c0_i32_0 = arith.constant 0 : i32
    %c0_i32_1 = arith.constant 0 : i32
    return %c0_i32, %c0_i32_0 : i32, i32
  }
  func.func @transform_2(%arg0: i32) -> (i32, i32) {
    %c0_i32 = arith.constant 0 : i32
    %c0_i32_0 = arith.constant 0 : i32
    %c0_i32_1 = arith.constant 0 : i32
    return %c0_i32, %c0_i32_0 : i32, i32
  }
  func.func @transform_3(%arg0: i32) -> (i32, i32) {
    %c0_i32 = arith.constant 0 : i32
    %c0_i32_0 = arith.constant 0 : i32
    %c0_i32_1 = arith.constant 0 : i32
    return %c0_i32, %c0_i32_0 : i32, i32
  }
  func.func @transform_4(%arg0: i32) -> (i32, i32) {
    %c0_i32 = arith.constant 0 : i32
    %c0_i32_0 = arith.constant 0 : i32
    %c0_i32_1 = arith.constant 0 : i32
    return %c0_i32, %c0_i32_0 : i32, i32
  }
  func.func @transform_5(%arg0: i32) -> (i32, i32) {
    %c0_i32 = arith.constant 0 : i32
    %c0_i32_0 = arith.constant 0 : i32
    %c0_i32_1 = arith.constant 0 : i32
    return %c0_i32, %c0_i32_0 : i32, i32
  }
  func.func @transform_6(%arg0: i32) -> (i32, i32) {
    %c0_i32 = arith.constant 0 : i32
    %c0_i32_0 = arith.constant 0 : i32
    %c0_i32_1 = arith.constant 0 : i32
    return %c0_i32, %c0_i32_0 : i32, i32
  }
  func.func @transform_7(%arg0: i32) -> (i32, i32, i32) {
    %c0_i32 = arith.constant 0 : i32
    %c0_i32_0 = arith.constant 0 : i32
    %c0_i32_1 = arith.constant 0 : i32
    return %arg0, %c0_i32, %c0_i32_0 : i32, i32, i32
  }
}

module attributes {stable_mosaic.version = 11 : i64} {
  func.func @_mha_kernel_mask(%arg0: i32, %arg1: memref<1x8x128xf32, #tpu.memory_space<vmem>>, %arg2: memref<1x1x8xf32, #tpu.memory_space<vmem>>, %arg3: memref<128x384xbf16, #tpu.memory_space<vmem>>, %arg4: memref<1x384xf32, #tpu.memory_space<vmem>>, %arg5: memref<128x128xbf16, #tpu.memory_space<vmem>>, %arg6: memref<1x128xf32, #tpu.memory_space<vmem>>, %arg7: memref<1x128xf32, #tpu.memory_space<vmem>>, %arg8: memref<1x128xf32, #tpu.memory_space<vmem>>, %arg9: memref<1x8x128xf32, #tpu.memory_space<vmem>>) attributes {dimension_semantics = [#tpu.dimension_semantics<parallel>], iteration_bounds = array<i64: 2>, scalar_prefetch = 0 : i64, scratch_operands = 0 : i64, tpu.core_type = #tpu.core_type<tc>, window_params = [{transform_indices = @transform_0, window_bounds = array<i64: 1, 8, 128>}, {transform_indices = @transform_1, window_bounds = array<i64: 1, 1, 8>}, {pipeline_mode = #tpu.pipeline_mode<synchronous>, transform_indices = @transform_2, window_bounds = array<i64: 128, 384>}, {pipeline_mode = #tpu.pipeline_mode<synchronous>, transform_indices = @transform_3, window_bounds = array<i64: 1, 384>}, {pipeline_mode = #tpu.pipeline_mode<synchronous>, transform_indices = @transform_4, window_bounds = array<i64: 128, 128>}, {pipeline_mode = #tpu.pipeline_mode<synchronous>, transform_indices = @transform_5, window_bounds = array<i64: 1, 128>}, {pipeline_mode = #tpu.pipeline_mode<synchronous>, transform_indices = @transform_6, window_bounds = array<i64: 1, 128>}, {pipeline_mode = #tpu.pipeline_mode<synchronous>, transform_indices = @transform_7, window_bounds = array<i64: 1, 128>}, {transform_indices = @transform_8, window_bounds = array<i64: 1, 8, 128>}]} {
    %c0 = arith.constant 0 : index
    %c0_0 = arith.constant 0 : index
    %c0_1 = arith.constant 0 : index
    %0 = vector.load %arg1[%c0, %c0_0, %c0_1] : memref<1x8x128xf32, #tpu.memory_space<vmem>>, vector<1x8x128xf32>
    %1 = vector.shape_cast %0 : vector<1x8x128xf32> to vector<8x128xf32>
    %c0_2 = arith.constant 0 : index
    %c0_3 = arith.constant 0 : index
    %c0_4 = arith.constant 0 : index
    %2 = vector.load %arg2[%c0_2, %c0_3, %c0_4] : memref<1x1x8xf32, #tpu.memory_space<vmem>>, vector<1x1x8xf32>
    %3 = vector.shape_cast %2 : vector<1x1x8xf32> to vector<1x8xf32>
    %c0_5 = arith.constant 0 : index
    %c0_6 = arith.constant 0 : index
    %4 = vector.load %arg3[%c0_5, %c0_6] : memref<128x384xbf16, #tpu.memory_space<vmem>>, vector<128x384xbf16>
    %c0_7 = arith.constant 0 : index
    %c0_8 = arith.constant 0 : index
    %5 = vector.load %arg4[%c0_7, %c0_8] : memref<1x384xf32, #tpu.memory_space<vmem>>, vector<1x384xf32>
    %c0_9 = arith.constant 0 : index
    %c0_10 = arith.constant 0 : index
    %6 = vector.load %arg5[%c0_9, %c0_10] : memref<128x128xbf16, #tpu.memory_space<vmem>>, vector<128x128xbf16>
    %c0_11 = arith.constant 0 : index
    %c0_12 = arith.constant 0 : index
    %7 = vector.load %arg6[%c0_11, %c0_12] : memref<1x128xf32, #tpu.memory_space<vmem>>, vector<1x128xf32>
    %c0_13 = arith.constant 0 : index
    %c0_14 = arith.constant 0 : index
    %8 = vector.load %arg7[%c0_13, %c0_14] : memref<1x128xf32, #tpu.memory_space<vmem>>, vector<1x128xf32>
    %c0_15 = arith.constant 0 : index
    %c0_16 = arith.constant 0 : index
    %9 = vector.load %arg8[%c0_15, %c0_16] : memref<1x128xf32, #tpu.memory_space<vmem>>, vector<1x128xf32>
    %10 = arith.truncf %1 : vector<8x128xf32> to vector<8x128xbf16>
    %cst = arith.constant dense<0.000000e+00> : vector<8x384xf32>
    %11 = tpu.matmul %10, %4, %cst {dimension_numbers = #tpu.dot_dimension_numbers<[1], [0], [0], [1], [0, 0, 1, 1], [], []>} : vector<8x128xbf16>, vector<128x384xbf16>, vector<8x384xf32> -> vector<8x384xf32>
    %12 = vector.broadcast %5 : vector<1x384xf32> to vector<8x384xf32>
    %13 = arith.addf %11, %12 : vector<8x384xf32>
    %cst_17 = arith.constant 0.000000e+00 : f32
    %14 = vector.broadcast %cst_17 : f32 to vector<8x128xf32>
    %15 = vector.extract_strided_slice %13 {offsets = [0, 0], sizes = [8, 32], strides = [1, 1]} : vector<8x384xf32> to vector<8x32xf32>
    %16 = arith.truncf %15 : vector<8x32xf32> to vector<8x32xbf16>
    %17 = vector.extract_strided_slice %13 {offsets = [0, 128], sizes = [8, 32], strides = [1, 1]} : vector<8x384xf32> to vector<8x32xf32>
    %18 = arith.truncf %17 : vector<8x32xf32> to vector<8x32xbf16>
    %19 = vector.extract_strided_slice %13 {offsets = [0, 256], sizes = [8, 32], strides = [1, 1]} : vector<8x384xf32> to vector<8x32xf32>
    %20 = arith.truncf %19 : vector<8x32xf32> to vector<8x32xbf16>
    %cst_18 = arith.constant dense<0.000000e+00> : vector<8x8xf32>
    %21 = tpu.matmul %16, %18, %cst_18 {dimension_numbers = #tpu.dot_dimension_numbers<[1], [1], [0], [0], [0, 0, 1, 0], [], []>} : vector<8x32xbf16>, vector<8x32xbf16>, vector<8x8xf32> -> vector<8x8xf32>
    %cst_19 = arith.constant 0.176776692 : f32
    %22 = vector.broadcast %cst_19 : f32 to vector<8x8xf32>
    %23 = arith.mulf %21, %22 : vector<8x8xf32>
    %cst_20 = arith.constant 5.000000e-01 : f32
    %24 = vector.broadcast %cst_20 : f32 to vector<1x8xf32>
    %25 = arith.cmpf ogt, %3, %24 : vector<1x8xf32>
    %cst_21 = arith.constant -1.000000e+09 : f32
    %26 = vector.shape_cast %25 : vector<1x8xi1> to vector<1x8xi1>
    %27 = vector.broadcast %26 : vector<1x8xi1> to vector<8x8xi1>
    %28 = vector.broadcast %cst_21 : f32 to vector<8x8xf32>
    %29 = arith.select %27, %28, %23 : vector<8x8xi1>, vector<8x8xf32>
    %cst_22 = arith.constant dense<0xFF800000> : vector<8xf32>
    %30 = vector.multi_reduction <maximumf>, %29, %cst_22 [1] : vector<8x8xf32> to vector<8xf32>
    %31 = vector.shape_cast %30 : vector<8xf32> to vector<8x1xf32>
    %32 = vector.broadcast %31 : vector<8x1xf32> to vector<8x8xf32>
    %33 = arith.subf %29, %32 : vector<8x8xf32>
    %34 = math.exp %33 : vector<8x8xf32>
    %cst_23 = arith.constant dense<0.000000e+00> : vector<8xf32>
    %35 = vector.multi_reduction <add>, %34, %cst_23 [1] : vector<8x8xf32> to vector<8xf32>
    %36 = vector.shape_cast %35 : vector<8xf32> to vector<8x1xf32>
    %37 = tpu.reciprocal %36 : vector<8x1xf32> -> vector<8x1xf32>
    %38 = vector.broadcast %37 : vector<8x1xf32> to vector<8x8xf32>
    %39 = arith.mulf %34, %38 : vector<8x8xf32>
    %40 = arith.truncf %39 : vector<8x8xf32> to vector<8x8xbf16>
    %cst_24 = arith.constant dense<0.000000e+00> : vector<8x32xf32>
    %41 = tpu.matmul %40, %20, %cst_24 {dimension_numbers = #tpu.dot_dimension_numbers<[1], [0], [0], [1], [0, 0, 1, 1], [], []>} : vector<8x8xbf16>, vector<8x32xbf16>, vector<8x32xf32> -> vector<8x32xf32>
    %42 = arith.truncf %41 : vector<8x32xf32> to vector<8x32xbf16>
    %43 = vector.extract_strided_slice %6 {offsets = [0, 0], sizes = [32, 128], strides = [1, 1]} : vector<128x128xbf16> to vector<32x128xbf16>
    %cst_25 = arith.constant dense<0.000000e+00> : vector<8x128xf32>
    %44 = tpu.matmul %42, %43, %cst_25 {dimension_numbers = #tpu.dot_dimension_numbers<[1], [0], [0], [1], [0, 0, 1, 1], [], []>} : vector<8x32xbf16>, vector<32x128xbf16>, vector<8x128xf32> -> vector<8x128xf32>
    %45 = arith.addf %14, %44 : vector<8x128xf32>
    %46 = vector.extract_strided_slice %13 {offsets = [0, 32], sizes = [8, 32], strides = [1, 1]} : vector<8x384xf32> to vector<8x32xf32>
    %47 = arith.truncf %46 : vector<8x32xf32> to vector<8x32xbf16>
    %48 = vector.extract_strided_slice %13 {offsets = [0, 160], sizes = [8, 32], strides = [1, 1]} : vector<8x384xf32> to vector<8x32xf32>
    %49 = arith.truncf %48 : vector<8x32xf32> to vector<8x32xbf16>
    %50 = vector.extract_strided_slice %13 {offsets = [0, 288], sizes = [8, 32], strides = [1, 1]} : vector<8x384xf32> to vector<8x32xf32>
    %51 = arith.truncf %50 : vector<8x32xf32> to vector<8x32xbf16>
    %cst_26 = arith.constant dense<0.000000e+00> : vector<8x8xf32>
    %52 = tpu.matmul %47, %49, %cst_26 {dimension_numbers = #tpu.dot_dimension_numbers<[1], [1], [0], [0], [0, 0, 1, 0], [], []>} : vector<8x32xbf16>, vector<8x32xbf16>, vector<8x8xf32> -> vector<8x8xf32>
    %cst_27 = arith.constant 0.176776692 : f32
    %53 = vector.broadcast %cst_27 : f32 to vector<8x8xf32>
    %54 = arith.mulf %52, %53 : vector<8x8xf32>
    %cst_28 = arith.constant 5.000000e-01 : f32
    %55 = vector.broadcast %cst_28 : f32 to vector<1x8xf32>
    %56 = arith.cmpf ogt, %3, %55 : vector<1x8xf32>
    %cst_29 = arith.constant -1.000000e+09 : f32
    %57 = vector.shape_cast %56 : vector<1x8xi1> to vector<1x8xi1>
    %58 = vector.broadcast %57 : vector<1x8xi1> to vector<8x8xi1>
    %59 = vector.broadcast %cst_29 : f32 to vector<8x8xf32>
    %60 = arith.select %58, %59, %54 : vector<8x8xi1>, vector<8x8xf32>
    %cst_30 = arith.constant dense<0xFF800000> : vector<8xf32>
    %61 = vector.multi_reduction <maximumf>, %60, %cst_30 [1] : vector<8x8xf32> to vector<8xf32>
    %62 = vector.shape_cast %61 : vector<8xf32> to vector<8x1xf32>
    %63 = vector.broadcast %62 : vector<8x1xf32> to vector<8x8xf32>
    %64 = arith.subf %60, %63 : vector<8x8xf32>
    %65 = math.exp %64 : vector<8x8xf32>
    %cst_31 = arith.constant dense<0.000000e+00> : vector<8xf32>
    %66 = vector.multi_reduction <add>, %65, %cst_31 [1] : vector<8x8xf32> to vector<8xf32>
    %67 = vector.shape_cast %66 : vector<8xf32> to vector<8x1xf32>
    %68 = tpu.reciprocal %67 : vector<8x1xf32> -> vector<8x1xf32>
    %69 = vector.broadcast %68 : vector<8x1xf32> to vector<8x8xf32>
    %70 = arith.mulf %65, %69 : vector<8x8xf32>
    %71 = arith.truncf %70 : vector<8x8xf32> to vector<8x8xbf16>
    %cst_32 = arith.constant dense<0.000000e+00> : vector<8x32xf32>
    %72 = tpu.matmul %71, %51, %cst_32 {dimension_numbers = #tpu.dot_dimension_numbers<[1], [0], [0], [1], [0, 0, 1, 1], [], []>} : vector<8x8xbf16>, vector<8x32xbf16>, vector<8x32xf32> -> vector<8x32xf32>
    %73 = arith.truncf %72 : vector<8x32xf32> to vector<8x32xbf16>
    %74 = vector.extract_strided_slice %6 {offsets = [32, 0], sizes = [32, 128], strides = [1, 1]} : vector<128x128xbf16> to vector<32x128xbf16>
    %cst_33 = arith.constant dense<0.000000e+00> : vector<8x128xf32>
    %75 = tpu.matmul %73, %74, %cst_33 {dimension_numbers = #tpu.dot_dimension_numbers<[1], [0], [0], [1], [0, 0, 1, 1], [], []>} : vector<8x32xbf16>, vector<32x128xbf16>, vector<8x128xf32> -> vector<8x128xf32>
    %76 = arith.addf %45, %75 : vector<8x128xf32>
    %77 = vector.extract_strided_slice %13 {offsets = [0, 64], sizes = [8, 32], strides = [1, 1]} : vector<8x384xf32> to vector<8x32xf32>
    %78 = arith.truncf %77 : vector<8x32xf32> to vector<8x32xbf16>
    %79 = vector.extract_strided_slice %13 {offsets = [0, 192], sizes = [8, 32], strides = [1, 1]} : vector<8x384xf32> to vector<8x32xf32>
    %80 = arith.truncf %79 : vector<8x32xf32> to vector<8x32xbf16>
    %81 = vector.extract_strided_slice %13 {offsets = [0, 320], sizes = [8, 32], strides = [1, 1]} : vector<8x384xf32> to vector<8x32xf32>
    %82 = arith.truncf %81 : vector<8x32xf32> to vector<8x32xbf16>
    %cst_34 = arith.constant dense<0.000000e+00> : vector<8x8xf32>
    %83 = tpu.matmul %78, %80, %cst_34 {dimension_numbers = #tpu.dot_dimension_numbers<[1], [1], [0], [0], [0, 0, 1, 0], [], []>} : vector<8x32xbf16>, vector<8x32xbf16>, vector<8x8xf32> -> vector<8x8xf32>
    %cst_35 = arith.constant 0.176776692 : f32
    %84 = vector.broadcast %cst_35 : f32 to vector<8x8xf32>
    %85 = arith.mulf %83, %84 : vector<8x8xf32>
    %cst_36 = arith.constant 5.000000e-01 : f32
    %86 = vector.broadcast %cst_36 : f32 to vector<1x8xf32>
    %87 = arith.cmpf ogt, %3, %86 : vector<1x8xf32>
    %cst_37 = arith.constant -1.000000e+09 : f32
    %88 = vector.shape_cast %87 : vector<1x8xi1> to vector<1x8xi1>
    %89 = vector.broadcast %88 : vector<1x8xi1> to vector<8x8xi1>
    %90 = vector.broadcast %cst_37 : f32 to vector<8x8xf32>
    %91 = arith.select %89, %90, %85 : vector<8x8xi1>, vector<8x8xf32>
    %cst_38 = arith.constant dense<0xFF800000> : vector<8xf32>
    %92 = vector.multi_reduction <maximumf>, %91, %cst_38 [1] : vector<8x8xf32> to vector<8xf32>
    %93 = vector.shape_cast %92 : vector<8xf32> to vector<8x1xf32>
    %94 = vector.broadcast %93 : vector<8x1xf32> to vector<8x8xf32>
    %95 = arith.subf %91, %94 : vector<8x8xf32>
    %96 = math.exp %95 : vector<8x8xf32>
    %cst_39 = arith.constant dense<0.000000e+00> : vector<8xf32>
    %97 = vector.multi_reduction <add>, %96, %cst_39 [1] : vector<8x8xf32> to vector<8xf32>
    %98 = vector.shape_cast %97 : vector<8xf32> to vector<8x1xf32>
    %99 = tpu.reciprocal %98 : vector<8x1xf32> -> vector<8x1xf32>
    %100 = vector.broadcast %99 : vector<8x1xf32> to vector<8x8xf32>
    %101 = arith.mulf %96, %100 : vector<8x8xf32>
    %102 = arith.truncf %101 : vector<8x8xf32> to vector<8x8xbf16>
    %cst_40 = arith.constant dense<0.000000e+00> : vector<8x32xf32>
    %103 = tpu.matmul %102, %82, %cst_40 {dimension_numbers = #tpu.dot_dimension_numbers<[1], [0], [0], [1], [0, 0, 1, 1], [], []>} : vector<8x8xbf16>, vector<8x32xbf16>, vector<8x32xf32> -> vector<8x32xf32>
    %104 = arith.truncf %103 : vector<8x32xf32> to vector<8x32xbf16>
    %105 = vector.extract_strided_slice %6 {offsets = [64, 0], sizes = [32, 128], strides = [1, 1]} : vector<128x128xbf16> to vector<32x128xbf16>
    %cst_41 = arith.constant dense<0.000000e+00> : vector<8x128xf32>
    %106 = tpu.matmul %104, %105, %cst_41 {dimension_numbers = #tpu.dot_dimension_numbers<[1], [0], [0], [1], [0, 0, 1, 1], [], []>} : vector<8x32xbf16>, vector<32x128xbf16>, vector<8x128xf32> -> vector<8x128xf32>
    %107 = arith.addf %76, %106 : vector<8x128xf32>
    %108 = vector.extract_strided_slice %13 {offsets = [0, 96], sizes = [8, 32], strides = [1, 1]} : vector<8x384xf32> to vector<8x32xf32>
    %109 = arith.truncf %108 : vector<8x32xf32> to vector<8x32xbf16>
    %110 = vector.extract_strided_slice %13 {offsets = [0, 224], sizes = [8, 32], strides = [1, 1]} : vector<8x384xf32> to vector<8x32xf32>
    %111 = arith.truncf %110 : vector<8x32xf32> to vector<8x32xbf16>
    %112 = vector.extract_strided_slice %13 {offsets = [0, 352], sizes = [8, 32], strides = [1, 1]} : vector<8x384xf32> to vector<8x32xf32>
    %113 = arith.truncf %112 : vector<8x32xf32> to vector<8x32xbf16>
    %cst_42 = arith.constant dense<0.000000e+00> : vector<8x8xf32>
    %114 = tpu.matmul %109, %111, %cst_42 {dimension_numbers = #tpu.dot_dimension_numbers<[1], [1], [0], [0], [0, 0, 1, 0], [], []>} : vector<8x32xbf16>, vector<8x32xbf16>, vector<8x8xf32> -> vector<8x8xf32>
    %cst_43 = arith.constant 0.176776692 : f32
    %115 = vector.broadcast %cst_43 : f32 to vector<8x8xf32>
    %116 = arith.mulf %114, %115 : vector<8x8xf32>
    %cst_44 = arith.constant 5.000000e-01 : f32
    %117 = vector.broadcast %cst_44 : f32 to vector<1x8xf32>
    %118 = arith.cmpf ogt, %3, %117 : vector<1x8xf32>
    %cst_45 = arith.constant -1.000000e+09 : f32
    %119 = vector.shape_cast %118 : vector<1x8xi1> to vector<1x8xi1>
    %120 = vector.broadcast %119 : vector<1x8xi1> to vector<8x8xi1>
    %121 = vector.broadcast %cst_45 : f32 to vector<8x8xf32>
    %122 = arith.select %120, %121, %116 : vector<8x8xi1>, vector<8x8xf32>
    %cst_46 = arith.constant dense<0xFF800000> : vector<8xf32>
    %123 = vector.multi_reduction <maximumf>, %122, %cst_46 [1] : vector<8x8xf32> to vector<8xf32>
    %124 = vector.shape_cast %123 : vector<8xf32> to vector<8x1xf32>
    %125 = vector.broadcast %124 : vector<8x1xf32> to vector<8x8xf32>
    %126 = arith.subf %122, %125 : vector<8x8xf32>
    %127 = math.exp %126 : vector<8x8xf32>
    %cst_47 = arith.constant dense<0.000000e+00> : vector<8xf32>
    %128 = vector.multi_reduction <add>, %127, %cst_47 [1] : vector<8x8xf32> to vector<8xf32>
    %129 = vector.shape_cast %128 : vector<8xf32> to vector<8x1xf32>
    %130 = tpu.reciprocal %129 : vector<8x1xf32> -> vector<8x1xf32>
    %131 = vector.broadcast %130 : vector<8x1xf32> to vector<8x8xf32>
    %132 = arith.mulf %127, %131 : vector<8x8xf32>
    %133 = arith.truncf %132 : vector<8x8xf32> to vector<8x8xbf16>
    %cst_48 = arith.constant dense<0.000000e+00> : vector<8x32xf32>
    %134 = tpu.matmul %133, %113, %cst_48 {dimension_numbers = #tpu.dot_dimension_numbers<[1], [0], [0], [1], [0, 0, 1, 1], [], []>} : vector<8x8xbf16>, vector<8x32xbf16>, vector<8x32xf32> -> vector<8x32xf32>
    %135 = arith.truncf %134 : vector<8x32xf32> to vector<8x32xbf16>
    %136 = vector.extract_strided_slice %6 {offsets = [96, 0], sizes = [32, 128], strides = [1, 1]} : vector<128x128xbf16> to vector<32x128xbf16>
    %cst_49 = arith.constant dense<0.000000e+00> : vector<8x128xf32>
    %137 = tpu.matmul %135, %136, %cst_49 {dimension_numbers = #tpu.dot_dimension_numbers<[1], [0], [0], [1], [0, 0, 1, 1], [], []>} : vector<8x32xbf16>, vector<32x128xbf16>, vector<8x128xf32> -> vector<8x128xf32>
    %138 = arith.addf %107, %137 : vector<8x128xf32>
    %139 = vector.broadcast %7 : vector<1x128xf32> to vector<8x128xf32>
    %140 = arith.addf %138, %139 : vector<8x128xf32>
    %141 = arith.addf %1, %140 : vector<8x128xf32>
    %cst_50 = arith.constant dense<0.000000e+00> : vector<8xf32>
    %142 = vector.multi_reduction <add>, %141, %cst_50 [1] : vector<8x128xf32> to vector<8xf32>
    %143 = vector.shape_cast %142 : vector<8xf32> to vector<8x1xf32>
    %cst_51 = arith.constant 1.280000e+02 : f32
    %144 = vector.broadcast %cst_51 : f32 to vector<8x1xf32>
    %145 = arith.divf %143, %144 : vector<8x1xf32>
    %146 = vector.broadcast %145 : vector<8x1xf32> to vector<8x128xf32>
    %147 = arith.subf %141, %146 : vector<8x128xf32>
    %148 = arith.mulf %147, %147 : vector<8x128xf32>
    %cst_52 = arith.constant dense<0.000000e+00> : vector<8xf32>
    %149 = vector.multi_reduction <add>, %148, %cst_52 [1] : vector<8x128xf32> to vector<8xf32>
    %150 = vector.shape_cast %149 : vector<8xf32> to vector<8x1xf32>
    %cst_53 = arith.constant 1.280000e+02 : f32
    %151 = vector.broadcast %cst_53 : f32 to vector<8x1xf32>
    %152 = arith.divf %150, %151 : vector<8x1xf32>
    %cst_54 = arith.constant 9.99999974E-6 : f32
    %153 = vector.broadcast %cst_54 : f32 to vector<8x1xf32>
    %154 = arith.addf %152, %153 : vector<8x1xf32>
    %155 = math.rsqrt %154 : vector<8x1xf32>
    %156 = vector.broadcast %155 : vector<8x1xf32> to vector<8x128xf32>
    %157 = arith.mulf %147, %156 : vector<8x128xf32>
    %158 = vector.broadcast %8 : vector<1x128xf32> to vector<8x128xf32>
    %159 = arith.mulf %157, %158 : vector<8x128xf32>
    %160 = vector.broadcast %9 : vector<1x128xf32> to vector<8x128xf32>
    %161 = arith.addf %159, %160 : vector<8x128xf32>
    %c0_55 = arith.constant 0 : index
    %c0_56 = arith.constant 0 : index
    %c0_57 = arith.constant 0 : index
    %162 = vector.load %arg9[%c0_55, %c0_56, %c0_57] : memref<1x8x128xf32, #tpu.memory_space<vmem>>, vector<1x8x128xf32>
    %163 = vector.shape_cast %162 : vector<1x8x128xf32> to vector<8x128xf32>
    %164 = vector.shape_cast %161 : vector<8x128xf32> to vector<1x8x128xf32>
    tpu.vector_store %arg9[%c0_55, %c0_56, %c0_57], %164 {strides = array<i32>} : memref<1x8x128xf32, #tpu.memory_space<vmem>>, vector<1x8x128xf32>,
    return
  }
  func.func @transform_0(%arg0: i32) -> (i32, i32, i32) {
    %c0_i32 = arith.constant 0 : i32
    %c0_i32_0 = arith.constant 0 : i32
    %c0_i32_1 = arith.constant 0 : i32
    return %arg0, %c0_i32, %c0_i32_0 : i32, i32, i32
  }
  func.func @transform_1(%arg0: i32) -> (i32, i32, i32) {
    %c0_i32 = arith.constant 0 : i32
    %c0_i32_0 = arith.constant 0 : i32
    %c0_i32_1 = arith.constant 0 : i32
    return %arg0, %c0_i32, %c0_i32_0 : i32, i32, i32
  }
  func.func @transform_2(%arg0: i32) -> (i32, i32) {
    %c0_i32 = arith.constant 0 : i32
    %c0_i32_0 = arith.constant 0 : i32
    %c0_i32_1 = arith.constant 0 : i32
    return %c0_i32, %c0_i32_0 : i32, i32
  }
  func.func @transform_3(%arg0: i32) -> (i32, i32) {
    %c0_i32 = arith.constant 0 : i32
    %c0_i32_0 = arith.constant 0 : i32
    %c0_i32_1 = arith.constant 0 : i32
    return %c0_i32, %c0_i32_0 : i32, i32
  }
  func.func @transform_4(%arg0: i32) -> (i32, i32) {
    %c0_i32 = arith.constant 0 : i32
    %c0_i32_0 = arith.constant 0 : i32
    %c0_i32_1 = arith.constant 0 : i32
    return %c0_i32, %c0_i32_0 : i32, i32
  }
  func.func @transform_5(%arg0: i32) -> (i32, i32) {
    %c0_i32 = arith.constant 0 : i32
    %c0_i32_0 = arith.constant 0 : i32
    %c0_i32_1 = arith.constant 0 : i32
    return %c0_i32, %c0_i32_0 : i32, i32
  }
  func.func @transform_6(%arg0: i32) -> (i32, i32) {
    %c0_i32 = arith.constant 0 : i32
    %c0_i32_0 = arith.constant 0 : i32
    %c0_i32_1 = arith.constant 0 : i32
    return %c0_i32, %c0_i32_0 : i32, i32
  }
  func.func @transform_7(%arg0: i32) -> (i32, i32) {
    %c0_i32 = arith.constant 0 : i32
    %c0_i32_0 = arith.constant 0 : i32
    %c0_i32_1 = arith.constant 0 : i32
    return %c0_i32, %c0_i32_0 : i32, i32
  }
  func.func @transform_8(%arg0: i32) -> (i32, i32, i32) {
    %c0_i32 = arith.constant 0 : i32
    %c0_i32_0 = arith.constant 0 : i32
    %c0_i32_1 = arith.constant 0 : i32
    return %arg0, %c0_i32, %c0_i32_0 : i32, i32, i32
  }
}

module attributes {stable_mosaic.version = 11 : i64} {
  func.func @_ffn_kernel_keep(%arg0: i32, %arg1: memref<1x8x128xf32, #tpu.memory_space<vmem>>, %arg2: memref<1x8x1xf32, #tpu.memory_space<vmem>>, %arg3: memref<128x256xbf16, #tpu.memory_space<vmem>>, %arg4: memref<1x256xf32, #tpu.memory_space<vmem>>, %arg5: memref<256x128xbf16, #tpu.memory_space<vmem>>, %arg6: memref<1x128xf32, #tpu.memory_space<vmem>>, %arg7: memref<1x128xf32, #tpu.memory_space<vmem>>, %arg8: memref<1x128xf32, #tpu.memory_space<vmem>>, %arg9: memref<1x8x128xf32, #tpu.memory_space<vmem>>) attributes {dimension_semantics = [#tpu.dimension_semantics<parallel>], iteration_bounds = array<i64: 2>, scalar_prefetch = 0 : i64, scratch_operands = 0 : i64, tpu.core_type = #tpu.core_type<tc>, window_params = [{transform_indices = @transform_0, window_bounds = array<i64: 1, 8, 128>}, {transform_indices = @transform_1, window_bounds = array<i64: 1, 8, 1>}, {pipeline_mode = #tpu.pipeline_mode<synchronous>, transform_indices = @transform_2, window_bounds = array<i64: 128, 256>}, {pipeline_mode = #tpu.pipeline_mode<synchronous>, transform_indices = @transform_3, window_bounds = array<i64: 1, 256>}, {pipeline_mode = #tpu.pipeline_mode<synchronous>, transform_indices = @transform_4, window_bounds = array<i64: 256, 128>}, {pipeline_mode = #tpu.pipeline_mode<synchronous>, transform_indices = @transform_5, window_bounds = array<i64: 1, 128>}, {pipeline_mode = #tpu.pipeline_mode<synchronous>, transform_indices = @transform_6, window_bounds = array<i64: 1, 128>}, {pipeline_mode = #tpu.pipeline_mode<synchronous>, transform_indices = @transform_7, window_bounds = array<i64: 1, 128>}, {transform_indices = @transform_8, window_bounds = array<i64: 1, 8, 128>}]} {
    %c0 = arith.constant 0 : index
    %c0_0 = arith.constant 0 : index
    %c0_1 = arith.constant 0 : index
    %0 = vector.load %arg1[%c0, %c0_0, %c0_1] : memref<1x8x128xf32, #tpu.memory_space<vmem>>, vector<1x8x128xf32>
    %1 = vector.shape_cast %0 : vector<1x8x128xf32> to vector<8x128xf32>
    %c0_2 = arith.constant 0 : index
    %c0_3 = arith.constant 0 : index
    %c0_4 = arith.constant 0 : index
    %2 = vector.load %arg2[%c0_2, %c0_3, %c0_4] : memref<1x8x1xf32, #tpu.memory_space<vmem>>, vector<1x8x1xf32>
    %3 = vector.shape_cast %2 : vector<1x8x1xf32> to vector<8x1xf32>
    %c0_5 = arith.constant 0 : index
    %c0_6 = arith.constant 0 : index
    %4 = vector.load %arg3[%c0_5, %c0_6] : memref<128x256xbf16, #tpu.memory_space<vmem>>, vector<128x256xbf16>
    %c0_7 = arith.constant 0 : index
    %c0_8 = arith.constant 0 : index
    %5 = vector.load %arg4[%c0_7, %c0_8] : memref<1x256xf32, #tpu.memory_space<vmem>>, vector<1x256xf32>
    %c0_9 = arith.constant 0 : index
    %c0_10 = arith.constant 0 : index
    %6 = vector.load %arg5[%c0_9, %c0_10] : memref<256x128xbf16, #tpu.memory_space<vmem>>, vector<256x128xbf16>
    %c0_11 = arith.constant 0 : index
    %c0_12 = arith.constant 0 : index
    %7 = vector.load %arg6[%c0_11, %c0_12] : memref<1x128xf32, #tpu.memory_space<vmem>>, vector<1x128xf32>
    %c0_13 = arith.constant 0 : index
    %c0_14 = arith.constant 0 : index
    %8 = vector.load %arg7[%c0_13, %c0_14] : memref<1x128xf32, #tpu.memory_space<vmem>>, vector<1x128xf32>
    %c0_15 = arith.constant 0 : index
    %c0_16 = arith.constant 0 : index
    %9 = vector.load %arg8[%c0_15, %c0_16] : memref<1x128xf32, #tpu.memory_space<vmem>>, vector<1x128xf32>
    %10 = arith.truncf %1 : vector<8x128xf32> to vector<8x128xbf16>
    %cst = arith.constant dense<0.000000e+00> : vector<8x256xf32>
    %11 = tpu.matmul %10, %4, %cst {dimension_numbers = #tpu.dot_dimension_numbers<[1], [0], [0], [1], [0, 0, 1, 1], [], []>} : vector<8x128xbf16>, vector<128x256xbf16>, vector<8x256xf32> -> vector<8x256xf32>
    %12 = vector.broadcast %5 : vector<1x256xf32> to vector<8x256xf32>
    %13 = arith.addf %11, %12 : vector<8x256xf32>
    %cst_17 = arith.constant 0.000000e+00 : f32
    %14 = vector.broadcast %cst_17 : f32 to vector<8x256xf32>
    %15 = arith.maximumf %13, %14 : vector<8x256xf32>
    %16 = arith.truncf %15 : vector<8x256xf32> to vector<8x256xbf16>
    %cst_18 = arith.constant dense<0.000000e+00> : vector<8x128xf32>
    %17 = tpu.matmul %16, %6, %cst_18 {dimension_numbers = #tpu.dot_dimension_numbers<[1], [0], [0], [1], [0, 0, 1, 1], [], []>} : vector<8x256xbf16>, vector<256x128xbf16>, vector<8x128xf32> -> vector<8x128xf32>
    %18 = vector.broadcast %7 : vector<1x128xf32> to vector<8x128xf32>
    %19 = arith.addf %17, %18 : vector<8x128xf32>
    %20 = arith.addf %1, %19 : vector<8x128xf32>
    %cst_19 = arith.constant dense<0.000000e+00> : vector<8xf32>
    %21 = vector.multi_reduction <add>, %20, %cst_19 [1] : vector<8x128xf32> to vector<8xf32>
    %22 = vector.shape_cast %21 : vector<8xf32> to vector<8x1xf32>
    %cst_20 = arith.constant 1.280000e+02 : f32
    %23 = vector.broadcast %cst_20 : f32 to vector<8x1xf32>
    %24 = arith.divf %22, %23 : vector<8x1xf32>
    %25 = vector.broadcast %24 : vector<8x1xf32> to vector<8x128xf32>
    %26 = arith.subf %20, %25 : vector<8x128xf32>
    %27 = arith.mulf %26, %26 : vector<8x128xf32>
    %cst_21 = arith.constant dense<0.000000e+00> : vector<8xf32>
    %28 = vector.multi_reduction <add>, %27, %cst_21 [1] : vector<8x128xf32> to vector<8xf32>
    %29 = vector.shape_cast %28 : vector<8xf32> to vector<8x1xf32>
    %cst_22 = arith.constant 1.280000e+02 : f32
    %30 = vector.broadcast %cst_22 : f32 to vector<8x1xf32>
    %31 = arith.divf %29, %30 : vector<8x1xf32>
    %cst_23 = arith.constant 9.99999974E-6 : f32
    %32 = vector.broadcast %cst_23 : f32 to vector<8x1xf32>
    %33 = arith.addf %31, %32 : vector<8x1xf32>
    %34 = math.rsqrt %33 : vector<8x1xf32>
    %35 = vector.broadcast %34 : vector<8x1xf32> to vector<8x128xf32>
    %36 = arith.mulf %26, %35 : vector<8x128xf32>
    %37 = vector.broadcast %8 : vector<1x128xf32> to vector<8x128xf32>
    %38 = arith.mulf %36, %37 : vector<8x128xf32>
    %39 = vector.broadcast %9 : vector<1x128xf32> to vector<8x128xf32>
    %40 = arith.addf %38, %39 : vector<8x128xf32>
    %41 = vector.broadcast %3 : vector<8x1xf32> to vector<8x128xf32>
    %42 = arith.mulf %40, %41 : vector<8x128xf32>
    %c0_24 = arith.constant 0 : index
    %c0_25 = arith.constant 0 : index
    %c0_26 = arith.constant 0 : index
    %43 = vector.load %arg9[%c0_24, %c0_25, %c0_26] : memref<1x8x128xf32, #tpu.memory_space<vmem>>, vector<1x8x128xf32>
    %44 = vector.shape_cast %43 : vector<1x8x128xf32> to vector<8x128xf32>
    %45 = vector.shape_cast %42 : vector<8x128xf32> to vector<1x8x128xf32>
    tpu.vector_store %arg9[%c0_24, %c0_25, %c0_26], %45 {strides = array<i32>} : memref<1x8x128xf32, #tpu.memory_space<vmem>>, vector<1x8x128xf32>,
    return
  }
  func.func @transform_0(%arg0: i32) -> (i32, i32, i32) {
    %c0_i32 = arith.constant 0 : i32
    %c0_i32_0 = arith.constant 0 : i32
    %c0_i32_1 = arith.constant 0 : i32
    return %arg0, %c0_i32, %c0_i32_0 : i32, i32, i32
  }
  func.func @transform_1(%arg0: i32) -> (i32, i32, i32) {
    %c0_i32 = arith.constant 0 : i32
    %c0_i32_0 = arith.constant 0 : i32
    %c0_i32_1 = arith.constant 0 : i32
    return %arg0, %c0_i32, %c0_i32_0 : i32, i32, i32
  }
  func.func @transform_2(%arg0: i32) -> (i32, i32) {
    %c0_i32 = arith.constant 0 : i32
    %c0_i32_0 = arith.constant 0 : i32
    %c0_i32_1 = arith.constant 0 : i32
    return %c0_i32, %c0_i32_0 : i32, i32
  }
  func.func @transform_3(%arg0: i32) -> (i32, i32) {
    %c0_i32 = arith.constant 0 : i32
    %c0_i32_0 = arith.constant 0 : i32
    %c0_i32_1 = arith.constant 0 : i32
    return %c0_i32, %c0_i32_0 : i32, i32
  }
  func.func @transform_4(%arg0: i32) -> (i32, i32) {
    %c0_i32 = arith.constant 0 : i32
    %c0_i32_0 = arith.constant 0 : i32
    %c0_i32_1 = arith.constant 0 : i32
    return %c0_i32, %c0_i32_0 : i32, i32
  }
  func.func @transform_5(%arg0: i32) -> (i32, i32) {
    %c0_i32 = arith.constant 0 : i32
    %c0_i32_0 = arith.constant 0 : i32
    %c0_i32_1 = arith.constant 0 : i32
    return %c0_i32, %c0_i32_0 : i32, i32
  }
  func.func @transform_6(%arg0: i32) -> (i32, i32) {
    %c0_i32 = arith.constant 0 : i32
    %c0_i32_0 = arith.constant 0 : i32
    %c0_i32_1 = arith.constant 0 : i32
    return %c0_i32, %c0_i32_0 : i32, i32
  }
  func.func @transform_7(%arg0: i32) -> (i32, i32) {
    %c0_i32 = arith.constant 0 : i32
    %c0_i32_0 = arith.constant 0 : i32
    %c0_i32_1 = arith.constant 0 : i32
    return %c0_i32, %c0_i32_0 : i32, i32
  }
  func.func @transform_8(%arg0: i32) -> (i32, i32, i32) {
    %c0_i32 = arith.constant 0 : i32
    %c0_i32_0 = arith.constant 0 : i32
    %c0_i32_1 = arith.constant 0 : i32
    return %arg0, %c0_i32, %c0_i32_0 : i32, i32, i32
  }
}

module attributes {stable_mosaic.version = 11 : i64} {
  func.func @_ffn_kernel_nokeep(%arg0: i32, %arg1: memref<1x4x128xf32, #tpu.memory_space<vmem>>, %arg2: memref<128x256xbf16, #tpu.memory_space<vmem>>, %arg3: memref<1x256xf32, #tpu.memory_space<vmem>>, %arg4: memref<256x128xbf16, #tpu.memory_space<vmem>>, %arg5: memref<1x128xf32, #tpu.memory_space<vmem>>, %arg6: memref<1x128xf32, #tpu.memory_space<vmem>>, %arg7: memref<1x128xf32, #tpu.memory_space<vmem>>, %arg8: memref<1x4x128xf32, #tpu.memory_space<vmem>>) attributes {dimension_semantics = [#tpu.dimension_semantics<parallel>], iteration_bounds = array<i64: 2>, scalar_prefetch = 0 : i64, scratch_operands = 0 : i64, tpu.core_type = #tpu.core_type<tc>, window_params = [{transform_indices = @transform_0, window_bounds = array<i64: 1, 4, 128>}, {pipeline_mode = #tpu.pipeline_mode<synchronous>, transform_indices = @transform_1, window_bounds = array<i64: 128, 256>}, {pipeline_mode = #tpu.pipeline_mode<synchronous>, transform_indices = @transform_2, window_bounds = array<i64: 1, 256>}, {pipeline_mode = #tpu.pipeline_mode<synchronous>, transform_indices = @transform_3, window_bounds = array<i64: 256, 128>}, {pipeline_mode = #tpu.pipeline_mode<synchronous>, transform_indices = @transform_4, window_bounds = array<i64: 1, 128>}, {pipeline_mode = #tpu.pipeline_mode<synchronous>, transform_indices = @transform_5, window_bounds = array<i64: 1, 128>}, {pipeline_mode = #tpu.pipeline_mode<synchronous>, transform_indices = @transform_6, window_bounds = array<i64: 1, 128>}, {transform_indices = @transform_7, window_bounds = array<i64: 1, 4, 128>}]} {
    %c0 = arith.constant 0 : index
    %c0_0 = arith.constant 0 : index
    %c0_1 = arith.constant 0 : index
    %0 = vector.load %arg1[%c0, %c0_0, %c0_1] : memref<1x4x128xf32, #tpu.memory_space<vmem>>, vector<1x4x128xf32>
    %1 = vector.shape_cast %0 : vector<1x4x128xf32> to vector<4x128xf32>
    %c0_2 = arith.constant 0 : index
    %c0_3 = arith.constant 0 : index
    %2 = vector.load %arg2[%c0_2, %c0_3] : memref<128x256xbf16, #tpu.memory_space<vmem>>, vector<128x256xbf16>
    %c0_4 = arith.constant 0 : index
    %c0_5 = arith.constant 0 : index
    %3 = vector.load %arg3[%c0_4, %c0_5] : memref<1x256xf32, #tpu.memory_space<vmem>>, vector<1x256xf32>
    %c0_6 = arith.constant 0 : index
    %c0_7 = arith.constant 0 : index
    %4 = vector.load %arg4[%c0_6, %c0_7] : memref<256x128xbf16, #tpu.memory_space<vmem>>, vector<256x128xbf16>
    %c0_8 = arith.constant 0 : index
    %c0_9 = arith.constant 0 : index
    %5 = vector.load %arg5[%c0_8, %c0_9] : memref<1x128xf32, #tpu.memory_space<vmem>>, vector<1x128xf32>
    %c0_10 = arith.constant 0 : index
    %c0_11 = arith.constant 0 : index
    %6 = vector.load %arg6[%c0_10, %c0_11] : memref<1x128xf32, #tpu.memory_space<vmem>>, vector<1x128xf32>
    %c0_12 = arith.constant 0 : index
    %c0_13 = arith.constant 0 : index
    %7 = vector.load %arg7[%c0_12, %c0_13] : memref<1x128xf32, #tpu.memory_space<vmem>>, vector<1x128xf32>
    %8 = arith.truncf %1 : vector<4x128xf32> to vector<4x128xbf16>
    %cst = arith.constant dense<0.000000e+00> : vector<4x256xf32>
    %9 = tpu.matmul %8, %2, %cst {dimension_numbers = #tpu.dot_dimension_numbers<[1], [0], [0], [1], [0, 0, 1, 1], [], []>} : vector<4x128xbf16>, vector<128x256xbf16>, vector<4x256xf32> -> vector<4x256xf32>
    %10 = vector.broadcast %3 : vector<1x256xf32> to vector<4x256xf32>
    %11 = arith.addf %9, %10 : vector<4x256xf32>
    %cst_14 = arith.constant 0.000000e+00 : f32
    %12 = vector.broadcast %cst_14 : f32 to vector<4x256xf32>
    %13 = arith.maximumf %11, %12 : vector<4x256xf32>
    %14 = arith.truncf %13 : vector<4x256xf32> to vector<4x256xbf16>
    %cst_15 = arith.constant dense<0.000000e+00> : vector<4x128xf32>
    %15 = tpu.matmul %14, %4, %cst_15 {dimension_numbers = #tpu.dot_dimension_numbers<[1], [0], [0], [1], [0, 0, 1, 1], [], []>} : vector<4x256xbf16>, vector<256x128xbf16>, vector<4x128xf32> -> vector<4x128xf32>
    %16 = vector.broadcast %5 : vector<1x128xf32> to vector<4x128xf32>
    %17 = arith.addf %15, %16 : vector<4x128xf32>
    %18 = arith.addf %1, %17 : vector<4x128xf32>
    %cst_16 = arith.constant dense<0.000000e+00> : vector<4xf32>
    %19 = vector.multi_reduction <add>, %18, %cst_16 [1] : vector<4x128xf32> to vector<4xf32>
    %20 = vector.shape_cast %19 : vector<4xf32> to vector<4x1xf32>
    %cst_17 = arith.constant 1.280000e+02 : f32
    %21 = vector.broadcast %cst_17 : f32 to vector<4x1xf32>
    %22 = arith.divf %20, %21 : vector<4x1xf32>
    %23 = vector.broadcast %22 : vector<4x1xf32> to vector<4x128xf32>
    %24 = arith.subf %18, %23 : vector<4x128xf32>
    %25 = arith.mulf %24, %24 : vector<4x128xf32>
    %cst_18 = arith.constant dense<0.000000e+00> : vector<4xf32>
    %26 = vector.multi_reduction <add>, %25, %cst_18 [1] : vector<4x128xf32> to vector<4xf32>
    %27 = vector.shape_cast %26 : vector<4xf32> to vector<4x1xf32>
    %cst_19 = arith.constant 1.280000e+02 : f32
    %28 = vector.broadcast %cst_19 : f32 to vector<4x1xf32>
    %29 = arith.divf %27, %28 : vector<4x1xf32>
    %cst_20 = arith.constant 9.99999974E-6 : f32
    %30 = vector.broadcast %cst_20 : f32 to vector<4x1xf32>
    %31 = arith.addf %29, %30 : vector<4x1xf32>
    %32 = math.rsqrt %31 : vector<4x1xf32>
    %33 = vector.broadcast %32 : vector<4x1xf32> to vector<4x128xf32>
    %34 = arith.mulf %24, %33 : vector<4x128xf32>
    %35 = vector.broadcast %6 : vector<1x128xf32> to vector<4x128xf32>
    %36 = arith.mulf %34, %35 : vector<4x128xf32>
    %37 = vector.broadcast %7 : vector<1x128xf32> to vector<4x128xf32>
    %38 = arith.addf %36, %37 : vector<4x128xf32>
    %c0_21 = arith.constant 0 : index
    %c0_22 = arith.constant 0 : index
    %c0_23 = arith.constant 0 : index
    %39 = vector.load %arg8[%c0_21, %c0_22, %c0_23] : memref<1x4x128xf32, #tpu.memory_space<vmem>>, vector<1x4x128xf32>
    %40 = vector.shape_cast %39 : vector<1x4x128xf32> to vector<4x128xf32>
    %41 = vector.shape_cast %38 : vector<4x128xf32> to vector<1x4x128xf32>
    tpu.vector_store %arg8[%c0_21, %c0_22, %c0_23], %41 {strides = array<i32>} : memref<1x4x128xf32, #tpu.memory_space<vmem>>, vector<1x4x128xf32>,
    return
  }
  func.func @transform_0(%arg0: i32) -> (i32, i32, i32) {
    %c0_i32 = arith.constant 0 : i32
    %c0_i32_0 = arith.constant 0 : i32
    %c0_i32_1 = arith.constant 0 : i32
    return %arg0, %c0_i32, %c0_i32_0 : i32, i32, i32
  }
  func.func @transform_1(%arg0: i32) -> (i32, i32) {
    %c0_i32 = arith.constant 0 : i32
    %c0_i32_0 = arith.constant 0 : i32
    %c0_i32_1 = arith.constant 0 : i32
    return %c0_i32, %c0_i32_0 : i32, i32
  }
  func.func @transform_2(%arg0: i32) -> (i32, i32) {
    %c0_i32 = arith.constant 0 : i32
    %c0_i32_0 = arith.constant 0 : i32
    %c0_i32_1 = arith.constant 0 : i32
    return %c0_i32, %c0_i32_0 : i32, i32
  }
  func.func @transform_3(%arg0: i32) -> (i32, i32) {
    %c0_i32 = arith.constant 0 : i32
    %c0_i32_0 = arith.constant 0 : i32
    %c0_i32_1 = arith.constant 0 : i32
    return %c0_i32, %c0_i32_0 : i32, i32
  }
  func.func @transform_4(%arg0: i32) -> (i32, i32) {
    %c0_i32 = arith.constant 0 : i32
    %c0_i32_0 = arith.constant 0 : i32
    %c0_i32_1 = arith.constant 0 : i32
    return %c0_i32, %c0_i32_0 : i32, i32
  }
  func.func @transform_5(%arg0: i32) -> (i32, i32) {
    %c0_i32 = arith.constant 0 : i32
    %c0_i32_0 = arith.constant 0 : i32
    %c0_i32_1 = arith.constant 0 : i32
    return %c0_i32, %c0_i32_0 : i32, i32
  }
  func.func @transform_6(%arg0: i32) -> (i32, i32) {
    %c0_i32 = arith.constant 0 : i32
    %c0_i32_0 = arith.constant 0 : i32
    %c0_i32_1 = arith.constant 0 : i32
    return %c0_i32, %c0_i32_0 : i32, i32
  }
  func.func @transform_7(%arg0: i32) -> (i32, i32, i32) {
    %c0_i32 = arith.constant 0 : i32
    %c0_i32_0 = arith.constant 0 : i32
    %c0_i32_1 = arith.constant 0 : i32
    return %arg0, %c0_i32, %c0_i32_0 : i32, i32, i32
  }
}

module attributes {stable_mosaic.version = 11 : i64} {
  func.func @_ffn_kernel_keep(%arg0: i32, %arg1: memref<1x8x128xf32, #tpu.memory_space<vmem>>, %arg2: memref<1x8x1xf32, #tpu.memory_space<vmem>>, %arg3: memref<128x256xbf16, #tpu.memory_space<vmem>>, %arg4: memref<1x256xf32, #tpu.memory_space<vmem>>, %arg5: memref<256x128xbf16, #tpu.memory_space<vmem>>, %arg6: memref<1x128xf32, #tpu.memory_space<vmem>>, %arg7: memref<1x128xf32, #tpu.memory_space<vmem>>, %arg8: memref<1x128xf32, #tpu.memory_space<vmem>>, %arg9: memref<1x8x128xf32, #tpu.memory_space<vmem>>) attributes {dimension_semantics = [#tpu.dimension_semantics<parallel>], iteration_bounds = array<i64: 2>, scalar_prefetch = 0 : i64, scratch_operands = 0 : i64, tpu.core_type = #tpu.core_type<tc>, window_params = [{transform_indices = @transform_0, window_bounds = array<i64: 1, 8, 128>}, {transform_indices = @transform_1, window_bounds = array<i64: 1, 8, 1>}, {pipeline_mode = #tpu.pipeline_mode<synchronous>, transform_indices = @transform_2, window_bounds = array<i64: 128, 256>}, {pipeline_mode = #tpu.pipeline_mode<synchronous>, transform_indices = @transform_3, window_bounds = array<i64: 1, 256>}, {pipeline_mode = #tpu.pipeline_mode<synchronous>, transform_indices = @transform_4, window_bounds = array<i64: 256, 128>}, {pipeline_mode = #tpu.pipeline_mode<synchronous>, transform_indices = @transform_5, window_bounds = array<i64: 1, 128>}, {pipeline_mode = #tpu.pipeline_mode<synchronous>, transform_indices = @transform_6, window_bounds = array<i64: 1, 128>}, {pipeline_mode = #tpu.pipeline_mode<synchronous>, transform_indices = @transform_7, window_bounds = array<i64: 1, 128>}, {transform_indices = @transform_8, window_bounds = array<i64: 1, 8, 128>}]} {
    %c0 = arith.constant 0 : index
    %c0_0 = arith.constant 0 : index
    %c0_1 = arith.constant 0 : index
    %0 = vector.load %arg1[%c0, %c0_0, %c0_1] : memref<1x8x128xf32, #tpu.memory_space<vmem>>, vector<1x8x128xf32>
    %1 = vector.shape_cast %0 : vector<1x8x128xf32> to vector<8x128xf32>
    %c0_2 = arith.constant 0 : index
    %c0_3 = arith.constant 0 : index
    %c0_4 = arith.constant 0 : index
    %2 = vector.load %arg2[%c0_2, %c0_3, %c0_4] : memref<1x8x1xf32, #tpu.memory_space<vmem>>, vector<1x8x1xf32>
    %3 = vector.shape_cast %2 : vector<1x8x1xf32> to vector<8x1xf32>
    %c0_5 = arith.constant 0 : index
    %c0_6 = arith.constant 0 : index
    %4 = vector.load %arg3[%c0_5, %c0_6] : memref<128x256xbf16, #tpu.memory_space<vmem>>, vector<128x256xbf16>
    %c0_7 = arith.constant 0 : index
    %c0_8 = arith.constant 0 : index
    %5 = vector.load %arg4[%c0_7, %c0_8] : memref<1x256xf32, #tpu.memory_space<vmem>>, vector<1x256xf32>
    %c0_9 = arith.constant 0 : index
    %c0_10 = arith.constant 0 : index
    %6 = vector.load %arg5[%c0_9, %c0_10] : memref<256x128xbf16, #tpu.memory_space<vmem>>, vector<256x128xbf16>
    %c0_11 = arith.constant 0 : index
    %c0_12 = arith.constant 0 : index
    %7 = vector.load %arg6[%c0_11, %c0_12] : memref<1x128xf32, #tpu.memory_space<vmem>>, vector<1x128xf32>
    %c0_13 = arith.constant 0 : index
    %c0_14 = arith.constant 0 : index
    %8 = vector.load %arg7[%c0_13, %c0_14] : memref<1x128xf32, #tpu.memory_space<vmem>>, vector<1x128xf32>
    %c0_15 = arith.constant 0 : index
    %c0_16 = arith.constant 0 : index
    %9 = vector.load %arg8[%c0_15, %c0_16] : memref<1x128xf32, #tpu.memory_space<vmem>>, vector<1x128xf32>
    %10 = arith.truncf %1 : vector<8x128xf32> to vector<8x128xbf16>
    %cst = arith.constant dense<0.000000e+00> : vector<8x256xf32>
    %11 = tpu.matmul %10, %4, %cst {dimension_numbers = #tpu.dot_dimension_numbers<[1], [0], [0], [1], [0, 0, 1, 1], [], []>} : vector<8x128xbf16>, vector<128x256xbf16>, vector<8x256xf32> -> vector<8x256xf32>
    %12 = vector.broadcast %5 : vector<1x256xf32> to vector<8x256xf32>
    %13 = arith.addf %11, %12 : vector<8x256xf32>
    %cst_17 = arith.constant 0.000000e+00 : f32
    %14 = vector.broadcast %cst_17 : f32 to vector<8x256xf32>
    %15 = arith.maximumf %13, %14 : vector<8x256xf32>
    %16 = arith.truncf %15 : vector<8x256xf32> to vector<8x256xbf16>
    %cst_18 = arith.constant dense<0.000000e+00> : vector<8x128xf32>
    %17 = tpu.matmul %16, %6, %cst_18 {dimension_numbers = #tpu.dot_dimension_numbers<[1], [0], [0], [1], [0, 0, 1, 1], [], []>} : vector<8x256xbf16>, vector<256x128xbf16>, vector<8x128xf32> -> vector<8x128xf32>
    %18 = vector.broadcast %7 : vector<1x128xf32> to vector<8x128xf32>
    %19 = arith.addf %17, %18 : vector<8x128xf32>
    %20 = arith.addf %1, %19 : vector<8x128xf32>
    %cst_19 = arith.constant dense<0.000000e+00> : vector<8xf32>
    %21 = vector.multi_reduction <add>, %20, %cst_19 [1] : vector<8x128xf32> to vector<8xf32>
    %22 = vector.shape_cast %21 : vector<8xf32> to vector<8x1xf32>
    %cst_20 = arith.constant 1.280000e+02 : f32
    %23 = vector.broadcast %cst_20 : f32 to vector<8x1xf32>
    %24 = arith.divf %22, %23 : vector<8x1xf32>
    %25 = vector.broadcast %24 : vector<8x1xf32> to vector<8x128xf32>
    %26 = arith.subf %20, %25 : vector<8x128xf32>
    %27 = arith.mulf %26, %26 : vector<8x128xf32>
    %cst_21 = arith.constant dense<0.000000e+00> : vector<8xf32>
    %28 = vector.multi_reduction <add>, %27, %cst_21 [1] : vector<8x128xf32> to vector<8xf32>
    %29 = vector.shape_cast %28 : vector<8xf32> to vector<8x1xf32>
    %cst_22 = arith.constant 1.280000e+02 : f32
    %30 = vector.broadcast %cst_22 : f32 to vector<8x1xf32>
    %31 = arith.divf %29, %30 : vector<8x1xf32>
    %cst_23 = arith.constant 9.99999974E-6 : f32
    %32 = vector.broadcast %cst_23 : f32 to vector<8x1xf32>
    %33 = arith.addf %31, %32 : vector<8x1xf32>
    %34 = math.rsqrt %33 : vector<8x1xf32>
    %35 = vector.broadcast %34 : vector<8x1xf32> to vector<8x128xf32>
    %36 = arith.mulf %26, %35 : vector<8x128xf32>
    %37 = vector.broadcast %8 : vector<1x128xf32> to vector<8x128xf32>
    %38 = arith.mulf %36, %37 : vector<8x128xf32>
    %39 = vector.broadcast %9 : vector<1x128xf32> to vector<8x128xf32>
    %40 = arith.addf %38, %39 : vector<8x128xf32>
    %41 = vector.broadcast %3 : vector<8x1xf32> to vector<8x128xf32>
    %42 = arith.mulf %40, %41 : vector<8x128xf32>
    %c0_24 = arith.constant 0 : index
    %c0_25 = arith.constant 0 : index
    %c0_26 = arith.constant 0 : index
    %43 = vector.load %arg9[%c0_24, %c0_25, %c0_26] : memref<1x8x128xf32, #tpu.memory_space<vmem>>, vector<1x8x128xf32>
    %44 = vector.shape_cast %43 : vector<1x8x128xf32> to vector<8x128xf32>
    %45 = vector.shape_cast %42 : vector<8x128xf32> to vector<1x8x128xf32>
    tpu.vector_store %arg9[%c0_24, %c0_25, %c0_26], %45 {strides = array<i32>} : memref<1x8x128xf32, #tpu.memory_space<vmem>>, vector<1x8x128xf32>,
    return
  }
  func.func @transform_0(%arg0: i32) -> (i32, i32, i32) {
    %c0_i32 = arith.constant 0 : i32
    %c0_i32_0 = arith.constant 0 : i32
    %c0_i32_1 = arith.constant 0 : i32
    return %arg0, %c0_i32, %c0_i32_0 : i32, i32, i32
  }
  func.func @transform_1(%arg0: i32) -> (i32, i32, i32) {
    %c0_i32 = arith.constant 0 : i32
    %c0_i32_0 = arith.constant 0 : i32
    %c0_i32_1 = arith.constant 0 : i32
    return %arg0, %c0_i32, %c0_i32_0 : i32, i32, i32
  }
  func.func @transform_2(%arg0: i32) -> (i32, i32) {
    %c0_i32 = arith.constant 0 : i32
    %c0_i32_0 = arith.constant 0 : i32
    %c0_i32_1 = arith.constant 0 : i32
    return %c0_i32, %c0_i32_0 : i32, i32
  }
  func.func @transform_3(%arg0: i32) -> (i32, i32) {
    %c0_i32 = arith.constant 0 : i32
    %c0_i32_0 = arith.constant 0 : i32
    %c0_i32_1 = arith.constant 0 : i32
    return %c0_i32, %c0_i32_0 : i32, i32
  }
  func.func @transform_4(%arg0: i32) -> (i32, i32) {
    %c0_i32 = arith.constant 0 : i32
    %c0_i32_0 = arith.constant 0 : i32
    %c0_i32_1 = arith.constant 0 : i32
    return %c0_i32, %c0_i32_0 : i32, i32
  }
  func.func @transform_5(%arg0: i32) -> (i32, i32) {
    %c0_i32 = arith.constant 0 : i32
    %c0_i32_0 = arith.constant 0 : i32
    %c0_i32_1 = arith.constant 0 : i32
    return %c0_i32, %c0_i32_0 : i32, i32
  }
  func.func @transform_6(%arg0: i32) -> (i32, i32) {
    %c0_i32 = arith.constant 0 : i32
    %c0_i32_0 = arith.constant 0 : i32
    %c0_i32_1 = arith.constant 0 : i32
    return %c0_i32, %c0_i32_0 : i32, i32
  }
  func.func @transform_7(%arg0: i32) -> (i32, i32) {
    %c0_i32 = arith.constant 0 : i32
    %c0_i32_0 = arith.constant 0 : i32
    %c0_i32_1 = arith.constant 0 : i32
    return %c0_i32, %c0_i32_0 : i32, i32
  }
  func.func @transform_8(%arg0: i32) -> (i32, i32, i32) {
    %c0_i32 = arith.constant 0 : i32
    %c0_i32_0 = arith.constant 0 : i32
    %c0_i32_1 = arith.constant 0 : i32
    return %arg0, %c0_i32, %c0_i32_0 : i32, i32, i32
  }
}

</mosaic_0001>

<llo_original>
// kernel: _lambda_.17
$region0: #{_lambda_.17}
  #allocation0 [shape = 'u32[]', space=smem, size = 0x4, offset = 0x4, fixed_abs, tag = 'smem constant byte address 0x4 - core index']
  #allocation1 [shape = 'u32[144,128]{1,0:T(1,128)}', space=vmem, size = 0x12000, scoped, tag = 'internal scratch']
  %s0 = inlined_call_operand.vmem [shape: f32[8,768], index: 0, kind: input, shape index: {}]
  %s1 = inlined_call_operand.vmem [shape: bf16[768,128], index: 1, kind: input, shape index: {}]
  %s2 = inlined_call_operand.vmem [shape: f32[1,128], index: 2, kind: input, shape index: {}]
  %s3 = inlined_call_operand.vmem [shape: f32[1,128], index: 3, kind: input, shape index: {}]
  %s4 = inlined_call_operand.vmem [shape: f32[1,128], index: 4, kind: input, shape index: {}]
  %s5 = inlined_call_operand.vmem [shape: f32[8,128], index: 5, kind: output, shape index: {}]
  %s6 = sld [smem:[#allocation0]]
  $region30: #{_lambda_.17} parent=0
    _
  %s8 = ssub.s32 1, %s6
  %s9 = scalar_select 0, %s8, %s6
  // Predicated region
  $region2: #{_lambda_.17} parent=0 // pred_check
    _
  $region3: #{_lambda_.17} parent=0 // pred_check_branch
    %11 = sbr.rel (0) target = $region5
  $region4: #{_lambda_.17} parent=0 // pred_region
    _
  $region5: #{_lambda_.17} parent=0 // pred_fallthru
    _
  // Predicated region
  $region6: #{_lambda_.17} parent=0 // pred_check
    _
  $region7: #{_lambda_.17} parent=0 // pred_check_branch
    %13 = sbr.rel (0) target = $region9
  $region8: #{_lambda_.17} parent=0 // pred_region
    _
  $region9: #{_lambda_.17} parent=0 // pred_fallthru
    _
  // Predicated region
  $region10: #{_lambda_.17} parent=0 // pred_check
    _
  $region11: #{_lambda_.17} parent=0 // pred_check_branch
    %15 = sbr.rel (0) target = $region13
  $region12: #{_lambda_.17} parent=0 // pred_region
    _
  $region13: #{_lambda_.17} parent=0 // pred_fallthru
    _
  // Predicated region
  $region14: #{_lambda_.17} parent=0 // pred_check
    _
  $region15: #{_lambda_.17} parent=0 // pred_check_branch
    %17 = sbr.rel (0) target = $region17
  $region16: #{_lambda_.17} parent=0 // pred_region
    _
  $region17: #{_lambda_.17} parent=0 // pred_fallthru
    _
  // Predicated region
  $region18: #{_lambda_.17} parent=0 // pred_check
    _
  $region19: #{_lambda_.17} parent=0 // pred_check_branch
    %19 = sbr.rel (0) target = $region21
  $region20: #{_lambda_.17} parent=0 // pred_region
    _
  $region21: #{_lambda_.17} parent=0 // pred_fallthru
    _
  %v21 = vld [vmem:[%s0] sm:$0xff]
  %v22 = vld [vmem:[%s0 + $0x8] sm:$0xff]
  %v23 = vld [vmem:[%s0 + $0x10] sm:$0xff]
  %v24 = vld [vmem:[%s0 + $0x18] sm:$0xff]
  %v25 = vld [vmem:[%s0 + $0x20] sm:$0xff]
  %v26 = vld [vmem:[%s0 + $0x28] sm:$0xff]
  %v27 = vpack.c.bf16 %v21, %v21
  %v28 = vpack.c.bf16 %v22, %v22
  %v29 = vpack.c.bf16 %v23, %v23
  %v30 = vpack.c.bf16 %v24, %v24
  %v31 = vpack.c.bf16 %v25, %v25
  %v32 = vpack.c.bf16 %v26, %v26
  %v33 = vld [vmem:[%s1] sm:$0xf]
  %v34 = vld [vmem:[%s1 + $0x4] sm:$0xf]
  %v35 = vld [vmem:[%s1 + $0x8] sm:$0xf]
  %v36 = vld [vmem:[%s1 + $0xc] sm:$0xf]
  %v37 = vld [vmem:[%s1 + $0x10] sm:$0xf]
  %v38 = vld [vmem:[%s1 + $0x14] sm:$0xf]
  %v39 = vld [vmem:[%s1 + $0x18] sm:$0xf]
  %v40 = vld [vmem:[%s1 + $0x1c] sm:$0xf]
  %v41 = vld [vmem:[%s1 + $0x20] sm:$0xf]
  %v42 = vld [vmem:[%s1 + $0x24] sm:$0xf]
  %v43 = vld [vmem:[%s1 + $0x28] sm:$0xf]
  %v44 = vld [vmem:[%s1 + $0x2c] sm:$0xf]
  %v45 = vld [vmem:[%s1 + $0x30] sm:$0xf]
  %v46 = vld [vmem:[%s1 + $0x34] sm:$0xf]
  %v47 = vld [vmem:[%s1 + $0x38] sm:$0xf]
  %v48 = vld [vmem:[%s1 + $0x3c] sm:$0xf]
  %v49 = vld [vmem:[%s1 + $0x40] sm:$0xf]
  %v50 = vld [vmem:[%s1 + $0x44] sm:$0xf]
  %v51 = vld [vmem:[%s1 + $0x48] sm:$0xf]
  %v52 = vld [vmem:[%s1 + $0x4c] sm:$0xf]
  %v53 = vld [vmem:[%s1 + $0x50] sm:$0xf]
  %v54 = vld [vmem:[%s1 + $0x54] sm:$0xf]
  %v55 = vld [vmem:[%s1 + $0x58] sm:$0xf]
  %v56 = vld [vmem:[%s1 + $0x5c] sm:$0xf]
  %v57 = vld [vmem:[%s1 + $0x60] sm:$0xf]
  %v58 = vld [vmem:[%s1 + $0x64] sm:$0xf]
  %v59 = vld [vmem:[%s1 + $0x68] sm:$0xf]
  %v60 = vld [vmem:[%s1 + $0x6c] sm:$0xf]
  %v61 = vld [vmem:[%s1 + $0x70] sm:$0xf]
  %v62 = vld [vmem:[%s1 + $0x74] sm:$0xf]
  %v63 = vld [vmem:[%s1 + $0x78] sm:$0xf]
  %v64 = vld [vmem:[%s1 + $0x7c] sm:$0xf]
  %v65 = vld [vmem:[%s1 + $0x80] sm:$0xf]
  %v66 = vld [vmem:[%s1 + $0x84] sm:$0xf]
  %v67 = vld [vmem:[%s1 + $0x88] sm:$0xf]
  %v68 = vld [vmem:[%s1 + $0x8c] sm:$0xf]
  %v69 = vld [vmem:[%s1 + $0x90] sm:$0xf]
  %v70 = vld [vmem:[%s1 + $0x94] sm:$0xf]
  %v71 = vld [vmem:[%s1 + $0x98] sm:$0xf]
  %v72 = vld [vmem:[%s1 + $0x9c] sm:$0xf]
  %v73 = vld [vmem:[%s1 + $0xa0] sm:$0xf]
  %v74 = vld [vmem:[%s1 + $0xa4] sm:$0xf]
  %v75 = vld [vmem:[%s1 + $0xa8] sm:$0xf]
  %v76 = vld [vmem:[%s1 + $0xac] sm:$0xf]
  %v77 = vld [vmem:[%s1 + $0xb0] sm:$0xf]
  %v78 = vld [vmem:[%s1 + $0xb4] sm:$0xf]
  %v79 = vld [vmem:[%s1 + $0xb8] sm:$0xf]
  %v80 = vld [vmem:[%s1 + $0xbc] sm:$0xf]
  %v81 = vld [vmem:[%s1 + $0xc0] sm:$0xf]
  %v82 = vld [vmem:[%s1 + $0xc4] sm:$0xf]
  %v83 = vld [vmem:[%s1 + $0xc8] sm:$0xf]
  %v84 = vld [vmem:[%s1 + $0xcc] sm:$0xf]
  %v85 = vld [vmem:[%s1 + $0xd0] sm:$0xf]
  %v86 = vld [vmem:[%s1 + $0xd4] sm:$0xf]
  %v87 = vld [vmem:[%s1 + $0xd8] sm:$0xf]
  %v88 = vld [vmem:[%s1 + $0xdc] sm:$0xf]
  %v89 = vld [vmem:[%s1 + $0xe0] sm:$0xf]
  %v90 = vld [vmem:[%s1 + $0xe4] sm:$0xf]
  %v91 = vld [vmem:[%s1 + $0xe8] sm:$0xf]
  %v92 = vld [vmem:[%s1 + $0xec] sm:$0xf]
  %v93 = vld [vmem:[%s1 + $0xf0] sm:$0xf]
  %v94 = vld [vmem:[%s1 + $0xf4] sm:$0xf]
  %v95 = vld [vmem:[%s1 + $0xf8] sm:$0xf]
  %v96 = vld [vmem:[%s1 + $0xfc] sm:$0xf]
  %v97 = vld [vmem:[%s1 + $0x100] sm:$0xf]
  %v98 = vld [vmem:[%s1 + $0x104] sm:$0xf]
  %v99 = vld [vmem:[%s1 + $0x108] sm:$0xf]
  %v100 = vld [vmem:[%s1 + $0x10c] sm:$0xf]
  %v101 = vld [vmem:[%s1 + $0x110] sm:$0xf]
  %v102 = vld [vmem:[%s1 + $0x114] sm:$0xf]
  %v103 = vld [vmem:[%s1 + $0x118] sm:$0xf]
  %v104 = vld [vmem:[%s1 + $0x11c] sm:$0xf]
  %v105 = vld [vmem:[%s1 + $0x120] sm:$0xf]
  %v106 = vld [vmem:[%s1 + $0x124] sm:$0xf]
  %v107 = vld [vmem:[%s1 + $0x128] sm:$0xf]
  %v108 = vld [vmem:[%s1 + $0x12c] sm:$0xf]
  %v109 = vld [vmem:[%s1 + $0x130] sm:$0xf]
  %v110 = vld [vmem:[%s1 + $0x134] sm:$0xf]
  %v111 = vld [vmem:[%s1 + $0x138] sm:$0xf]
  %v112 = vld [vmem:[%s1 + $0x13c] sm:$0xf]
  %v113 = vld [vmem:[%s1 + $0x140] sm:$0xf]
  %v114 = vld [vmem:[%s1 + $0x144] sm:$0xf]
  %v115 = vld [vmem:[%s1 + $0x148] sm:$0xf]
  %v116 = vld [vmem:[%s1 + $0x14c] sm:$0xf]
  %v117 = vld [vmem:[%s1 + $0x150] sm:$0xf]
  %v118 = vld [vmem:[%s1 + $0x154] sm:$0xf]
  %v119 = vld [vmem:[%s1 + $0x158] sm:$0xf]
  %v120 = vld [vmem:[%s1 + $0x15c] sm:$0xf]
  %v121 = vld [vmem:[%s1 + $0x160] sm:$0xf]
  %v122 = vld [vmem:[%s1 + $0x164] sm:$0xf]
  %v123 = vld [vmem:[%s1 + $0x168] sm:$0xf]
  %v124 = vld [vmem:[%s1 + $0x16c] sm:$0xf]
  %v125 = vld [vmem:[%s1 + $0x170] sm:$0xf]
  %v126 = vld [vmem:[%s1 + $0x174] sm:$0xf]
  %v127 = vld [vmem:[%s1 + $0x178] sm:$0xf]
  %v128 = vld [vmem:[%s1 + $0x17c] sm:$0xf]
  %v129 = vld [vmem:[%s2] sm:$0x1]
  %v131 = vlaneseq
  %v132 = vshrl.u32 %v131, 7
  %v133 = vsub.s32 0, %v132
  %v134 = vrot.slane %v129, %v133
  %v232 = vunpack.c.l.b16 %v33
  %v233 = vunpack.c.l.b16 %v34
  %v234 = vunpack.c.l.b16 %v35
  %v235 = vunpack.c.l.b16 %v36
  %v236 = vunpack.c.l.b16 %v37
  %v237 = vunpack.c.l.b16 %v38
  %v238 = vunpack.c.l.b16 %v39
  %v239 = vunpack.c.l.b16 %v40
  %v240 = vunpack.c.l.b16 %v41
  %v241 = vunpack.c.l.b16 %v42
  %v242 = vunpack.c.l.b16 %v43
  %v243 = vunpack.c.l.b16 %v44
  %v244 = vunpack.c.l.b16 %v45
  %v245 = vunpack.c.l.b16 %v46
  %v246 = vunpack.c.l.b16 %v47
  %v247 = vunpack.c.l.b16 %v48
  %v248 = vunpack.c.l.b16 %v49
  %v249 = vunpack.c.l.b16 %v50
  %v250 = vunpack.c.l.b16 %v51
  %v251 = vunpack.c.l.b16 %v52
  %v252 = vunpack.c.l.b16 %v53
  %v253 = vunpack.c.l.b16 %v54
  %v254 = vunpack.c.l.b16 %v55
  %v255 = vunpack.c.l.b16 %v56
  %v256 = vunpack.c.l.b16 %v57
  %v257 = vunpack.c.l.b16 %v58
  %v258 = vunpack.c.l.b16 %v59
  %v259 = vunpack.c.l.b16 %v60
  %v260 = vunpack.c.l.b16 %v61
  %v261 = vunpack.c.l.b16 %v62
  %v262 = vunpack.c.l.b16 %v63
  %v263 = vunpack.c.l.b16 %v64
  %v264 = vunpack.c.l.b16 %v65
  %v265 = vunpack.c.l.b16 %v66
  %v266 = vunpack.c.l.b16 %v67
  %v267 = vunpack.c.l.b16 %v68
  %v268 = vunpack.c.l.b16 %v69
  %v269 = vunpack.c.l.b16 %v70
  %v270 = vunpack.c.l.b16 %v71
  %v271 = vunpack.c.l.b16 %v72
  %v272 = vunpack.c.l.b16 %v73
  %v273 = vunpack.c.l.b16 %v74
  %v274 = vunpack.c.l.b16 %v75
  %v275 = vunpack.c.l.b16 %v76
  %v276 = vunpack.c.l.b16 %v77
  %v277 = vunpack.c.l.b16 %v78
  %v278 = vunpack.c.l.b16 %v79
  %v279 = vunpack.c.l.b16 %v80
  %v280 = vunpack.c.l.b16 %v81
  %v281 = vunpack.c.l.b16 %v82
  %v282 = vunpack.c.l.b16 %v83
  %v283 = vunpack.c.l.b16 %v84
  %v284 = vunpack.c.l.b16 %v85
  %v285 = vunpack.c.l.b16 %v86
  %v286 = vunpack.c.l.b16 %v87
  %v287 = vunpack.c.l.b16 %v88
  %v288 = vunpack.c.l.b16 %v89
  %v289 = vunpack.c.l.b16 %v90
  %v290 = vunpack.c.l.b16 %v91
  %v291 = vunpack.c.l.b16 %v92
  %v292 = vunpack.c.l.b16 %v93
  %v293 = vunpack.c.l.b16 %v94
  %v294 = vunpack.c.l.b16 %v95
  %v295 = vunpack.c.l.b16 %v96
  %v296 = vunpack.c.l.b16 %v97
  %v297 = vunpack.c.l.b16 %v98
  %v298 = vunpack.c.l.b16 %v99
  %v299 = vunpack.c.l.b16 %v100
  %v300 = vunpack.c.l.b16 %v101
  %v301 = vunpack.c.l.b16 %v102
  %v302 = vunpack.c.l.b16 %v103
  %v303 = vunpack.c.l.b16 %v104
  %v304 = vunpack.c.l.b16 %v105
  %v305 = vunpack.c.l.b16 %v106
  %v306 = vunpack.c.l.b16 %v107
  %v307 = vunpack.c.l.b16 %v108
  %v308 = vunpack.c.l.b16 %v109
  %v309 = vunpack.c.l.b16 %v110
  %v310 = vunpack.c.l.b16 %v111
  %v311 = vunpack.c.l.b16 %v112
  %v312 = vunpack.c.l.b16 %v113
  %v313 = vunpack.c.l.b16 %v114
  %v314 = vunpack.c.l.b16 %v115
  %v315 = vunpack.c.l.b16 %v116
  %v316 = vunpack.c.l.b16 %v117
  %v317 = vunpack.c.l.b16 %v118
  %v318 = vunpack.c.l.b16 %v119
  %v319 = vunpack.c.l.b16 %v120
  %v320 = vunpack.c.l.b16 %v121
  %v321 = vunpack.c.l.b16 %v122
  %v322 = vunpack.c.l.b16 %v123
  %v323 = vunpack.c.l.b16 %v124
  %v324 = vunpack.c.l.b16 %v125
  %v325 = vunpack.c.l.b16 %v126
  %v326 = vunpack.c.l.b16 %v127
  %v327 = vunpack.c.l.b16 %v128
  %v328 = vpack.c.b16 %v233, %v232
  %v329 = vpack.c.b16 %v235, %v234
  %v330 = vpack.c.b16 %v237, %v236
  %v331 = vpack.c.b16 %v239, %v238
  %v332 = vpack.c.b16 %v241, %v240
  %v333 = vpack.c.b16 %v243, %v242
  %v334 = vpack.c.b16 %v245, %v244
  %v335 = vpack.c.b16 %v247, %v246
  %v336 = vpack.c.b16 %v249, %v248
  %v337 = vpack.c.b16 %v251, %v250
  %v338 = vpack.c.b16 %v253, %v252
  %v339 = vpack.c.b16 %v255, %v254
  %v340 = vpack.c.b16 %v257, %v256
  %v341 = vpack.c.b16 %v259, %v258
  %v342 = vpack.c.b16 %v261, %v260
  %v343 = vpack.c.b16 %v263, %v262
  %v344 = vpack.c.b16 %v265, %v264
  %v345 = vpack.c.b16 %v267, %v266
  %v346 = vpack.c.b16 %v269, %v268
  %v347 = vpack.c.b16 %v271, %v270
  %v348 = vpack.c.b16 %v273, %v272
  %v349 = vpack.c.b16 %v275, %v274
  %v350 = vpack.c.b16 %v277, %v276
  %v351 = vpack.c.b16 %v279, %v278
  %v352 = vpack.c.b16 %v281, %v280
  %v353 = vpack.c.b16 %v283, %v282
  %v354 = vpack.c.b16 %v285, %v284
  %v355 = vpack.c.b16 %v287, %v286
  %v356 = vpack.c.b16 %v289, %v288
  %v357 = vpack.c.b16 %v291, %v290
  %v358 = vpack.c.b16 %v293, %v292
  %v359 = vpack.c.b16 %v295, %v294
  %v360 = vpack.c.b16 %v297, %v296
  %v361 = vpack.c.b16 %v299, %v298
  %v362 = vpack.c.b16 %v301, %v300
  %v363 = vpack.c.b16 %v303, %v302
  %v364 = vpack.c.b16 %v305, %v304
  %v365 = vpack.c.b16 %v307, %v306
  %v366 = vpack.c.b16 %v309, %v308
  %v367 = vpack.c.b16 %v311, %v310
  %v368 = vpack.c.b16 %v313, %v312
  %v369 = vpack.c.b16 %v315, %v314
  %v370 = vpack.c.b16 %v317, %v316
  %v371 = vpack.c.b16 %v319, %v318
  %v372 = vpack.c.b16 %v321, %v320
  %v373 = vpack.c.b16 %v323, %v322
  %v374 = vpack.c.b16 %v325, %v324
  %v375 = vpack.c.b16 %v327, %v326
  %424 = vmatprep.subr.bf16.mxu0 0
  %425 = vmatpush1.bf16.msra.mxu0 %v328
  %426 = vmatprep.subr.bf16.mxu0 0
  %427 = vmatpush1.bf16.msra.mxu0 %v329
  %428 = vmatprep.subr.bf16.mxu0 0
  %429 = vmatpush1.bf16.msra.mxu0 %v330
  %430 = vmatprep.subr.bf16.mxu0 0
  %431 = vmatpush1.bf16.msra.mxu0 %v331
  %432 = vmatprep.subr.bf16.mxu0 0
  %433 = vmatpush1.bf16.msra.mxu0 %v332
  %434 = vmatprep.subr.bf16.mxu0 0
  %435 = vmatpush1.bf16.msra.mxu0 %v333
  %436 = vmatprep.subr.bf16.mxu0 0
  %437 = vmatpush1.bf16.msra.mxu0 %v334
  %438 = vmatprep.subr.bf16.mxu0 0
  %439 = vmatpush1.bf16.msra.mxu0 %v335
  %440 = vmatprep.subr.bf16.mxu0 0
  %441 = vmatpush1.bf16.msra.mxu0 %v336
  %442 = vmatprep.subr.bf16.mxu0 0
  %443 = vmatpush1.bf16.msra.mxu0 %v337
  %444 = vmatprep.subr.bf16.mxu0 0
  %445 = vmatpush1.bf16.msra.mxu0 %v338
  %446 = vmatprep.subr.bf16.mxu0 0
  %447 = vmatpush1.bf16.msra.mxu0 %v339
  %448 = vmatprep.subr.bf16.mxu0 0
  %449 = vmatpush1.bf16.msra.mxu0 %v340
  %450 = vmatprep.subr.bf16.mxu0 0
  %451 = vmatpush1.bf16.msra.mxu0 %v341
  %452 = vmatprep.subr.bf16.mxu0 0
  %453 = vmatpush1.bf16.msra.mxu0 %v342
  %454 = vmatprep.subr.bf16.mxu0 0
  %455 = vmatpush1.bf16.msra.mxu0 %v343
  %456 = vmatprep.mubr.bf16.mxu0 %v28
  %457 = vmatmul.mubr.bf16.gmra.mrb[0].mxu0 %v27
  %v458 = vpop.f32.mrb[0].mxu0
  %v459 = vadd.f32 %v134, %v458
  %v460 = vpop.f32.mrb[0].mxu0
  %v461 = vpop.f32.mrb[0].mxu0
  %v462 = vpop.f32.mrb[0].mxu0
  %463 = vdwg.mxu0
  %464 = vmatprep.subr.bf16.mxu0 0
  %465 = vmatpush1.bf16.msra.mxu0 %v344
  %466 = vmatprep.subr.bf16.mxu0 0
  %467 = vmatpush1.bf16.msra.mxu0 %v345
  %468 = vmatprep.subr.bf16.mxu0 0
  %469 = vmatpush1.bf16.msra.mxu0 %v346
  %470 = vmatprep.subr.bf16.mxu0 0
  %471 = vmatpush1.bf16.msra.mxu0 %v347
  %472 = vmatprep.subr.bf16.mxu0 0
  %473 = vmatpush1.bf16.msra.mxu0 %v348
  %474 = vmatprep.subr.bf16.mxu0 0
  %475 = vmatpush1.bf16.msra.mxu0 %v349
  %476 = vmatprep.subr.bf16.mxu0 0
  %477 = vmatpush1.bf16.msra.mxu0 %v350
  %478 = vmatprep.subr.bf16.mxu0 0
  %479 = vmatpush1.bf16.msra.mxu0 %v351
  %480 = vmatprep.subr.bf16.mxu0 0
  %481 = vmatpush1.bf16.msra.mxu0 %v352
  %482 = vmatprep.subr.bf16.mxu0 0
  %483 = vmatpush1.bf16.msra.mxu0 %v353
  %484 = vmatprep.subr.bf16.mxu0 0
  %485 = vmatpush1.bf16.msra.mxu0 %v354
  %486 = vmatprep.subr.bf16.mxu0 0
  %487 = vmatpush1.bf16.msra.mxu0 %v355
  %488 = vmatprep.subr.bf16.mxu0 0
  %489 = vmatpush1.bf16.msra.mxu0 %v356
  %490 = vmatprep.subr.bf16.mxu0 0
  %491 = vmatpush1.bf16.msra.mxu0 %v357
  %492 = vmatprep.subr.bf16.mxu0 0
  %493 = vmatpush1.bf16.msra.mxu0 %v358
  %494 = vmatprep.subr.bf16.mxu0 0
  %495 = vmatpush1.bf16.msra.mxu0 %v359
  %496 = vmatprep.mubr.bf16.mxu0 %v30
  %497 = vmatmul.mubr.bf16.gmra.mrb[0].mxu0 %v29
  %v498 = vpop.f32.mrb[0].mxu0
  %v499 = vadd.f32 %v459, %v498
  %v500 = vpop.f32.mrb[0].mxu0
  %v501 = vpop.f32.mrb[0].mxu0
  %v502 = vpop.f32.mrb[0].mxu0
  %503 = vdwg.mxu0
  %504 = vmatprep.subr.bf16.mxu0 0
  %505 = vmatpush1.bf16.msra.mxu0 %v360
  %506 = vmatprep.subr.bf16.mxu0 0
  %507 = vmatpush1.bf16.msra.mxu0 %v361
  %508 = vmatprep.subr.bf16.mxu0 0
  %509 = vmatpush1.bf16.msra.mxu0 %v362
  %510 = vmatprep.subr.bf16.mxu0 0
  %511 = vmatpush1.bf16.msra.mxu0 %v363
  %512 = vmatprep.subr.bf16.mxu0 0
  %513 = vmatpush1.bf16.msra.mxu0 %v364
  %514 = vmatprep.subr.bf16.mxu0 0
  %515 = vmatpush1.bf16.msra.mxu0 %v365
  %516 = vmatprep.subr.bf16.mxu0 0
  %517 = vmatpush1.bf16.msra.mxu0 %v366
  %518 = vmatprep.subr.bf16.mxu0 0
  %519 = vmatpush1.bf16.msra.mxu0 %v367
  %520 = vmatprep.subr.bf16.mxu0 0
  %521 = vmatpush1.bf16.msra.mxu0 %v368
  %522 = vmatprep.subr.bf16.mxu0 0
  %523 = vmatpush1.bf16.msra.mxu0 %v369
  %524 = vmatprep.subr.bf16.mxu0 0
  %525 = vmatpush1.bf16.msra.mxu0 %v370
  %526 = vmatprep.subr.bf16.mxu0 0
  %527 = vmatpush1.bf16.msra.mxu0 %v371
  %528 = vmatprep.subr.bf16.mxu0 0
  %529 = vmatpush1.bf16.msra.mxu0 %v372
  %530 = vmatprep.subr.bf16.mxu0 0
  %531 = vmatpush1.bf16.msra.mxu0 %v373
  %532 = vmatprep.subr.bf16.mxu0 0
  %533 = vmatpush1.bf16.msra.mxu0 %v374
  %534 = vmatprep.subr.bf16.mxu0 0
  %535 = vmatpush1.bf16.msra.mxu0 %v375
  %536 = vmatprep.mubr.bf16.mxu0 %v32
  %537 = vmatmul.mubr.bf16.gmra.mrb[0].mxu0 %v31
  %v538 = vpop.f32.mrb[0].mxu0
  %v539 = vadd.f32 %v499, %v538
  %v540 = vpop.f32.mrb[0].mxu0
  %v541 = vpop.f32.mrb[0].mxu0
  %v542 = vpop.f32.mrb[0].mxu0
  %543 = vdwg.mxu0
  %v544 = vld [vmem:[%s3] sm:$0x1]
  %v545 = vld [vmem:[%s4] sm:$0x1]
  %546 = vadd.xlane.f32.xlu0 %v539
  %v547 = vpop.xlane.xlu0 %546
  %v548 = vrcp.pop 128.0
  %v549 = vmul.f32 %v547, %v548
  %v550 = vsub.f32 %v539, %v549
  %v551 = vmul.f32 %v550, %v550
  %552 = vadd.xlane.f32.xlu0 %v551
  %v553 = vpop.xlane.xlu0 %552
  %v554 = vmul.f32 %v553, %v548
  %v555 = vadd.f32 %v554, 1e-05
  %v556 = vrsqrt.pop %v555
  %v557 = vmul.f32 %v550, %v556
  %v559 = vlaneseq
  %v560 = vshrl.u32 %v559, 7
  %v561 = vsub.s32 0, %v560
  %v562 = vrot.slane %v544, %v561
  %v564 = vmul.f32 %v557, %v562
  %v566 = vlaneseq
  %v567 = vshrl.u32 %v566, 7
  %v568 = vsub.s32 0, %v567
  %v569 = vrot.slane %v545, %v568
  %v571 = vadd.f32 %v564, %v569
  %572 = vst [vmem:[%s5] sm:$0xff] %v571
  // Predicated region
  $region22: #{_lambda_.17} parent=0 // pred_check
    _
  $region23: #{_lambda_.17} parent=0 // pred_check_branch
    %574 = sbr.rel (0) target = $region25
  $region24: #{_lambda_.17} parent=0 // pred_region
    _
  $region25: #{_lambda_.17} parent=0 // pred_fallthru
    _
  // Predicated region
  $region26: #{_lambda_.17} parent=0 // pred_check
    _
  $region27: #{_lambda_.17} parent=0 // pred_check_branch
    %576 = sbr.rel (0) target = $region29
  $region28: #{_lambda_.17} parent=0 // pred_region
    _
  $region29: #{_lambda_.17} parent=0 // pred_fallthru
    _

// kernel: _lambda_.19
$region0: #{_lambda_.19}
  #allocation0 [shape = 'u32[]', space=smem, size = 0x4, offset = 0x4, fixed_abs, tag = 'smem constant byte address 0x4 - core index']
  #allocation1 [shape = 'u32[144,128]{1,0:T(1,128)}', space=vmem, size = 0x12000, scoped, tag = 'internal scratch']
  %s0 = inlined_call_operand.vmem [shape: f32[2,4,128], index: 0, kind: input, shape index: {}]
  %s1 = inlined_call_operand.vmem [shape: bf16[128,256], index: 1, kind: input, shape index: {}]
  %s2 = inlined_call_operand.vmem [shape: f32[1,256], index: 2, kind: input, shape index: {}]
  %s3 = inlined_call_operand.vmem [shape: bf16[256,128], index: 3, kind: input, shape index: {}]
  %s4 = inlined_call_operand.vmem [shape: f32[1,128], index: 4, kind: input, shape index: {}]
  %s5 = inlined_call_operand.vmem [shape: f32[1,128], index: 5, kind: input, shape index: {}]
  %s6 = inlined_call_operand.vmem [shape: f32[1,128], index: 6, kind: input, shape index: {}]
  %s7 = inlined_call_operand.vmem [shape: f32[2,4,128], index: 7, kind: output, shape index: {}]
  %s8 = sld [smem:[#allocation0]]
  $region61: #{_lambda_.19} parent=0
    _
  %s10 = ssub.s32 1, %s8
  %s11 = scalar_select 0, %s10, %s8
  loop: start=0, step=1, limit=4
  $region2: #{_lambda_.19} parent=0 // loop_pre_header
    _
  $region3: #{_lambda_.19} parent=0 // loop_header
    %s13 = sphi 0, %s17
    %p14 = scmp.ge.s32.totalorder %s13, 4
    %s23 = sphi 0, %s25
    %s26 = sphi 0, %s23
    %s27 = sphi 0, %s26
    %s43 = sphi 0, %s27
    %s47 = sphi 0, %s47
    %s49 = sphi 0, %s47
    %s50 = sphi 0, %s49
    %s64 = sphi 0, %s50
    %s68 = sphi 0, %s68
    %s70 = sphi 0, %s68
    %s71 = sphi 0, %s70
    %s85 = sphi 0, %s71
    %s89 = sphi 0, %s89
    %s91 = sphi 0, %s89
    %s92 = sphi 0, %s91
    %s106 = sphi 0, %s92
    %s110 = sphi 0, %s110
    %s112 = sphi 0, %s110
    %s113 = sphi 0, %s112
    %s127 = sphi 0, %s113
    %s131 = sphi 0, %s131
    %s133 = sphi 0, %s131
    %s134 = sphi 0, %s133
    %s148 = sphi 0, %s134
    %s152 = sphi 0, %s152
    %s154 = sphi 0, %s152
    %s155 = sphi 0, %s154
    %s169 = sphi 0, %s155
    %s175 = sphi 0, %s177
    %s178 = sphi 0, %s175
    %s179 = sphi 0, %s178
    %s195 = sphi 0, %s179
  $region4: #{_lambda_.19} parent=0 // loop_header_branch
    %16 = sbr.rel (%p14) target = $region8
  $region5: #{_lambda_.19} parent=0 // loop_body
    %s18 = ssub.s32 %s13, 1
    %s19 = ssub.s32 %s13, 2
    %s20 = sadd.s32 %s13, 1
    %s21 = ssub.s32 %s13, %s20
    %p22 = scmp.eq.s32.totalorder %s21, 0
    %s24 = sadd.s32 %s23, 1
    %s25 = scalar_select %p22, %s23, %s24
    %p28 = pneg %p22
    %p29 = scmp.eq.s32.totalorder %s13, 1
    %p30 = por %p28, %p29
    %p31 = scmp.ne.s32.totalorder %s23, %s26
    %p32 = scmp.eq.s32.totalorder %s13, 0
    %p33 = por %p31, %p32
    %p34 = scmp.ne.s32.totalorder %s23, %s26
    %p35 = scmp.eq.s32.totalorder %s18, 1
    %p36 = por %p34, %p35
    %p37 = scmp.ne.s32.totalorder %s26, %s27
    %p38 = scmp.eq.s32.totalorder %s18, 0
    %p39 = por %p37, %p38
    %p40 = scmp.ne.s32.totalorder %s26, %s27
    %p41 = scmp.eq.s32.totalorder %s19, 1
    %p42 = por %p40, %p41
    %p44 = scmp.ne.s32.totalorder %s27, %s43
    %p45 = scmp.eq.s32.totalorder %s19, 0
    %p46 = por %p44, %p45
    %s48 = sadd.s32 %s47, 1
    %p51 = scmp.eq.s32.totalorder %s13, 1
    %p52 = scmp.ne.s32.totalorder %s47, %s49
    %p53 = scmp.eq.s32.totalorder %s13, 0
    %p54 = por %p52, %p53
    %p55 = scmp.ne.s32.totalorder %s47, %s49
    %p56 = scmp.eq.s32.totalorder %s18, 1
    %p57 = por %p55, %p56
    %p58 = scmp.ne.s32.totalorder %s49, %s50
    %p59 = scmp.eq.s32.totalorder %s18, 0
    %p60 = por %p58, %p59
    %p61 = scmp.ne.s32.totalorder %s49, %s50
    %p62 = scmp.eq.s32.totalorder %s19, 1
    %p63 = por %p61, %p62
    %p65 = scmp.ne.s32.totalorder %s50, %s64
    %p66 = scmp.eq.s32.totalorder %s19, 0
    %p67 = por %p65, %p66
    %s69 = sadd.s32 %s68, 1
    %p72 = scmp.eq.s32.totalorder %s13, 1
    %p73 = scmp.ne.s32.totalorder %s68, %s70
    %p74 = scmp.eq.s32.totalorder %s13, 0
    %p75 = por %p73, %p74
    %p76 = scmp.ne.s32.totalorder %s68, %s70
    %p77 = scmp.eq.s32.totalorder %s18, 1
    %p78 = por %p76, %p77
    %p79 = scmp.ne.s32.totalorder %s70, %s71
    %p80 = scmp.eq.s32.totalorder %s18, 0
    %p81 = por %p79, %p80
    %p82 = scmp.ne.s32.totalorder %s70, %s71
    %p83 = scmp.eq.s32.totalorder %s19, 1
    %p84 = por %p82, %p83
    %p86 = scmp.ne.s32.totalorder %s71, %s85
    %p87 = scmp.eq.s32.totalorder %s19, 0
    %p88 = por %p86, %p87
    %s90 = sadd.s32 %s89, 1
    %p93 = scmp.eq.s32.totalorder %s13, 1
    %p94 = scmp.ne.s32.totalorder %s89, %s91
    %p95 = scmp.eq.s32.totalorder %s13, 0
    %p96 = por %p94, %p95
    %p97 = scmp.ne.s32.totalorder %s89, %s91
    %p98 = scmp.eq.s32.totalorder %s18, 1
    %p99 = por %p97, %p98
    %p100 = scmp.ne.s32.totalorder %s91, %s92
    %p101 = scmp.eq.s32.totalorder %s18, 0
    %p102 = por %p100, %p101
    %p103 = scmp.ne.s32.totalorder %s91, %s92
    %p104 = scmp.eq.s32.totalorder %s19, 1
    %p105 = por %p103, %p104
    %p107 = scmp.ne.s32.totalorder %s92, %s106
    %p108 = scmp.eq.s32.totalorder %s19, 0
    %p109 = por %p107, %p108
    %s111 = sadd.s32 %s110, 1
    %p114 = scmp.eq.s32.totalorder %s13, 1
    %p115 = scmp.ne.s32.totalorder %s110, %s112
    %p116 = scmp.eq.s32.totalorder %s13, 0
    %p117 = por %p115, %p116
    %p118 = scmp.ne.s32.totalorder %s110, %s112
    %p119 = scmp.eq.s32.totalorder %s18, 1
    %p120 = por %p118, %p119
    %p121 = scmp.ne.s32.totalorder %s112, %s113
    %p122 = scmp.eq.s32.totalorder %s18, 0
    %p123 = por %p121, %p122
    %p124 = scmp.ne.s32.totalorder %s112, %s113
    %p125 = scmp.eq.s32.totalorder %s19, 1
    %p126 = por %p124, %p125
    %p128 = scmp.ne.s32.totalorder %s113, %s127
    %p129 = scmp.eq.s32.totalorder %s19, 0
    %p130 = por %p128, %p129
    %s132 = sadd.s32 %s131, 1
    %p135 = scmp.eq.s32.totalorder %s13, 1
    %p136 = scmp.ne.s32.totalorder %s131, %s133
    %p137 = scmp.eq.s32.totalorder %s13, 0
    %p138 = por %p136, %p137
    %p139 = scmp.ne.s32.totalorder %s131, %s133
    %p140 = scmp.eq.s32.totalorder %s18, 1
    %p141 = por %p139, %p140
    %p142 = scmp.ne.s32.totalorder %s133, %s134
    %p143 = scmp.eq.s32.totalorder %s18, 0
    %p144 = por %p142, %p143
    %p145 = scmp.ne.s32.totalorder %s133, %s134
    %p146 = scmp.eq.s32.totalorder %s19, 1
    %p147 = por %p145, %p146
    %p149 = scmp.ne.s32.totalorder %s134, %s148
    %p150 = scmp.eq.s32.totalorder %s19, 0
    %p151 = por %p149, %p150
    %s153 = sadd.s32 %s152, 1
    %p156 = scmp.eq.s32.totalorder %s13, 1
    %p157 = scmp.ne.s32.totalorder %s152, %s154
    %p158 = scmp.eq.s32.totalorder %s13, 0
    %p159 = por %p157, %p158
    %p160 = scmp.ne.s32.totalorder %s152, %s154
    %p161 = scmp.eq.s32.totalorder %s18, 1
    %p162 = por %p160, %p161
    %p163 = scmp.ne.s32.totalorder %s154, %s155
    %p164 = scmp.eq.s32.totalorder %s18, 0
    %p165 = por %p163, %p164
    %p166 = scmp.ne.s32.totalorder %s154, %s155
    %p167 = scmp.eq.s32.totalorder %s19, 1
    %p168 = por %p166, %p167
    %p170 = scmp.ne.s32.totalorder %s155, %s169
    %p171 = scmp.eq.s32.totalorder %s19, 0
    %p172 = por %p170, %p171
    %s173 = ssub.s32 %s13, %s20
    %p174 = scmp.eq.s32.totalorder %s173, 0
    %s176 = sadd.s32 %s175, 1
    %s177 = scalar_select %p174, %s175, %s176
    %p180 = pneg %p174
    %p181 = scmp.eq.s32.totalorder %s13, 1
    %p182 = por %p180, %p181
    %p183 = scmp.ne.s32.totalorder %s175, %s178
    %p184 = scmp.eq.s32.totalorder %s13, 0
    %p185 = por %p183, %p184
    %p186 = scmp.ne.s32.totalorder %s175, %s178
    %p187 = scmp.eq.s32.totalorder %s18, 1
    %p188 = por %p186, %p187
    %p189 = scmp.ne.s32.totalorder %s178, %s179
    %p190 = scmp.eq.s32.totalorder %s18, 0
    %p191 = por %p189, %p190
    %p192 = scmp.ne.s32.totalorder %s178, %s179
    %p193 = scmp.eq.s32.totalorder %s19, 1
    %p194 = por %p192, %p193
    %p196 = scmp.ne.s32.totalorder %s179, %s195
    %p197 = scmp.eq.s32.totalorder %s19, 0
    %p198 = por %p196, %p197
    %p199 = scmp.le.s32.totalorder 1, %s13
    %p200 = scmp.lt.s32.totalorder %s13, 3
    %p201 = pnand %p199, %p200
    %p202 = pneg %p201
    // Predicated region
    $region9: #{_lambda_.19} parent=5 // pred_check
      _
    $region10: #{_lambda_.19} parent=5 // pred_check_branch
      %204 = sbr.rel (%p201) target = $region12
    $region11: #{_lambda_.19} parent=5 // pred_region
      %s205 = ssub.s32 %s13, 1
      // Predicated region
      $region13: #{_lambda_.19} parent=11 // pred_check
        %p206 = pneg %p60
      $region14: #{_lambda_.19} parent=11 // pred_check_branch
        %208 = sbr.rel (%p206) target = $region16
      $region15: #{_lambda_.19} parent=11 // pred_region
        _
      $region16: #{_lambda_.19} parent=11 // pred_fallthru
        _
      // Predicated region
      $region17: #{_lambda_.19} parent=11 // pred_check
        %p209 = pneg %p81
      $region18: #{_lambda_.19} parent=11 // pred_check_branch
        %211 = sbr.rel (%p209) target = $region20
      $region19: #{_lambda_.19} parent=11 // pred_region
        _
      $region20: #{_lambda_.19} parent=11 // pred_fallthru
        _
      // Predicated region
      $region21: #{_lambda_.19} parent=11 // pred_check
        %p212 = pneg %p102
      $region22: #{_lambda_.19} parent=11 // pred_check_branch
        %214 = sbr.rel (%p212) target = $region24
      $region23: #{_lambda_.19} parent=11 // pred_region
        _
      $region24: #{_lambda_.19} parent=11 // pred_fallthru
        _
      // Predicated region
      $region25: #{_lambda_.19} parent=11 // pred_check
        %p215 = pneg %p123
      $region26: #{_lambda_.19} parent=11 // pred_check_branch
        %217 = sbr.rel (%p215) target = $region28
      $region27: #{_lambda_.19} parent=11 // pred_region
        _
      $region28: #{_lambda_.19} parent=11 // pred_fallthru
        _
      // Predicated region
      $region29: #{_lambda_.19} parent=11 // pred_check
        %p218 = pneg %p144
      $region30: #{_lambda_.19} parent=11 // pred_check_branch
        %220 = sbr.rel (%p218) target = $region32
      $region31: #{_lambda_.19} parent=11 // pred_region
        _
      $region32: #{_lambda_.19} parent=11 // pred_fallthru
        _
      // Predicated region
      $region33: #{_lambda_.19} parent=11 // pred_check
        %p221 = pneg %p165
      $region34: #{_lambda_.19} parent=11 // pred_check_branch
        %223 = sbr.rel (%p221) target = $region36
      $region35: #{_lambda_.19} parent=11 // pred_region
        _
      $region36: #{_lambda_.19} parent=11 // pred_fallthru
        _
    $region12: #{_lambda_.19} parent=5 // pred_fallthru
      _
    %p224 = scmp.lt.s32.totalorder %s13, 2
    // Predicated region
    $region37: #{_lambda_.19} parent=5 // pred_check
      %p225 = pneg %p224
    $region38: #{_lambda_.19} parent=5 // pred_check_branch
      %227 = sbr.rel (%p225) target = $region40
    $region39: #{_lambda_.19} parent=5 // pred_region
      // Predicated region
      $region41: #{_lambda_.19} parent=39 // pred_check
        %p228 = pneg %p33
      $region42: #{_lambda_.19} parent=39 // pred_check_branch
        %230 = sbr.rel (%p228) target = $region44
      $region43: #{_lambda_.19} parent=39 // pred_region
        %p231 = scmp.lt.s32.totalorder %s13, 1
        %s232 = scalar_select %p231, %s13, 1
        %s233 = smul.addr %s232, 4
        %s234 = scalar_lea.vmem %s0, %s233
      $region44: #{_lambda_.19} parent=39 // pred_fallthru
        _
    $region40: #{_lambda_.19} parent=5 // pred_fallthru
      _
    %p235 = scmp.le.s32.totalorder 1, %s13
    %p236 = scmp.lt.s32.totalorder %s13, 3
    %p237 = pnand %p235, %p236
    %p238 = pneg %p237
    // Predicated region
    $region45: #{_lambda_.19} parent=5 // pred_check
      _
    $region46: #{_lambda_.19} parent=5 // pred_check_branch
      %240 = sbr.rel (%p237) target = $region48
    $region47: #{_lambda_.19} parent=5 // pred_region
      %s241 = ssub.s32 %s13, 1
      %p242 = scmp.lt.s32.totalorder %s18, 1
      %s243 = scalar_select %p242, %s18, 1
      %s244 = smul.addr %s243, 4
      %s245 = scalar_lea.vmem %s0, %s244
      %p246 = pneg %p39
      %p247 = pneg %p36
      %p248 = pneg %p60
      %p249 = pneg %p57
      %p250 = pneg %p81
      %p251 = pneg %p78
      %p252 = pneg %p102
      %p253 = pneg %p99
      %p254 = pneg %p123
      %p255 = pneg %p120
      %p256 = pneg %p144
      %p257 = pneg %p141
      %p258 = pneg %p165
      %p259 = pneg %p162
      %p260 = pneg %p191
      %p261 = pneg %p188
      %p262 = scmp.lt.s32.totalorder %s18, 1
      %s263 = scalar_select %p262, %s18, 1
      %s264 = smul.addr %s263, 4
      %s265 = scalar_lea.vmem %s7, %s264
      %p266 = scmp.lt.s32.totalorder %s18, 1
      %s267 = scalar_select %p266, %s18, 1
      %s268 = smul.addr %s267, 4
      %s269 = scalar_lea.vmem %s0, %s268
      %p270 = scmp.lt.s32.totalorder %s18, 1
      %s271 = scalar_select %p270, %s18, 1
      %s272 = smul.addr %s271, 4
      %s273 = scalar_lea.vmem %s7, %s272
      %v275 = vld [vmem:[%s269] sm:$0xf]
      %v276 = vld [vmem:[%s1] sm:$0xff]
      %v277 = vld [vmem:[%s1 + $0x8] sm:$0xff]
      %v278 = vld [vmem:[%s1 + $0x10] sm:$0xff]
      %v279 = vld [vmem:[%s1 + $0x18] sm:$0xff]
      %v280 = vld [vmem:[%s1 + $0x20] sm:$0xff]
      %v281 = vld [vmem:[%s1 + $0x28] sm:$0xff]
      %v282 = vld [vmem:[%s1 + $0x30] sm:$0xff]
      %v283 = vld [vmem:[%s1 + $0x38] sm:$0xff]
      %v284 = vld [vmem:[%s1 + $0x40] sm:$0xff]
      %v285 = vld [vmem:[%s1 + $0x48] sm:$0xff]
      %v286 = vld [vmem:[%s1 + $0x50] sm:$0xff]
      %v287 = vld [vmem:[%s1 + $0x58] sm:$0xff]
      %v288 = vld [vmem:[%s1 + $0x60] sm:$0xff]
      %v289 = vld [vmem:[%s1 + $0x68] sm:$0xff]
      %v290 = vld [vmem:[%s1 + $0x70] sm:$0xff]
      %v291 = vld [vmem:[%s1 + $0x78] sm:$0xff]
      %v292 = vld [vmem:[%s2] sm:$0x3]
      %v293 = vld [vmem:[%s3] sm:$0xf]
      %v294 = vld [vmem:[%s3 + $0x4] sm:$0xf]
      %v295 = vld [vmem:[%s3 + $0x8] sm:$0xf]
      %v296 = vld [vmem:[%s3 + $0xc] sm:$0xf]
      %v297 = vld [vmem:[%s3 + $0x10] sm:$0xf]
      %v298 = vld [vmem:[%s3 + $0x14] sm:$0xf]
      %v299 = vld [vmem:[%s3 + $0x18] sm:$0xf]
      %v300 = vld [vmem:[%s3 + $0x1c] sm:$0xf]
      %v301 = vld [vmem:[%s3 + $0x20] sm:$0xf]
      %v302 = vld [vmem:[%s3 + $0x24] sm:$0xf]
      %v303 = vld [vmem:[%s3 + $0x28] sm:$0xf]
      %v304 = vld [vmem:[%s3 + $0x2c] sm:$0xf]
      %v305 = vld [vmem:[%s3 + $0x30] sm:$0xf]
      %v306 = vld [vmem:[%s3 + $0x34] sm:$0xf]
      %v307 = vld [vmem:[%s3 + $0x38] sm:$0xf]
      %v308 = vld [vmem:[%s3 + $0x3c] sm:$0xf]
      %v309 = vld [vmem:[%s3 + $0x40] sm:$0xf]
      %v310 = vld [vmem:[%s3 + $0x44] sm:$0xf]
      %v311 = vld [vmem:[%s3 + $0x48] sm:$0xf]
      %v312 = vld [vmem:[%s3 + $0x4c] sm:$0xf]
      %v313 = vld [vmem:[%s3 + $0x50] sm:$0xf]
      %v314 = vld [vmem:[%s3 + $0x54] sm:$0xf]
      %v315 = vld [vmem:[%s3 + $0x58] sm:$0xf]
      %v316 = vld [vmem:[%s3 + $0x5c] sm:$0xf]
      %v317 = vld [vmem:[%s3 + $0x60] sm:$0xf]
      %v318 = vld [vmem:[%s3 + $0x64] sm:$0xf]
      %v319 = vld [vmem:[%s3 + $0x68] sm:$0xf]
      %v320 = vld [vmem:[%s3 + $0x6c] sm:$0xf]
      %v321 = vld [vmem:[%s3 + $0x70] sm:$0xf]
      %v322 = vld [vmem:[%s3 + $0x74] sm:$0xf]
      %v323 = vld [vmem:[%s3 + $0x78] sm:$0xf]
      %v324 = vld [vmem:[%s3 + $0x7c] sm:$0xf]
      %v325 = vld [vmem:[%s4] sm:$0x1]
      %v326 = vld [vmem:[%s5] sm:$0x1]
      %v327 = vld [vmem:[%s6] sm:$0x1]
      %v328 = vpack.c.bf16 %v275, %v275
      %v330 = vlaneseq
      %v331 = vshrl.u32 %v330, 7
      %v332 = vsub.s32 0, %v331
      %v333 = vrot.slane %v292, %v332
      %v334 = vlaneseq
      %v335 = vshrl.u32 %v334, 7
      %v336 = vsub.s32 1, %v335
      %v337 = vrot.slane %v292, %v336
      %v356 = vunpack.c.l.b16 %v276
      %v357 = vunpack.c.h.b16 %v276
      %v358 = vunpack.c.l.b16 %v277
      %v359 = vunpack.c.h.b16 %v277
      %v360 = vunpack.c.l.b16 %v278
      %v361 = vunpack.c.h.b16 %v278
      %v362 = vunpack.c.l.b16 %v279
      %v363 = vunpack.c.h.b16 %v279
      %v364 = vunpack.c.l.b16 %v280
      %v365 = vunpack.c.h.b16 %v280
      %v366 = vunpack.c.l.b16 %v281
      %v367 = vunpack.c.h.b16 %v281
      %v368 = vunpack.c.l.b16 %v282
      %v369 = vunpack.c.h.b16 %v282
      %v370 = vunpack.c.l.b16 %v283
      %v371 = vunpack.c.h.b16 %v283
      %v372 = vunpack.c.l.b16 %v284
      %v373 = vunpack.c.h.b16 %v284
      %v374 = vunpack.c.l.b16 %v285
      %v375 = vunpack.c.h.b16 %v285
      %v376 = vunpack.c.l.b16 %v286
      %v377 = vunpack.c.h.b16 %v286
      %v378 = vunpack.c.l.b16 %v287
      %v379 = vunpack.c.h.b16 %v287
      %v380 = vunpack.c.l.b16 %v288
      %v381 = vunpack.c.h.b16 %v288
      %v382 = vunpack.c.l.b16 %v289
      %v383 = vunpack.c.h.b16 %v289
      %v384 = vunpack.c.l.b16 %v290
      %v385 = vunpack.c.h.b16 %v290
      %v386 = vunpack.c.l.b16 %v291
      %v387 = vunpack.c.h.b16 %v291
      %v388 = vpack.c.b16 %v358, %v356
      %v389 = vpack.c.b16 %v359, %v357
      %v390 = vpack.c.b16 %v362, %v360
      %v391 = vpack.c.b16 %v363, %v361
      %v392 = vpack.c.b16 %v366, %v364
      %v393 = vpack.c.b16 %v367, %v365
      %v394 = vpack.c.b16 %v370, %v368
      %v395 = vpack.c.b16 %v371, %v369
      %v396 = vpack.c.b16 %v374, %v372
      %v397 = vpack.c.b16 %v375, %v373
      %v398 = vpack.c.b16 %v378, %v376
      %v399 = vpack.c.b16 %v379, %v377
      %v400 = vpack.c.b16 %v382, %v380
      %v401 = vpack.c.b16 %v383, %v381
      %v402 = vpack.c.b16 %v386, %v384
      %v403 = vpack.c.b16 %v387, %v385
      %420 = vmatprep.subr.bf16.mxu0 %v389
      %421 = vmatpush1.bf16.msra.mxu0 %v388
      %422 = vmatprep.subr.bf16.mxu0 %v391
      %423 = vmatpush1.bf16.msra.mxu0 %v390
      %424 = vmatprep.subr.bf16.mxu0 %v393
      %425 = vmatpush1.bf16.msra.mxu0 %v392
      %426 = vmatprep.subr.bf16.mxu0 %v395
      %427 = vmatpush1.bf16.msra.mxu0 %v394
      %428 = vmatprep.subr.bf16.mxu0 %v397
      %429 = vmatpush1.bf16.msra.mxu0 %v396
      %430 = vmatprep.subr.bf16.mxu0 %v399
      %431 = vmatpush1.bf16.msra.mxu0 %v398
      %432 = vmatprep.subr.bf16.mxu0 %v401
      %433 = vmatpush1.bf16.msra.mxu0 %v400
      %434 = vmatprep.subr.bf16.mxu0 %v403
      %435 = vmatpush1.bf16.msra.mxu0 %v402
      %436 = vmatprep.subr.bf16.mxu0 0
      %437 = vmatpush1.bf16.msra.mxu0 0
      %438 = vmatprep.subr.bf16.mxu0 0
      %439 = vmatpush1.bf16.msra.mxu0 0
      %440 = vmatprep.subr.bf16.mxu0 0
      %441 = vmatpush1.bf16.msra.mxu0 0
      %442 = vmatprep.subr.bf16.mxu0 0
      %443 = vmatpush1.bf16.msra.mxu0 0
      %444 = vmatprep.subr.bf16.mxu0 0
      %445 = vmatpush1.bf16.msra.mxu0 0
      %446 = vmatprep.subr.bf16.mxu0 0
      %447 = vmatpush1.bf16.msra.mxu0 0
      %448 = vmatprep.subr.bf16.mxu0 0
      %449 = vmatpush1.bf16.msra.mxu0 0
      %450 = vmatprep.subr.bf16.mxu0 0
      %451 = vmatpush1.bf16.msra.mxu0 0
      %452 = vmatprep.mubr.bf16.mxu0 0
      %453 = vmatmul.mubr.bf16.gmra.mrb[0].mxu0 %v328
      %v454 = vpop.f32.mrb[0].mxu0
      %v455 = vadd.f32 %v333, %v454
      %v456 = vpop.f32.mrb[0].mxu0
      %v457 = vadd.f32 %v337, %v456
      %v458 = vpop.f32.mrb[0].mxu0
      %v459 = vpop.f32.mrb[0].mxu0
      %460 = vdwg.mxu0
      %v461 = vmax.f32 %v455, 0.0
      %v462 = vmax.f32 %v457, 0.0
      %v463 = vpack.c.bf16 %v461, %v461
      %v464 = vpack.c.bf16 %v462, %v462
      %v466 = vlaneseq
      %v467 = vshrl.u32 %v466, 7
      %v468 = vsub.s32 0, %v467
      %v469 = vrot.slane %v325, %v468
      %v503 = vunpack.c.l.b16 %v293
      %v504 = vunpack.c.l.b16 %v294
      %v505 = vunpack.c.l.b16 %v295
      %v506 = vunpack.c.l.b16 %v296
      %v507 = vunpack.c.l.b16 %v297
      %v508 = vunpack.c.l.b16 %v298
      %v509 = vunpack.c.l.b16 %v299
      %v510 = vunpack.c.l.b16 %v300
      %v511 = vunpack.c.l.b16 %v301
      %v512 = vunpack.c.l.b16 %v302
      %v513 = vunpack.c.l.b16 %v303
      %v514 = vunpack.c.l.b16 %v304
      %v515 = vunpack.c.l.b16 %v305
      %v516 = vunpack.c.l.b16 %v306
      %v517 = vunpack.c.l.b16 %v307
      %v518 = vunpack.c.l.b16 %v308
      %v519 = vunpack.c.l.b16 %v309
      %v520 = vunpack.c.l.b16 %v310
      %v521 = vunpack.c.l.b16 %v311
      %v522 = vunpack.c.l.b16 %v312
      %v523 = vunpack.c.l.b16 %v313
      %v524 = vunpack.c.l.b16 %v314
      %v525 = vunpack.c.l.b16 %v315
      %v526 = vunpack.c.l.b16 %v316
      %v527 = vunpack.c.l.b16 %v317
      %v528 = vunpack.c.l.b16 %v318
      %v529 = vunpack.c.l.b16 %v319
      %v530 = vunpack.c.l.b16 %v320
      %v531 = vunpack.c.l.b16 %v321
      %v532 = vunpack.c.l.b16 %v322
      %v533 = vunpack.c.l.b16 %v323
      %v534 = vunpack.c.l.b16 %v324
      %v535 = vpack.c.b16 %v504, %v503
      %v536 = vpack.c.b16 %v506, %v505
      %v537 = vpack.c.b16 %v508, %v507
      %v538 = vpack.c.b16 %v510, %v509
      %v539 = vpack.c.b16 %v512, %v511
      %v540 = vpack.c.b16 %v514, %v513
      %v541 = vpack.c.b16 %v516, %v515
      %v542 = vpack.c.b16 %v518, %v517
      %v543 = vpack.c.b16 %v520, %v519
      %v544 = vpack.c.b16 %v522, %v521
      %v545 = vpack.c.b16 %v524, %v523
      %v546 = vpack.c.b16 %v526, %v525
      %v547 = vpack.c.b16 %v528, %v527
      %v548 = vpack.c.b16 %v530, %v529
      %v549 = vpack.c.b16 %v532, %v531
      %v550 = vpack.c.b16 %v534, %v533
      %567 = vmatprep.subr.bf16.mxu0 0
      %568 = vmatpush1.bf16.msra.mxu0 %v535
      %569 = vmatprep.subr.bf16.mxu0 0
      %570 = vmatpush1.bf16.msra.mxu0 %v536
      %571 = vmatprep.subr.bf16.mxu0 0
      %572 = vmatpush1.bf16.msra.mxu0 %v537
      %573 = vmatprep.subr.bf16.mxu0 0
      %574 = vmatpush1.bf16.msra.mxu0 %v538
      %575 = vmatprep.subr.bf16.mxu0 0
      %576 = vmatpush1.bf16.msra.mxu0 %v539
      %577 = vmatprep.subr.bf16.mxu0 0
      %578 = vmatpush1.bf16.msra.mxu0 %v540
      %579 = vmatprep.subr.bf16.mxu0 0
      %580 = vmatpush1.bf16.msra.mxu0 %v541
      %581 = vmatprep.subr.bf16.mxu0 0
      %582 = vmatpush1.bf16.msra.mxu0 %v542
      %583 = vmatprep.subr.bf16.mxu0 0
      %584 = vmatpush1.bf16.msra.mxu0 %v543
      %585 = vmatprep.subr.bf16.mxu0 0
      %586 = vmatpush1.bf16.msra.mxu0 %v544
      %587 = vmatprep.subr.bf16.mxu0 0
      %588 = vmatpush1.bf16.msra.mxu0 %v545
      %589 = vmatprep.subr.bf16.mxu0 0
      %590 = vmatpush1.bf16.msra.mxu0 %v546
      %591 = vmatprep.subr.bf16.mxu0 0
      %592 = vmatpush1.bf16.msra.mxu0 %v547
      %593 = vmatprep.subr.bf16.mxu0 0
      %594 = vmatpush1.bf16.msra.mxu0 %v548
      %595 = vmatprep.subr.bf16.mxu0 0
      %596 = vmatpush1.bf16.msra.mxu0 %v549
      %597 = vmatprep.subr.bf16.mxu0 0
      %598 = vmatpush1.bf16.msra.mxu0 %v550
      %599 = vmatprep.mubr.bf16.mxu0 %v464
      %600 = vmatmul.mubr.bf16.gmra.mrb[0].mxu0 %v463
      %v601 = vpop.f32.mrb[0].mxu0
      %v602 = vadd.f32 %v469, %v601
      %v603 = vpop.f32.mrb[0].mxu0
      %v604 = vpop.f32.mrb[0].mxu0
      %v605 = vpop.f32.mrb[0].mxu0
      %606 = vdwg.mxu0
      %v607 = vadd.f32 %v275, %v602
      %vm608 = vcmask 1043456
      %v609 = vsel %vm608, %v607, 0.0
      %610 = vadd.xlane.f32.xlu0 %v609
      %v611 = vpop.xlane.xlu0 %610
      %v612 = vrcp.pop 128.0
      %v613 = vmul.f32 %v611, %v612
      %v614 = vsub.f32 %v607, %v613
      %v615 = vmul.f32 %v614, %v614
      %v616 = vsel %vm608, %v615, 0.0
      %617 = vadd.xlane.f32.xlu0 %v616
      %v618 = vpop.xlane.xlu0 %617
      %v619 = vmul.f32 %v618, %v612
      %v620 = vadd.f32 %v619, 1e-05
      %v621 = vrsqrt.pop %v620
      %v622 = vmul.f32 %v614, %v621
      %v624 = vlaneseq
      %v625 = vshrl.u32 %v624, 7
      %v626 = vsub.s32 0, %v625
      %v627 = vrot.slane %v326, %v626
      %v629 = vmul.f32 %v622, %v627
      %v631 = vlaneseq
      %v632 = vshrl.u32 %v631, 7
      %v633 = vsub.s32 0, %v632
      %v634 = vrot.slane %v327, %v633
      %v636 = vadd.f32 %v629, %v634
      %637 = vst [vmem:[%s273] sm:$0xf] %v636
      %p638 = scmp.lt.s32.totalorder %s18, 1
      %s639 = scalar_select %p638, %s18, 1
      %s640 = smul.addr %s639, 4
      %s641 = scalar_lea.vmem %s7, %s640
      // Predicated region
      $region49: #{_lambda_.19} parent=47 // pred_check
        %p642 = pneg %p188
      $region50: #{_lambda_.19} parent=47 // pred_check_branch
        %644 = sbr.rel (%p642) target = $region52
      $region51: #{_lambda_.19} parent=47 // pred_region
        _
      $region52: #{_lambda_.19} parent=47 // pred_fallthru
        _
    $region48: #{_lambda_.19} parent=5 // pred_fallthru
      _
    %p645 = scmp.le.s32.totalorder 2, %s13
    // Predicated region
    $region53: #{_lambda_.19} parent=5 // pred_check
      %p646 = pneg %p645
    $region54: #{_lambda_.19} parent=5 // pred_check_branch
      %648 = sbr.rel (%p646) target = $region56
    $region55: #{_lambda_.19} parent=5 // pred_region
      %s649 = ssub.s32 %s13, 2
      // Predicated region
      $region57: #{_lambda_.19} parent=55 // pred_check
        %p650 = pneg %p194
      $region58: #{_lambda_.19} parent=55 // pred_check_branch
        %652 = sbr.rel (%p650) target = $region60
      $region59: #{_lambda_.19} parent=55 // pred_region
        %p653 = scmp.lt.s32.totalorder %s19, 1
        %s654 = scalar_select %p653, %s19, 1
        %s655 = smul.addr %s654, 4
        %s656 = scalar_lea.vmem %s7, %s655
      $region60: #{_lambda_.19} parent=55 // pred_fallthru
        _
    $region56: #{_lambda_.19} parent=5 // pred_fallthru
      _
  $region6: #{_lambda_.19} parent=0 // loop_footer
    %s17 = sadd.s32 1, %s13
  $region7: #{_lambda_.19} parent=0 // loop_footer_branch
    %12 = sbr.rel target = $region3
  $region8: #{_lambda_.19} parent=0 // loop_exit
    _

// kernel: _lambda_.18
$region0: #{_lambda_.18}
  #allocation0 [shape = 'u32[]', space=smem, size = 0x4, offset = 0x4, fixed_abs, tag = 'smem constant byte address 0x4 - core index']
  #allocation1 [shape = 'u32[144,128]{1,0:T(1,128)}', space=vmem, size = 0x12000, scoped, tag = 'internal scratch']
  %s0 = inlined_call_operand.vmem [shape: f32[2,4,128], index: 0, kind: input, shape index: {}]
  %s1 = inlined_call_operand.vmem [shape: bf16[128,384], index: 1, kind: input, shape index: {}]
  %s2 = inlined_call_operand.vmem [shape: f32[1,384], index: 2, kind: input, shape index: {}]
  %s3 = inlined_call_operand.vmem [shape: bf16[128,128], index: 3, kind: input, shape index: {}]
  %s4 = inlined_call_operand.vmem [shape: f32[1,128], index: 4, kind: input, shape index: {}]
  %s5 = inlined_call_operand.vmem [shape: f32[1,128], index: 5, kind: input, shape index: {}]
  %s6 = inlined_call_operand.vmem [shape: f32[1,128], index: 6, kind: input, shape index: {}]
  %s7 = inlined_call_operand.vmem [shape: f32[2,4,128], index: 7, kind: output, shape index: {}]
  %s8 = sld [smem:[#allocation0]]
  $region61: #{_lambda_.18} parent=0
    _
  %s10 = ssub.s32 1, %s8
  %s11 = scalar_select 0, %s10, %s8
  loop: start=0, step=1, limit=4
  $region2: #{_lambda_.18} parent=0 // loop_pre_header
    _
  $region3: #{_lambda_.18} parent=0 // loop_header
    %s13 = sphi 0, %s17
    %p14 = scmp.ge.s32.totalorder %s13, 4
    %s23 = sphi 0, %s25
    %s26 = sphi 0, %s23
    %s27 = sphi 0, %s26
    %s43 = sphi 0, %s27
    %s47 = sphi 0, %s47
    %s49 = sphi 0, %s47
    %s50 = sphi 0, %s49
    %s64 = sphi 0, %s50
    %s68 = sphi 0, %s68
    %s70 = sphi 0, %s68
    %s71 = sphi 0, %s70
    %s85 = sphi 0, %s71
    %s89 = sphi 0, %s89
    %s91 = sphi 0, %s89
    %s92 = sphi 0, %s91
    %s106 = sphi 0, %s92
    %s110 = sphi 0, %s110
    %s112 = sphi 0, %s110
    %s113 = sphi 0, %s112
    %s127 = sphi 0, %s113
    %s131 = sphi 0, %s131
    %s133 = sphi 0, %s131
    %s134 = sphi 0, %s133
    %s148 = sphi 0, %s134
    %s152 = sphi 0, %s152
    %s154 = sphi 0, %s152
    %s155 = sphi 0, %s154
    %s169 = sphi 0, %s155
    %s175 = sphi 0, %s177
    %s178 = sphi 0, %s175
    %s179 = sphi 0, %s178
    %s195 = sphi 0, %s179
  $region4: #{_lambda_.18} parent=0 // loop_header_branch
    %16 = sbr.rel (%p14) target = $region8
  $region5: #{_lambda_.18} parent=0 // loop_body
    %s18 = ssub.s32 %s13, 1
    %s19 = ssub.s32 %s13, 2
    %s20 = sadd.s32 %s13, 1
    %s21 = ssub.s32 %s13, %s20
    %p22 = scmp.eq.s32.totalorder %s21, 0
    %s24 = sadd.s32 %s23, 1
    %s25 = scalar_select %p22, %s23, %s24
    %p28 = pneg %p22
    %p29 = scmp.eq.s32.totalorder %s13, 1
    %p30 = por %p28, %p29
    %p31 = scmp.ne.s32.totalorder %s23, %s26
    %p32 = scmp.eq.s32.totalorder %s13, 0
    %p33 = por %p31, %p32
    %p34 = scmp.ne.s32.totalorder %s23, %s26
    %p35 = scmp.eq.s32.totalorder %s18, 1
    %p36 = por %p34, %p35
    %p37 = scmp.ne.s32.totalorder %s26, %s27
    %p38 = scmp.eq.s32.totalorder %s18, 0
    %p39 = por %p37, %p38
    %p40 = scmp.ne.s32.totalorder %s26, %s27
    %p41 = scmp.eq.s32.totalorder %s19, 1
    %p42 = por %p40, %p41
    %p44 = scmp.ne.s32.totalorder %s27, %s43
    %p45 = scmp.eq.s32.totalorder %s19, 0
    %p46 = por %p44, %p45
    %s48 = sadd.s32 %s47, 1
    %p51 = scmp.eq.s32.totalorder %s13, 1
    %p52 = scmp.ne.s32.totalorder %s47, %s49
    %p53 = scmp.eq.s32.totalorder %s13, 0
    %p54 = por %p52, %p53
    %p55 = scmp.ne.s32.totalorder %s47, %s49
    %p56 = scmp.eq.s32.totalorder %s18, 1
    %p57 = por %p55, %p56
    %p58 = scmp.ne.s32.totalorder %s49, %s50
    %p59 = scmp.eq.s32.totalorder %s18, 0
    %p60 = por %p58, %p59
    %p61 = scmp.ne.s32.totalorder %s49, %s50
    %p62 = scmp.eq.s32.totalorder %s19, 1
    %p63 = por %p61, %p62
    %p65 = scmp.ne.s32.totalorder %s50, %s64
    %p66 = scmp.eq.s32.totalorder %s19, 0
    %p67 = por %p65, %p66
    %s69 = sadd.s32 %s68, 1
    %p72 = scmp.eq.s32.totalorder %s13, 1
    %p73 = scmp.ne.s32.totalorder %s68, %s70
    %p74 = scmp.eq.s32.totalorder %s13, 0
    %p75 = por %p73, %p74
    %p76 = scmp.ne.s32.totalorder %s68, %s70
    %p77 = scmp.eq.s32.totalorder %s18, 1
    %p78 = por %p76, %p77
    %p79 = scmp.ne.s32.totalorder %s70, %s71
    %p80 = scmp.eq.s32.totalorder %s18, 0
    %p81 = por %p79, %p80
    %p82 = scmp.ne.s32.totalorder %s70, %s71
    %p83 = scmp.eq.s32.totalorder %s19, 1
    %p84 = por %p82, %p83
    %p86 = scmp.ne.s32.totalorder %s71, %s85
    %p87 = scmp.eq.s32.totalorder %s19, 0
    %p88 = por %p86, %p87
    %s90 = sadd.s32 %s89, 1
    %p93 = scmp.eq.s32.totalorder %s13, 1
    %p94 = scmp.ne.s32.totalorder %s89, %s91
    %p95 = scmp.eq.s32.totalorder %s13, 0
    %p96 = por %p94, %p95
    %p97 = scmp.ne.s32.totalorder %s89, %s91
    %p98 = scmp.eq.s32.totalorder %s18, 1
    %p99 = por %p97, %p98
    %p100 = scmp.ne.s32.totalorder %s91, %s92
    %p101 = scmp.eq.s32.totalorder %s18, 0
    %p102 = por %p100, %p101
    %p103 = scmp.ne.s32.totalorder %s91, %s92
    %p104 = scmp.eq.s32.totalorder %s19, 1
    %p105 = por %p103, %p104
    %p107 = scmp.ne.s32.totalorder %s92, %s106
    %p108 = scmp.eq.s32.totalorder %s19, 0
    %p109 = por %p107, %p108
    %s111 = sadd.s32 %s110, 1
    %p114 = scmp.eq.s32.totalorder %s13, 1
    %p115 = scmp.ne.s32.totalorder %s110, %s112
    %p116 = scmp.eq.s32.totalorder %s13, 0
    %p117 = por %p115, %p116
    %p118 = scmp.ne.s32.totalorder %s110, %s112
    %p119 = scmp.eq.s32.totalorder %s18, 1
    %p120 = por %p118, %p119
    %p121 = scmp.ne.s32.totalorder %s112, %s113
    %p122 = scmp.eq.s32.totalorder %s18, 0
    %p123 = por %p121, %p122
    %p124 = scmp.ne.s32.totalorder %s112, %s113
    %p125 = scmp.eq.s32.totalorder %s19, 1
    %p126 = por %p124, %p125
    %p128 = scmp.ne.s32.totalorder %s113, %s127
    %p129 = scmp.eq.s32.totalorder %s19, 0
    %p130 = por %p128, %p129
    %s132 = sadd.s32 %s131, 1
    %p135 = scmp.eq.s32.totalorder %s13, 1
    %p136 = scmp.ne.s32.totalorder %s131, %s133
    %p137 = scmp.eq.s32.totalorder %s13, 0
    %p138 = por %p136, %p137
    %p139 = scmp.ne.s32.totalorder %s131, %s133
    %p140 = scmp.eq.s32.totalorder %s18, 1
    %p141 = por %p139, %p140
    %p142 = scmp.ne.s32.totalorder %s133, %s134
    %p143 = scmp.eq.s32.totalorder %s18, 0
    %p144 = por %p142, %p143
    %p145 = scmp.ne.s32.totalorder %s133, %s134
    %p146 = scmp.eq.s32.totalorder %s19, 1
    %p147 = por %p145, %p146
    %p149 = scmp.ne.s32.totalorder %s134, %s148
    %p150 = scmp.eq.s32.totalorder %s19, 0
    %p151 = por %p149, %p150
    %s153 = sadd.s32 %s152, 1
    %p156 = scmp.eq.s32.totalorder %s13, 1
    %p157 = scmp.ne.s32.totalorder %s152, %s154
    %p158 = scmp.eq.s32.totalorder %s13, 0
    %p159 = por %p157, %p158
    %p160 = scmp.ne.s32.totalorder %s152, %s154
    %p161 = scmp.eq.s32.totalorder %s18, 1
    %p162 = por %p160, %p161
    %p163 = scmp.ne.s32.totalorder %s154, %s155
    %p164 = scmp.eq.s32.totalorder %s18, 0
    %p165 = por %p163, %p164
    %p166 = scmp.ne.s32.totalorder %s154, %s155
    %p167 = scmp.eq.s32.totalorder %s19, 1
    %p168 = por %p166, %p167
    %p170 = scmp.ne.s32.totalorder %s155, %s169
    %p171 = scmp.eq.s32.totalorder %s19, 0
    %p172 = por %p170, %p171
    %s173 = ssub.s32 %s13, %s20
    %p174 = scmp.eq.s32.totalorder %s173, 0
    %s176 = sadd.s32 %s175, 1
    %s177 = scalar_select %p174, %s175, %s176
    %p180 = pneg %p174
    %p181 = scmp.eq.s32.totalorder %s13, 1
    %p182 = por %p180, %p181
    %p183 = scmp.ne.s32.totalorder %s175, %s178
    %p184 = scmp.eq.s32.totalorder %s13, 0
    %p185 = por %p183, %p184
    %p186 = scmp.ne.s32.totalorder %s175, %s178
    %p187 = scmp.eq.s32.totalorder %s18, 1
    %p188 = por %p186, %p187
    %p189 = scmp.ne.s32.totalorder %s178, %s179
    %p190 = scmp.eq.s32.totalorder %s18, 0
    %p191 = por %p189, %p190
    %p192 = scmp.ne.s32.totalorder %s178, %s179
    %p193 = scmp.eq.s32.totalorder %s19, 1
    %p194 = por %p192, %p193
    %p196 = scmp.ne.s32.totalorder %s179, %s195
    %p197 = scmp.eq.s32.totalorder %s19, 0
    %p198 = por %p196, %p197
    %p199 = scmp.le.s32.totalorder 1, %s13
    %p200 = scmp.lt.s32.totalorder %s13, 3
    %p201 = pnand %p199, %p200
    %p202 = pneg %p201
    // Predicated region
    $region9: #{_lambda_.18} parent=5 // pred_check
      _
    $region10: #{_lambda_.18} parent=5 // pred_check_branch
      %204 = sbr.rel (%p201) target = $region12
    $region11: #{_lambda_.18} parent=5 // pred_region
      %s205 = ssub.s32 %s13, 1
      // Predicated region
      $region13: #{_lambda_.18} parent=11 // pred_check
        %p206 = pneg %p60
      $region14: #{_lambda_.18} parent=11 // pred_check_branch
        %208 = sbr.rel (%p206) target = $region16
      $region15: #{_lambda_.18} parent=11 // pred_region
        _
      $region16: #{_lambda_.18} parent=11 // pred_fallthru
        _
      // Predicated region
      $region17: #{_lambda_.18} parent=11 // pred_check
        %p209 = pneg %p81
      $region18: #{_lambda_.18} parent=11 // pred_check_branch
        %211 = sbr.rel (%p209) target = $region20
      $region19: #{_lambda_.18} parent=11 // pred_region
        _
      $region20: #{_lambda_.18} parent=11 // pred_fallthru
        _
      // Predicated region
      $region21: #{_lambda_.18} parent=11 // pred_check
        %p212 = pneg %p102
      $region22: #{_lambda_.18} parent=11 // pred_check_branch
        %214 = sbr.rel (%p212) target = $region24
      $region23: #{_lambda_.18} parent=11 // pred_region
        _
      $region24: #{_lambda_.18} parent=11 // pred_fallthru
        _
      // Predicated region
      $region25: #{_lambda_.18} parent=11 // pred_check
        %p215 = pneg %p123
      $region26: #{_lambda_.18} parent=11 // pred_check_branch
        %217 = sbr.rel (%p215) target = $region28
      $region27: #{_lambda_.18} parent=11 // pred_region
        _
      $region28: #{_lambda_.18} parent=11 // pred_fallthru
        _
      // Predicated region
      $region29: #{_lambda_.18} parent=11 // pred_check
        %p218 = pneg %p144
      $region30: #{_lambda_.18} parent=11 // pred_check_branch
        %220 = sbr.rel (%p218) target = $region32
      $region31: #{_lambda_.18} parent=11 // pred_region
        _
      $region32: #{_lambda_.18} parent=11 // pred_fallthru
        _
      // Predicated region
      $region33: #{_lambda_.18} parent=11 // pred_check
        %p221 = pneg %p165
      $region34: #{_lambda_.18} parent=11 // pred_check_branch
        %223 = sbr.rel (%p221) target = $region36
      $region35: #{_lambda_.18} parent=11 // pred_region
        _
      $region36: #{_lambda_.18} parent=11 // pred_fallthru
        _
    $region12: #{_lambda_.18} parent=5 // pred_fallthru
      _
    %p224 = scmp.lt.s32.totalorder %s13, 2
    // Predicated region
    $region37: #{_lambda_.18} parent=5 // pred_check
      %p225 = pneg %p224
    $region38: #{_lambda_.18} parent=5 // pred_check_branch
      %227 = sbr.rel (%p225) target = $region40
    $region39: #{_lambda_.18} parent=5 // pred_region
      // Predicated region
      $region41: #{_lambda_.18} parent=39 // pred_check
        %p228 = pneg %p33
      $region42: #{_lambda_.18} parent=39 // pred_check_branch
        %230 = sbr.rel (%p228) target = $region44
      $region43: #{_lambda_.18} parent=39 // pred_region
        %p231 = scmp.lt.s32.totalorder %s13, 1
        %s232 = scalar_select %p231, %s13, 1
        %s233 = smul.addr %s232, 4
        %s234 = scalar_lea.vmem %s0, %s233
      $region44: #{_lambda_.18} parent=39 // pred_fallthru
        _
    $region40: #{_lambda_.18} parent=5 // pred_fallthru
      _
    %p235 = scmp.le.s32.totalorder 1, %s13
    %p236 = scmp.lt.s32.totalorder %s13, 3
    %p237 = pnand %p235, %p236
    %p238 = pneg %p237
    // Predicated region
    $region45: #{_lambda_.18} parent=5 // pred_check
      _
    $region46: #{_lambda_.18} parent=5 // pred_check_branch
      %240 = sbr.rel (%p237) target = $region48
    $region47: #{_lambda_.18} parent=5 // pred_region
      %s241 = ssub.s32 %s13, 1
      %p242 = scmp.lt.s32.totalorder %s18, 1
      %s243 = scalar_select %p242, %s18, 1
      %s244 = smul.addr %s243, 4
      %s245 = scalar_lea.vmem %s0, %s244
      %p246 = pneg %p39
      %p247 = pneg %p36
      %p248 = pneg %p60
      %p249 = pneg %p57
      %p250 = pneg %p81
      %p251 = pneg %p78
      %p252 = pneg %p102
      %p253 = pneg %p99
      %p254 = pneg %p123
      %p255 = pneg %p120
      %p256 = pneg %p144
      %p257 = pneg %p141
      %p258 = pneg %p165
      %p259 = pneg %p162
      %p260 = pneg %p191
      %p261 = pneg %p188
      %p262 = scmp.lt.s32.totalorder %s18, 1
      %s263 = scalar_select %p262, %s18, 1
      %s264 = smul.addr %s263, 4
      %s265 = scalar_lea.vmem %s7, %s264
      %p266 = scmp.lt.s32.totalorder %s18, 1
      %s267 = scalar_select %p266, %s18, 1
      %s268 = smul.addr %s267, 4
      %s269 = scalar_lea.vmem %s0, %s268
      %p270 = scmp.lt.s32.totalorder %s18, 1
      %s271 = scalar_select %p270, %s18, 1
      %s272 = smul.addr %s271, 4
      %s273 = scalar_lea.vmem %s7, %s272
      %v275 = vld [vmem:[%s269] sm:$0xf]
      %v276 = vld [vmem:[%s1] sm:$0xff]
      %v277 = vld [vmem:[%s1 + $0x8] sm:$0xf]
      %v278 = vld [vmem:[%s1 + $0xc] sm:$0xff]
      %v279 = vld [vmem:[%s1 + $0x14] sm:$0xf]
      %v280 = vld [vmem:[%s1 + $0x18] sm:$0xff]
      %v281 = vld [vmem:[%s1 + $0x20] sm:$0xf]
      %v282 = vld [vmem:[%s1 + $0x24] sm:$0xff]
      %v283 = vld [vmem:[%s1 + $0x2c] sm:$0xf]
      %v284 = vld [vmem:[%s1 + $0x30] sm:$0xff]
      %v285 = vld [vmem:[%s1 + $0x38] sm:$0xf]
      %v286 = vld [vmem:[%s1 + $0x3c] sm:$0xff]
      %v287 = vld [vmem:[%s1 + $0x44] sm:$0xf]
      %v288 = vld [vmem:[%s1 + $0x48] sm:$0xff]
      %v289 = vld [vmem:[%s1 + $0x50] sm:$0xf]
      %v290 = vld [vmem:[%s1 + $0x54] sm:$0xff]
      %v291 = vld [vmem:[%s1 + $0x5c] sm:$0xf]
      %v292 = vld [vmem:[%s1 + $0x60] sm:$0xff]
      %v293 = vld [vmem:[%s1 + $0x68] sm:$0xf]
      %v294 = vld [vmem:[%s1 + $0x6c] sm:$0xff]
      %v295 = vld [vmem:[%s1 + $0x74] sm:$0xf]
      %v296 = vld [vmem:[%s1 + $0x78] sm:$0xff]
      %v297 = vld [vmem:[%s1 + $0x80] sm:$0xf]
      %v298 = vld [vmem:[%s1 + $0x84] sm:$0xff]
      %v299 = vld [vmem:[%s1 + $0x8c] sm:$0xf]
      %v300 = vld [vmem:[%s1 + $0x90] sm:$0xff]
      %v301 = vld [vmem:[%s1 + $0x98] sm:$0xf]
      %v302 = vld [vmem:[%s1 + $0x9c] sm:$0xff]
      %v303 = vld [vmem:[%s1 + $0xa4] sm:$0xf]
      %v304 = vld [vmem:[%s1 + $0xa8] sm:$0xff]
      %v305 = vld [vmem:[%s1 + $0xb0] sm:$0xf]
      %v306 = vld [vmem:[%s1 + $0xb4] sm:$0xff]
      %v307 = vld [vmem:[%s1 + $0xbc] sm:$0xf]
      %v308 = vld [vmem:[%s2] sm:$0x7]
      %v309 = vld [vmem:[%s3] sm:$0xf]
      %v310 = vld [vmem:[%s3 + $0x4] sm:$0xf]
      %v311 = vld [vmem:[%s3 + $0x8] sm:$0xf]
      %v312 = vld [vmem:[%s3 + $0xc] sm:$0xf]
      %v313 = vld [vmem:[%s3 + $0x10] sm:$0xf]
      %v314 = vld [vmem:[%s3 + $0x14] sm:$0xf]
      %v315 = vld [vmem:[%s3 + $0x18] sm:$0xf]
      %v316 = vld [vmem:[%s3 + $0x1c] sm:$0xf]
      %v317 = vld [vmem:[%s3 + $0x20] sm:$0xf]
      %v318 = vld [vmem:[%s3 + $0x24] sm:$0xf]
      %v319 = vld [vmem:[%s3 + $0x28] sm:$0xf]
      %v320 = vld [vmem:[%s3 + $0x2c] sm:$0xf]
      %v321 = vld [vmem:[%s3 + $0x30] sm:$0xf]
      %v322 = vld [vmem:[%s3 + $0x34] sm:$0xf]
      %v323 = vld [vmem:[%s3 + $0x38] sm:$0xf]
      %v324 = vld [vmem:[%s3 + $0x3c] sm:$0xf]
      %v325 = vld [vmem:[%s4] sm:$0x1]
      %v326 = vld [vmem:[%s5] sm:$0x1]
      %v327 = vld [vmem:[%s6] sm:$0x1]
      %v328 = vpack.c.bf16 %v275, %v275
      %v330 = vlaneseq
      %v331 = vshrl.u32 %v330, 7
      %v332 = vsub.s32 0, %v331
      %v333 = vrot.slane %v308, %v332
      %v334 = vlaneseq
      %v335 = vshrl.u32 %v334, 7
      %v336 = vsub.s32 1, %v335
      %v337 = vrot.slane %v308, %v336
      %v338 = vlaneseq
      %v339 = vshrl.u32 %v338, 7
      %v340 = vsub.s32 2, %v339
      %v341 = vrot.slane %v308, %v340
      %v377 = vunpack.c.l.b16 %v276
      %v378 = vunpack.c.h.b16 %v276
      %v379 = vunpack.c.l.b16 %v277
      %v380 = vunpack.c.l.b16 %v278
      %v381 = vunpack.c.h.b16 %v278
      %v382 = vunpack.c.l.b16 %v279
      %v383 = vunpack.c.l.b16 %v280
      %v384 = vunpack.c.h.b16 %v280
      %v385 = vunpack.c.l.b16 %v281
      %v386 = vunpack.c.l.b16 %v282
      %v387 = vunpack.c.h.b16 %v282
      %v388 = vunpack.c.l.b16 %v283
      %v389 = vunpack.c.l.b16 %v284
      %v390 = vunpack.c.h.b16 %v284
      %v391 = vunpack.c.l.b16 %v285
      %v392 = vunpack.c.l.b16 %v286
      %v393 = vunpack.c.h.b16 %v286
      %v394 = vunpack.c.l.b16 %v287
      %v395 = vunpack.c.l.b16 %v288
      %v396 = vunpack.c.h.b16 %v288
      %v397 = vunpack.c.l.b16 %v289
      %v398 = vunpack.c.l.b16 %v290
      %v399 = vunpack.c.h.b16 %v290
      %v400 = vunpack.c.l.b16 %v291
      %v401 = vunpack.c.l.b16 %v292
      %v402 = vunpack.c.h.b16 %v292
      %v403 = vunpack.c.l.b16 %v293
      %v404 = vunpack.c.l.b16 %v294
      %v405 = vunpack.c.h.b16 %v294
      %v406 = vunpack.c.l.b16 %v295
      %v407 = vunpack.c.l.b16 %v296
      %v408 = vunpack.c.h.b16 %v296
      %v409 = vunpack.c.l.b16 %v297
      %v410 = vunpack.c.l.b16 %v298
      %v411 = vunpack.c.h.b16 %v298
      %v412 = vunpack.c.l.b16 %v299
      %v413 = vunpack.c.l.b16 %v300
      %v414 = vunpack.c.h.b16 %v300
      %v415 = vunpack.c.l.b16 %v301
      %v416 = vunpack.c.l.b16 %v302
      %v417 = vunpack.c.h.b16 %v302
      %v418 = vunpack.c.l.b16 %v303
      %v419 = vunpack.c.l.b16 %v304
      %v420 = vunpack.c.h.b16 %v304
      %v421 = vunpack.c.l.b16 %v305
      %v422 = vunpack.c.l.b16 %v306
      %v423 = vunpack.c.h.b16 %v306
      %v424 = vunpack.c.l.b16 %v307
      %v425 = vpack.c.b16 %v380, %v377
      %v426 = vpack.c.b16 %v381, %v378
      %v427 = vpack.c.b16 %v382, %v379
      %v428 = vpack.c.b16 %v386, %v383
      %v429 = vpack.c.b16 %v387, %v384
      %v430 = vpack.c.b16 %v388, %v385
      %v431 = vpack.c.b16 %v392, %v389
      %v432 = vpack.c.b16 %v393, %v390
      %v433 = vpack.c.b16 %v394, %v391
      %v434 = vpack.c.b16 %v398, %v395
      %v435 = vpack.c.b16 %v399, %v396
      %v436 = vpack.c.b16 %v400, %v397
      %v437 = vpack.c.b16 %v404, %v401
      %v438 = vpack.c.b16 %v405, %v402
      %v439 = vpack.c.b16 %v406, %v403
      %v440 = vpack.c.b16 %v410, %v407
      %v441 = vpack.c.b16 %v411, %v408
      %v442 = vpack.c.b16 %v412, %v409
      %v443 = vpack.c.b16 %v416, %v413
      %v444 = vpack.c.b16 %v417, %v414
      %v445 = vpack.c.b16 %v418, %v415
      %v446 = vpack.c.b16 %v422, %v419
      %v447 = vpack.c.b16 %v423, %v420
      %v448 = vpack.c.b16 %v424, %v421
      %473 = vmatprep.subr.bf16.mxu0 %v426
      %474 = vmatpush1.bf16.msra.mxu0 %v425
      %475 = vmatprep.subr.bf16.mxu0 %v429
      %476 = vmatpush1.bf16.msra.mxu0 %v428
      %477 = vmatprep.subr.bf16.mxu0 %v432
      %478 = vmatpush1.bf16.msra.mxu0 %v431
      %479 = vmatprep.subr.bf16.mxu0 %v435
      %480 = vmatpush1.bf16.msra.mxu0 %v434
      %481 = vmatprep.subr.bf16.mxu0 %v438
      %482 = vmatpush1.bf16.msra.mxu0 %v437
      %483 = vmatprep.subr.bf16.mxu0 %v441
      %484 = vmatpush1.bf16.msra.mxu0 %v440
      %485 = vmatprep.subr.bf16.mxu0 %v444
      %486 = vmatpush1.bf16.msra.mxu0 %v443
      %487 = vmatprep.subr.bf16.mxu0 %v447
      %488 = vmatpush1.bf16.msra.mxu0 %v446
      %489 = vmatprep.subr.bf16.mxu0 0
      %490 = vmatpush1.bf16.msra.mxu0 0
      %491 = vmatprep.subr.bf16.mxu0 0
      %492 = vmatpush1.bf16.msra.mxu0 0
      %493 = vmatprep.subr.bf16.mxu0 0
      %494 = vmatpush1.bf16.msra.mxu0 0
      %495 = vmatprep.subr.bf16.mxu0 0
      %496 = vmatpush1.bf16.msra.mxu0 0
      %497 = vmatprep.subr.bf16.mxu0 0
      %498 = vmatpush1.bf16.msra.mxu0 0
      %499 = vmatprep.subr.bf16.mxu0 0
      %500 = vmatpush1.bf16.msra.mxu0 0
      %501 = vmatprep.subr.bf16.mxu0 0
      %502 = vmatpush1.bf16.msra.mxu0 0
      %503 = vmatprep.subr.bf16.mxu0 0
      %504 = vmatpush1.bf16.msra.mxu0 0
      %505 = vmatprep.mubr.bf16.mxu0 0
      %506 = vmatmul.mubr.bf16.gmra.mrb[0].mxu0 %v328
      %v507 = vpop.f32.mrb[0].mxu0
      %v508 = vadd.f32 %v333, %v507
      %v509 = vpop.f32.mrb[0].mxu0
      %v510 = vadd.f32 %v337, %v509
      %v511 = vpop.f32.mrb[0].mxu0
      %v512 = vpop.f32.mrb[0].mxu0
      %513 = vdwg.mxu0
      %514 = vmatprep.subr.bf16.mxu0 0
      %515 = vmatpush1.bf16.msra.mxu0 %v427
      %516 = vmatprep.subr.bf16.mxu0 0
      %517 = vmatpush1.bf16.msra.mxu0 %v430
      %518 = vmatprep.subr.bf16.mxu0 0
      %519 = vmatpush1.bf16.msra.mxu0 %v433
      %520 = vmatprep.subr.bf16.mxu0 0
      %521 = vmatpush1.bf16.msra.mxu0 %v436
      %522 = vmatprep.subr.bf16.mxu0 0
      %523 = vmatpush1.bf16.msra.mxu0 %v439
      %524 = vmatprep.subr.bf16.mxu0 0
      %525 = vmatpush1.bf16.msra.mxu0 %v442
      %526 = vmatprep.subr.bf16.mxu0 0
      %527 = vmatpush1.bf16.msra.mxu0 %v445
      %528 = vmatprep.subr.bf16.mxu0 0
      %529 = vmatpush1.bf16.msra.mxu0 %v448
      %530 = vmatprep.subr.bf16.mxu0 0
      %531 = vmatpush1.bf16.msra.mxu0 0
      %532 = vmatprep.subr.bf16.mxu0 0
      %533 = vmatpush1.bf16.msra.mxu0 0
      %534 = vmatprep.subr.bf16.mxu0 0
      %535 = vmatpush1.bf16.msra.mxu0 0
      %536 = vmatprep.subr.bf16.mxu0 0
      %537 = vmatpush1.bf16.msra.mxu0 0
      %538 = vmatprep.subr.bf16.mxu0 0
      %539 = vmatpush1.bf16.msra.mxu0 0
      %540 = vmatprep.subr.bf16.mxu0 0
      %541 = vmatpush1.bf16.msra.mxu0 0
      %542 = vmatprep.subr.bf16.mxu0 0
      %543 = vmatpush1.bf16.msra.mxu0 0
      %544 = vmatprep.subr.bf16.mxu0 0
      %545 = vmatpush1.bf16.msra.mxu0 0
      %546 = vmatprep.mubr.bf16.mxu0 0
      %547 = vmatmul.mubr.bf16.gmra.mrb[0].mxu0 %v328
      %v548 = vpop.f32.mrb[0].mxu0
      %v549 = vadd.f32 %v341, %v548
      %v550 = vpop.f32.mrb[0].mxu0
      %v551 = vpop.f32.mrb[0].mxu0
      %v552 = vpop.f32.mrb[0].mxu0
      %553 = vdwg.mxu0
      %v554 = vpack.c.bf16 %v508, %v508
      %v555 = vpack.c.bf16 %v510, %v510
      %v556 = vpack.c.bf16 %v549, %v549
      %vm557 = vcmask 261120
      %v559 = vsel %vm557, %v554, 0
      %v562 = vsel %vm557, %v555, 0
      %564 = vmatprep.subr.bf16.mxu0 0
      %565 = vmatpush1.bf16.xpose.msra.mxu0 %v562
      %566 = vmatprep.subr.bf16.mxu0 0
      %567 = vmatpush1.bf16.xpose.msra.mxu0 0
      %568 = vmatprep.subr.bf16.mxu0 0
      %569 = vmatpush1.bf16.xpose.msra.mxu0 0
      %570 = vmatprep.subr.bf16.mxu0 0
      %571 = vmatpush1.bf16.xpose.msra.mxu0 0
      %572 = vmatprep.subr.bf16.mxu0 0
      %573 = vmatpush1.bf16.xpose.msra.mxu0 0
      %574 = vmatprep.subr.bf16.mxu0 0
      %575 = vmatpush1.bf16.xpose.msra.mxu0 0
      %576 = vmatprep.subr.bf16.mxu0 0
      %577 = vmatpush1.bf16.xpose.msra.mxu0 0
      %578 = vmatprep.subr.bf16.mxu0 0
      %579 = vmatpush1.bf16.xpose.msra.mxu0 0
      %580 = vmatprep.subr.bf16.mxu0 0
      %581 = vmatpush1.bf16.xpose.msra.mxu0 0
      %582 = vmatprep.subr.bf16.mxu0 0
      %583 = vmatpush1.bf16.xpose.msra.mxu0 0
      %584 = vmatprep.subr.bf16.mxu0 0
      %585 = vmatpush1.bf16.xpose.msra.mxu0 0
      %586 = vmatprep.subr.bf16.mxu0 0
      %587 = vmatpush1.bf16.xpose.msra.mxu0 0
      %588 = vmatprep.subr.bf16.mxu0 0
      %589 = vmatpush1.bf16.xpose.msra.mxu0 0
      %590 = vmatprep.subr.bf16.mxu0 0
      %591 = vmatpush1.bf16.xpose.msra.mxu0 0
      %592 = vmatprep.subr.bf16.mxu0 0
      %593 = vmatpush1.bf16.xpose.msra.mxu0 0
      %594 = vmatprep.subr.bf16.mxu0 0
      %595 = vmatpush1.bf16.xpose.msra.mxu0 0
      %596 = vmatprep.mubr.bf16.mxu0 0
      %597 = vmatmul.mubr.bf16.gmra.mrb[0].mxu0 %v559
      %v598 = vpop.f32.mrb[0].mxu0
      %v599 = vadd.f32 0.0, %v598
      %v600 = vpop.f32.mrb[0].mxu0
      %v601 = vpop.f32.mrb[0].mxu0
      %v602 = vpop.f32.mrb[0].mxu0
      %603 = vdwg.mxu0
      %v604 = vmul.f32 %v599, 0.17677669
      %vm605 = vcmask 27648
      %v606 = vsel %vm605, %v604, -inf
      %607 = vmax.xlane.f32.xlu0 %v606
      %v608 = vpop.xlane.xlu0 %607
      %v609 = vsub.f32 %v604, %v608
      %v610 = vmul.f32 %v609, 1.442695
      %v611 = vpow.pop %v610
      %v612 = vsel %vm605, %v611, 0.0
      %613 = vadd.xlane.f32.xlu0 %v612
      %v614 = vpop.xlane.xlu0 %613
      %v615 = vrcp.pop %v614
      %v616 = vmul.f32 %v611, %v615
      %v617 = vpack.c.bf16 %v616, %v616
      %vm618 = vcmask 31744
      %v620 = vsel %vm618, %v617, 0
      %vm622 = vcmask 1041408
      %v624 = vsel %vm622, %v556, 0
      %626 = vmatprep.subr.bf16.mxu0 0
      %627 = vmatpush1.bf16.msra.mxu0 %v624
      %628 = vmatprep.subr.bf16.mxu0 0
      %629 = vmatpush1.bf16.msra.mxu0 0
      %630 = vmatprep.subr.bf16.mxu0 0
      %631 = vmatpush1.bf16.msra.mxu0 0
      %632 = vmatprep.subr.bf16.mxu0 0
      %633 = vmatpush1.bf16.msra.mxu0 0
      %634 = vmatprep.subr.bf16.mxu0 0
      %635 = vmatpush1.bf16.msra.mxu0 0
      %636 = vmatprep.subr.bf16.mxu0 0
      %637 = vmatpush1.bf16.msra.mxu0 0
      %638 = vmatprep.subr.bf16.mxu0 0
      %639 = vmatpush1.bf16.msra.mxu0 0
      %640 = vmatprep.subr.bf16.mxu0 0
      %641 = vmatpush1.bf16.msra.mxu0 0
      %642 = vmatprep.subr.bf16.mxu0 0
      %643 = vmatpush1.bf16.msra.mxu0 0
      %644 = vmatprep.subr.bf16.mxu0 0
      %645 = vmatpush1.bf16.msra.mxu0 0
      %646 = vmatprep.subr.bf16.mxu0 0
      %647 = vmatpush1.bf16.msra.mxu0 0
      %648 = vmatprep.subr.bf16.mxu0 0
      %649 = vmatpush1.bf16.msra.mxu0 0
      %650 = vmatprep.subr.bf16.mxu0 0
      %651 = vmatpush1.bf16.msra.mxu0 0
      %652 = vmatprep.subr.bf16.mxu0 0
      %653 = vmatpush1.bf16.msra.mxu0 0
      %654 = vmatprep.subr.bf16.mxu0 0
      %655 = vmatpush1.bf16.msra.mxu0 0
      %656 = vmatprep.subr.bf16.mxu0 0
      %657 = vmatpush1.bf16.msra.mxu0 0
      %658 = vmatprep.mubr.bf16.mxu0 0
      %659 = vmatmul.mubr.bf16.gmra.mrb[0].mxu0 %v620
      %v660 = vpop.f32.mrb[0].mxu0
      %v661 = vadd.f32 0.0, %v660
      %v662 = vpop.f32.mrb[0].mxu0
      %v663 = vpop.f32.mrb[0].mxu0
      %v664 = vpop.f32.mrb[0].mxu0
      %665 = vdwg.mxu0
      %v666 = vpack.c.bf16 %v661, %v661
      %668 = vrot.lane.b32.xlu0 %v554, 96
      %v669 = vpop.permute.xlu0 %668
      %671 = vrot.lane.b32.xlu0 %v555, 96
      %v672 = vpop.permute.xlu0 %671
      %v674 = vsel %vm557, %v669, 0
      %v677 = vsel %vm557, %v672, 0
      %679 = vmatprep.subr.bf16.mxu0 0
      %680 = vmatpush1.bf16.xpose.msra.mxu0 %v677
      %681 = vmatprep.subr.bf16.mxu0 0
      %682 = vmatpush1.bf16.xpose.msra.mxu0 0
      %683 = vmatprep.subr.bf16.mxu0 0
      %684 = vmatpush1.bf16.xpose.msra.mxu0 0
      %685 = vmatprep.subr.bf16.mxu0 0
      %686 = vmatpush1.bf16.xpose.msra.mxu0 0
      %687 = vmatprep.subr.bf16.mxu0 0
      %688 = vmatpush1.bf16.xpose.msra.mxu0 0
      %689 = vmatprep.subr.bf16.mxu0 0
      %690 = vmatpush1.bf16.xpose.msra.mxu0 0
      %691 = vmatprep.subr.bf16.mxu0 0
      %692 = vmatpush1.bf16.xpose.msra.mxu0 0
      %693 = vmatprep.subr.bf16.mxu0 0
      %694 = vmatpush1.bf16.xpose.msra.mxu0 0
      %695 = vmatprep.subr.bf16.mxu0 0
      %696 = vmatpush1.bf16.xpose.msra.mxu0 0
      %697 = vmatprep.subr.bf16.mxu0 0
      %698 = vmatpush1.bf16.xpose.msra.mxu0 0
      %699 = vmatprep.subr.bf16.mxu0 0
      %700 = vmatpush1.bf16.xpose.msra.mxu0 0
      %701 = vmatprep.subr.bf16.mxu0 0
      %702 = vmatpush1.bf16.xpose.msra.mxu0 0
      %703 = vmatprep.subr.bf16.mxu0 0
      %704 = vmatpush1.bf16.xpose.msra.mxu0 0
      %705 = vmatprep.subr.bf16.mxu0 0
      %706 = vmatpush1.bf16.xpose.msra.mxu0 0
      %707 = vmatprep.subr.bf16.mxu0 0
      %708 = vmatpush1.bf16.xpose.msra.mxu0 0
      %709 = vmatprep.subr.bf16.mxu0 0
      %710 = vmatpush1.bf16.xpose.msra.mxu0 0
      %711 = vmatprep.mubr.bf16.mxu0 0
      %712 = vmatmul.mubr.bf16.gmra.mrb[0].mxu0 %v674
      %v713 = vpop.f32.mrb[0].mxu0
      %v714 = vadd.f32 0.0, %v713
      %v715 = vpop.f32.mrb[0].mxu0
      %v716 = vpop.f32.mrb[0].mxu0
      %v717 = vpop.f32.mrb[0].mxu0
      %718 = vdwg.mxu0
      %v719 = vmul.f32 %v714, 0.17677669
      %v720 = vsel %vm605, %v719, -inf
      %721 = vmax.xlane.f32.xlu0 %v720
      %v722 = vpop.xlane.xlu0 %721
      %v723 = vsub.f32 %v719, %v722
      %v724 = vmul.f32 %v723, 1.442695
      %v725 = vpow.pop %v724
      %v726 = vsel %vm605, %v725, 0.0
      %727 = vadd.xlane.f32.xlu0 %v726
      %v728 = vpop.xlane.xlu0 %727
      %v729 = vrcp.pop %v728
      %v730 = vmul.f32 %v725, %v729
      %v731 = vpack.c.bf16 %v730, %v730
      %733 = vrot.lane.b32.xlu0 %v556, 96
      %v734 = vpop.permute.xlu0 %733
      %v736 = vsel %vm618, %v731, 0
      %v739 = vsel %vm622, %v734, 0
      %741 = vmatprep.subr.bf16.mxu0 0
      %742 = vmatpush1.bf16.msra.mxu0 %v739
      %743 = vmatprep.subr.bf16.mxu0 0
      %744 = vmatpush1.bf16.msra.mxu0 0
      %745 = vmatprep.subr.bf16.mxu0 0
      %746 = vmatpush1.bf16.msra.mxu0 0
      %747 = vmatprep.subr.bf16.mxu0 0
      %748 = vmatpush1.bf16.msra.mxu0 0
      %749 = vmatprep.subr.bf16.mxu0 0
      %750 = vmatpush1.bf16.msra.mxu0 0
      %751 = vmatprep.subr.bf16.mxu0 0
      %752 = vmatpush1.bf16.msra.mxu0 0
      %753 = vmatprep.subr.bf16.mxu0 0
      %754 = vmatpush1.bf16.msra.mxu0 0
      %755 = vmatprep.subr.bf16.mxu0 0
      %756 = vmatpush1.bf16.msra.mxu0 0
      %757 = vmatprep.subr.bf16.mxu0 0
      %758 = vmatpush1.bf16.msra.mxu0 0
      %759 = vmatprep.subr.bf16.mxu0 0
      %760 = vmatpush1.bf16.msra.mxu0 0
      %761 = vmatprep.subr.bf16.mxu0 0
      %762 = vmatpush1.bf16.msra.mxu0 0
      %763 = vmatprep.subr.bf16.mxu0 0
      %764 = vmatpush1.bf16.msra.mxu0 0
      %765 = vmatprep.subr.bf16.mxu0 0
      %766 = vmatpush1.bf16.msra.mxu0 0
      %767 = vmatprep.subr.bf16.mxu0 0
      %768 = vmatpush1.bf16.msra.mxu0 0
      %769 = vmatprep.subr.bf16.mxu0 0
      %770 = vmatpush1.bf16.msra.mxu0 0
      %771 = vmatprep.subr.bf16.mxu0 0
      %772 = vmatpush1.bf16.msra.mxu0 0
      %773 = vmatprep.mubr.bf16.mxu0 0
      %774 = vmatmul.mubr.bf16.gmra.mrb[0].mxu0 %v736
      %v775 = vpop.f32.mrb[0].mxu0
      %v776 = vadd.f32 0.0, %v775
      %v777 = vpop.f32.mrb[0].mxu0
      %v778 = vpop.f32.mrb[0].mxu0
      %v779 = vpop.f32.mrb[0].mxu0
      %780 = vdwg.mxu0
      %v781 = vpack.c.bf16 %v776, %v776
      %v786 = vunpack.c.l.b16 %v313
      %v787 = vunpack.c.l.b16 %v314
      %v788 = vunpack.c.l.b16 %v315
      %v789 = vunpack.c.l.b16 %v316
      %v790 = vpack.c.b16 %v787, %v786
      %v791 = vpack.c.b16 %v789, %v788
      %v795 = vsel %vm557, %v781, 0
      %797 = vmatprep.subr.bf16.mxu0 0
      %798 = vmatpush1.bf16.msra.mxu0 %v790
      %799 = vmatprep.subr.bf16.mxu0 0
      %800 = vmatpush1.bf16.msra.mxu0 %v791
      %801 = vmatprep.subr.bf16.mxu0 0
      %802 = vmatpush1.bf16.msra.mxu0 0
      %803 = vmatprep.subr.bf16.mxu0 0
      %804 = vmatpush1.bf16.msra.mxu0 0
      %805 = vmatprep.subr.bf16.mxu0 0
      %806 = vmatpush1.bf16.msra.mxu0 0
      %807 = vmatprep.subr.bf16.mxu0 0
      %808 = vmatpush1.bf16.msra.mxu0 0
      %809 = vmatprep.subr.bf16.mxu0 0
      %810 = vmatpush1.bf16.msra.mxu0 0
      %811 = vmatprep.subr.bf16.mxu0 0
      %812 = vmatpush1.bf16.msra.mxu0 0
      %813 = vmatprep.subr.bf16.mxu0 0
      %814 = vmatpush1.bf16.msra.mxu0 0
      %815 = vmatprep.subr.bf16.mxu0 0
      %816 = vmatpush1.bf16.msra.mxu0 0
      %817 = vmatprep.subr.bf16.mxu0 0
      %818 = vmatpush1.bf16.msra.mxu0 0
      %819 = vmatprep.subr.bf16.mxu0 0
      %820 = vmatpush1.bf16.msra.mxu0 0
      %821 = vmatprep.subr.bf16.mxu0 0
      %822 = vmatpush1.bf16.msra.mxu0 0
      %823 = vmatprep.subr.bf16.mxu0 0
      %824 = vmatpush1.bf16.msra.mxu0 0
      %825 = vmatprep.subr.bf16.mxu0 0
      %826 = vmatpush1.bf16.msra.mxu0 0
      %827 = vmatprep.subr.bf16.mxu0 0
      %828 = vmatpush1.bf16.msra.mxu0 0
      %829 = vmatprep.mubr.bf16.mxu0 0
      %830 = vmatmul.mubr.bf16.gmra.mrb[0].mxu0 %v795
      %v831 = vpop.f32.mrb[0].mxu0
      %v832 = vadd.f32 0.0, %v831
      %v833 = vpop.f32.mrb[0].mxu0
      %v834 = vpop.f32.mrb[0].mxu0
      %v835 = vpop.f32.mrb[0].mxu0
      %836 = vdwg.mxu0
      %v841 = vunpack.c.l.b16 %v309
      %v842 = vunpack.c.l.b16 %v310
      %v843 = vunpack.c.l.b16 %v311
      %v844 = vunpack.c.l.b16 %v312
      %v845 = vpack.c.b16 %v842, %v841
      %v846 = vpack.c.b16 %v844, %v843
      %v850 = vsel %vm557, %v666, 0
      %852 = vmatprep.subr.bf16.mxu0 0
      %853 = vmatpush1.bf16.msra.mxu0 %v845
      %854 = vmatprep.subr.bf16.mxu0 0
      %855 = vmatpush1.bf16.msra.mxu0 %v846
      %856 = vmatprep.subr.bf16.mxu0 0
      %857 = vmatpush1.bf16.msra.mxu0 0
      %858 = vmatprep.subr.bf16.mxu0 0
      %859 = vmatpush1.bf16.msra.mxu0 0
      %860 = vmatprep.subr.bf16.mxu0 0
      %861 = vmatpush1.bf16.msra.mxu0 0
      %862 = vmatprep.subr.bf16.mxu0 0
      %863 = vmatpush1.bf16.msra.mxu0 0
      %864 = vmatprep.subr.bf16.mxu0 0
      %865 = vmatpush1.bf16.msra.mxu0 0
      %866 = vmatprep.subr.bf16.mxu0 0
      %867 = vmatpush1.bf16.msra.mxu0 0
      %868 = vmatprep.subr.bf16.mxu0 0
      %869 = vmatpush1.bf16.msra.mxu0 0
      %870 = vmatprep.subr.bf16.mxu0 0
      %871 = vmatpush1.bf16.msra.mxu0 0
      %872 = vmatprep.subr.bf16.mxu0 0
      %873 = vmatpush1.bf16.msra.mxu0 0
      %874 = vmatprep.subr.bf16.mxu0 0
      %875 = vmatpush1.bf16.msra.mxu0 0
      %876 = vmatprep.subr.bf16.mxu0 0
      %877 = vmatpush1.bf16.msra.mxu0 0
      %878 = vmatprep.subr.bf16.mxu0 0
      %879 = vmatpush1.bf16.msra.mxu0 0
      %880 = vmatprep.subr.bf16.mxu0 0
      %881 = vmatpush1.bf16.msra.mxu0 0
      %882 = vmatprep.subr.bf16.mxu0 0
      %883 = vmatpush1.bf16.msra.mxu0 0
      %884 = vmatprep.mubr.bf16.mxu0 0
      %885 = vmatmul.mubr.bf16.gmra.mrb[0].mxu0 %v850
      %v886 = vpop.f32.mrb[0].mxu0
      %v887 = vadd.f32 %v832, %v886
      %v888 = vpop.f32.mrb[0].mxu0
      %v889 = vpop.f32.mrb[0].mxu0
      %v890 = vpop.f32.mrb[0].mxu0
      %891 = vdwg.mxu0
      %892 = vrot.lane.b32.xlu0 %v554, 64
      %v893 = vpop.permute.xlu0 %892
      %894 = vrot.lane.b32.xlu0 %v555, 64
      %v895 = vpop.permute.xlu0 %894
      %v897 = vsel %vm557, %v893, 0
      %v900 = vsel %vm557, %v895, 0
      %902 = vmatprep.subr.bf16.mxu0 0
      %903 = vmatpush1.bf16.xpose.msra.mxu0 %v900
      %904 = vmatprep.subr.bf16.mxu0 0
      %905 = vmatpush1.bf16.xpose.msra.mxu0 0
      %906 = vmatprep.subr.bf16.mxu0 0
      %907 = vmatpush1.bf16.xpose.msra.mxu0 0
      %908 = vmatprep.subr.bf16.mxu0 0
      %909 = vmatpush1.bf16.xpose.msra.mxu0 0
      %910 = vmatprep.subr.bf16.mxu0 0
      %911 = vmatpush1.bf16.xpose.msra.mxu0 0
      %912 = vmatprep.subr.bf16.mxu0 0
      %913 = vmatpush1.bf16.xpose.msra.mxu0 0
      %914 = vmatprep.subr.bf16.mxu0 0
      %915 = vmatpush1.bf16.xpose.msra.mxu0 0
      %916 = vmatprep.subr.bf16.mxu0 0
      %917 = vmatpush1.bf16.xpose.msra.mxu0 0
      %918 = vmatprep.subr.bf16.mxu0 0
      %919 = vmatpush1.bf16.xpose.msra.mxu0 0
      %920 = vmatprep.subr.bf16.mxu0 0
      %921 = vmatpush1.bf16.xpose.msra.mxu0 0
      %922 = vmatprep.subr.bf16.mxu0 0
      %923 = vmatpush1.bf16.xpose.msra.mxu0 0
      %924 = vmatprep.subr.bf16.mxu0 0
      %925 = vmatpush1.bf16.xpose.msra.mxu0 0
      %926 = vmatprep.subr.bf16.mxu0 0
      %927 = vmatpush1.bf16.xpose.msra.mxu0 0
      %928 = vmatprep.subr.bf16.mxu0 0
      %929 = vmatpush1.bf16.xpose.msra.mxu0 0
      %930 = vmatprep.subr.bf16.mxu0 0
      %931 = vmatpush1.bf16.xpose.msra.mxu0 0
      %932 = vmatprep.subr.bf16.mxu0 0
      %933 = vmatpush1.bf16.xpose.msra.mxu0 0
      %934 = vmatprep.mubr.bf16.mxu0 0
      %935 = vmatmul.mubr.bf16.gmra.mrb[0].mxu0 %v897
      %v936 = vpop.f32.mrb[0].mxu0
      %v937 = vadd.f32 0.0, %v936
      %v938 = vpop.f32.mrb[0].mxu0
      %v939 = vpop.f32.mrb[0].mxu0
      %v940 = vpop.f32.mrb[0].mxu0
      %941 = vdwg.mxu0
      %v942 = vmul.f32 %v937, 0.17677669
      %v943 = vsel %vm605, %v942, -inf
      %944 = vmax.xlane.f32.xlu0 %v943
      %v945 = vpop.xlane.xlu0 %944
      %v946 = vsub.f32 %v942, %v945
      %v947 = vmul.f32 %v946, 1.442695
      %v948 = vpow.pop %v947
      %v949 = vsel %vm605, %v948, 0.0
      %950 = vadd.xlane.f32.xlu0 %v949
      %v951 = vpop.xlane.xlu0 %950
      %v952 = vrcp.pop %v951
      %v953 = vmul.f32 %v948, %v952
      %v954 = vpack.c.bf16 %v953, %v953
      %955 = vrot.lane.b32.xlu0 %v556, 64
      %v956 = vpop.permute.xlu0 %955
      %v958 = vsel %vm618, %v954, 0
      %v961 = vsel %vm622, %v956, 0
      %963 = vmatprep.subr.bf16.mxu0 0
      %964 = vmatpush1.bf16.msra.mxu0 %v961
      %965 = vmatprep.subr.bf16.mxu0 0
      %966 = vmatpush1.bf16.msra.mxu0 0
      %967 = vmatprep.subr.bf16.mxu0 0
      %968 = vmatpush1.bf16.msra.mxu0 0
      %969 = vmatprep.subr.bf16.mxu0 0
      %970 = vmatpush1.bf16.msra.mxu0 0
      %971 = vmatprep.subr.bf16.mxu0 0
      %972 = vmatpush1.bf16.msra.mxu0 0
      %973 = vmatprep.subr.bf16.mxu0 0
      %974 = vmatpush1.bf16.msra.mxu0 0
      %975 = vmatprep.subr.bf16.mxu0 0
      %976 = vmatpush1.bf16.msra.mxu0 0
      %977 = vmatprep.subr.bf16.mxu0 0
      %978 = vmatpush1.bf16.msra.mxu0 0
      %979 = vmatprep.subr.bf16.mxu0 0
      %980 = vmatpush1.bf16.msra.mxu0 0
      %981 = vmatprep.subr.bf16.mxu0 0
      %982 = vmatpush1.bf16.msra.mxu0 0
      %983 = vmatprep.subr.bf16.mxu0 0
      %984 = vmatpush1.bf16.msra.mxu0 0
      %985 = vmatprep.subr.bf16.mxu0 0
      %986 = vmatpush1.bf16.msra.mxu0 0
      %987 = vmatprep.subr.bf16.mxu0 0
      %988 = vmatpush1.bf16.msra.mxu0 0
      %989 = vmatprep.subr.bf16.mxu0 0
      %990 = vmatpush1.bf16.msra.mxu0 0
      %991 = vmatprep.subr.bf16.mxu0 0
      %992 = vmatpush1.bf16.msra.mxu0 0
      %993 = vmatprep.subr.bf16.mxu0 0
      %994 = vmatpush1.bf16.msra.mxu0 0
      %995 = vmatprep.mubr.bf16.mxu0 0
      %996 = vmatmul.mubr.bf16.gmra.mrb[0].mxu0 %v958
      %v997 = vpop.f32.mrb[0].mxu0
      %v998 = vadd.f32 0.0, %v997
      %v999 = vpop.f32.mrb[0].mxu0
      %v1000 = vpop.f32.mrb[0].mxu0
      %v1001 = vpop.f32.mrb[0].mxu0
      %1002 = vdwg.mxu0
      %v1003 = vpack.c.bf16 %v998, %v998
      %v1008 = vunpack.c.l.b16 %v317
      %v1009 = vunpack.c.l.b16 %v318
      %v1010 = vunpack.c.l.b16 %v319
      %v1011 = vunpack.c.l.b16 %v320
      %v1012 = vpack.c.b16 %v1009, %v1008
      %v1013 = vpack.c.b16 %v1011, %v1010
      %v1017 = vsel %vm557, %v1003, 0
      %1019 = vmatprep.subr.bf16.mxu0 0
      %1020 = vmatpush1.bf16.msra.mxu0 %v1012
      %1021 = vmatprep.subr.bf16.mxu0 0
      %1022 = vmatpush1.bf16.msra.mxu0 %v1013
      %1023 = vmatprep.subr.bf16.mxu0 0
      %1024 = vmatpush1.bf16.msra.mxu0 0
      %1025 = vmatprep.subr.bf16.mxu0 0
      %1026 = vmatpush1.bf16.msra.mxu0 0
      %1027 = vmatprep.subr.bf16.mxu0 0
      %1028 = vmatpush1.bf16.msra.mxu0 0
      %1029 = vmatprep.subr.bf16.mxu0 0
      %1030 = vmatpush1.bf16.msra.mxu0 0
      %1031 = vmatprep.subr.bf16.mxu0 0
      %1032 = vmatpush1.bf16.msra.mxu0 0
      %1033 = vmatprep.subr.bf16.mxu0 0
      %1034 = vmatpush1.bf16.msra.mxu0 0
      %1035 = vmatprep.subr.bf16.mxu0 0
      %1036 = vmatpush1.bf16.msra.mxu0 0
      %1037 = vmatprep.subr.bf16.mxu0 0
      %1038 = vmatpush1.bf16.msra.mxu0 0
      %1039 = vmatprep.subr.bf16.mxu0 0
      %1040 = vmatpush1.bf16.msra.mxu0 0
      %1041 = vmatprep.subr.bf16.mxu0 0
      %1042 = vmatpush1.bf16.msra.mxu0 0
      %1043 = vmatprep.subr.bf16.mxu0 0
      %1044 = vmatpush1.bf16.msra.mxu0 0
      %1045 = vmatprep.subr.bf16.mxu0 0
      %1046 = vmatpush1.bf16.msra.mxu0 0
      %1047 = vmatprep.subr.bf16.mxu0 0
      %1048 = vmatpush1.bf16.msra.mxu0 0
      %1049 = vmatprep.subr.bf16.mxu0 0
      %1050 = vmatpush1.bf16.msra.mxu0 0
      %1051 = vmatprep.mubr.bf16.mxu0 0
      %1052 = vmatmul.mubr.bf16.gmra.mrb[0].mxu0 %v1017
      %v1053 = vpop.f32.mrb[0].mxu0
      %v1054 = vadd.f32 0.0, %v1053
      %v1055 = vpop.f32.mrb[0].mxu0
      %v1056 = vpop.f32.mrb[0].mxu0
      %v1057 = vpop.f32.mrb[0].mxu0
      %1058 = vdwg.mxu0
      %v1059 = vadd.f32 %v887, %v1054
      %1060 = vrot.lane.b32.xlu0 %v554, 32
      %v1061 = vpop.permute.xlu0 %1060
      %1062 = vrot.lane.b32.xlu0 %v555, 32
      %v1063 = vpop.permute.xlu0 %1062
      %v1065 = vsel %vm557, %v1061, 0
      %v1068 = vsel %vm557, %v1063, 0
      %1070 = vmatprep.subr.bf16.mxu0 0
      %1071 = vmatpush1.bf16.xpose.msra.mxu0 %v1068
      %1072 = vmatprep.subr.bf16.mxu0 0
      %1073 = vmatpush1.bf16.xpose.msra.mxu0 0
      %1074 = vmatprep.subr.bf16.mxu0 0
      %1075 = vmatpush1.bf16.xpose.msra.mxu0 0
      %1076 = vmatprep.subr.bf16.mxu0 0
      %1077 = vmatpush1.bf16.xpose.msra.mxu0 0
      %1078 = vmatprep.subr.bf16.mxu0 0
      %1079 = vmatpush1.bf16.xpose.msra.mxu0 0
      %1080 = vmatprep.subr.bf16.mxu0 0
      %1081 = vmatpush1.bf16.xpose.msra.mxu0 0
      %1082 = vmatprep.subr.bf16.mxu0 0
      %1083 = vmatpush1.bf16.xpose.msra.mxu0 0
      %1084 = vmatprep.subr.bf16.mxu0 0
      %1085 = vmatpush1.bf16.xpose.msra.mxu0 0
      %1086 = vmatprep.subr.bf16.mxu0 0
      %1087 = vmatpush1.bf16.xpose.msra.mxu0 0
      %1088 = vmatprep.subr.bf16.mxu0 0
      %1089 = vmatpush1.bf16.xpose.msra.mxu0 0
      %1090 = vmatprep.subr.bf16.mxu0 0
      %1091 = vmatpush1.bf16.xpose.msra.mxu0 0
      %1092 = vmatprep.subr.bf16.mxu0 0
      %1093 = vmatpush1.bf16.xpose.msra.mxu0 0
      %1094 = vmatprep.subr.bf16.mxu0 0
      %1095 = vmatpush1.bf16.xpose.msra.mxu0 0
      %1096 = vmatprep.subr.bf16.mxu0 0
      %1097 = vmatpush1.bf16.xpose.msra.mxu0 0
      %1098 = vmatprep.subr.bf16.mxu0 0
      %1099 = vmatpush1.bf16.xpose.msra.mxu0 0
      %1100 = vmatprep.subr.bf16.mxu0 0
      %1101 = vmatpush1.bf16.xpose.msra.mxu0 0
      %1102 = vmatprep.mubr.bf16.mxu0 0
      %1103 = vmatmul.mubr.bf16.gmra.mrb[0].mxu0 %v1065
      %v1104 = vpop.f32.mrb[0].mxu0
      %v1105 = vadd.f32 0.0, %v1104
      %v1106 = vpop.f32.mrb[0].mxu0
      %v1107 = vpop.f32.mrb[0].mxu0
      %v1108 = vpop.f32.mrb[0].mxu0
      %1109 = vdwg.mxu0
      %v1110 = vmul.f32 %v1105, 0.17677669
      %v1111 = vsel %vm605, %v1110, -inf
      %1112 = vmax.xlane.f32.xlu0 %v1111
      %v1113 = vpop.xlane.xlu0 %1112
      %v1114 = vsub.f32 %v1110, %v1113
      %v1115 = vmul.f32 %v1114, 1.442695
      %v1116 = vpow.pop %v1115
      %v1117 = vsel %vm605, %v1116, 0.0
      %1118 = vadd.xlane.f32.xlu0 %v1117
      %v1119 = vpop.xlane.xlu0 %1118
      %v1120 = vrcp.pop %v1119
      %v1121 = vmul.f32 %v1116, %v1120
      %v1122 = vpack.c.bf16 %v1121, %v1121
      %1123 = vrot.lane.b32.xlu0 %v556, 32
      %v1124 = vpop.permute.xlu0 %1123
      %v1126 = vsel %vm618, %v1122, 0
      %v1129 = vsel %vm622, %v1124, 0
      %1131 = vmatprep.subr.bf16.mxu0 0
      %1132 = vmatpush1.bf16.msra.mxu0 %v1129
      %1133 = vmatprep.subr.bf16.mxu0 0
      %1134 = vmatpush1.bf16.msra.mxu0 0
      %1135 = vmatprep.subr.bf16.mxu0 0
      %1136 = vmatpush1.bf16.msra.mxu0 0
      %1137 = vmatprep.subr.bf16.mxu0 0
      %1138 = vmatpush1.bf16.msra.mxu0 0
      %1139 = vmatprep.subr.bf16.mxu0 0
      %1140 = vmatpush1.bf16.msra.mxu0 0
      %1141 = vmatprep.subr.bf16.mxu0 0
      %1142 = vmatpush1.bf16.msra.mxu0 0
      %1143 = vmatprep.subr.bf16.mxu0 0
      %1144 = vmatpush1.bf16.msra.mxu0 0
      %1145 = vmatprep.subr.bf16.mxu0 0
      %1146 = vmatpush1.bf16.msra.mxu0 0
      %1147 = vmatprep.subr.bf16.mxu0 0
      %1148 = vmatpush1.bf16.msra.mxu0 0
      %1149 = vmatprep.subr.bf16.mxu0 0
      %1150 = vmatpush1.bf16.msra.mxu0 0
      %1151 = vmatprep.subr.bf16.mxu0 0
      %1152 = vmatpush1.bf16.msra.mxu0 0
      %1153 = vmatprep.subr.bf16.mxu0 0
      %1154 = vmatpush1.bf16.msra.mxu0 0
      %1155 = vmatprep.subr.bf16.mxu0 0
      %1156 = vmatpush1.bf16.msra.mxu0 0
      %1157 = vmatprep.subr.bf16.mxu0 0
      %1158 = vmatpush1.bf16.msra.mxu0 0
      %1159 = vmatprep.subr.bf16.mxu0 0
      %1160 = vmatpush1.bf16.msra.mxu0 0
      %1161 = vmatprep.subr.bf16.mxu0 0
      %1162 = vmatpush1.bf16.msra.mxu0 0
      %1163 = vmatprep.mubr.bf16.mxu0 0
      %1164 = vmatmul.mubr.bf16.gmra.mrb[0].mxu0 %v1126
      %v1165 = vpop.f32.mrb[0].mxu0
      %v1166 = vadd.f32 0.0, %v1165
      %v1167 = vpop.f32.mrb[0].mxu0
      %v1168 = vpop.f32.mrb[0].mxu0
      %v1169 = vpop.f32.mrb[0].mxu0
      %1170 = vdwg.mxu0
      %v1171 = vpack.c.bf16 %v1166, %v1166
      %v1176 = vunpack.c.l.b16 %v321
      %v1177 = vunpack.c.l.b16 %v322
      %v1178 = vunpack.c.l.b16 %v323
      %v1179 = vunpack.c.l.b16 %v324
      %v1180 = vpack.c.b16 %v1177, %v1176
      %v1181 = vpack.c.b16 %v1179, %v1178
      %v1185 = vsel %vm557, %v1171, 0
      %1187 = vmatprep.subr.bf16.mxu0 0
      %1188 = vmatpush1.bf16.msra.mxu0 %v1180
      %1189 = vmatprep.subr.bf16.mxu0 0
      %1190 = vmatpush1.bf16.msra.mxu0 %v1181
      %1191 = vmatprep.subr.bf16.mxu0 0
      %1192 = vmatpush1.bf16.msra.mxu0 0
      %1193 = vmatprep.subr.bf16.mxu0 0
      %1194 = vmatpush1.bf16.msra.mxu0 0
      %1195 = vmatprep.subr.bf16.mxu0 0
      %1196 = vmatpush1.bf16.msra.mxu0 0
      %1197 = vmatprep.subr.bf16.mxu0 0
      %1198 = vmatpush1.bf16.msra.mxu0 0
      %1199 = vmatprep.subr.bf16.mxu0 0
      %1200 = vmatpush1.bf16.msra.mxu0 0
      %1201 = vmatprep.subr.bf16.mxu0 0
      %1202 = vmatpush1.bf16.msra.mxu0 0
      %1203 = vmatprep.subr.bf16.mxu0 0
      %1204 = vmatpush1.bf16.msra.mxu0 0
      %1205 = vmatprep.subr.bf16.mxu0 0
      %1206 = vmatpush1.bf16.msra.mxu0 0
      %1207 = vmatprep.subr.bf16.mxu0 0
      %1208 = vmatpush1.bf16.msra.mxu0 0
      %1209 = vmatprep.subr.bf16.mxu0 0
      %1210 = vmatpush1.bf16.msra.mxu0 0
      %1211 = vmatprep.subr.bf16.mxu0 0
      %1212 = vmatpush1.bf16.msra.mxu0 0
      %1213 = vmatprep.subr.bf16.mxu0 0
      %1214 = vmatpush1.bf16.msra.mxu0 0
      %1215 = vmatprep.subr.bf16.mxu0 0
      %1216 = vmatpush1.bf16.msra.mxu0 0
      %1217 = vmatprep.subr.bf16.mxu0 0
      %1218 = vmatpush1.bf16.msra.mxu0 0
      %1219 = vmatprep.mubr.bf16.mxu0 0
      %1220 = vmatmul.mubr.bf16.gmra.mrb[0].mxu0 %v1185
      %v1221 = vpop.f32.mrb[0].mxu0
      %v1222 = vadd.f32 0.0, %v1221
      %v1223 = vpop.f32.mrb[0].mxu0
      %v1224 = vpop.f32.mrb[0].mxu0
      %v1225 = vpop.f32.mrb[0].mxu0
      %1226 = vdwg.mxu0
      %v1227 = vadd.f32 %v1059, %v1222
      %v1229 = vlaneseq
      %v1230 = vshrl.u32 %v1229, 7
      %v1231 = vsub.s32 0, %v1230
      %v1232 = vrot.slane %v325, %v1231
      %v1234 = vadd.f32 %v1227, %v1232
      %v1235 = vadd.f32 %v275, %v1234
      %vm1236 = vcmask 1043456
      %v1237 = vsel %vm1236, %v1235, 0.0
      %1238 = vadd.xlane.f32.xlu0 %v1237
      %v1239 = vpop.xlane.xlu0 %1238
      %v1240 = vrcp.pop 128.0
      %v1241 = vmul.f32 %v1239, %v1240
      %v1242 = vsub.f32 %v1235, %v1241
      %v1243 = vmul.f32 %v1242, %v1242
      %v1244 = vsel %vm1236, %v1243, 0.0
      %1245 = vadd.xlane.f32.xlu0 %v1244
      %v1246 = vpop.xlane.xlu0 %1245
      %v1247 = vmul.f32 %v1246, %v1240
      %v1248 = vadd.f32 %v1247, 1e-05
      %v1249 = vrsqrt.pop %v1248
      %v1250 = vmul.f32 %v1242, %v1249
      %v1252 = vlaneseq
      %v1253 = vshrl.u32 %v1252, 7
      %v1254 = vsub.s32 0, %v1253
      %v1255 = vrot.slane %v326, %v1254
      %v1257 = vmul.f32 %v1250, %v1255
      %v1259 = vlaneseq
      %v1260 = vshrl.u32 %v1259, 7
      %v1261 = vsub.s32 0, %v1260
      %v1262 = vrot.slane %v327, %v1261
      %v1264 = vadd.f32 %v1257, %v1262
      %1265 = vst [vmem:[%s273] sm:$0xf] %v1264
      %p1266 = scmp.lt.s32.totalorder %s18, 1
      %s1267 = scalar_select %p1266, %s18, 1
      %s1268 = smul.addr %s1267, 4
      %s1269 = scalar_lea.vmem %s7, %s1268
      // Predicated region
      $region49: #{_lambda_.18} parent=47 // pred_check
        %p1270 = pneg %p188
      $region50: #{_lambda_.18} parent=47 // pred_check_branch
        %1272 = sbr.rel (%p1270) target = $region52
      $region51: #{_lambda_.18} parent=47 // pred_region
        _
      $region52: #{_lambda_.18} parent=47 // pred_fallthru
        _
    $region48: #{_lambda_.18} parent=5 // pred_fallthru
      _
    %p1273 = scmp.le.s32.totalorder 2, %s13
    // Predicated region
    $region53: #{_lambda_.18} parent=5 // pred_check
      %p1274 = pneg %p1273
    $region54: #{_lambda_.18} parent=5 // pred_check_branch
      %1276 = sbr.rel (%p1274) target = $region56
    $region55: #{_lambda_.18} parent=5 // pred_region
      %s1277 = ssub.s32 %s13, 2
      // Predicated region
      $region57: #{_lambda_.18} parent=55 // pred_check
        %p1278 = pneg %p194
      $region58: #{_lambda_.18} parent=55 // pred_check_branch
        %1280 = sbr.rel (%p1278) target = $region60
      $region59: #{_lambda_.18} parent=55 // pred_region
        %p1281 = scmp.lt.s32.totalorder %s19, 1
        %s1282 = scalar_select %p1281, %s19, 1
        %s1283 = smul.addr %s1282, 4
        %s1284 = scalar_lea.vmem %s7, %s1283
      $region60: #{_lambda_.18} parent=55 // pred_fallthru
        _
    $region56: #{_lambda_.18} parent=5 // pred_fallthru
      _
  $region6: #{_lambda_.18} parent=0 // loop_footer
    %s17 = sadd.s32 1, %s13
  $region7: #{_lambda_.18} parent=0 // loop_footer_branch
    %12 = sbr.rel target = $region3
  $region8: #{_lambda_.18} parent=0 // loop_exit
    _

// kernel: _lambda_.23
$region0: #{_lambda_.23}
  #allocation0 [shape = 'u32[]', space=smem, size = 0x4, offset = 0x4, fixed_abs, tag = 'smem constant byte address 0x4 - core index']
  #allocation1 [shape = 'u32[144,128]{1,0:T(1,128)}', space=vmem, size = 0x12000, scoped, tag = 'internal scratch']
  %s0 = inlined_call_operand.vmem [shape: f32[2,8,128], index: 0, kind: input, shape index: {}]
  %s1 = inlined_call_operand.vmem [shape: f32[2,8,1], index: 1, kind: input, shape index: {}]
  %s2 = inlined_call_operand.vmem [shape: bf16[128,256], index: 2, kind: input, shape index: {}]
  %s3 = inlined_call_operand.vmem [shape: f32[1,256], index: 3, kind: input, shape index: {}]
  %s4 = inlined_call_operand.vmem [shape: bf16[256,128], index: 4, kind: input, shape index: {}]
  %s5 = inlined_call_operand.vmem [shape: f32[1,128], index: 5, kind: input, shape index: {}]
  %s6 = inlined_call_operand.vmem [shape: f32[1,128], index: 6, kind: input, shape index: {}]
  %s7 = inlined_call_operand.vmem [shape: f32[1,128], index: 7, kind: input, shape index: {}]
  %s8 = inlined_call_operand.vmem [shape: f32[2,8,128], index: 8, kind: output, shape index: {}]
  %s9 = sld [smem:[#allocation0]]
  $region65: #{_lambda_.23} parent=0
    _
  %s11 = ssub.s32 1, %s9
  %s12 = scalar_select 0, %s11, %s9
  loop: start=0, step=1, limit=4
  $region2: #{_lambda_.23} parent=0 // loop_pre_header
    _
  $region3: #{_lambda_.23} parent=0 // loop_header
    %s14 = sphi 0, %s18
    %p15 = scmp.ge.s32.totalorder %s14, 4
    %s24 = sphi 0, %s26
    %s27 = sphi 0, %s24
    %s28 = sphi 0, %s27
    %s44 = sphi 0, %s28
    %s50 = sphi 0, %s52
    %s53 = sphi 0, %s50
    %s54 = sphi 0, %s53
    %s70 = sphi 0, %s54
    %s74 = sphi 0, %s74
    %s76 = sphi 0, %s74
    %s77 = sphi 0, %s76
    %s91 = sphi 0, %s77
    %s95 = sphi 0, %s95
    %s97 = sphi 0, %s95
    %s98 = sphi 0, %s97
    %s112 = sphi 0, %s98
    %s116 = sphi 0, %s116
    %s118 = sphi 0, %s116
    %s119 = sphi 0, %s118
    %s133 = sphi 0, %s119
    %s137 = sphi 0, %s137
    %s139 = sphi 0, %s137
    %s140 = sphi 0, %s139
    %s154 = sphi 0, %s140
    %s158 = sphi 0, %s158
    %s160 = sphi 0, %s158
    %s161 = sphi 0, %s160
    %s175 = sphi 0, %s161
    %s179 = sphi 0, %s179
    %s181 = sphi 0, %s179
    %s182 = sphi 0, %s181
    %s196 = sphi 0, %s182
    %s202 = sphi 0, %s204
    %s205 = sphi 0, %s202
    %s206 = sphi 0, %s205
    %s222 = sphi 0, %s206
  $region4: #{_lambda_.23} parent=0 // loop_header_branch
    %17 = sbr.rel (%p15) target = $region8
  $region5: #{_lambda_.23} parent=0 // loop_body
    %s19 = ssub.s32 %s14, 1
    %s20 = ssub.s32 %s14, 2
    %s21 = sadd.s32 %s14, 1
    %s22 = ssub.s32 %s14, %s21
    %p23 = scmp.eq.s32.totalorder %s22, 0
    %s25 = sadd.s32 %s24, 1
    %s26 = scalar_select %p23, %s24, %s25
    %p29 = pneg %p23
    %p30 = scmp.eq.s32.totalorder %s14, 1
    %p31 = por %p29, %p30
    %p32 = scmp.ne.s32.totalorder %s24, %s27
    %p33 = scmp.eq.s32.totalorder %s14, 0
    %p34 = por %p32, %p33
    %p35 = scmp.ne.s32.totalorder %s24, %s27
    %p36 = scmp.eq.s32.totalorder %s19, 1
    %p37 = por %p35, %p36
    %p38 = scmp.ne.s32.totalorder %s27, %s28
    %p39 = scmp.eq.s32.totalorder %s19, 0
    %p40 = por %p38, %p39
    %p41 = scmp.ne.s32.totalorder %s27, %s28
    %p42 = scmp.eq.s32.totalorder %s20, 1
    %p43 = por %p41, %p42
    %p45 = scmp.ne.s32.totalorder %s28, %s44
    %p46 = scmp.eq.s32.totalorder %s20, 0
    %p47 = por %p45, %p46
    %s48 = ssub.s32 %s14, %s21
    %p49 = scmp.eq.s32.totalorder %s48, 0
    %s51 = sadd.s32 %s50, 1
    %s52 = scalar_select %p49, %s50, %s51
    %p55 = pneg %p49
    %p56 = scmp.eq.s32.totalorder %s14, 1
    %p57 = por %p55, %p56
    %p58 = scmp.ne.s32.totalorder %s50, %s53
    %p59 = scmp.eq.s32.totalorder %s14, 0
    %p60 = por %p58, %p59
    %p61 = scmp.ne.s32.totalorder %s50, %s53
    %p62 = scmp.eq.s32.totalorder %s19, 1
    %p63 = por %p61, %p62
    %p64 = scmp.ne.s32.totalorder %s53, %s54
    %p65 = scmp.eq.s32.totalorder %s19, 0
    %p66 = por %p64, %p65
    %p67 = scmp.ne.s32.totalorder %s53, %s54
    %p68 = scmp.eq.s32.totalorder %s20, 1
    %p69 = por %p67, %p68
    %p71 = scmp.ne.s32.totalorder %s54, %s70
    %p72 = scmp.eq.s32.totalorder %s20, 0
    %p73 = por %p71, %p72
    %s75 = sadd.s32 %s74, 1
    %p78 = scmp.eq.s32.totalorder %s14, 1
    %p79 = scmp.ne.s32.totalorder %s74, %s76
    %p80 = scmp.eq.s32.totalorder %s14, 0
    %p81 = por %p79, %p80
    %p82 = scmp.ne.s32.totalorder %s74, %s76
    %p83 = scmp.eq.s32.totalorder %s19, 1
    %p84 = por %p82, %p83
    %p85 = scmp.ne.s32.totalorder %s76, %s77
    %p86 = scmp.eq.s32.totalorder %s19, 0
    %p87 = por %p85, %p86
    %p88 = scmp.ne.s32.totalorder %s76, %s77
    %p89 = scmp.eq.s32.totalorder %s20, 1
    %p90 = por %p88, %p89
    %p92 = scmp.ne.s32.totalorder %s77, %s91
    %p93 = scmp.eq.s32.totalorder %s20, 0
    %p94 = por %p92, %p93
    %s96 = sadd.s32 %s95, 1
    %p99 = scmp.eq.s32.totalorder %s14, 1
    %p100 = scmp.ne.s32.totalorder %s95, %s97
    %p101 = scmp.eq.s32.totalorder %s14, 0
    %p102 = por %p100, %p101
    %p103 = scmp.ne.s32.totalorder %s95, %s97
    %p104 = scmp.eq.s32.totalorder %s19, 1
    %p105 = por %p103, %p104
    %p106 = scmp.ne.s32.totalorder %s97, %s98
    %p107 = scmp.eq.s32.totalorder %s19, 0
    %p108 = por %p106, %p107
    %p109 = scmp.ne.s32.totalorder %s97, %s98
    %p110 = scmp.eq.s32.totalorder %s20, 1
    %p111 = por %p109, %p110
    %p113 = scmp.ne.s32.totalorder %s98, %s112
    %p114 = scmp.eq.s32.totalorder %s20, 0
    %p115 = por %p113, %p114
    %s117 = sadd.s32 %s116, 1
    %p120 = scmp.eq.s32.totalorder %s14, 1
    %p121 = scmp.ne.s32.totalorder %s116, %s118
    %p122 = scmp.eq.s32.totalorder %s14, 0
    %p123 = por %p121, %p122
    %p124 = scmp.ne.s32.totalorder %s116, %s118
    %p125 = scmp.eq.s32.totalorder %s19, 1
    %p126 = por %p124, %p125
    %p127 = scmp.ne.s32.totalorder %s118, %s119
    %p128 = scmp.eq.s32.totalorder %s19, 0
    %p129 = por %p127, %p128
    %p130 = scmp.ne.s32.totalorder %s118, %s119
    %p131 = scmp.eq.s32.totalorder %s20, 1
    %p132 = por %p130, %p131
    %p134 = scmp.ne.s32.totalorder %s119, %s133
    %p135 = scmp.eq.s32.totalorder %s20, 0
    %p136 = por %p134, %p135
    %s138 = sadd.s32 %s137, 1
    %p141 = scmp.eq.s32.totalorder %s14, 1
    %p142 = scmp.ne.s32.totalorder %s137, %s139
    %p143 = scmp.eq.s32.totalorder %s14, 0
    %p144 = por %p142, %p143
    %p145 = scmp.ne.s32.totalorder %s137, %s139
    %p146 = scmp.eq.s32.totalorder %s19, 1
    %p147 = por %p145, %p146
    %p148 = scmp.ne.s32.totalorder %s139, %s140
    %p149 = scmp.eq.s32.totalorder %s19, 0
    %p150 = por %p148, %p149
    %p151 = scmp.ne.s32.totalorder %s139, %s140
    %p152 = scmp.eq.s32.totalorder %s20, 1
    %p153 = por %p151, %p152
    %p155 = scmp.ne.s32.totalorder %s140, %s154
    %p156 = scmp.eq.s32.totalorder %s20, 0
    %p157 = por %p155, %p156
    %s159 = sadd.s32 %s158, 1
    %p162 = scmp.eq.s32.totalorder %s14, 1
    %p163 = scmp.ne.s32.totalorder %s158, %s160
    %p164 = scmp.eq.s32.totalorder %s14, 0
    %p165 = por %p163, %p164
    %p166 = scmp.ne.s32.totalorder %s158, %s160
    %p167 = scmp.eq.s32.totalorder %s19, 1
    %p168 = por %p166, %p167
    %p169 = scmp.ne.s32.totalorder %s160, %s161
    %p170 = scmp.eq.s32.totalorder %s19, 0
    %p171 = por %p169, %p170
    %p172 = scmp.ne.s32.totalorder %s160, %s161
    %p173 = scmp.eq.s32.totalorder %s20, 1
    %p174 = por %p172, %p173
    %p176 = scmp.ne.s32.totalorder %s161, %s175
    %p177 = scmp.eq.s32.totalorder %s20, 0
    %p178 = por %p176, %p177
    %s180 = sadd.s32 %s179, 1
    %p183 = scmp.eq.s32.totalorder %s14, 1
    %p184 = scmp.ne.s32.totalorder %s179, %s181
    %p185 = scmp.eq.s32.totalorder %s14, 0
    %p186 = por %p184, %p185
    %p187 = scmp.ne.s32.totalorder %s179, %s181
    %p188 = scmp.eq.s32.totalorder %s19, 1
    %p189 = por %p187, %p188
    %p190 = scmp.ne.s32.totalorder %s181, %s182
    %p191 = scmp.eq.s32.totalorder %s19, 0
    %p192 = por %p190, %p191
    %p193 = scmp.ne.s32.totalorder %s181, %s182
    %p194 = scmp.eq.s32.totalorder %s20, 1
    %p195 = por %p193, %p194
    %p197 = scmp.ne.s32.totalorder %s182, %s196
    %p198 = scmp.eq.s32.totalorder %s20, 0
    %p199 = por %p197, %p198
    %s200 = ssub.s32 %s14, %s21
    %p201 = scmp.eq.s32.totalorder %s200, 0
    %s203 = sadd.s32 %s202, 1
    %s204 = scalar_select %p201, %s202, %s203
    %p207 = pneg %p201
    %p208 = scmp.eq.s32.totalorder %s14, 1
    %p209 = por %p207, %p208
    %p210 = scmp.ne.s32.totalorder %s202, %s205
    %p211 = scmp.eq.s32.totalorder %s14, 0
    %p212 = por %p210, %p211
    %p213 = scmp.ne.s32.totalorder %s202, %s205
    %p214 = scmp.eq.s32.totalorder %s19, 1
    %p215 = por %p213, %p214
    %p216 = scmp.ne.s32.totalorder %s205, %s206
    %p217 = scmp.eq.s32.totalorder %s19, 0
    %p218 = por %p216, %p217
    %p219 = scmp.ne.s32.totalorder %s205, %s206
    %p220 = scmp.eq.s32.totalorder %s20, 1
    %p221 = por %p219, %p220
    %p223 = scmp.ne.s32.totalorder %s206, %s222
    %p224 = scmp.eq.s32.totalorder %s20, 0
    %p225 = por %p223, %p224
    %p226 = scmp.le.s32.totalorder 1, %s14
    %p227 = scmp.lt.s32.totalorder %s14, 3
    %p228 = pnand %p226, %p227
    %p229 = pneg %p228
    // Predicated region
    $region9: #{_lambda_.23} parent=5 // pred_check
      _
    $region10: #{_lambda_.23} parent=5 // pred_check_branch
      %231 = sbr.rel (%p228) target = $region12
    $region11: #{_lambda_.23} parent=5 // pred_region
      %s232 = ssub.s32 %s14, 1
      // Predicated region
      $region13: #{_lambda_.23} parent=11 // pred_check
        %p233 = pneg %p87
      $region14: #{_lambda_.23} parent=11 // pred_check_branch
        %235 = sbr.rel (%p233) target = $region16
      $region15: #{_lambda_.23} parent=11 // pred_region
        _
      $region16: #{_lambda_.23} parent=11 // pred_fallthru
        _
      // Predicated region
      $region17: #{_lambda_.23} parent=11 // pred_check
        %p236 = pneg %p108
      $region18: #{_lambda_.23} parent=11 // pred_check_branch
        %238 = sbr.rel (%p236) target = $region20
      $region19: #{_lambda_.23} parent=11 // pred_region
        _
      $region20: #{_lambda_.23} parent=11 // pred_fallthru
        _
      // Predicated region
      $region21: #{_lambda_.23} parent=11 // pred_check
        %p239 = pneg %p129
      $region22: #{_lambda_.23} parent=11 // pred_check_branch
        %241 = sbr.rel (%p239) target = $region24
      $region23: #{_lambda_.23} parent=11 // pred_region
        _
      $region24: #{_lambda_.23} parent=11 // pred_fallthru
        _
      // Predicated region
      $region25: #{_lambda_.23} parent=11 // pred_check
        %p242 = pneg %p150
      $region26: #{_lambda_.23} parent=11 // pred_check_branch
        %244 = sbr.rel (%p242) target = $region28
      $region27: #{_lambda_.23} parent=11 // pred_region
        _
      $region28: #{_lambda_.23} parent=11 // pred_fallthru
        _
      // Predicated region
      $region29: #{_lambda_.23} parent=11 // pred_check
        %p245 = pneg %p171
      $region30: #{_lambda_.23} parent=11 // pred_check_branch
        %247 = sbr.rel (%p245) target = $region32
      $region31: #{_lambda_.23} parent=11 // pred_region
        _
      $region32: #{_lambda_.23} parent=11 // pred_fallthru
        _
      // Predicated region
      $region33: #{_lambda_.23} parent=11 // pred_check
        %p248 = pneg %p192
      $region34: #{_lambda_.23} parent=11 // pred_check_branch
        %250 = sbr.rel (%p248) target = $region36
      $region35: #{_lambda_.23} parent=11 // pred_region
        _
      $region36: #{_lambda_.23} parent=11 // pred_fallthru
        _
    $region12: #{_lambda_.23} parent=5 // pred_fallthru
      _
    %p251 = scmp.lt.s32.totalorder %s14, 2
    // Predicated region
    $region37: #{_lambda_.23} parent=5 // pred_check
      %p252 = pneg %p251
    $region38: #{_lambda_.23} parent=5 // pred_check_branch
      %254 = sbr.rel (%p252) target = $region40
    $region39: #{_lambda_.23} parent=5 // pred_region
      // Predicated region
      $region41: #{_lambda_.23} parent=39 // pred_check
        %p255 = pneg %p34
      $region42: #{_lambda_.23} parent=39 // pred_check_branch
        %257 = sbr.rel (%p255) target = $region44
      $region43: #{_lambda_.23} parent=39 // pred_region
        %p258 = scmp.lt.s32.totalorder %s14, 1
        %s259 = scalar_select %p258, %s14, 1
        %s260 = smul.addr %s259, 8
        %s261 = scalar_lea.vmem %s0, %s260
      $region44: #{_lambda_.23} parent=39 // pred_fallthru
        _
      // Predicated region
      $region45: #{_lambda_.23} parent=39 // pred_check
        %p262 = pneg %p60
      $region46: #{_lambda_.23} parent=39 // pred_check_branch
        %264 = sbr.rel (%p262) target = $region48
      $region47: #{_lambda_.23} parent=39 // pred_region
        %p265 = scmp.lt.s32.totalorder %s14, 1
        %s266 = scalar_select %p265, %s14, 1
        %s267 = smul.addr %s266, 8
        %s268 = scalar_lea.vmem %s1, %s267
      $region48: #{_lambda_.23} parent=39 // pred_fallthru
        _
    $region40: #{_lambda_.23} parent=5 // pred_fallthru
      _
    %p269 = scmp.le.s32.totalorder 1, %s14
    %p270 = scmp.lt.s32.totalorder %s14, 3
    %p271 = pnand %p269, %p270
    %p272 = pneg %p271
    // Predicated region
    $region49: #{_lambda_.23} parent=5 // pred_check
      _
    $region50: #{_lambda_.23} parent=5 // pred_check_branch
      %274 = sbr.rel (%p271) target = $region52
    $region51: #{_lambda_.23} parent=5 // pred_region
      %s275 = ssub.s32 %s14, 1
      %p276 = scmp.lt.s32.totalorder %s19, 1
      %s277 = scalar_select %p276, %s19, 1
      %s278 = smul.addr %s277, 8
      %s279 = scalar_lea.vmem %s0, %s278
      %p280 = pneg %p40
      %p281 = pneg %p37
      %p282 = scmp.lt.s32.totalorder %s19, 1
      %s283 = scalar_select %p282, %s19, 1
      %s284 = smul.addr %s283, 8
      %s285 = scalar_lea.vmem %s1, %s284
      %p286 = pneg %p66
      %p287 = pneg %p63
      %p288 = pneg %p87
      %p289 = pneg %p84
      %p290 = pneg %p108
      %p291 = pneg %p105
      %p292 = pneg %p129
      %p293 = pneg %p126
      %p294 = pneg %p150
      %p295 = pneg %p147
      %p296 = pneg %p171
      %p297 = pneg %p168
      %p298 = pneg %p192
      %p299 = pneg %p189
      %p300 = pneg %p218
      %p301 = pneg %p215
      %p302 = scmp.lt.s32.totalorder %s19, 1
      %s303 = scalar_select %p302, %s19, 1
      %s304 = smul.addr %s303, 8
      %s305 = scalar_lea.vmem %s8, %s304
      %p306 = scmp.lt.s32.totalorder %s19, 1
      %s307 = scalar_select %p306, %s19, 1
      %s308 = smul.addr %s307, 8
      %s309 = scalar_lea.vmem %s0, %s308
      %p310 = scmp.lt.s32.totalorder %s19, 1
      %s311 = scalar_select %p310, %s19, 1
      %s312 = smul.addr %s311, 8
      %s313 = scalar_lea.vmem %s1, %s312
      %p314 = scmp.lt.s32.totalorder %s19, 1
      %s315 = scalar_select %p314, %s19, 1
      %s316 = smul.addr %s315, 8
      %s317 = scalar_lea.vmem %s8, %s316
      %v319 = vld [vmem:[%s309] sm:$0xff]
      %v320 = vld [vmem:[%s313] sm:$0xff]
      %v321 = vld [vmem:[%s2] sm:$0xff]
      %v322 = vld [vmem:[%s2 + $0x8] sm:$0xff]
      %v323 = vld [vmem:[%s2 + $0x10] sm:$0xff]
      %v324 = vld [vmem:[%s2 + $0x18] sm:$0xff]
      %v325 = vld [vmem:[%s2 + $0x20] sm:$0xff]
      %v326 = vld [vmem:[%s2 + $0x28] sm:$0xff]
      %v327 = vld [vmem:[%s2 + $0x30] sm:$0xff]
      %v328 = vld [vmem:[%s2 + $0x38] sm:$0xff]
      %v329 = vld [vmem:[%s2 + $0x40] sm:$0xff]
      %v330 = vld [vmem:[%s2 + $0x48] sm:$0xff]
      %v331 = vld [vmem:[%s2 + $0x50] sm:$0xff]
      %v332 = vld [vmem:[%s2 + $0x58] sm:$0xff]
      %v333 = vld [vmem:[%s2 + $0x60] sm:$0xff]
      %v334 = vld [vmem:[%s2 + $0x68] sm:$0xff]
      %v335 = vld [vmem:[%s2 + $0x70] sm:$0xff]
      %v336 = vld [vmem:[%s2 + $0x78] sm:$0xff]
      %v337 = vld [vmem:[%s3] sm:$0x3]
      %v338 = vld [vmem:[%s4] sm:$0xf]
      %v339 = vld [vmem:[%s4 + $0x4] sm:$0xf]
      %v340 = vld [vmem:[%s4 + $0x8] sm:$0xf]
      %v341 = vld [vmem:[%s4 + $0xc] sm:$0xf]
      %v342 = vld [vmem:[%s4 + $0x10] sm:$0xf]
      %v343 = vld [vmem:[%s4 + $0x14] sm:$0xf]
      %v344 = vld [vmem:[%s4 + $0x18] sm:$0xf]
      %v345 = vld [vmem:[%s4 + $0x1c] sm:$0xf]
      %v346 = vld [vmem:[%s4 + $0x20] sm:$0xf]
      %v347 = vld [vmem:[%s4 + $0x24] sm:$0xf]
      %v348 = vld [vmem:[%s4 + $0x28] sm:$0xf]
      %v349 = vld [vmem:[%s4 + $0x2c] sm:$0xf]
      %v350 = vld [vmem:[%s4 + $0x30] sm:$0xf]
      %v351 = vld [vmem:[%s4 + $0x34] sm:$0xf]
      %v352 = vld [vmem:[%s4 + $0x38] sm:$0xf]
      %v353 = vld [vmem:[%s4 + $0x3c] sm:$0xf]
      %v354 = vld [vmem:[%s4 + $0x40] sm:$0xf]
      %v355 = vld [vmem:[%s4 + $0x44] sm:$0xf]
      %v356 = vld [vmem:[%s4 + $0x48] sm:$0xf]
      %v357 = vld [vmem:[%s4 + $0x4c] sm:$0xf]
      %v358 = vld [vmem:[%s4 + $0x50] sm:$0xf]
      %v359 = vld [vmem:[%s4 + $0x54] sm:$0xf]
      %v360 = vld [vmem:[%s4 + $0x58] sm:$0xf]
      %v361 = vld [vmem:[%s4 + $0x5c] sm:$0xf]
      %v362 = vld [vmem:[%s4 + $0x60] sm:$0xf]
      %v363 = vld [vmem:[%s4 + $0x64] sm:$0xf]
      %v364 = vld [vmem:[%s4 + $0x68] sm:$0xf]
      %v365 = vld [vmem:[%s4 + $0x6c] sm:$0xf]
      %v366 = vld [vmem:[%s4 + $0x70] sm:$0xf]
      %v367 = vld [vmem:[%s4 + $0x74] sm:$0xf]
      %v368 = vld [vmem:[%s4 + $0x78] sm:$0xf]
      %v369 = vld [vmem:[%s4 + $0x7c] sm:$0xf]
      %v370 = vld [vmem:[%s5] sm:$0x1]
      %v371 = vld [vmem:[%s6] sm:$0x1]
      %v372 = vld [vmem:[%s7] sm:$0x1]
      %v373 = vpack.c.bf16 %v319, %v319
      %v375 = vlaneseq
      %v376 = vshrl.u32 %v375, 7
      %v377 = vsub.s32 0, %v376
      %v378 = vrot.slane %v337, %v377
      %v379 = vlaneseq
      %v380 = vshrl.u32 %v379, 7
      %v381 = vsub.s32 1, %v380
      %v382 = vrot.slane %v337, %v381
      %v401 = vunpack.c.l.b16 %v321
      %v402 = vunpack.c.h.b16 %v321
      %v403 = vunpack.c.l.b16 %v322
      %v404 = vunpack.c.h.b16 %v322
      %v405 = vunpack.c.l.b16 %v323
      %v406 = vunpack.c.h.b16 %v323
      %v407 = vunpack.c.l.b16 %v324
      %v408 = vunpack.c.h.b16 %v324
      %v409 = vunpack.c.l.b16 %v325
      %v410 = vunpack.c.h.b16 %v325
      %v411 = vunpack.c.l.b16 %v326
      %v412 = vunpack.c.h.b16 %v326
      %v413 = vunpack.c.l.b16 %v327
      %v414 = vunpack.c.h.b16 %v327
      %v415 = vunpack.c.l.b16 %v328
      %v416 = vunpack.c.h.b16 %v328
      %v417 = vunpack.c.l.b16 %v329
      %v418 = vunpack.c.h.b16 %v329
      %v419 = vunpack.c.l.b16 %v330
      %v420 = vunpack.c.h.b16 %v330
      %v421 = vunpack.c.l.b16 %v331
      %v422 = vunpack.c.h.b16 %v331
      %v423 = vunpack.c.l.b16 %v332
      %v424 = vunpack.c.h.b16 %v332
      %v425 = vunpack.c.l.b16 %v333
      %v426 = vunpack.c.h.b16 %v333
      %v427 = vunpack.c.l.b16 %v334
      %v428 = vunpack.c.h.b16 %v334
      %v429 = vunpack.c.l.b16 %v335
      %v430 = vunpack.c.h.b16 %v335
      %v431 = vunpack.c.l.b16 %v336
      %v432 = vunpack.c.h.b16 %v336
      %v433 = vpack.c.b16 %v403, %v401
      %v434 = vpack.c.b16 %v404, %v402
      %v435 = vpack.c.b16 %v407, %v405
      %v436 = vpack.c.b16 %v408, %v406
      %v437 = vpack.c.b16 %v411, %v409
      %v438 = vpack.c.b16 %v412, %v410
      %v439 = vpack.c.b16 %v415, %v413
      %v440 = vpack.c.b16 %v416, %v414
      %v441 = vpack.c.b16 %v419, %v417
      %v442 = vpack.c.b16 %v420, %v418
      %v443 = vpack.c.b16 %v423, %v421
      %v444 = vpack.c.b16 %v424, %v422
      %v445 = vpack.c.b16 %v427, %v425
      %v446 = vpack.c.b16 %v428, %v426
      %v447 = vpack.c.b16 %v431, %v429
      %v448 = vpack.c.b16 %v432, %v430
      %465 = vmatprep.subr.bf16.mxu0 %v434
      %466 = vmatpush1.bf16.msra.mxu0 %v433
      %467 = vmatprep.subr.bf16.mxu0 %v436
      %468 = vmatpush1.bf16.msra.mxu0 %v435
      %469 = vmatprep.subr.bf16.mxu0 %v438
      %470 = vmatpush1.bf16.msra.mxu0 %v437
      %471 = vmatprep.subr.bf16.mxu0 %v440
      %472 = vmatpush1.bf16.msra.mxu0 %v439
      %473 = vmatprep.subr.bf16.mxu0 %v442
      %474 = vmatpush1.bf16.msra.mxu0 %v441
      %475 = vmatprep.subr.bf16.mxu0 %v444
      %476 = vmatpush1.bf16.msra.mxu0 %v443
      %477 = vmatprep.subr.bf16.mxu0 %v446
      %478 = vmatpush1.bf16.msra.mxu0 %v445
      %479 = vmatprep.subr.bf16.mxu0 %v448
      %480 = vmatpush1.bf16.msra.mxu0 %v447
      %481 = vmatprep.subr.bf16.mxu0 0
      %482 = vmatpush1.bf16.msra.mxu0 0
      %483 = vmatprep.subr.bf16.mxu0 0
      %484 = vmatpush1.bf16.msra.mxu0 0
      %485 = vmatprep.subr.bf16.mxu0 0
      %486 = vmatpush1.bf16.msra.mxu0 0
      %487 = vmatprep.subr.bf16.mxu0 0
      %488 = vmatpush1.bf16.msra.mxu0 0
      %489 = vmatprep.subr.bf16.mxu0 0
      %490 = vmatpush1.bf16.msra.mxu0 0
      %491 = vmatprep.subr.bf16.mxu0 0
      %492 = vmatpush1.bf16.msra.mxu0 0
      %493 = vmatprep.subr.bf16.mxu0 0
      %494 = vmatpush1.bf16.msra.mxu0 0
      %495 = vmatprep.subr.bf16.mxu0 0
      %496 = vmatpush1.bf16.msra.mxu0 0
      %497 = vmatprep.mubr.bf16.mxu0 0
      %498 = vmatmul.mubr.bf16.gmra.mrb[0].mxu0 %v373
      %v499 = vpop.f32.mrb[0].mxu0
      %v500 = vadd.f32 %v378, %v499
      %v501 = vpop.f32.mrb[0].mxu0
      %v502 = vadd.f32 %v382, %v501
      %v503 = vpop.f32.mrb[0].mxu0
      %v504 = vpop.f32.mrb[0].mxu0
      %505 = vdwg.mxu0
      %v506 = vmax.f32 %v500, 0.0
      %v507 = vmax.f32 %v502, 0.0
      %v508 = vpack.c.bf16 %v506, %v506
      %v509 = vpack.c.bf16 %v507, %v507
      %v511 = vlaneseq
      %v512 = vshrl.u32 %v511, 7
      %v513 = vsub.s32 0, %v512
      %v514 = vrot.slane %v370, %v513
      %v548 = vunpack.c.l.b16 %v338
      %v549 = vunpack.c.l.b16 %v339
      %v550 = vunpack.c.l.b16 %v340
      %v551 = vunpack.c.l.b16 %v341
      %v552 = vunpack.c.l.b16 %v342
      %v553 = vunpack.c.l.b16 %v343
      %v554 = vunpack.c.l.b16 %v344
      %v555 = vunpack.c.l.b16 %v345
      %v556 = vunpack.c.l.b16 %v346
      %v557 = vunpack.c.l.b16 %v347
      %v558 = vunpack.c.l.b16 %v348
      %v559 = vunpack.c.l.b16 %v349
      %v560 = vunpack.c.l.b16 %v350
      %v561 = vunpack.c.l.b16 %v351
      %v562 = vunpack.c.l.b16 %v352
      %v563 = vunpack.c.l.b16 %v353
      %v564 = vunpack.c.l.b16 %v354
      %v565 = vunpack.c.l.b16 %v355
      %v566 = vunpack.c.l.b16 %v356
      %v567 = vunpack.c.l.b16 %v357
      %v568 = vunpack.c.l.b16 %v358
      %v569 = vunpack.c.l.b16 %v359
      %v570 = vunpack.c.l.b16 %v360
      %v571 = vunpack.c.l.b16 %v361
      %v572 = vunpack.c.l.b16 %v362
      %v573 = vunpack.c.l.b16 %v363
      %v574 = vunpack.c.l.b16 %v364
      %v575 = vunpack.c.l.b16 %v365
      %v576 = vunpack.c.l.b16 %v366
      %v577 = vunpack.c.l.b16 %v367
      %v578 = vunpack.c.l.b16 %v368
      %v579 = vunpack.c.l.b16 %v369
      %v580 = vpack.c.b16 %v549, %v548
      %v581 = vpack.c.b16 %v551, %v550
      %v582 = vpack.c.b16 %v553, %v552
      %v583 = vpack.c.b16 %v555, %v554
      %v584 = vpack.c.b16 %v557, %v556
      %v585 = vpack.c.b16 %v559, %v558
      %v586 = vpack.c.b16 %v561, %v560
      %v587 = vpack.c.b16 %v563, %v562
      %v588 = vpack.c.b16 %v565, %v564
      %v589 = vpack.c.b16 %v567, %v566
      %v590 = vpack.c.b16 %v569, %v568
      %v591 = vpack.c.b16 %v571, %v570
      %v592 = vpack.c.b16 %v573, %v572
      %v593 = vpack.c.b16 %v575, %v574
      %v594 = vpack.c.b16 %v577, %v576
      %v595 = vpack.c.b16 %v579, %v578
      %612 = vmatprep.subr.bf16.mxu0 0
      %613 = vmatpush1.bf16.msra.mxu0 %v580
      %614 = vmatprep.subr.bf16.mxu0 0
      %615 = vmatpush1.bf16.msra.mxu0 %v581
      %616 = vmatprep.subr.bf16.mxu0 0
      %617 = vmatpush1.bf16.msra.mxu0 %v582
      %618 = vmatprep.subr.bf16.mxu0 0
      %619 = vmatpush1.bf16.msra.mxu0 %v583
      %620 = vmatprep.subr.bf16.mxu0 0
      %621 = vmatpush1.bf16.msra.mxu0 %v584
      %622 = vmatprep.subr.bf16.mxu0 0
      %623 = vmatpush1.bf16.msra.mxu0 %v585
      %624 = vmatprep.subr.bf16.mxu0 0
      %625 = vmatpush1.bf16.msra.mxu0 %v586
      %626 = vmatprep.subr.bf16.mxu0 0
      %627 = vmatpush1.bf16.msra.mxu0 %v587
      %628 = vmatprep.subr.bf16.mxu0 0
      %629 = vmatpush1.bf16.msra.mxu0 %v588
      %630 = vmatprep.subr.bf16.mxu0 0
      %631 = vmatpush1.bf16.msra.mxu0 %v589
      %632 = vmatprep.subr.bf16.mxu0 0
      %633 = vmatpush1.bf16.msra.mxu0 %v590
      %634 = vmatprep.subr.bf16.mxu0 0
      %635 = vmatpush1.bf16.msra.mxu0 %v591
      %636 = vmatprep.subr.bf16.mxu0 0
      %637 = vmatpush1.bf16.msra.mxu0 %v592
      %638 = vmatprep.subr.bf16.mxu0 0
      %639 = vmatpush1.bf16.msra.mxu0 %v593
      %640 = vmatprep.subr.bf16.mxu0 0
      %641 = vmatpush1.bf16.msra.mxu0 %v594
      %642 = vmatprep.subr.bf16.mxu0 0
      %643 = vmatpush1.bf16.msra.mxu0 %v595
      %644 = vmatprep.mubr.bf16.mxu0 %v509
      %645 = vmatmul.mubr.bf16.gmra.mrb[0].mxu0 %v508
      %v646 = vpop.f32.mrb[0].mxu0
      %v647 = vadd.f32 %v514, %v646
      %v648 = vpop.f32.mrb[0].mxu0
      %v649 = vpop.f32.mrb[0].mxu0
      %v650 = vpop.f32.mrb[0].mxu0
      %651 = vdwg.mxu0
      %v652 = vadd.f32 %v319, %v647
      %653 = vadd.xlane.f32.xlu0 %v652
      %v654 = vpop.xlane.xlu0 %653
      %v655 = vrcp.pop 128.0
      %v656 = vmul.f32 %v654, %v655
      %v657 = vsub.f32 %v652, %v656
      %v658 = vmul.f32 %v657, %v657
      %659 = vadd.xlane.f32.xlu0 %v658
      %v660 = vpop.xlane.xlu0 %659
      %v661 = vmul.f32 %v660, %v655
      %v662 = vadd.f32 %v661, 1e-05
      %v663 = vrsqrt.pop %v662
      %v664 = vmul.f32 %v657, %v663
      %v666 = vlaneseq
      %v667 = vshrl.u32 %v666, 7
      %v668 = vsub.s32 0, %v667
      %v669 = vrot.slane %v371, %v668
      %v671 = vmul.f32 %v664, %v669
      %v673 = vlaneseq
      %v674 = vshrl.u32 %v673, 7
      %v675 = vsub.s32 0, %v674
      %v676 = vrot.slane %v372, %v675
      %v678 = vadd.f32 %v671, %v676
      %680 = vset.pattern.permute.xlu0 0
      %681 = vperm.xlu0 %680, %v320
      %v682 = vpop.permute.xlu0 %681
      %v684 = vmul.f32 %v678, %v682
      %685 = vst [vmem:[%s317] sm:$0xff] %v684
      %p686 = scmp.lt.s32.totalorder %s19, 1
      %s687 = scalar_select %p686, %s19, 1
      %s688 = smul.addr %s687, 8
      %s689 = scalar_lea.vmem %s8, %s688
      // Predicated region
      $region53: #{_lambda_.23} parent=51 // pred_check
        %p690 = pneg %p215
      $region54: #{_lambda_.23} parent=51 // pred_check_branch
        %692 = sbr.rel (%p690) target = $region56
      $region55: #{_lambda_.23} parent=51 // pred_region
        _
      $region56: #{_lambda_.23} parent=51 // pred_fallthru
        _
    $region52: #{_lambda_.23} parent=5 // pred_fallthru
      _
    %p693 = scmp.le.s32.totalorder 2, %s14
    // Predicated region
    $region57: #{_lambda_.23} parent=5 // pred_check
      %p694 = pneg %p693
    $region58: #{_lambda_.23} parent=5 // pred_check_branch
      %696 = sbr.rel (%p694) target = $region60
    $region59: #{_lambda_.23} parent=5 // pred_region
      %s697 = ssub.s32 %s14, 2
      // Predicated region
      $region61: #{_lambda_.23} parent=59 // pred_check
        %p698 = pneg %p221
      $region62: #{_lambda_.23} parent=59 // pred_check_branch
        %700 = sbr.rel (%p698) target = $region64
      $region63: #{_lambda_.23} parent=59 // pred_region
        %p701 = scmp.lt.s32.totalorder %s20, 1
        %s702 = scalar_select %p701, %s20, 1
        %s703 = smul.addr %s702, 8
        %s704 = scalar_lea.vmem %s8, %s703
      $region64: #{_lambda_.23} parent=59 // pred_fallthru
        _
    $region60: #{_lambda_.23} parent=5 // pred_fallthru
      _
  $region6: #{_lambda_.23} parent=0 // loop_footer
    %s18 = sadd.s32 1, %s14
  $region7: #{_lambda_.23} parent=0 // loop_footer_branch
    %13 = sbr.rel target = $region3
  $region8: #{_lambda_.23} parent=0 // loop_exit
    _

// kernel: _lambda_.29
$region0: #{_lambda_.29}
  #allocation0 [shape = 'u32[]', space=smem, size = 0x4, offset = 0x4, fixed_abs, tag = 'smem constant byte address 0x4 - core index']
  #allocation1 [shape = 'u32[144,128]{1,0:T(1,128)}', space=vmem, size = 0x12000, scoped, tag = 'internal scratch']
  %s0 = inlined_call_operand.vmem [shape: f32[2,4,128], index: 0, kind: input, shape index: {}]
  %s1 = inlined_call_operand.vmem [shape: bf16[128,256], index: 1, kind: input, shape index: {}]
  %s2 = inlined_call_operand.vmem [shape: f32[1,256], index: 2, kind: input, shape index: {}]
  %s3 = inlined_call_operand.vmem [shape: bf16[256,128], index: 3, kind: input, shape index: {}]
  %s4 = inlined_call_operand.vmem [shape: f32[1,128], index: 4, kind: input, shape index: {}]
  %s5 = inlined_call_operand.vmem [shape: f32[1,128], index: 5, kind: input, shape index: {}]
  %s6 = inlined_call_operand.vmem [shape: f32[1,128], index: 6, kind: input, shape index: {}]
  %s7 = inlined_call_operand.hbm [shape: f32[2,4,128], index: 7, kind: output, shape index: {}]
  %s8 = sld [smem:[#allocation0]]
  $region61: #{_lambda_.29} parent=0
    _
  %s10 = ssub.s32 1, %s8
  %s11 = scalar_select 0, %s10, %s8
  $region1: #{_lambda_.29} parent=0
    #allocation2 [shape = 'u8[4096]{0}', space=vmem, size = 0x1000, scoped, tag = 'output window, operand 0']
    #allocation3 [shape = 's32[2]{0}', space=sflag, size = 0x8, scoped, tag = 'scoped memory for _lambda_.29']
    %12 = vsyncpa [#allocation3], 0
    %s13 = scalar_lea.sflag [#allocation3], 1
    %14 = vsyncpa %s13, 0
    loop: start=0, step=1, limit=4
    $region2: #{_lambda_.29} parent=1 // loop_pre_header
      _
    $region3: #{_lambda_.29} parent=1 // loop_header
      %s16 = sphi 0, %s20
      %p17 = scmp.ge.s32.totalorder %s16, 4
      %s26 = sphi 0, %s28
      %s29 = sphi 0, %s26
      %s30 = sphi 0, %s29
      %s46 = sphi 0, %s30
      %s50 = sphi 0, %s50
      %s52 = sphi 0, %s50
      %s53 = sphi 0, %s52
      %s67 = sphi 0, %s53
      %s71 = sphi 0, %s71
      %s73 = sphi 0, %s71
      %s74 = sphi 0, %s73
      %s88 = sphi 0, %s74
      %s92 = sphi 0, %s92
      %s94 = sphi 0, %s92
      %s95 = sphi 0, %s94
      %s109 = sphi 0, %s95
      %s113 = sphi 0, %s113
      %s115 = sphi 0, %s113
      %s116 = sphi 0, %s115
      %s130 = sphi 0, %s116
      %s134 = sphi 0, %s134
      %s136 = sphi 0, %s134
      %s137 = sphi 0, %s136
      %s151 = sphi 0, %s137
      %s155 = sphi 0, %s155
      %s157 = sphi 0, %s155
      %s158 = sphi 0, %s157
      %s172 = sphi 0, %s158
      %s178 = sphi 0, %s180
      %s181 = sphi 0, %s178
      %s182 = sphi 0, %s181
      %s198 = sphi 0, %s182
    $region4: #{_lambda_.29} parent=1 // loop_header_branch
      %19 = sbr.rel (%p17) target = $region8
    $region5: #{_lambda_.29} parent=1 // loop_body
      %s21 = ssub.s32 %s16, 1
      %s22 = ssub.s32 %s16, 2
      %s23 = sadd.s32 %s16, 1
      %s24 = ssub.s32 %s16, %s23
      %p25 = scmp.eq.s32.totalorder %s24, 0
      %s27 = sadd.s32 %s26, 1
      %s28 = scalar_select %p25, %s26, %s27
      %p31 = pneg %p25
      %p32 = scmp.eq.s32.totalorder %s16, 1
      %p33 = por %p31, %p32
      %p34 = scmp.ne.s32.totalorder %s26, %s29
      %p35 = scmp.eq.s32.totalorder %s16, 0
      %p36 = por %p34, %p35
      %p37 = scmp.ne.s32.totalorder %s26, %s29
      %p38 = scmp.eq.s32.totalorder %s21, 1
      %p39 = por %p37, %p38
      %p40 = scmp.ne.s32.totalorder %s29, %s30
      %p41 = scmp.eq.s32.totalorder %s21, 0
      %p42 = por %p40, %p41
      %p43 = scmp.ne.s32.totalorder %s29, %s30
      %p44 = scmp.eq.s32.totalorder %s22, 1
      %p45 = por %p43, %p44
      %p47 = scmp.ne.s32.totalorder %s30, %s46
      %p48 = scmp.eq.s32.totalorder %s22, 0
      %p49 = por %p47, %p48
      %s51 = sadd.s32 %s50, 1
      %p54 = scmp.eq.s32.totalorder %s16, 1
      %p55 = scmp.ne.s32.totalorder %s50, %s52
      %p56 = scmp.eq.s32.totalorder %s16, 0
      %p57 = por %p55, %p56
      %p58 = scmp.ne.s32.totalorder %s50, %s52
      %p59 = scmp.eq.s32.totalorder %s21, 1
      %p60 = por %p58, %p59
      %p61 = scmp.ne.s32.totalorder %s52, %s53
      %p62 = scmp.eq.s32.totalorder %s21, 0
      %p63 = por %p61, %p62
      %p64 = scmp.ne.s32.totalorder %s52, %s53
      %p65 = scmp.eq.s32.totalorder %s22, 1
      %p66 = por %p64, %p65
      %p68 = scmp.ne.s32.totalorder %s53, %s67
      %p69 = scmp.eq.s32.totalorder %s22, 0
      %p70 = por %p68, %p69
      %s72 = sadd.s32 %s71, 1
      %p75 = scmp.eq.s32.totalorder %s16, 1
      %p76 = scmp.ne.s32.totalorder %s71, %s73
      %p77 = scmp.eq.s32.totalorder %s16, 0
      %p78 = por %p76, %p77
      %p79 = scmp.ne.s32.totalorder %s71, %s73
      %p80 = scmp.eq.s32.totalorder %s21, 1
      %p81 = por %p79, %p80
      %p82 = scmp.ne.s32.totalorder %s73, %s74
      %p83 = scmp.eq.s32.totalorder %s21, 0
      %p84 = por %p82, %p83
      %p85 = scmp.ne.s32.totalorder %s73, %s74
      %p86 = scmp.eq.s32.totalorder %s22, 1
      %p87 = por %p85, %p86
      %p89 = scmp.ne.s32.totalorder %s74, %s88
      %p90 = scmp.eq.s32.totalorder %s22, 0
      %p91 = por %p89, %p90
      %s93 = sadd.s32 %s92, 1
      %p96 = scmp.eq.s32.totalorder %s16, 1
      %p97 = scmp.ne.s32.totalorder %s92, %s94
      %p98 = scmp.eq.s32.totalorder %s16, 0
      %p99 = por %p97, %p98
      %p100 = scmp.ne.s32.totalorder %s92, %s94
      %p101 = scmp.eq.s32.totalorder %s21, 1
      %p102 = por %p100, %p101
      %p103 = scmp.ne.s32.totalorder %s94, %s95
      %p104 = scmp.eq.s32.totalorder %s21, 0
      %p105 = por %p103, %p104
      %p106 = scmp.ne.s32.totalorder %s94, %s95
      %p107 = scmp.eq.s32.totalorder %s22, 1
      %p108 = por %p106, %p107
      %p110 = scmp.ne.s32.totalorder %s95, %s109
      %p111 = scmp.eq.s32.totalorder %s22, 0
      %p112 = por %p110, %p111
      %s114 = sadd.s32 %s113, 1
      %p117 = scmp.eq.s32.totalorder %s16, 1
      %p118 = scmp.ne.s32.totalorder %s113, %s115
      %p119 = scmp.eq.s32.totalorder %s16, 0
      %p120 = por %p118, %p119
      %p121 = scmp.ne.s32.totalorder %s113, %s115
      %p122 = scmp.eq.s32.totalorder %s21, 1
      %p123 = por %p121, %p122
      %p124 = scmp.ne.s32.totalorder %s115, %s116
      %p125 = scmp.eq.s32.totalorder %s21, 0
      %p126 = por %p124, %p125
      %p127 = scmp.ne.s32.totalorder %s115, %s116
      %p128 = scmp.eq.s32.totalorder %s22, 1
      %p129 = por %p127, %p128
      %p131 = scmp.ne.s32.totalorder %s116, %s130
      %p132 = scmp.eq.s32.totalorder %s22, 0
      %p133 = por %p131, %p132
      %s135 = sadd.s32 %s134, 1
      %p138 = scmp.eq.s32.totalorder %s16, 1
      %p139 = scmp.ne.s32.totalorder %s134, %s136
      %p140 = scmp.eq.s32.totalorder %s16, 0
      %p141 = por %p139, %p140
      %p142 = scmp.ne.s32.totalorder %s134, %s136
      %p143 = scmp.eq.s32.totalorder %s21, 1
      %p144 = por %p142, %p143
      %p145 = scmp.ne.s32.totalorder %s136, %s137
      %p146 = scmp.eq.s32.totalorder %s21, 0
      %p147 = por %p145, %p146
      %p148 = scmp.ne.s32.totalorder %s136, %s137
      %p149 = scmp.eq.s32.totalorder %s22, 1
      %p150 = por %p148, %p149
      %p152 = scmp.ne.s32.totalorder %s137, %s151
      %p153 = scmp.eq.s32.totalorder %s22, 0
      %p154 = por %p152, %p153
      %s156 = sadd.s32 %s155, 1
      %p159 = scmp.eq.s32.totalorder %s16, 1
      %p160 = scmp.ne.s32.totalorder %s155, %s157
      %p161 = scmp.eq.s32.totalorder %s16, 0
      %p162 = por %p160, %p161
      %p163 = scmp.ne.s32.totalorder %s155, %s157
      %p164 = scmp.eq.s32.totalorder %s21, 1
      %p165 = por %p163, %p164
      %p166 = scmp.ne.s32.totalorder %s157, %s158
      %p167 = scmp.eq.s32.totalorder %s21, 0
      %p168 = por %p166, %p167
      %p169 = scmp.ne.s32.totalorder %s157, %s158
      %p170 = scmp.eq.s32.totalorder %s22, 1
      %p171 = por %p169, %p170
      %p173 = scmp.ne.s32.totalorder %s158, %s172
      %p174 = scmp.eq.s32.totalorder %s22, 0
      %p175 = por %p173, %p174
      %s176 = ssub.s32 %s16, %s23
      %p177 = scmp.eq.s32.totalorder %s176, 0
      %s179 = sadd.s32 %s178, 1
      %s180 = scalar_select %p177, %s178, %s179
      %p183 = pneg %p177
      %p184 = scmp.eq.s32.totalorder %s16, 1
      %p185 = por %p183, %p184
      %p186 = scmp.ne.s32.totalorder %s178, %s181
      %p187 = scmp.eq.s32.totalorder %s16, 0
      %p188 = por %p186, %p187
      %p189 = scmp.ne.s32.totalorder %s178, %s181
      %p190 = scmp.eq.s32.totalorder %s21, 1
      %p191 = por %p189, %p190
      %p192 = scmp.ne.s32.totalorder %s181, %s182
      %p193 = scmp.eq.s32.totalorder %s21, 0
      %p194 = por %p192, %p193
      %p195 = scmp.ne.s32.totalorder %s181, %s182
      %p196 = scmp.eq.s32.totalorder %s22, 1
      %p197 = por %p195, %p196
      %p199 = scmp.ne.s32.totalorder %s182, %s198
      %p200 = scmp.eq.s32.totalorder %s22, 0
      %p201 = por %p199, %p200
      %p202 = scmp.le.s32.totalorder 1, %s16
      %p203 = scmp.lt.s32.totalorder %s16, 3
      %p204 = pnand %p202, %p203
      %p205 = pneg %p204
      // Predicated region
      $region9: #{_lambda_.29} parent=5 // pred_check
        _
      $region10: #{_lambda_.29} parent=5 // pred_check_branch
        %207 = sbr.rel (%p204) target = $region12
      $region11: #{_lambda_.29} parent=5 // pred_region
        %s208 = ssub.s32 %s16, 1
        // Predicated region
        $region13: #{_lambda_.29} parent=11 // pred_check
          %p209 = pneg %p63
        $region14: #{_lambda_.29} parent=11 // pred_check_branch
          %211 = sbr.rel (%p209) target = $region16
        $region15: #{_lambda_.29} parent=11 // pred_region
          _
        $region16: #{_lambda_.29} parent=11 // pred_fallthru
          _
        // Predicated region
        $region17: #{_lambda_.29} parent=11 // pred_check
          %p212 = pneg %p84
        $region18: #{_lambda_.29} parent=11 // pred_check_branch
          %214 = sbr.rel (%p212) target = $region20
        $region19: #{_lambda_.29} parent=11 // pred_region
          _
        $region20: #{_lambda_.29} parent=11 // pred_fallthru
          _
        // Predicated region
        $region21: #{_lambda_.29} parent=11 // pred_check
          %p215 = pneg %p105
        $region22: #{_lambda_.29} parent=11 // pred_check_branch
          %217 = sbr.rel (%p215) target = $region24
        $region23: #{_lambda_.29} parent=11 // pred_region
          _
        $region24: #{_lambda_.29} parent=11 // pred_fallthru
          _
        // Predicated region
        $region25: #{_lambda_.29} parent=11 // pred_check
          %p218 = pneg %p126
        $region26: #{_lambda_.29} parent=11 // pred_check_branch
          %220 = sbr.rel (%p218) target = $region28
        $region27: #{_lambda_.29} parent=11 // pred_region
          _
        $region28: #{_lambda_.29} parent=11 // pred_fallthru
          _
        // Predicated region
        $region29: #{_lambda_.29} parent=11 // pred_check
          %p221 = pneg %p147
        $region30: #{_lambda_.29} parent=11 // pred_check_branch
          %223 = sbr.rel (%p221) target = $region32
        $region31: #{_lambda_.29} parent=11 // pred_region
          _
        $region32: #{_lambda_.29} parent=11 // pred_fallthru
          _
        // Predicated region
        $region33: #{_lambda_.29} parent=11 // pred_check
          %p224 = pneg %p168
        $region34: #{_lambda_.29} parent=11 // pred_check_branch
          %226 = sbr.rel (%p224) target = $region36
        $region35: #{_lambda_.29} parent=11 // pred_region
          _
        $region36: #{_lambda_.29} parent=11 // pred_fallthru
          _
      $region12: #{_lambda_.29} parent=5 // pred_fallthru
        _
      %p227 = scmp.lt.s32.totalorder %s16, 2
      // Predicated region
      $region37: #{_lambda_.29} parent=5 // pred_check
        %p228 = pneg %p227
      $region38: #{_lambda_.29} parent=5 // pred_check_branch
        %230 = sbr.rel (%p228) target = $region40
      $region39: #{_lambda_.29} parent=5 // pred_region
        // Predicated region
        $region41: #{_lambda_.29} parent=39 // pred_check
          %p231 = pneg %p36
        $region42: #{_lambda_.29} parent=39 // pred_check_branch
          %233 = sbr.rel (%p231) target = $region44
        $region43: #{_lambda_.29} parent=39 // pred_region
          %p234 = scmp.lt.s32.totalorder %s16, 1
          %s235 = scalar_select %p234, %s16, 1
          %s236 = smul.addr %s235, 4
          %s237 = scalar_lea.vmem %s0, %s236
        $region44: #{_lambda_.29} parent=39 // pred_fallthru
          _
      $region40: #{_lambda_.29} parent=5 // pred_fallthru
        _
      %p238 = scmp.le.s32.totalorder 1, %s16
      %p239 = scmp.lt.s32.totalorder %s16, 3
      %p240 = pnand %p238, %p239
      %p241 = pneg %p240
      // Predicated region
      $region45: #{_lambda_.29} parent=5 // pred_check
        _
      $region46: #{_lambda_.29} parent=5 // pred_check_branch
        %243 = sbr.rel (%p240) target = $region48
      $region47: #{_lambda_.29} parent=5 // pred_region
        %s244 = ssub.s32 %s16, 1
        %p245 = scmp.lt.s32.totalorder %s21, 1
        %s246 = scalar_select %p245, %s21, 1
        %s247 = smul.addr %s246, 4
        %s248 = scalar_lea.vmem %s0, %s247
        %p249 = pneg %p42
        %p250 = pneg %p39
        %p251 = pneg %p63
        %p252 = pneg %p60
        %p253 = pneg %p84
        %p254 = pneg %p81
        %p255 = pneg %p105
        %p256 = pneg %p102
        %p257 = pneg %p126
        %p258 = pneg %p123
        %p259 = pneg %p147
        %p260 = pneg %p144
        %p261 = pneg %p168
        %p262 = pneg %p165
        %p263 = pneg %p194
        %p264 = pneg %p191
        %s265 = sand.u32 %s181, 1
        %s266 = scalar_lea.sflag [#allocation3], %s265
        %s267 = sand.u32 %s181, 1
        %s268 = smul.addr %s267, 4
        %s269 = scalar_lea.vmem [#allocation2], %s268
        %p270 = scmp.lt.s32.totalorder %s21, 1
        %s271 = scalar_select %p270, %s21, 1
        %s272 = smul.addr %s271, 4
        %s273 = scalar_lea.vmem %s0, %s272
        %v275 = vld [vmem:[%s273] sm:$0xf]
        %v276 = vld [vmem:[%s1] sm:$0xff]
        %v277 = vld [vmem:[%s1 + $0x8] sm:$0xff]
        %v278 = vld [vmem:[%s1 + $0x10] sm:$0xff]
        %v279 = vld [vmem:[%s1 + $0x18] sm:$0xff]
        %v280 = vld [vmem:[%s1 + $0x20] sm:$0xff]
        %v281 = vld [vmem:[%s1 + $0x28] sm:$0xff]
        %v282 = vld [vmem:[%s1 + $0x30] sm:$0xff]
        %v283 = vld [vmem:[%s1 + $0x38] sm:$0xff]
        %v284 = vld [vmem:[%s1 + $0x40] sm:$0xff]
        %v285 = vld [vmem:[%s1 + $0x48] sm:$0xff]
        %v286 = vld [vmem:[%s1 + $0x50] sm:$0xff]
        %v287 = vld [vmem:[%s1 + $0x58] sm:$0xff]
        %v288 = vld [vmem:[%s1 + $0x60] sm:$0xff]
        %v289 = vld [vmem:[%s1 + $0x68] sm:$0xff]
        %v290 = vld [vmem:[%s1 + $0x70] sm:$0xff]
        %v291 = vld [vmem:[%s1 + $0x78] sm:$0xff]
        %v292 = vld [vmem:[%s2] sm:$0x3]
        %v293 = vld [vmem:[%s3] sm:$0xf]
        %v294 = vld [vmem:[%s3 + $0x4] sm:$0xf]
        %v295 = vld [vmem:[%s3 + $0x8] sm:$0xf]
        %v296 = vld [vmem:[%s3 + $0xc] sm:$0xf]
        %v297 = vld [vmem:[%s3 + $0x10] sm:$0xf]
        %v298 = vld [vmem:[%s3 + $0x14] sm:$0xf]
        %v299 = vld [vmem:[%s3 + $0x18] sm:$0xf]
        %v300 = vld [vmem:[%s3 + $0x1c] sm:$0xf]
        %v301 = vld [vmem:[%s3 + $0x20] sm:$0xf]
        %v302 = vld [vmem:[%s3 + $0x24] sm:$0xf]
        %v303 = vld [vmem:[%s3 + $0x28] sm:$0xf]
        %v304 = vld [vmem:[%s3 + $0x2c] sm:$0xf]
        %v305 = vld [vmem:[%s3 + $0x30] sm:$0xf]
        %v306 = vld [vmem:[%s3 + $0x34] sm:$0xf]
        %v307 = vld [vmem:[%s3 + $0x38] sm:$0xf]
        %v308 = vld [vmem:[%s3 + $0x3c] sm:$0xf]
        %v309 = vld [vmem:[%s3 + $0x40] sm:$0xf]
        %v310 = vld [vmem:[%s3 + $0x44] sm:$0xf]
        %v311 = vld [vmem:[%s3 + $0x48] sm:$0xf]
        %v312 = vld [vmem:[%s3 + $0x4c] sm:$0xf]
        %v313 = vld [vmem:[%s3 + $0x50] sm:$0xf]
        %v314 = vld [vmem:[%s3 + $0x54] sm:$0xf]
        %v315 = vld [vmem:[%s3 + $0x58] sm:$0xf]
        %v316 = vld [vmem:[%s3 + $0x5c] sm:$0xf]
        %v317 = vld [vmem:[%s3 + $0x60] sm:$0xf]
        %v318 = vld [vmem:[%s3 + $0x64] sm:$0xf]
        %v319 = vld [vmem:[%s3 + $0x68] sm:$0xf]
        %v320 = vld [vmem:[%s3 + $0x6c] sm:$0xf]
        %v321 = vld [vmem:[%s3 + $0x70] sm:$0xf]
        %v322 = vld [vmem:[%s3 + $0x74] sm:$0xf]
        %v323 = vld [vmem:[%s3 + $0x78] sm:$0xf]
        %v324 = vld [vmem:[%s3 + $0x7c] sm:$0xf]
        %v325 = vld [vmem:[%s4] sm:$0x1]
        %v326 = vld [vmem:[%s5] sm:$0x1]
        %v327 = vld [vmem:[%s6] sm:$0x1]
        %v328 = vpack.c.bf16 %v275, %v275
        %v330 = vlaneseq
        %v331 = vshrl.u32 %v330, 7
        %v332 = vsub.s32 0, %v331
        %v333 = vrot.slane %v292, %v332
        %v334 = vlaneseq
        %v335 = vshrl.u32 %v334, 7
        %v336 = vsub.s32 1, %v335
        %v337 = vrot.slane %v292, %v336
        %v356 = vunpack.c.l.b16 %v276
        %v357 = vunpack.c.h.b16 %v276
        %v358 = vunpack.c.l.b16 %v277
        %v359 = vunpack.c.h.b16 %v277
        %v360 = vunpack.c.l.b16 %v278
        %v361 = vunpack.c.h.b16 %v278
        %v362 = vunpack.c.l.b16 %v279
        %v363 = vunpack.c.h.b16 %v279
        %v364 = vunpack.c.l.b16 %v280
        %v365 = vunpack.c.h.b16 %v280
        %v366 = vunpack.c.l.b16 %v281
        %v367 = vunpack.c.h.b16 %v281
        %v368 = vunpack.c.l.b16 %v282
        %v369 = vunpack.c.h.b16 %v282
        %v370 = vunpack.c.l.b16 %v283
        %v371 = vunpack.c.h.b16 %v283
        %v372 = vunpack.c.l.b16 %v284
        %v373 = vunpack.c.h.b16 %v284
        %v374 = vunpack.c.l.b16 %v285
        %v375 = vunpack.c.h.b16 %v285
        %v376 = vunpack.c.l.b16 %v286
        %v377 = vunpack.c.h.b16 %v286
        %v378 = vunpack.c.l.b16 %v287
        %v379 = vunpack.c.h.b16 %v287
        %v380 = vunpack.c.l.b16 %v288
        %v381 = vunpack.c.h.b16 %v288
        %v382 = vunpack.c.l.b16 %v289
        %v383 = vunpack.c.h.b16 %v289
        %v384 = vunpack.c.l.b16 %v290
        %v385 = vunpack.c.h.b16 %v290
        %v386 = vunpack.c.l.b16 %v291
        %v387 = vunpack.c.h.b16 %v291
        %v388 = vpack.c.b16 %v358, %v356
        %v389 = vpack.c.b16 %v359, %v357
        %v390 = vpack.c.b16 %v362, %v360
        %v391 = vpack.c.b16 %v363, %v361
        %v392 = vpack.c.b16 %v366, %v364
        %v393 = vpack.c.b16 %v367, %v365
        %v394 = vpack.c.b16 %v370, %v368
        %v395 = vpack.c.b16 %v371, %v369
        %v396 = vpack.c.b16 %v374, %v372
        %v397 = vpack.c.b16 %v375, %v373
        %v398 = vpack.c.b16 %v378, %v376
        %v399 = vpack.c.b16 %v379, %v377
        %v400 = vpack.c.b16 %v382, %v380
        %v401 = vpack.c.b16 %v383, %v381
        %v402 = vpack.c.b16 %v386, %v384
        %v403 = vpack.c.b16 %v387, %v385
        %420 = vmatprep.subr.bf16.mxu0 %v389
        %421 = vmatpush1.bf16.msra.mxu0 %v388
        %422 = vmatprep.subr.bf16.mxu0 %v391
        %423 = vmatpush1.bf16.msra.mxu0 %v390
        %424 = vmatprep.subr.bf16.mxu0 %v393
        %425 = vmatpush1.bf16.msra.mxu0 %v392
        %426 = vmatprep.subr.bf16.mxu0 %v395
        %427 = vmatpush1.bf16.msra.mxu0 %v394
        %428 = vmatprep.subr.bf16.mxu0 %v397
        %429 = vmatpush1.bf16.msra.mxu0 %v396
        %430 = vmatprep.subr.bf16.mxu0 %v399
        %431 = vmatpush1.bf16.msra.mxu0 %v398
        %432 = vmatprep.subr.bf16.mxu0 %v401
        %433 = vmatpush1.bf16.msra.mxu0 %v400
        %434 = vmatprep.subr.bf16.mxu0 %v403
        %435 = vmatpush1.bf16.msra.mxu0 %v402
        %436 = vmatprep.subr.bf16.mxu0 0
        %437 = vmatpush1.bf16.msra.mxu0 0
        %438 = vmatprep.subr.bf16.mxu0 0
        %439 = vmatpush1.bf16.msra.mxu0 0
        %440 = vmatprep.subr.bf16.mxu0 0
        %441 = vmatpush1.bf16.msra.mxu0 0
        %442 = vmatprep.subr.bf16.mxu0 0
        %443 = vmatpush1.bf16.msra.mxu0 0
        %444 = vmatprep.subr.bf16.mxu0 0
        %445 = vmatpush1.bf16.msra.mxu0 0
        %446 = vmatprep.subr.bf16.mxu0 0
        %447 = vmatpush1.bf16.msra.mxu0 0
        %448 = vmatprep.subr.bf16.mxu0 0
        %449 = vmatpush1.bf16.msra.mxu0 0
        %450 = vmatprep.subr.bf16.mxu0 0
        %451 = vmatpush1.bf16.msra.mxu0 0
        %452 = vmatprep.mubr.bf16.mxu0 0
        %453 = vmatmul.mubr.bf16.gmra.mrb[0].mxu0 %v328
        %v454 = vpop.f32.mrb[0].mxu0
        %v455 = vadd.f32 %v333, %v454
        %v456 = vpop.f32.mrb[0].mxu0
        %v457 = vadd.f32 %v337, %v456
        %v458 = vpop.f32.mrb[0].mxu0
        %v459 = vpop.f32.mrb[0].mxu0
        %460 = vdwg.mxu0
        %v461 = vmax.f32 %v455, 0.0
        %v462 = vmax.f32 %v457, 0.0
        %v463 = vpack.c.bf16 %v461, %v461
        %v464 = vpack.c.bf16 %v462, %v462
        %v466 = vlaneseq
        %v467 = vshrl.u32 %v466, 7
        %v468 = vsub.s32 0, %v467
        %v469 = vrot.slane %v325, %v468
        %v503 = vunpack.c.l.b16 %v293
        %v504 = vunpack.c.l.b16 %v294
        %v505 = vunpack.c.l.b16 %v295
        %v506 = vunpack.c.l.b16 %v296
        %v507 = vunpack.c.l.b16 %v297
        %v508 = vunpack.c.l.b16 %v298
        %v509 = vunpack.c.l.b16 %v299
        %v510 = vunpack.c.l.b16 %v300
        %v511 = vunpack.c.l.b16 %v301
        %v512 = vunpack.c.l.b16 %v302
        %v513 = vunpack.c.l.b16 %v303
        %v514 = vunpack.c.l.b16 %v304
        %v515 = vunpack.c.l.b16 %v305
        %v516 = vunpack.c.l.b16 %v306
        %v517 = vunpack.c.l.b16 %v307
        %v518 = vunpack.c.l.b16 %v308
        %v519 = vunpack.c.l.b16 %v309
        %v520 = vunpack.c.l.b16 %v310
        %v521 = vunpack.c.l.b16 %v311
        %v522 = vunpack.c.l.b16 %v312
        %v523 = vunpack.c.l.b16 %v313
        %v524 = vunpack.c.l.b16 %v314
        %v525 = vunpack.c.l.b16 %v315
        %v526 = vunpack.c.l.b16 %v316
        %v527 = vunpack.c.l.b16 %v317
        %v528 = vunpack.c.l.b16 %v318
        %v529 = vunpack.c.l.b16 %v319
        %v530 = vunpack.c.l.b16 %v320
        %v531 = vunpack.c.l.b16 %v321
        %v532 = vunpack.c.l.b16 %v322
        %v533 = vunpack.c.l.b16 %v323
        %v534 = vunpack.c.l.b16 %v324
        %v535 = vpack.c.b16 %v504, %v503
        %v536 = vpack.c.b16 %v506, %v505
        %v537 = vpack.c.b16 %v508, %v507
        %v538 = vpack.c.b16 %v510, %v509
        %v539 = vpack.c.b16 %v512, %v511
        %v540 = vpack.c.b16 %v514, %v513
        %v541 = vpack.c.b16 %v516, %v515
        %v542 = vpack.c.b16 %v518, %v517
        %v543 = vpack.c.b16 %v520, %v519
        %v544 = vpack.c.b16 %v522, %v521
        %v545 = vpack.c.b16 %v524, %v523
        %v546 = vpack.c.b16 %v526, %v525
        %v547 = vpack.c.b16 %v528, %v527
        %v548 = vpack.c.b16 %v530, %v529
        %v549 = vpack.c.b16 %v532, %v531
        %v550 = vpack.c.b16 %v534, %v533
        %567 = vmatprep.subr.bf16.mxu0 0
        %568 = vmatpush1.bf16.msra.mxu0 %v535
        %569 = vmatprep.subr.bf16.mxu0 0
        %570 = vmatpush1.bf16.msra.mxu0 %v536
        %571 = vmatprep.subr.bf16.mxu0 0
        %572 = vmatpush1.bf16.msra.mxu0 %v537
        %573 = vmatprep.subr.bf16.mxu0 0
        %574 = vmatpush1.bf16.msra.mxu0 %v538
        %575 = vmatprep.subr.bf16.mxu0 0
        %576 = vmatpush1.bf16.msra.mxu0 %v539
        %577 = vmatprep.subr.bf16.mxu0 0
        %578 = vmatpush1.bf16.msra.mxu0 %v540
        %579 = vmatprep.subr.bf16.mxu0 0
        %580 = vmatpush1.bf16.msra.mxu0 %v541
        %581 = vmatprep.subr.bf16.mxu0 0
        %582 = vmatpush1.bf16.msra.mxu0 %v542
        %583 = vmatprep.subr.bf16.mxu0 0
        %584 = vmatpush1.bf16.msra.mxu0 %v543
        %585 = vmatprep.subr.bf16.mxu0 0
        %586 = vmatpush1.bf16.msra.mxu0 %v544
        %587 = vmatprep.subr.bf16.mxu0 0
        %588 = vmatpush1.bf16.msra.mxu0 %v545
        %589 = vmatprep.subr.bf16.mxu0 0
        %590 = vmatpush1.bf16.msra.mxu0 %v546
        %591 = vmatprep.subr.bf16.mxu0 0
        %592 = vmatpush1.bf16.msra.mxu0 %v547
        %593 = vmatprep.subr.bf16.mxu0 0
        %594 = vmatpush1.bf16.msra.mxu0 %v548
        %595 = vmatprep.subr.bf16.mxu0 0
        %596 = vmatpush1.bf16.msra.mxu0 %v549
        %597 = vmatprep.subr.bf16.mxu0 0
        %598 = vmatpush1.bf16.msra.mxu0 %v550
        %599 = vmatprep.mubr.bf16.mxu0 %v464
        %600 = vmatmul.mubr.bf16.gmra.mrb[0].mxu0 %v463
        %v601 = vpop.f32.mrb[0].mxu0
        %v602 = vadd.f32 %v469, %v601
        %v603 = vpop.f32.mrb[0].mxu0
        %v604 = vpop.f32.mrb[0].mxu0
        %v605 = vpop.f32.mrb[0].mxu0
        %606 = vdwg.mxu0
        %v607 = vadd.f32 %v275, %v602
        %vm608 = vcmask 1043456
        %v609 = vsel %vm608, %v607, 0.0
        %610 = vadd.xlane.f32.xlu0 %v609
        %v611 = vpop.xlane.xlu0 %610
        %v612 = vrcp.pop 128.0
        %v613 = vmul.f32 %v611, %v612
        %v614 = vsub.f32 %v607, %v613
        %v615 = vmul.f32 %v614, %v614
        %v616 = vsel %vm608, %v615, 0.0
        %617 = vadd.xlane.f32.xlu0 %v616
        %v618 = vpop.xlane.xlu0 %617
        %v619 = vmul.f32 %v618, %v612
        %v620 = vadd.f32 %v619, 1e-05
        %v621 = vrsqrt.pop %v620
        %v622 = vmul.f32 %v614, %v621
        %v624 = vlaneseq
        %v625 = vshrl.u32 %v624, 7
        %v626 = vsub.s32 0, %v625
        %v627 = vrot.slane %v326, %v626
        %v629 = vmul.f32 %v622, %v627
        %v631 = vlaneseq
        %v632 = vshrl.u32 %v631, 7
        %v633 = vsub.s32 0, %v632
        %v634 = vrot.slane %v327, %v633
        %v636 = vadd.f32 %v629, %v634
        %637 = vst [vmem:[%s269] sm:$0xf] %v636
        %s638 = sand.u32 %s181, 1
        %s639 = scalar_lea.sflag [#allocation3], %s638
        %s640 = sand.u32 %s181, 1
        %s641 = smul.addr %s640, 4
        %s642 = scalar_lea.vmem [#allocation2], %s641
        // Predicated region
        $region49: #{_lambda_.29} parent=47 // pred_check
          %p643 = pneg %p191
        $region50: #{_lambda_.29} parent=47 // pred_check_branch
          %645 = sbr.rel (%p643) target = $region52
        $region51: #{_lambda_.29} parent=47 // pred_region
          %s647 = ssub.s32 64, 64
          %648 = vsyncadd %s639, %s647
          %s649 = smul.addr %s21, 64
          %s650 = scalar_lea.hbm %s7, %s649
          %s652 = sshll.u32 %s642, 4
          %s653 = int_to_ptr.vmem [resolvable:$true] %s652
          %655 = dma.vmem_to_hbm [thread:$0]  %s653, 64, %s650, %s639
        $region52: #{_lambda_.29} parent=47 // pred_fallthru
          _
      $region48: #{_lambda_.29} parent=5 // pred_fallthru
        _
      %p656 = scmp.le.s32.totalorder 2, %s16
      // Predicated region
      $region53: #{_lambda_.29} parent=5 // pred_check
        %p657 = pneg %p656
      $region54: #{_lambda_.29} parent=5 // pred_check_branch
        %659 = sbr.rel (%p657) target = $region56
      $region55: #{_lambda_.29} parent=5 // pred_region
        %s660 = ssub.s32 %s16, 2
        // Predicated region
        $region57: #{_lambda_.29} parent=55 // pred_check
          %p661 = pneg %p197
        $region58: #{_lambda_.29} parent=55 // pred_check_branch
          %663 = sbr.rel (%p661) target = $region60
        $region59: #{_lambda_.29} parent=55 // pred_region
          %s664 = sand.u32 %s182, 1
          %s665 = scalar_lea.sflag [#allocation3], %s664
          %s666 = sand.u32 %s182, 1
          %s667 = smul.addr %s666, 4
          %s668 = scalar_lea.vmem [#allocation2], %s667
          %669 = dma.done %s665, 64
        $region60: #{_lambda_.29} parent=55 // pred_fallthru
          _
      $region56: #{_lambda_.29} parent=5 // pred_fallthru
        _
    $region6: #{_lambda_.29} parent=1 // loop_footer
      %s20 = sadd.s32 1, %s16
    $region7: #{_lambda_.29} parent=1 // loop_footer_branch
      %15 = sbr.rel target = $region3
    $region8: #{_lambda_.29} parent=1 // loop_exit
      _
    %670 = vsyncpa [#allocation3], 1
    %s671 = scalar_lea.sflag [#allocation3], 1
    %672 = vsyncpa %s671, 1

// kernel: _lambda_.22
$region0: #{_lambda_.22}
  #allocation0 [shape = 'u32[]', space=smem, size = 0x4, offset = 0x4, fixed_abs, tag = 'smem constant byte address 0x4 - core index']
  #allocation1 [shape = 'u32[144,128]{1,0:T(1,128)}', space=vmem, size = 0x12000, scoped, tag = 'internal scratch']
  %s0 = inlined_call_operand.vmem [shape: f32[2,8,128], index: 0, kind: input, shape index: {}]
  %s1 = inlined_call_operand.vmem [shape: f32[2,1,8], index: 1, kind: input, shape index: {}]
  %s2 = inlined_call_operand.vmem [shape: bf16[128,384], index: 2, kind: input, shape index: {}]
  %s3 = inlined_call_operand.vmem [shape: f32[1,384], index: 3, kind: input, shape index: {}]
  %s4 = inlined_call_operand.vmem [shape: bf16[128,128], index: 4, kind: input, shape index: {}]
  %s5 = inlined_call_operand.vmem [shape: f32[1,128], index: 5, kind: input, shape index: {}]
  %s6 = inlined_call_operand.vmem [shape: f32[1,128], index: 6, kind: input, shape index: {}]
  %s7 = inlined_call_operand.vmem [shape: f32[1,128], index: 7, kind: input, shape index: {}]
  %s8 = inlined_call_operand.vmem [shape: f32[2,8,128], index: 8, kind: output, shape index: {}]
  %s9 = sld [smem:[#allocation0]]
  $region65: #{_lambda_.22} parent=0
    _
  %s11 = ssub.s32 1, %s9
  %s12 = scalar_select 0, %s11, %s9
  loop: start=0, step=1, limit=4
  $region2: #{_lambda_.22} parent=0 // loop_pre_header
    _
  $region3: #{_lambda_.22} parent=0 // loop_header
    %s14 = sphi 0, %s18
    %p15 = scmp.ge.s32.totalorder %s14, 4
    %s24 = sphi 0, %s26
    %s27 = sphi 0, %s24
    %s28 = sphi 0, %s27
    %s44 = sphi 0, %s28
    %s50 = sphi 0, %s52
    %s53 = sphi 0, %s50
    %s54 = sphi 0, %s53
    %s70 = sphi 0, %s54
    %s74 = sphi 0, %s74
    %s76 = sphi 0, %s74
    %s77 = sphi 0, %s76
    %s91 = sphi 0, %s77
    %s95 = sphi 0, %s95
    %s97 = sphi 0, %s95
    %s98 = sphi 0, %s97
    %s112 = sphi 0, %s98
    %s116 = sphi 0, %s116
    %s118 = sphi 0, %s116
    %s119 = sphi 0, %s118
    %s133 = sphi 0, %s119
    %s137 = sphi 0, %s137
    %s139 = sphi 0, %s137
    %s140 = sphi 0, %s139
    %s154 = sphi 0, %s140
    %s158 = sphi 0, %s158
    %s160 = sphi 0, %s158
    %s161 = sphi 0, %s160
    %s175 = sphi 0, %s161
    %s179 = sphi 0, %s179
    %s181 = sphi 0, %s179
    %s182 = sphi 0, %s181
    %s196 = sphi 0, %s182
    %s202 = sphi 0, %s204
    %s205 = sphi 0, %s202
    %s206 = sphi 0, %s205
    %s222 = sphi 0, %s206
  $region4: #{_lambda_.22} parent=0 // loop_header_branch
    %17 = sbr.rel (%p15) target = $region8
  $region5: #{_lambda_.22} parent=0 // loop_body
    %s19 = ssub.s32 %s14, 1
    %s20 = ssub.s32 %s14, 2
    %s21 = sadd.s32 %s14, 1
    %s22 = ssub.s32 %s14, %s21
    %p23 = scmp.eq.s32.totalorder %s22, 0
    %s25 = sadd.s32 %s24, 1
    %s26 = scalar_select %p23, %s24, %s25
    %p29 = pneg %p23
    %p30 = scmp.eq.s32.totalorder %s14, 1
    %p31 = por %p29, %p30
    %p32 = scmp.ne.s32.totalorder %s24, %s27
    %p33 = scmp.eq.s32.totalorder %s14, 0
    %p34 = por %p32, %p33
    %p35 = scmp.ne.s32.totalorder %s24, %s27
    %p36 = scmp.eq.s32.totalorder %s19, 1
    %p37 = por %p35, %p36
    %p38 = scmp.ne.s32.totalorder %s27, %s28
    %p39 = scmp.eq.s32.totalorder %s19, 0
    %p40 = por %p38, %p39
    %p41 = scmp.ne.s32.totalorder %s27, %s28
    %p42 = scmp.eq.s32.totalorder %s20, 1
    %p43 = por %p41, %p42
    %p45 = scmp.ne.s32.totalorder %s28, %s44
    %p46 = scmp.eq.s32.totalorder %s20, 0
    %p47 = por %p45, %p46
    %s48 = ssub.s32 %s14, %s21
    %p49 = scmp.eq.s32.totalorder %s48, 0
    %s51 = sadd.s32 %s50, 1
    %s52 = scalar_select %p49, %s50, %s51
    %p55 = pneg %p49
    %p56 = scmp.eq.s32.totalorder %s14, 1
    %p57 = por %p55, %p56
    %p58 = scmp.ne.s32.totalorder %s50, %s53
    %p59 = scmp.eq.s32.totalorder %s14, 0
    %p60 = por %p58, %p59
    %p61 = scmp.ne.s32.totalorder %s50, %s53
    %p62 = scmp.eq.s32.totalorder %s19, 1
    %p63 = por %p61, %p62
    %p64 = scmp.ne.s32.totalorder %s53, %s54
    %p65 = scmp.eq.s32.totalorder %s19, 0
    %p66 = por %p64, %p65
    %p67 = scmp.ne.s32.totalorder %s53, %s54
    %p68 = scmp.eq.s32.totalorder %s20, 1
    %p69 = por %p67, %p68
    %p71 = scmp.ne.s32.totalorder %s54, %s70
    %p72 = scmp.eq.s32.totalorder %s20, 0
    %p73 = por %p71, %p72
    %s75 = sadd.s32 %s74, 1
    %p78 = scmp.eq.s32.totalorder %s14, 1
    %p79 = scmp.ne.s32.totalorder %s74, %s76
    %p80 = scmp.eq.s32.totalorder %s14, 0
    %p81 = por %p79, %p80
    %p82 = scmp.ne.s32.totalorder %s74, %s76
    %p83 = scmp.eq.s32.totalorder %s19, 1
    %p84 = por %p82, %p83
    %p85 = scmp.ne.s32.totalorder %s76, %s77
    %p86 = scmp.eq.s32.totalorder %s19, 0
    %p87 = por %p85, %p86
    %p88 = scmp.ne.s32.totalorder %s76, %s77
    %p89 = scmp.eq.s32.totalorder %s20, 1
    %p90 = por %p88, %p89
    %p92 = scmp.ne.s32.totalorder %s77, %s91
    %p93 = scmp.eq.s32.totalorder %s20, 0
    %p94 = por %p92, %p93
    %s96 = sadd.s32 %s95, 1
    %p99 = scmp.eq.s32.totalorder %s14, 1
    %p100 = scmp.ne.s32.totalorder %s95, %s97
    %p101 = scmp.eq.s32.totalorder %s14, 0
    %p102 = por %p100, %p101
    %p103 = scmp.ne.s32.totalorder %s95, %s97
    %p104 = scmp.eq.s32.totalorder %s19, 1
    %p105 = por %p103, %p104
    %p106 = scmp.ne.s32.totalorder %s97, %s98
    %p107 = scmp.eq.s32.totalorder %s19, 0
    %p108 = por %p106, %p107
    %p109 = scmp.ne.s32.totalorder %s97, %s98
    %p110 = scmp.eq.s32.totalorder %s20, 1
    %p111 = por %p109, %p110
    %p113 = scmp.ne.s32.totalorder %s98, %s112
    %p114 = scmp.eq.s32.totalorder %s20, 0
    %p115 = por %p113, %p114
    %s117 = sadd.s32 %s116, 1
    %p120 = scmp.eq.s32.totalorder %s14, 1
    %p121 = scmp.ne.s32.totalorder %s116, %s118
    %p122 = scmp.eq.s32.totalorder %s14, 0
    %p123 = por %p121, %p122
    %p124 = scmp.ne.s32.totalorder %s116, %s118
    %p125 = scmp.eq.s32.totalorder %s19, 1
    %p126 = por %p124, %p125
    %p127 = scmp.ne.s32.totalorder %s118, %s119
    %p128 = scmp.eq.s32.totalorder %s19, 0
    %p129 = por %p127, %p128
    %p130 = scmp.ne.s32.totalorder %s118, %s119
    %p131 = scmp.eq.s32.totalorder %s20, 1
    %p132 = por %p130, %p131
    %p134 = scmp.ne.s32.totalorder %s119, %s133
    %p135 = scmp.eq.s32.totalorder %s20, 0
    %p136 = por %p134, %p135
    %s138 = sadd.s32 %s137, 1
    %p141 = scmp.eq.s32.totalorder %s14, 1
    %p142 = scmp.ne.s32.totalorder %s137, %s139
    %p143 = scmp.eq.s32.totalorder %s14, 0
    %p144 = por %p142, %p143
    %p145 = scmp.ne.s32.totalorder %s137, %s139
    %p146 = scmp.eq.s32.totalorder %s19, 1
    %p147 = por %p145, %p146
    %p148 = scmp.ne.s32.totalorder %s139, %s140
    %p149 = scmp.eq.s32.totalorder %s19, 0
    %p150 = por %p148, %p149
    %p151 = scmp.ne.s32.totalorder %s139, %s140
    %p152 = scmp.eq.s32.totalorder %s20, 1
    %p153 = por %p151, %p152
    %p155 = scmp.ne.s32.totalorder %s140, %s154
    %p156 = scmp.eq.s32.totalorder %s20, 0
    %p157 = por %p155, %p156
    %s159 = sadd.s32 %s158, 1
    %p162 = scmp.eq.s32.totalorder %s14, 1
    %p163 = scmp.ne.s32.totalorder %s158, %s160
    %p164 = scmp.eq.s32.totalorder %s14, 0
    %p165 = por %p163, %p164
    %p166 = scmp.ne.s32.totalorder %s158, %s160
    %p167 = scmp.eq.s32.totalorder %s19, 1
    %p168 = por %p166, %p167
    %p169 = scmp.ne.s32.totalorder %s160, %s161
    %p170 = scmp.eq.s32.totalorder %s19, 0
    %p171 = por %p169, %p170
    %p172 = scmp.ne.s32.totalorder %s160, %s161
    %p173 = scmp.eq.s32.totalorder %s20, 1
    %p174 = por %p172, %p173
    %p176 = scmp.ne.s32.totalorder %s161, %s175
    %p177 = scmp.eq.s32.totalorder %s20, 0
    %p178 = por %p176, %p177
    %s180 = sadd.s32 %s179, 1
    %p183 = scmp.eq.s32.totalorder %s14, 1
    %p184 = scmp.ne.s32.totalorder %s179, %s181
    %p185 = scmp.eq.s32.totalorder %s14, 0
    %p186 = por %p184, %p185
    %p187 = scmp.ne.s32.totalorder %s179, %s181
    %p188 = scmp.eq.s32.totalorder %s19, 1
    %p189 = por %p187, %p188
    %p190 = scmp.ne.s32.totalorder %s181, %s182
    %p191 = scmp.eq.s32.totalorder %s19, 0
    %p192 = por %p190, %p191
    %p193 = scmp.ne.s32.totalorder %s181, %s182
    %p194 = scmp.eq.s32.totalorder %s20, 1
    %p195 = por %p193, %p194
    %p197 = scmp.ne.s32.totalorder %s182, %s196
    %p198 = scmp.eq.s32.totalorder %s20, 0
    %p199 = por %p197, %p198
    %s200 = ssub.s32 %s14, %s21
    %p201 = scmp.eq.s32.totalorder %s200, 0
    %s203 = sadd.s32 %s202, 1
    %s204 = scalar_select %p201, %s202, %s203
    %p207 = pneg %p201
    %p208 = scmp.eq.s32.totalorder %s14, 1
    %p209 = por %p207, %p208
    %p210 = scmp.ne.s32.totalorder %s202, %s205
    %p211 = scmp.eq.s32.totalorder %s14, 0
    %p212 = por %p210, %p211
    %p213 = scmp.ne.s32.totalorder %s202, %s205
    %p214 = scmp.eq.s32.totalorder %s19, 1
    %p215 = por %p213, %p214
    %p216 = scmp.ne.s32.totalorder %s205, %s206
    %p217 = scmp.eq.s32.totalorder %s19, 0
    %p218 = por %p216, %p217
    %p219 = scmp.ne.s32.totalorder %s205, %s206
    %p220 = scmp.eq.s32.totalorder %s20, 1
    %p221 = por %p219, %p220
    %p223 = scmp.ne.s32.totalorder %s206, %s222
    %p224 = scmp.eq.s32.totalorder %s20, 0
    %p225 = por %p223, %p224
    %p226 = scmp.le.s32.totalorder 1, %s14
    %p227 = scmp.lt.s32.totalorder %s14, 3
    %p228 = pnand %p226, %p227
    %p229 = pneg %p228
    // Predicated region
    $region9: #{_lambda_.22} parent=5 // pred_check
      _
    $region10: #{_lambda_.22} parent=5 // pred_check_branch
      %231 = sbr.rel (%p228) target = $region12
    $region11: #{_lambda_.22} parent=5 // pred_region
      %s232 = ssub.s32 %s14, 1
      // Predicated region
      $region13: #{_lambda_.22} parent=11 // pred_check
        %p233 = pneg %p87
      $region14: #{_lambda_.22} parent=11 // pred_check_branch
        %235 = sbr.rel (%p233) target = $region16
      $region15: #{_lambda_.22} parent=11 // pred_region
        _
      $region16: #{_lambda_.22} parent=11 // pred_fallthru
        _
      // Predicated region
      $region17: #{_lambda_.22} parent=11 // pred_check
        %p236 = pneg %p108
      $region18: #{_lambda_.22} parent=11 // pred_check_branch
        %238 = sbr.rel (%p236) target = $region20
      $region19: #{_lambda_.22} parent=11 // pred_region
        _
      $region20: #{_lambda_.22} parent=11 // pred_fallthru
        _
      // Predicated region
      $region21: #{_lambda_.22} parent=11 // pred_check
        %p239 = pneg %p129
      $region22: #{_lambda_.22} parent=11 // pred_check_branch
        %241 = sbr.rel (%p239) target = $region24
      $region23: #{_lambda_.22} parent=11 // pred_region
        _
      $region24: #{_lambda_.22} parent=11 // pred_fallthru
        _
      // Predicated region
      $region25: #{_lambda_.22} parent=11 // pred_check
        %p242 = pneg %p150
      $region26: #{_lambda_.22} parent=11 // pred_check_branch
        %244 = sbr.rel (%p242) target = $region28
      $region27: #{_lambda_.22} parent=11 // pred_region
        _
      $region28: #{_lambda_.22} parent=11 // pred_fallthru
        _
      // Predicated region
      $region29: #{_lambda_.22} parent=11 // pred_check
        %p245 = pneg %p171
      $region30: #{_lambda_.22} parent=11 // pred_check_branch
        %247 = sbr.rel (%p245) target = $region32
      $region31: #{_lambda_.22} parent=11 // pred_region
        _
      $region32: #{_lambda_.22} parent=11 // pred_fallthru
        _
      // Predicated region
      $region33: #{_lambda_.22} parent=11 // pred_check
        %p248 = pneg %p192
      $region34: #{_lambda_.22} parent=11 // pred_check_branch
        %250 = sbr.rel (%p248) target = $region36
      $region35: #{_lambda_.22} parent=11 // pred_region
        _
      $region36: #{_lambda_.22} parent=11 // pred_fallthru
        _
    $region12: #{_lambda_.22} parent=5 // pred_fallthru
      _
    %p251 = scmp.lt.s32.totalorder %s14, 2
    // Predicated region
    $region37: #{_lambda_.22} parent=5 // pred_check
      %p252 = pneg %p251
    $region38: #{_lambda_.22} parent=5 // pred_check_branch
      %254 = sbr.rel (%p252) target = $region40
    $region39: #{_lambda_.22} parent=5 // pred_region
      // Predicated region
      $region41: #{_lambda_.22} parent=39 // pred_check
        %p255 = pneg %p34
      $region42: #{_lambda_.22} parent=39 // pred_check_branch
        %257 = sbr.rel (%p255) target = $region44
      $region43: #{_lambda_.22} parent=39 // pred_region
        %p258 = scmp.lt.s32.totalorder %s14, 1
        %s259 = scalar_select %p258, %s14, 1
        %s260 = smul.addr %s259, 8
        %s261 = scalar_lea.vmem %s0, %s260
      $region44: #{_lambda_.22} parent=39 // pred_fallthru
        _
      // Predicated region
      $region45: #{_lambda_.22} parent=39 // pred_check
        %p262 = pneg %p60
      $region46: #{_lambda_.22} parent=39 // pred_check_branch
        %264 = sbr.rel (%p262) target = $region48
      $region47: #{_lambda_.22} parent=39 // pred_region
        %p265 = scmp.lt.s32.totalorder %s14, 1
        %s266 = scalar_select %p265, %s14, 1
        %s267 = scalar_lea.vmem %s1, %s266
      $region48: #{_lambda_.22} parent=39 // pred_fallthru
        _
    $region40: #{_lambda_.22} parent=5 // pred_fallthru
      _
    %p268 = scmp.le.s32.totalorder 1, %s14
    %p269 = scmp.lt.s32.totalorder %s14, 3
    %p270 = pnand %p268, %p269
    %p271 = pneg %p270
    // Predicated region
    $region49: #{_lambda_.22} parent=5 // pred_check
      _
    $region50: #{_lambda_.22} parent=5 // pred_check_branch
      %273 = sbr.rel (%p270) target = $region52
    $region51: #{_lambda_.22} parent=5 // pred_region
      %s274 = ssub.s32 %s14, 1
      %p275 = scmp.lt.s32.totalorder %s19, 1
      %s276 = scalar_select %p275, %s19, 1
      %s277 = smul.addr %s276, 8
      %s278 = scalar_lea.vmem %s0, %s277
      %p279 = pneg %p40
      %p280 = pneg %p37
      %p281 = scmp.lt.s32.totalorder %s19, 1
      %s282 = scalar_select %p281, %s19, 1
      %s283 = scalar_lea.vmem %s1, %s282
      %p284 = pneg %p66
      %p285 = pneg %p63
      %p286 = pneg %p87
      %p287 = pneg %p84
      %p288 = pneg %p108
      %p289 = pneg %p105
      %p290 = pneg %p129
      %p291 = pneg %p126
      %p292 = pneg %p150
      %p293 = pneg %p147
      %p294 = pneg %p171
      %p295 = pneg %p168
      %p296 = pneg %p192
      %p297 = pneg %p189
      %p298 = pneg %p218
      %p299 = pneg %p215
      %p300 = scmp.lt.s32.totalorder %s19, 1
      %s301 = scalar_select %p300, %s19, 1
      %s302 = smul.addr %s301, 8
      %s303 = scalar_lea.vmem %s8, %s302
      %p304 = scmp.lt.s32.totalorder %s19, 1
      %s305 = scalar_select %p304, %s19, 1
      %s306 = smul.addr %s305, 8
      %s307 = scalar_lea.vmem %s0, %s306
      %p308 = scmp.lt.s32.totalorder %s19, 1
      %s309 = scalar_select %p308, %s19, 1
      %s310 = scalar_lea.vmem %s1, %s309
      %p311 = scmp.lt.s32.totalorder %s19, 1
      %s312 = scalar_select %p311, %s19, 1
      %s313 = smul.addr %s312, 8
      %s314 = scalar_lea.vmem %s8, %s313
      %v316 = vld [vmem:[%s307] sm:$0xff]
      %v317 = vld [vmem:[%s310] sm:$0x1]
      %v318 = vld [vmem:[%s2] sm:$0xff]
      %v319 = vld [vmem:[%s2 + $0x8] sm:$0xf]
      %v320 = vld [vmem:[%s2 + $0xc] sm:$0xff]
      %v321 = vld [vmem:[%s2 + $0x14] sm:$0xf]
      %v322 = vld [vmem:[%s2 + $0x18] sm:$0xff]
      %v323 = vld [vmem:[%s2 + $0x20] sm:$0xf]
      %v324 = vld [vmem:[%s2 + $0x24] sm:$0xff]
      %v325 = vld [vmem:[%s2 + $0x2c] sm:$0xf]
      %v326 = vld [vmem:[%s2 + $0x30] sm:$0xff]
      %v327 = vld [vmem:[%s2 + $0x38] sm:$0xf]
      %v328 = vld [vmem:[%s2 + $0x3c] sm:$0xff]
      %v329 = vld [vmem:[%s2 + $0x44] sm:$0xf]
      %v330 = vld [vmem:[%s2 + $0x48] sm:$0xff]
      %v331 = vld [vmem:[%s2 + $0x50] sm:$0xf]
      %v332 = vld [vmem:[%s2 + $0x54] sm:$0xff]
      %v333 = vld [vmem:[%s2 + $0x5c] sm:$0xf]
      %v334 = vld [vmem:[%s2 + $0x60] sm:$0xff]
      %v335 = vld [vmem:[%s2 + $0x68] sm:$0xf]
      %v336 = vld [vmem:[%s2 + $0x6c] sm:$0xff]
      %v337 = vld [vmem:[%s2 + $0x74] sm:$0xf]
      %v338 = vld [vmem:[%s2 + $0x78] sm:$0xff]
      %v339 = vld [vmem:[%s2 + $0x80] sm:$0xf]
      %v340 = vld [vmem:[%s2 + $0x84] sm:$0xff]
      %v341 = vld [vmem:[%s2 + $0x8c] sm:$0xf]
      %v342 = vld [vmem:[%s2 + $0x90] sm:$0xff]
      %v343 = vld [vmem:[%s2 + $0x98] sm:$0xf]
      %v344 = vld [vmem:[%s2 + $0x9c] sm:$0xff]
      %v345 = vld [vmem:[%s2 + $0xa4] sm:$0xf]
      %v346 = vld [vmem:[%s2 + $0xa8] sm:$0xff]
      %v347 = vld [vmem:[%s2 + $0xb0] sm:$0xf]
      %v348 = vld [vmem:[%s2 + $0xb4] sm:$0xff]
      %v349 = vld [vmem:[%s2 + $0xbc] sm:$0xf]
      %v350 = vld [vmem:[%s3] sm:$0x7]
      %v351 = vld [vmem:[%s4] sm:$0xf]
      %v352 = vld [vmem:[%s4 + $0x4] sm:$0xf]
      %v353 = vld [vmem:[%s4 + $0x8] sm:$0xf]
      %v354 = vld [vmem:[%s4 + $0xc] sm:$0xf]
      %v355 = vld [vmem:[%s4 + $0x10] sm:$0xf]
      %v356 = vld [vmem:[%s4 + $0x14] sm:$0xf]
      %v357 = vld [vmem:[%s4 + $0x18] sm:$0xf]
      %v358 = vld [vmem:[%s4 + $0x1c] sm:$0xf]
      %v359 = vld [vmem:[%s4 + $0x20] sm:$0xf]
      %v360 = vld [vmem:[%s4 + $0x24] sm:$0xf]
      %v361 = vld [vmem:[%s4 + $0x28] sm:$0xf]
      %v362 = vld [vmem:[%s4 + $0x2c] sm:$0xf]
      %v363 = vld [vmem:[%s4 + $0x30] sm:$0xf]
      %v364 = vld [vmem:[%s4 + $0x34] sm:$0xf]
      %v365 = vld [vmem:[%s4 + $0x38] sm:$0xf]
      %v366 = vld [vmem:[%s4 + $0x3c] sm:$0xf]
      %v367 = vld [vmem:[%s5] sm:$0x1]
      %v368 = vld [vmem:[%s6] sm:$0x1]
      %v369 = vld [vmem:[%s7] sm:$0x1]
      %v370 = vpack.c.bf16 %v316, %v316
      %v372 = vlaneseq
      %v373 = vshrl.u32 %v372, 7
      %v374 = vsub.s32 0, %v373
      %v375 = vrot.slane %v350, %v374
      %v376 = vlaneseq
      %v377 = vshrl.u32 %v376, 7
      %v378 = vsub.s32 1, %v377
      %v379 = vrot.slane %v350, %v378
      %v380 = vlaneseq
      %v381 = vshrl.u32 %v380, 7
      %v382 = vsub.s32 2, %v381
      %v383 = vrot.slane %v350, %v382
      %v419 = vunpack.c.l.b16 %v318
      %v420 = vunpack.c.h.b16 %v318
      %v421 = vunpack.c.l.b16 %v319
      %v422 = vunpack.c.l.b16 %v320
      %v423 = vunpack.c.h.b16 %v320
      %v424 = vunpack.c.l.b16 %v321
      %v425 = vunpack.c.l.b16 %v322
      %v426 = vunpack.c.h.b16 %v322
      %v427 = vunpack.c.l.b16 %v323
      %v428 = vunpack.c.l.b16 %v324
      %v429 = vunpack.c.h.b16 %v324
      %v430 = vunpack.c.l.b16 %v325
      %v431 = vunpack.c.l.b16 %v326
      %v432 = vunpack.c.h.b16 %v326
      %v433 = vunpack.c.l.b16 %v327
      %v434 = vunpack.c.l.b16 %v328
      %v435 = vunpack.c.h.b16 %v328
      %v436 = vunpack.c.l.b16 %v329
      %v437 = vunpack.c.l.b16 %v330
      %v438 = vunpack.c.h.b16 %v330
      %v439 = vunpack.c.l.b16 %v331
      %v440 = vunpack.c.l.b16 %v332
      %v441 = vunpack.c.h.b16 %v332
      %v442 = vunpack.c.l.b16 %v333
      %v443 = vunpack.c.l.b16 %v334
      %v444 = vunpack.c.h.b16 %v334
      %v445 = vunpack.c.l.b16 %v335
      %v446 = vunpack.c.l.b16 %v336
      %v447 = vunpack.c.h.b16 %v336
      %v448 = vunpack.c.l.b16 %v337
      %v449 = vunpack.c.l.b16 %v338
      %v450 = vunpack.c.h.b16 %v338
      %v451 = vunpack.c.l.b16 %v339
      %v452 = vunpack.c.l.b16 %v340
      %v453 = vunpack.c.h.b16 %v340
      %v454 = vunpack.c.l.b16 %v341
      %v455 = vunpack.c.l.b16 %v342
      %v456 = vunpack.c.h.b16 %v342
      %v457 = vunpack.c.l.b16 %v343
      %v458 = vunpack.c.l.b16 %v344
      %v459 = vunpack.c.h.b16 %v344
      %v460 = vunpack.c.l.b16 %v345
      %v461 = vunpack.c.l.b16 %v346
      %v462 = vunpack.c.h.b16 %v346
      %v463 = vunpack.c.l.b16 %v347
      %v464 = vunpack.c.l.b16 %v348
      %v465 = vunpack.c.h.b16 %v348
      %v466 = vunpack.c.l.b16 %v349
      %v467 = vpack.c.b16 %v422, %v419
      %v468 = vpack.c.b16 %v423, %v420
      %v469 = vpack.c.b16 %v424, %v421
      %v470 = vpack.c.b16 %v428, %v425
      %v471 = vpack.c.b16 %v429, %v426
      %v472 = vpack.c.b16 %v430, %v427
      %v473 = vpack.c.b16 %v434, %v431
      %v474 = vpack.c.b16 %v435, %v432
      %v475 = vpack.c.b16 %v436, %v433
      %v476 = vpack.c.b16 %v440, %v437
      %v477 = vpack.c.b16 %v441, %v438
      %v478 = vpack.c.b16 %v442, %v439
      %v479 = vpack.c.b16 %v446, %v443
      %v480 = vpack.c.b16 %v447, %v444
      %v481 = vpack.c.b16 %v448, %v445
      %v482 = vpack.c.b16 %v452, %v449
      %v483 = vpack.c.b16 %v453, %v450
      %v484 = vpack.c.b16 %v454, %v451
      %v485 = vpack.c.b16 %v458, %v455
      %v486 = vpack.c.b16 %v459, %v456
      %v487 = vpack.c.b16 %v460, %v457
      %v488 = vpack.c.b16 %v464, %v461
      %v489 = vpack.c.b16 %v465, %v462
      %v490 = vpack.c.b16 %v466, %v463
      %515 = vmatprep.subr.bf16.mxu0 %v468
      %516 = vmatpush1.bf16.msra.mxu0 %v467
      %517 = vmatprep.subr.bf16.mxu0 %v471
      %518 = vmatpush1.bf16.msra.mxu0 %v470
      %519 = vmatprep.subr.bf16.mxu0 %v474
      %520 = vmatpush1.bf16.msra.mxu0 %v473
      %521 = vmatprep.subr.bf16.mxu0 %v477
      %522 = vmatpush1.bf16.msra.mxu0 %v476
      %523 = vmatprep.subr.bf16.mxu0 %v480
      %524 = vmatpush1.bf16.msra.mxu0 %v479
      %525 = vmatprep.subr.bf16.mxu0 %v483
      %526 = vmatpush1.bf16.msra.mxu0 %v482
      %527 = vmatprep.subr.bf16.mxu0 %v486
      %528 = vmatpush1.bf16.msra.mxu0 %v485
      %529 = vmatprep.subr.bf16.mxu0 %v489
      %530 = vmatpush1.bf16.msra.mxu0 %v488
      %531 = vmatprep.subr.bf16.mxu0 0
      %532 = vmatpush1.bf16.msra.mxu0 0
      %533 = vmatprep.subr.bf16.mxu0 0
      %534 = vmatpush1.bf16.msra.mxu0 0
      %535 = vmatprep.subr.bf16.mxu0 0
      %536 = vmatpush1.bf16.msra.mxu0 0
      %537 = vmatprep.subr.bf16.mxu0 0
      %538 = vmatpush1.bf16.msra.mxu0 0
      %539 = vmatprep.subr.bf16.mxu0 0
      %540 = vmatpush1.bf16.msra.mxu0 0
      %541 = vmatprep.subr.bf16.mxu0 0
      %542 = vmatpush1.bf16.msra.mxu0 0
      %543 = vmatprep.subr.bf16.mxu0 0
      %544 = vmatpush1.bf16.msra.mxu0 0
      %545 = vmatprep.subr.bf16.mxu0 0
      %546 = vmatpush1.bf16.msra.mxu0 0
      %547 = vmatprep.mubr.bf16.mxu0 0
      %548 = vmatmul.mubr.bf16.gmra.mrb[0].mxu0 %v370
      %v549 = vpop.f32.mrb[0].mxu0
      %v550 = vadd.f32 %v375, %v549
      %v551 = vpop.f32.mrb[0].mxu0
      %v552 = vadd.f32 %v379, %v551
      %v553 = vpop.f32.mrb[0].mxu0
      %v554 = vpop.f32.mrb[0].mxu0
      %555 = vdwg.mxu0
      %556 = vmatprep.subr.bf16.mxu0 0
      %557 = vmatpush1.bf16.msra.mxu0 %v469
      %558 = vmatprep.subr.bf16.mxu0 0
      %559 = vmatpush1.bf16.msra.mxu0 %v472
      %560 = vmatprep.subr.bf16.mxu0 0
      %561 = vmatpush1.bf16.msra.mxu0 %v475
      %562 = vmatprep.subr.bf16.mxu0 0
      %563 = vmatpush1.bf16.msra.mxu0 %v478
      %564 = vmatprep.subr.bf16.mxu0 0
      %565 = vmatpush1.bf16.msra.mxu0 %v481
      %566 = vmatprep.subr.bf16.mxu0 0
      %567 = vmatpush1.bf16.msra.mxu0 %v484
      %568 = vmatprep.subr.bf16.mxu0 0
      %569 = vmatpush1.bf16.msra.mxu0 %v487
      %570 = vmatprep.subr.bf16.mxu0 0
      %571 = vmatpush1.bf16.msra.mxu0 %v490
      %572 = vmatprep.subr.bf16.mxu0 0
      %573 = vmatpush1.bf16.msra.mxu0 0
      %574 = vmatprep.subr.bf16.mxu0 0
      %575 = vmatpush1.bf16.msra.mxu0 0
      %576 = vmatprep.subr.bf16.mxu0 0
      %577 = vmatpush1.bf16.msra.mxu0 0
      %578 = vmatprep.subr.bf16.mxu0 0
      %579 = vmatpush1.bf16.msra.mxu0 0
      %580 = vmatprep.subr.bf16.mxu0 0
      %581 = vmatpush1.bf16.msra.mxu0 0
      %582 = vmatprep.subr.bf16.mxu0 0
      %583 = vmatpush1.bf16.msra.mxu0 0
      %584 = vmatprep.subr.bf16.mxu0 0
      %585 = vmatpush1.bf16.msra.mxu0 0
      %586 = vmatprep.subr.bf16.mxu0 0
      %587 = vmatpush1.bf16.msra.mxu0 0
      %588 = vmatprep.mubr.bf16.mxu0 0
      %589 = vmatmul.mubr.bf16.gmra.mrb[0].mxu0 %v370
      %v590 = vpop.f32.mrb[0].mxu0
      %v591 = vadd.f32 %v383, %v590
      %v592 = vpop.f32.mrb[0].mxu0
      %v593 = vpop.f32.mrb[0].mxu0
      %v594 = vpop.f32.mrb[0].mxu0
      %595 = vdwg.mxu0
      %v596 = vpack.c.bf16 %v550, %v550
      %v597 = vpack.c.bf16 %v552, %v552
      %v598 = vpack.c.bf16 %v591, %v591
      %vm599 = vcmask 261120
      %v601 = vsel %vm599, %v596, 0
      %v604 = vsel %vm599, %v597, 0
      %606 = vmatprep.subr.bf16.mxu0 0
      %607 = vmatpush1.bf16.xpose.msra.mxu0 %v604
      %608 = vmatprep.subr.bf16.mxu0 0
      %609 = vmatpush1.bf16.xpose.msra.mxu0 0
      %610 = vmatprep.subr.bf16.mxu0 0
      %611 = vmatpush1.bf16.xpose.msra.mxu0 0
      %612 = vmatprep.subr.bf16.mxu0 0
      %613 = vmatpush1.bf16.xpose.msra.mxu0 0
      %614 = vmatprep.subr.bf16.mxu0 0
      %615 = vmatpush1.bf16.xpose.msra.mxu0 0
      %616 = vmatprep.subr.bf16.mxu0 0
      %617 = vmatpush1.bf16.xpose.msra.mxu0 0
      %618 = vmatprep.subr.bf16.mxu0 0
      %619 = vmatpush1.bf16.xpose.msra.mxu0 0
      %620 = vmatprep.subr.bf16.mxu0 0
      %621 = vmatpush1.bf16.xpose.msra.mxu0 0
      %622 = vmatprep.subr.bf16.mxu0 0
      %623 = vmatpush1.bf16.xpose.msra.mxu0 0
      %624 = vmatprep.subr.bf16.mxu0 0
      %625 = vmatpush1.bf16.xpose.msra.mxu0 0
      %626 = vmatprep.subr.bf16.mxu0 0
      %627 = vmatpush1.bf16.xpose.msra.mxu0 0
      %628 = vmatprep.subr.bf16.mxu0 0
      %629 = vmatpush1.bf16.xpose.msra.mxu0 0
      %630 = vmatprep.subr.bf16.mxu0 0
      %631 = vmatpush1.bf16.xpose.msra.mxu0 0
      %632 = vmatprep.subr.bf16.mxu0 0
      %633 = vmatpush1.bf16.xpose.msra.mxu0 0
      %634 = vmatprep.subr.bf16.mxu0 0
      %635 = vmatpush1.bf16.xpose.msra.mxu0 0
      %636 = vmatprep.subr.bf16.mxu0 0
      %637 = vmatpush1.bf16.xpose.msra.mxu0 0
      %638 = vmatprep.mubr.bf16.mxu0 0
      %639 = vmatmul.mubr.bf16.gmra.mrb[0].mxu0 %v601
      %v640 = vpop.f32.mrb[0].mxu0
      %v641 = vadd.f32 0.0, %v640
      %v642 = vpop.f32.mrb[0].mxu0
      %v643 = vpop.f32.mrb[0].mxu0
      %v644 = vpop.f32.mrb[0].mxu0
      %645 = vdwg.mxu0
      %v646 = vmul.f32 %v641, 0.17677669
      %vm647 = vcmp.gt.f32.partialorder %v317, 0.5
      %v648 = vsel %vm647, 1, 0
      %v649 = vlaneseq
      %v650 = vshrl.u32 %v649, 7
      %v651 = vsub.s32 0, %v650
      %v652 = vrot.slane %v648, %v651
      %vm653 = vcmp.eq.s32.totalorder %v652, 1
      %v654 = vsel %vm653, -1e+09, %v646
      %vm655 = vcmask 64512
      %v656 = vsel %vm655, %v654, -inf
      %657 = vmax.xlane.f32.xlu0 %v656
      %v658 = vpop.xlane.xlu0 %657
      %v659 = vsub.f32 %v654, %v658
      %v660 = vmul.f32 %v659, 1.442695
      %v661 = vpow.pop %v660
      %v662 = vsel %vm655, %v661, 0.0
      %663 = vadd.xlane.f32.xlu0 %v662
      %v664 = vpop.xlane.xlu0 %663
      %v665 = vrcp.pop %v664
      %v666 = vmul.f32 %v661, %v665
      %v667 = vpack.c.bf16 %v666, %v666
      %v669 = vsel %vm655, %v667, 0
      %vm671 = vcmask 1043456
      %v673 = vsel %vm671, %v598, 0
      %675 = vmatprep.subr.bf16.mxu0 0
      %676 = vmatpush1.bf16.msra.mxu0 %v673
      %677 = vmatprep.subr.bf16.mxu0 0
      %678 = vmatpush1.bf16.msra.mxu0 0
      %679 = vmatprep.subr.bf16.mxu0 0
      %680 = vmatpush1.bf16.msra.mxu0 0
      %681 = vmatprep.subr.bf16.mxu0 0
      %682 = vmatpush1.bf16.msra.mxu0 0
      %683 = vmatprep.subr.bf16.mxu0 0
      %684 = vmatpush1.bf16.msra.mxu0 0
      %685 = vmatprep.subr.bf16.mxu0 0
      %686 = vmatpush1.bf16.msra.mxu0 0
      %687 = vmatprep.subr.bf16.mxu0 0
      %688 = vmatpush1.bf16.msra.mxu0 0
      %689 = vmatprep.subr.bf16.mxu0 0
      %690 = vmatpush1.bf16.msra.mxu0 0
      %691 = vmatprep.subr.bf16.mxu0 0
      %692 = vmatpush1.bf16.msra.mxu0 0
      %693 = vmatprep.subr.bf16.mxu0 0
      %694 = vmatpush1.bf16.msra.mxu0 0
      %695 = vmatprep.subr.bf16.mxu0 0
      %696 = vmatpush1.bf16.msra.mxu0 0
      %697 = vmatprep.subr.bf16.mxu0 0
      %698 = vmatpush1.bf16.msra.mxu0 0
      %699 = vmatprep.subr.bf16.mxu0 0
      %700 = vmatpush1.bf16.msra.mxu0 0
      %701 = vmatprep.subr.bf16.mxu0 0
      %702 = vmatpush1.bf16.msra.mxu0 0
      %703 = vmatprep.subr.bf16.mxu0 0
      %704 = vmatpush1.bf16.msra.mxu0 0
      %705 = vmatprep.subr.bf16.mxu0 0
      %706 = vmatpush1.bf16.msra.mxu0 0
      %707 = vmatprep.mubr.bf16.mxu0 0
      %708 = vmatmul.mubr.bf16.gmra.mrb[0].mxu0 %v669
      %v709 = vpop.f32.mrb[0].mxu0
      %v710 = vadd.f32 0.0, %v709
      %v711 = vpop.f32.mrb[0].mxu0
      %v712 = vpop.f32.mrb[0].mxu0
      %v713 = vpop.f32.mrb[0].mxu0
      %714 = vdwg.mxu0
      %v715 = vpack.c.bf16 %v710, %v710
      %717 = vrot.lane.b32.xlu0 %v596, 96
      %v718 = vpop.permute.xlu0 %717
      %720 = vrot.lane.b32.xlu0 %v597, 96
      %v721 = vpop.permute.xlu0 %720
      %v723 = vsel %vm599, %v718, 0
      %v726 = vsel %vm599, %v721, 0
      %728 = vmatprep.subr.bf16.mxu0 0
      %729 = vmatpush1.bf16.xpose.msra.mxu0 %v726
      %730 = vmatprep.subr.bf16.mxu0 0
      %731 = vmatpush1.bf16.xpose.msra.mxu0 0
      %732 = vmatprep.subr.bf16.mxu0 0
      %733 = vmatpush1.bf16.xpose.msra.mxu0 0
      %734 = vmatprep.subr.bf16.mxu0 0
      %735 = vmatpush1.bf16.xpose.msra.mxu0 0
      %736 = vmatprep.subr.bf16.mxu0 0
      %737 = vmatpush1.bf16.xpose.msra.mxu0 0
      %738 = vmatprep.subr.bf16.mxu0 0
      %739 = vmatpush1.bf16.xpose.msra.mxu0 0
      %740 = vmatprep.subr.bf16.mxu0 0
      %741 = vmatpush1.bf16.xpose.msra.mxu0 0
      %742 = vmatprep.subr.bf16.mxu0 0
      %743 = vmatpush1.bf16.xpose.msra.mxu0 0
      %744 = vmatprep.subr.bf16.mxu0 0
      %745 = vmatpush1.bf16.xpose.msra.mxu0 0
      %746 = vmatprep.subr.bf16.mxu0 0
      %747 = vmatpush1.bf16.xpose.msra.mxu0 0
      %748 = vmatprep.subr.bf16.mxu0 0
      %749 = vmatpush1.bf16.xpose.msra.mxu0 0
      %750 = vmatprep.subr.bf16.mxu0 0
      %751 = vmatpush1.bf16.xpose.msra.mxu0 0
      %752 = vmatprep.subr.bf16.mxu0 0
      %753 = vmatpush1.bf16.xpose.msra.mxu0 0
      %754 = vmatprep.subr.bf16.mxu0 0
      %755 = vmatpush1.bf16.xpose.msra.mxu0 0
      %756 = vmatprep.subr.bf16.mxu0 0
      %757 = vmatpush1.bf16.xpose.msra.mxu0 0
      %758 = vmatprep.subr.bf16.mxu0 0
      %759 = vmatpush1.bf16.xpose.msra.mxu0 0
      %760 = vmatprep.mubr.bf16.mxu0 0
      %761 = vmatmul.mubr.bf16.gmra.mrb[0].mxu0 %v723
      %v762 = vpop.f32.mrb[0].mxu0
      %v763 = vadd.f32 0.0, %v762
      %v764 = vpop.f32.mrb[0].mxu0
      %v765 = vpop.f32.mrb[0].mxu0
      %v766 = vpop.f32.mrb[0].mxu0
      %767 = vdwg.mxu0
      %v768 = vmul.f32 %v763, 0.17677669
      %v769 = vsel %vm653, -1e+09, %v768
      %v770 = vsel %vm655, %v769, -inf
      %771 = vmax.xlane.f32.xlu0 %v770
      %v772 = vpop.xlane.xlu0 %771
      %v773 = vsub.f32 %v769, %v772
      %v774 = vmul.f32 %v773, 1.442695
      %v775 = vpow.pop %v774
      %v776 = vsel %vm655, %v775, 0.0
      %777 = vadd.xlane.f32.xlu0 %v776
      %v778 = vpop.xlane.xlu0 %777
      %v779 = vrcp.pop %v778
      %v780 = vmul.f32 %v775, %v779
      %v781 = vpack.c.bf16 %v780, %v780
      %783 = vrot.lane.b32.xlu0 %v598, 96
      %v784 = vpop.permute.xlu0 %783
      %v786 = vsel %vm655, %v781, 0
      %v789 = vsel %vm671, %v784, 0
      %791 = vmatprep.subr.bf16.mxu0 0
      %792 = vmatpush1.bf16.msra.mxu0 %v789
      %793 = vmatprep.subr.bf16.mxu0 0
      %794 = vmatpush1.bf16.msra.mxu0 0
      %795 = vmatprep.subr.bf16.mxu0 0
      %796 = vmatpush1.bf16.msra.mxu0 0
      %797 = vmatprep.subr.bf16.mxu0 0
      %798 = vmatpush1.bf16.msra.mxu0 0
      %799 = vmatprep.subr.bf16.mxu0 0
      %800 = vmatpush1.bf16.msra.mxu0 0
      %801 = vmatprep.subr.bf16.mxu0 0
      %802 = vmatpush1.bf16.msra.mxu0 0
      %803 = vmatprep.subr.bf16.mxu0 0
      %804 = vmatpush1.bf16.msra.mxu0 0
      %805 = vmatprep.subr.bf16.mxu0 0
      %806 = vmatpush1.bf16.msra.mxu0 0
      %807 = vmatprep.subr.bf16.mxu0 0
      %808 = vmatpush1.bf16.msra.mxu0 0
      %809 = vmatprep.subr.bf16.mxu0 0
      %810 = vmatpush1.bf16.msra.mxu0 0
      %811 = vmatprep.subr.bf16.mxu0 0
      %812 = vmatpush1.bf16.msra.mxu0 0
      %813 = vmatprep.subr.bf16.mxu0 0
      %814 = vmatpush1.bf16.msra.mxu0 0
      %815 = vmatprep.subr.bf16.mxu0 0
      %816 = vmatpush1.bf16.msra.mxu0 0
      %817 = vmatprep.subr.bf16.mxu0 0
      %818 = vmatpush1.bf16.msra.mxu0 0
      %819 = vmatprep.subr.bf16.mxu0 0
      %820 = vmatpush1.bf16.msra.mxu0 0
      %821 = vmatprep.subr.bf16.mxu0 0
      %822 = vmatpush1.bf16.msra.mxu0 0
      %823 = vmatprep.mubr.bf16.mxu0 0
      %824 = vmatmul.mubr.bf16.gmra.mrb[0].mxu0 %v786
      %v825 = vpop.f32.mrb[0].mxu0
      %v826 = vadd.f32 0.0, %v825
      %v827 = vpop.f32.mrb[0].mxu0
      %v828 = vpop.f32.mrb[0].mxu0
      %v829 = vpop.f32.mrb[0].mxu0
      %830 = vdwg.mxu0
      %v831 = vpack.c.bf16 %v826, %v826
      %v836 = vunpack.c.l.b16 %v355
      %v837 = vunpack.c.l.b16 %v356
      %v838 = vunpack.c.l.b16 %v357
      %v839 = vunpack.c.l.b16 %v358
      %v840 = vpack.c.b16 %v837, %v836
      %v841 = vpack.c.b16 %v839, %v838
      %v845 = vsel %vm599, %v831, 0
      %847 = vmatprep.subr.bf16.mxu0 0
      %848 = vmatpush1.bf16.msra.mxu0 %v840
      %849 = vmatprep.subr.bf16.mxu0 0
      %850 = vmatpush1.bf16.msra.mxu0 %v841
      %851 = vmatprep.subr.bf16.mxu0 0
      %852 = vmatpush1.bf16.msra.mxu0 0
      %853 = vmatprep.subr.bf16.mxu0 0
      %854 = vmatpush1.bf16.msra.mxu0 0
      %855 = vmatprep.subr.bf16.mxu0 0
      %856 = vmatpush1.bf16.msra.mxu0 0
      %857 = vmatprep.subr.bf16.mxu0 0
      %858 = vmatpush1.bf16.msra.mxu0 0
      %859 = vmatprep.subr.bf16.mxu0 0
      %860 = vmatpush1.bf16.msra.mxu0 0
      %861 = vmatprep.subr.bf16.mxu0 0
      %862 = vmatpush1.bf16.msra.mxu0 0
      %863 = vmatprep.subr.bf16.mxu0 0
      %864 = vmatpush1.bf16.msra.mxu0 0
      %865 = vmatprep.subr.bf16.mxu0 0
      %866 = vmatpush1.bf16.msra.mxu0 0
      %867 = vmatprep.subr.bf16.mxu0 0
      %868 = vmatpush1.bf16.msra.mxu0 0
      %869 = vmatprep.subr.bf16.mxu0 0
      %870 = vmatpush1.bf16.msra.mxu0 0
      %871 = vmatprep.subr.bf16.mxu0 0
      %872 = vmatpush1.bf16.msra.mxu0 0
      %873 = vmatprep.subr.bf16.mxu0 0
      %874 = vmatpush1.bf16.msra.mxu0 0
      %875 = vmatprep.subr.bf16.mxu0 0
      %876 = vmatpush1.bf16.msra.mxu0 0
      %877 = vmatprep.subr.bf16.mxu0 0
      %878 = vmatpush1.bf16.msra.mxu0 0
      %879 = vmatprep.mubr.bf16.mxu0 0
      %880 = vmatmul.mubr.bf16.gmra.mrb[0].mxu0 %v845
      %v881 = vpop.f32.mrb[0].mxu0
      %v882 = vadd.f32 0.0, %v881
      %v883 = vpop.f32.mrb[0].mxu0
      %v884 = vpop.f32.mrb[0].mxu0
      %v885 = vpop.f32.mrb[0].mxu0
      %886 = vdwg.mxu0
      %v891 = vunpack.c.l.b16 %v351
      %v892 = vunpack.c.l.b16 %v352
      %v893 = vunpack.c.l.b16 %v353
      %v894 = vunpack.c.l.b16 %v354
      %v895 = vpack.c.b16 %v892, %v891
      %v896 = vpack.c.b16 %v894, %v893
      %v900 = vsel %vm599, %v715, 0
      %902 = vmatprep.subr.bf16.mxu0 0
      %903 = vmatpush1.bf16.msra.mxu0 %v895
      %904 = vmatprep.subr.bf16.mxu0 0
      %905 = vmatpush1.bf16.msra.mxu0 %v896
      %906 = vmatprep.subr.bf16.mxu0 0
      %907 = vmatpush1.bf16.msra.mxu0 0
      %908 = vmatprep.subr.bf16.mxu0 0
      %909 = vmatpush1.bf16.msra.mxu0 0
      %910 = vmatprep.subr.bf16.mxu0 0
      %911 = vmatpush1.bf16.msra.mxu0 0
      %912 = vmatprep.subr.bf16.mxu0 0
      %913 = vmatpush1.bf16.msra.mxu0 0
      %914 = vmatprep.subr.bf16.mxu0 0
      %915 = vmatpush1.bf16.msra.mxu0 0
      %916 = vmatprep.subr.bf16.mxu0 0
      %917 = vmatpush1.bf16.msra.mxu0 0
      %918 = vmatprep.subr.bf16.mxu0 0
      %919 = vmatpush1.bf16.msra.mxu0 0
      %920 = vmatprep.subr.bf16.mxu0 0
      %921 = vmatpush1.bf16.msra.mxu0 0
      %922 = vmatprep.subr.bf16.mxu0 0
      %923 = vmatpush1.bf16.msra.mxu0 0
      %924 = vmatprep.subr.bf16.mxu0 0
      %925 = vmatpush1.bf16.msra.mxu0 0
      %926 = vmatprep.subr.bf16.mxu0 0
      %927 = vmatpush1.bf16.msra.mxu0 0
      %928 = vmatprep.subr.bf16.mxu0 0
      %929 = vmatpush1.bf16.msra.mxu0 0
      %930 = vmatprep.subr.bf16.mxu0 0
      %931 = vmatpush1.bf16.msra.mxu0 0
      %932 = vmatprep.subr.bf16.mxu0 0
      %933 = vmatpush1.bf16.msra.mxu0 0
      %934 = vmatprep.mubr.bf16.mxu0 0
      %935 = vmatmul.mubr.bf16.gmra.mrb[0].mxu0 %v900
      %v936 = vpop.f32.mrb[0].mxu0
      %v937 = vadd.f32 %v882, %v936
      %v938 = vpop.f32.mrb[0].mxu0
      %v939 = vpop.f32.mrb[0].mxu0
      %v940 = vpop.f32.mrb[0].mxu0
      %941 = vdwg.mxu0
      %942 = vrot.lane.b32.xlu0 %v596, 64
      %v943 = vpop.permute.xlu0 %942
      %944 = vrot.lane.b32.xlu0 %v597, 64
      %v945 = vpop.permute.xlu0 %944
      %v947 = vsel %vm599, %v943, 0
      %v950 = vsel %vm599, %v945, 0
      %952 = vmatprep.subr.bf16.mxu0 0
      %953 = vmatpush1.bf16.xpose.msra.mxu0 %v950
      %954 = vmatprep.subr.bf16.mxu0 0
      %955 = vmatpush1.bf16.xpose.msra.mxu0 0
      %956 = vmatprep.subr.bf16.mxu0 0
      %957 = vmatpush1.bf16.xpose.msra.mxu0 0
      %958 = vmatprep.subr.bf16.mxu0 0
      %959 = vmatpush1.bf16.xpose.msra.mxu0 0
      %960 = vmatprep.subr.bf16.mxu0 0
      %961 = vmatpush1.bf16.xpose.msra.mxu0 0
      %962 = vmatprep.subr.bf16.mxu0 0
      %963 = vmatpush1.bf16.xpose.msra.mxu0 0
      %964 = vmatprep.subr.bf16.mxu0 0
      %965 = vmatpush1.bf16.xpose.msra.mxu0 0
      %966 = vmatprep.subr.bf16.mxu0 0
      %967 = vmatpush1.bf16.xpose.msra.mxu0 0
      %968 = vmatprep.subr.bf16.mxu0 0
      %969 = vmatpush1.bf16.xpose.msra.mxu0 0
      %970 = vmatprep.subr.bf16.mxu0 0
      %971 = vmatpush1.bf16.xpose.msra.mxu0 0
      %972 = vmatprep.subr.bf16.mxu0 0
      %973 = vmatpush1.bf16.xpose.msra.mxu0 0
      %974 = vmatprep.subr.bf16.mxu0 0
      %975 = vmatpush1.bf16.xpose.msra.mxu0 0
      %976 = vmatprep.subr.bf16.mxu0 0
      %977 = vmatpush1.bf16.xpose.msra.mxu0 0
      %978 = vmatprep.subr.bf16.mxu0 0
      %979 = vmatpush1.bf16.xpose.msra.mxu0 0
      %980 = vmatprep.subr.bf16.mxu0 0
      %981 = vmatpush1.bf16.xpose.msra.mxu0 0
      %982 = vmatprep.subr.bf16.mxu0 0
      %983 = vmatpush1.bf16.xpose.msra.mxu0 0
      %984 = vmatprep.mubr.bf16.mxu0 0
      %985 = vmatmul.mubr.bf16.gmra.mrb[0].mxu0 %v947
      %v986 = vpop.f32.mrb[0].mxu0
      %v987 = vadd.f32 0.0, %v986
      %v988 = vpop.f32.mrb[0].mxu0
      %v989 = vpop.f32.mrb[0].mxu0
      %v990 = vpop.f32.mrb[0].mxu0
      %991 = vdwg.mxu0
      %v992 = vmul.f32 %v987, 0.17677669
      %v993 = vsel %vm653, -1e+09, %v992
      %v994 = vsel %vm655, %v993, -inf
      %995 = vmax.xlane.f32.xlu0 %v994
      %v996 = vpop.xlane.xlu0 %995
      %v997 = vsub.f32 %v993, %v996
      %v998 = vmul.f32 %v997, 1.442695
      %v999 = vpow.pop %v998
      %v1000 = vsel %vm655, %v999, 0.0
      %1001 = vadd.xlane.f32.xlu0 %v1000
      %v1002 = vpop.xlane.xlu0 %1001
      %v1003 = vrcp.pop %v1002
      %v1004 = vmul.f32 %v999, %v1003
      %v1005 = vpack.c.bf16 %v1004, %v1004
      %1006 = vrot.lane.b32.xlu0 %v598, 64
      %v1007 = vpop.permute.xlu0 %1006
      %v1009 = vsel %vm655, %v1005, 0
      %v1012 = vsel %vm671, %v1007, 0
      %1014 = vmatprep.subr.bf16.mxu0 0
      %1015 = vmatpush1.bf16.msra.mxu0 %v1012
      %1016 = vmatprep.subr.bf16.mxu0 0
      %1017 = vmatpush1.bf16.msra.mxu0 0
      %1018 = vmatprep.subr.bf16.mxu0 0
      %1019 = vmatpush1.bf16.msra.mxu0 0
      %1020 = vmatprep.subr.bf16.mxu0 0
      %1021 = vmatpush1.bf16.msra.mxu0 0
      %1022 = vmatprep.subr.bf16.mxu0 0
      %1023 = vmatpush1.bf16.msra.mxu0 0
      %1024 = vmatprep.subr.bf16.mxu0 0
      %1025 = vmatpush1.bf16.msra.mxu0 0
      %1026 = vmatprep.subr.bf16.mxu0 0
      %1027 = vmatpush1.bf16.msra.mxu0 0
      %1028 = vmatprep.subr.bf16.mxu0 0
      %1029 = vmatpush1.bf16.msra.mxu0 0
      %1030 = vmatprep.subr.bf16.mxu0 0
      %1031 = vmatpush1.bf16.msra.mxu0 0
      %1032 = vmatprep.subr.bf16.mxu0 0
      %1033 = vmatpush1.bf16.msra.mxu0 0
      %1034 = vmatprep.subr.bf16.mxu0 0
      %1035 = vmatpush1.bf16.msra.mxu0 0
      %1036 = vmatprep.subr.bf16.mxu0 0
      %1037 = vmatpush1.bf16.msra.mxu0 0
      %1038 = vmatprep.subr.bf16.mxu0 0
      %1039 = vmatpush1.bf16.msra.mxu0 0
      %1040 = vmatprep.subr.bf16.mxu0 0
      %1041 = vmatpush1.bf16.msra.mxu0 0
      %1042 = vmatprep.subr.bf16.mxu0 0
      %1043 = vmatpush1.bf16.msra.mxu0 0
      %1044 = vmatprep.subr.bf16.mxu0 0
      %1045 = vmatpush1.bf16.msra.mxu0 0
      %1046 = vmatprep.mubr.bf16.mxu0 0
      %1047 = vmatmul.mubr.bf16.gmra.mrb[0].mxu0 %v1009
      %v1048 = vpop.f32.mrb[0].mxu0
      %v1049 = vadd.f32 0.0, %v1048
      %v1050 = vpop.f32.mrb[0].mxu0
      %v1051 = vpop.f32.mrb[0].mxu0
      %v1052 = vpop.f32.mrb[0].mxu0
      %1053 = vdwg.mxu0
      %v1054 = vpack.c.bf16 %v1049, %v1049
      %v1059 = vunpack.c.l.b16 %v359
      %v1060 = vunpack.c.l.b16 %v360
      %v1061 = vunpack.c.l.b16 %v361
      %v1062 = vunpack.c.l.b16 %v362
      %v1063 = vpack.c.b16 %v1060, %v1059
      %v1064 = vpack.c.b16 %v1062, %v1061
      %v1068 = vsel %vm599, %v1054, 0
      %1070 = vmatprep.subr.bf16.mxu0 0
      %1071 = vmatpush1.bf16.msra.mxu0 %v1063
      %1072 = vmatprep.subr.bf16.mxu0 0
      %1073 = vmatpush1.bf16.msra.mxu0 %v1064
      %1074 = vmatprep.subr.bf16.mxu0 0
      %1075 = vmatpush1.bf16.msra.mxu0 0
      %1076 = vmatprep.subr.bf16.mxu0 0
      %1077 = vmatpush1.bf16.msra.mxu0 0
      %1078 = vmatprep.subr.bf16.mxu0 0
      %1079 = vmatpush1.bf16.msra.mxu0 0
      %1080 = vmatprep.subr.bf16.mxu0 0
      %1081 = vmatpush1.bf16.msra.mxu0 0
      %1082 = vmatprep.subr.bf16.mxu0 0
      %1083 = vmatpush1.bf16.msra.mxu0 0
      %1084 = vmatprep.subr.bf16.mxu0 0
      %1085 = vmatpush1.bf16.msra.mxu0 0
      %1086 = vmatprep.subr.bf16.mxu0 0
      %1087 = vmatpush1.bf16.msra.mxu0 0
      %1088 = vmatprep.subr.bf16.mxu0 0
      %1089 = vmatpush1.bf16.msra.mxu0 0
      %1090 = vmatprep.subr.bf16.mxu0 0
      %1091 = vmatpush1.bf16.msra.mxu0 0
      %1092 = vmatprep.subr.bf16.mxu0 0
      %1093 = vmatpush1.bf16.msra.mxu0 0
      %1094 = vmatprep.subr.bf16.mxu0 0
      %1095 = vmatpush1.bf16.msra.mxu0 0
      %1096 = vmatprep.subr.bf16.mxu0 0
      %1097 = vmatpush1.bf16.msra.mxu0 0
      %1098 = vmatprep.subr.bf16.mxu0 0
      %1099 = vmatpush1.bf16.msra.mxu0 0
      %1100 = vmatprep.subr.bf16.mxu0 0
      %1101 = vmatpush1.bf16.msra.mxu0 0
      %1102 = vmatprep.mubr.bf16.mxu0 0
      %1103 = vmatmul.mubr.bf16.gmra.mrb[0].mxu0 %v1068
      %v1104 = vpop.f32.mrb[0].mxu0
      %v1105 = vadd.f32 0.0, %v1104
      %v1106 = vpop.f32.mrb[0].mxu0
      %v1107 = vpop.f32.mrb[0].mxu0
      %v1108 = vpop.f32.mrb[0].mxu0
      %1109 = vdwg.mxu0
      %v1110 = vadd.f32 %v937, %v1105
      %1111 = vrot.lane.b32.xlu0 %v596, 32
      %v1112 = vpop.permute.xlu0 %1111
      %1113 = vrot.lane.b32.xlu0 %v597, 32
      %v1114 = vpop.permute.xlu0 %1113
      %v1116 = vsel %vm599, %v1112, 0
      %v1119 = vsel %vm599, %v1114, 0
      %1121 = vmatprep.subr.bf16.mxu0 0
      %1122 = vmatpush1.bf16.xpose.msra.mxu0 %v1119
      %1123 = vmatprep.subr.bf16.mxu0 0
      %1124 = vmatpush1.bf16.xpose.msra.mxu0 0
      %1125 = vmatprep.subr.bf16.mxu0 0
      %1126 = vmatpush1.bf16.xpose.msra.mxu0 0
      %1127 = vmatprep.subr.bf16.mxu0 0
      %1128 = vmatpush1.bf16.xpose.msra.mxu0 0
      %1129 = vmatprep.subr.bf16.mxu0 0
      %1130 = vmatpush1.bf16.xpose.msra.mxu0 0
      %1131 = vmatprep.subr.bf16.mxu0 0
      %1132 = vmatpush1.bf16.xpose.msra.mxu0 0
      %1133 = vmatprep.subr.bf16.mxu0 0
      %1134 = vmatpush1.bf16.xpose.msra.mxu0 0
      %1135 = vmatprep.subr.bf16.mxu0 0
      %1136 = vmatpush1.bf16.xpose.msra.mxu0 0
      %1137 = vmatprep.subr.bf16.mxu0 0
      %1138 = vmatpush1.bf16.xpose.msra.mxu0 0
      %1139 = vmatprep.subr.bf16.mxu0 0
      %1140 = vmatpush1.bf16.xpose.msra.mxu0 0
      %1141 = vmatprep.subr.bf16.mxu0 0
      %1142 = vmatpush1.bf16.xpose.msra.mxu0 0
      %1143 = vmatprep.subr.bf16.mxu0 0
      %1144 = vmatpush1.bf16.xpose.msra.mxu0 0
      %1145 = vmatprep.subr.bf16.mxu0 0
      %1146 = vmatpush1.bf16.xpose.msra.mxu0 0
      %1147 = vmatprep.subr.bf16.mxu0 0
      %1148 = vmatpush1.bf16.xpose.msra.mxu0 0
      %1149 = vmatprep.subr.bf16.mxu0 0
      %1150 = vmatpush1.bf16.xpose.msra.mxu0 0
      %1151 = vmatprep.subr.bf16.mxu0 0
      %1152 = vmatpush1.bf16.xpose.msra.mxu0 0
      %1153 = vmatprep.mubr.bf16.mxu0 0
      %1154 = vmatmul.mubr.bf16.gmra.mrb[0].mxu0 %v1116
      %v1155 = vpop.f32.mrb[0].mxu0
      %v1156 = vadd.f32 0.0, %v1155
      %v1157 = vpop.f32.mrb[0].mxu0
      %v1158 = vpop.f32.mrb[0].mxu0
      %v1159 = vpop.f32.mrb[0].mxu0
      %1160 = vdwg.mxu0
      %v1161 = vmul.f32 %v1156, 0.17677669
      %v1162 = vsel %vm653, -1e+09, %v1161
      %v1163 = vsel %vm655, %v1162, -inf
      %1164 = vmax.xlane.f32.xlu0 %v1163
      %v1165 = vpop.xlane.xlu0 %1164
      %v1166 = vsub.f32 %v1162, %v1165
      %v1167 = vmul.f32 %v1166, 1.442695
      %v1168 = vpow.pop %v1167
      %v1169 = vsel %vm655, %v1168, 0.0
      %1170 = vadd.xlane.f32.xlu0 %v1169
      %v1171 = vpop.xlane.xlu0 %1170
      %v1172 = vrcp.pop %v1171
      %v1173 = vmul.f32 %v1168, %v1172
      %v1174 = vpack.c.bf16 %v1173, %v1173
      %1175 = vrot.lane.b32.xlu0 %v598, 32
      %v1176 = vpop.permute.xlu0 %1175
      %v1178 = vsel %vm655, %v1174, 0
      %v1181 = vsel %vm671, %v1176, 0
      %1183 = vmatprep.subr.bf16.mxu0 0
      %1184 = vmatpush1.bf16.msra.mxu0 %v1181
      %1185 = vmatprep.subr.bf16.mxu0 0
      %1186 = vmatpush1.bf16.msra.mxu0 0
      %1187 = vmatprep.subr.bf16.mxu0 0
      %1188 = vmatpush1.bf16.msra.mxu0 0
      %1189 = vmatprep.subr.bf16.mxu0 0
      %1190 = vmatpush1.bf16.msra.mxu0 0
      %1191 = vmatprep.subr.bf16.mxu0 0
      %1192 = vmatpush1.bf16.msra.mxu0 0
      %1193 = vmatprep.subr.bf16.mxu0 0
      %1194 = vmatpush1.bf16.msra.mxu0 0
      %1195 = vmatprep.subr.bf16.mxu0 0
      %1196 = vmatpush1.bf16.msra.mxu0 0
      %1197 = vmatprep.subr.bf16.mxu0 0
      %1198 = vmatpush1.bf16.msra.mxu0 0
      %1199 = vmatprep.subr.bf16.mxu0 0
      %1200 = vmatpush1.bf16.msra.mxu0 0
      %1201 = vmatprep.subr.bf16.mxu0 0
      %1202 = vmatpush1.bf16.msra.mxu0 0
      %1203 = vmatprep.subr.bf16.mxu0 0
      %1204 = vmatpush1.bf16.msra.mxu0 0
      %1205 = vmatprep.subr.bf16.mxu0 0
      %1206 = vmatpush1.bf16.msra.mxu0 0
      %1207 = vmatprep.subr.bf16.mxu0 0
      %1208 = vmatpush1.bf16.msra.mxu0 0
      %1209 = vmatprep.subr.bf16.mxu0 0
      %1210 = vmatpush1.bf16.msra.mxu0 0
      %1211 = vmatprep.subr.bf16.mxu0 0
      %1212 = vmatpush1.bf16.msra.mxu0 0
      %1213 = vmatprep.subr.bf16.mxu0 0
      %1214 = vmatpush1.bf16.msra.mxu0 0
      %1215 = vmatprep.mubr.bf16.mxu0 0
      %1216 = vmatmul.mubr.bf16.gmra.mrb[0].mxu0 %v1178
      %v1217 = vpop.f32.mrb[0].mxu0
      %v1218 = vadd.f32 0.0, %v1217
      %v1219 = vpop.f32.mrb[0].mxu0
      %v1220 = vpop.f32.mrb[0].mxu0
      %v1221 = vpop.f32.mrb[0].mxu0
      %1222 = vdwg.mxu0
      %v1223 = vpack.c.bf16 %v1218, %v1218
      %v1228 = vunpack.c.l.b16 %v363
      %v1229 = vunpack.c.l.b16 %v364
      %v1230 = vunpack.c.l.b16 %v365
      %v1231 = vunpack.c.l.b16 %v366
      %v1232 = vpack.c.b16 %v1229, %v1228
      %v1233 = vpack.c.b16 %v1231, %v1230
      %v1237 = vsel %vm599, %v1223, 0
      %1239 = vmatprep.subr.bf16.mxu0 0
      %1240 = vmatpush1.bf16.msra.mxu0 %v1232
      %1241 = vmatprep.subr.bf16.mxu0 0
      %1242 = vmatpush1.bf16.msra.mxu0 %v1233
      %1243 = vmatprep.subr.bf16.mxu0 0
      %1244 = vmatpush1.bf16.msra.mxu0 0
      %1245 = vmatprep.subr.bf16.mxu0 0
      %1246 = vmatpush1.bf16.msra.mxu0 0
      %1247 = vmatprep.subr.bf16.mxu0 0
      %1248 = vmatpush1.bf16.msra.mxu0 0
      %1249 = vmatprep.subr.bf16.mxu0 0
      %1250 = vmatpush1.bf16.msra.mxu0 0
      %1251 = vmatprep.subr.bf16.mxu0 0
      %1252 = vmatpush1.bf16.msra.mxu0 0
      %1253 = vmatprep.subr.bf16.mxu0 0
      %1254 = vmatpush1.bf16.msra.mxu0 0
      %1255 = vmatprep.subr.bf16.mxu0 0
      %1256 = vmatpush1.bf16.msra.mxu0 0
      %1257 = vmatprep.subr.bf16.mxu0 0
      %1258 = vmatpush1.bf16.msra.mxu0 0
      %1259 = vmatprep.subr.bf16.mxu0 0
      %1260 = vmatpush1.bf16.msra.mxu0 0
      %1261 = vmatprep.subr.bf16.mxu0 0
      %1262 = vmatpush1.bf16.msra.mxu0 0
      %1263 = vmatprep.subr.bf16.mxu0 0
      %1264 = vmatpush1.bf16.msra.mxu0 0
      %1265 = vmatprep.subr.bf16.mxu0 0
      %1266 = vmatpush1.bf16.msra.mxu0 0
      %1267 = vmatprep.subr.bf16.mxu0 0
      %1268 = vmatpush1.bf16.msra.mxu0 0
      %1269 = vmatprep.subr.bf16.mxu0 0
      %1270 = vmatpush1.bf16.msra.mxu0 0
      %1271 = vmatprep.mubr.bf16.mxu0 0
      %1272 = vmatmul.mubr.bf16.gmra.mrb[0].mxu0 %v1237
      %v1273 = vpop.f32.mrb[0].mxu0
      %v1274 = vadd.f32 0.0, %v1273
      %v1275 = vpop.f32.mrb[0].mxu0
      %v1276 = vpop.f32.mrb[0].mxu0
      %v1277 = vpop.f32.mrb[0].mxu0
      %1278 = vdwg.mxu0
      %v1279 = vadd.f32 %v1110, %v1274
      %v1281 = vlaneseq
      %v1282 = vshrl.u32 %v1281, 7
      %v1283 = vsub.s32 0, %v1282
      %v1284 = vrot.slane %v367, %v1283
      %v1286 = vadd.f32 %v1279, %v1284
      %v1287 = vadd.f32 %v316, %v1286
      %1288 = vadd.xlane.f32.xlu0 %v1287
      %v1289 = vpop.xlane.xlu0 %1288
      %v1290 = vrcp.pop 128.0
      %v1291 = vmul.f32 %v1289, %v1290
      %v1292 = vsub.f32 %v1287, %v1291
      %v1293 = vmul.f32 %v1292, %v1292
      %1294 = vadd.xlane.f32.xlu0 %v1293
      %v1295 = vpop.xlane.xlu0 %1294
      %v1296 = vmul.f32 %v1295, %v1290
      %v1297 = vadd.f32 %v1296, 1e-05
      %v1298 = vrsqrt.pop %v1297
      %v1299 = vmul.f32 %v1292, %v1298
      %v1301 = vlaneseq
      %v1302 = vshrl.u32 %v1301, 7
      %v1303 = vsub.s32 0, %v1302
      %v1304 = vrot.slane %v368, %v1303
      %v1306 = vmul.f32 %v1299, %v1304
      %v1308 = vlaneseq
      %v1309 = vshrl.u32 %v1308, 7
      %v1310 = vsub.s32 0, %v1309
      %v1311 = vrot.slane %v369, %v1310
      %v1313 = vadd.f32 %v1306, %v1311
      %1314 = vst [vmem:[%s314] sm:$0xff] %v1313
      %p1315 = scmp.lt.s32.totalorder %s19, 1
      %s1316 = scalar_select %p1315, %s19, 1
      %s1317 = smul.addr %s1316, 8
      %s1318 = scalar_lea.vmem %s8, %s1317
      // Predicated region
      $region53: #{_lambda_.22} parent=51 // pred_check
        %p1319 = pneg %p215
      $region54: #{_lambda_.22} parent=51 // pred_check_branch
        %1321 = sbr.rel (%p1319) target = $region56
      $region55: #{_lambda_.22} parent=51 // pred_region
        _
      $region56: #{_lambda_.22} parent=51 // pred_fallthru
        _
    $region52: #{_lambda_.22} parent=5 // pred_fallthru
      _
    %p1322 = scmp.le.s32.totalorder 2, %s14
    // Predicated region
    $region57: #{_lambda_.22} parent=5 // pred_check
      %p1323 = pneg %p1322
    $region58: #{_lambda_.22} parent=5 // pred_check_branch
      %1325 = sbr.rel (%p1323) target = $region60
    $region59: #{_lambda_.22} parent=5 // pred_region
      %s1326 = ssub.s32 %s14, 2
      // Predicated region
      $region61: #{_lambda_.22} parent=59 // pred_check
        %p1327 = pneg %p221
      $region62: #{_lambda_.22} parent=59 // pred_check_branch
        %1329 = sbr.rel (%p1327) target = $region64
      $region63: #{_lambda_.22} parent=59 // pred_region
        %p1330 = scmp.lt.s32.totalorder %s20, 1
        %s1331 = scalar_select %p1330, %s20, 1
        %s1332 = smul.addr %s1331, 8
        %s1333 = scalar_lea.vmem %s8, %s1332
      $region64: #{_lambda_.22} parent=59 // pred_fallthru
        _
    $region60: #{_lambda_.22} parent=5 // pred_fallthru
      _
  $region6: #{_lambda_.22} parent=0 // loop_footer
    %s18 = sadd.s32 1, %s14
  $region7: #{_lambda_.22} parent=0 // loop_footer_branch
    %13 = sbr.rel target = $region3
  $region8: #{_lambda_.22} parent=0 // loop_exit
    _

// kernel: _lambda_.33
$region0: #{_lambda_.33}
  #allocation0 [shape = 'u32[]', space=smem, size = 0x4, offset = 0x4, fixed_abs, tag = 'smem constant byte address 0x4 - core index']
  #allocation1 [shape = 'u32[144,128]{1,0:T(1,128)}', space=vmem, size = 0x12000, scoped, tag = 'internal scratch']
  %s0 = inlined_call_operand.vmem [shape: f32[2,8,128], index: 0, kind: input, shape index: {}]
  %s1 = inlined_call_operand.vmem [shape: f32[2,8,1], index: 1, kind: input, shape index: {}]
  %s2 = inlined_call_operand.vmem [shape: bf16[128,256], index: 2, kind: input, shape index: {}]
  %s3 = inlined_call_operand.vmem [shape: f32[1,256], index: 3, kind: input, shape index: {}]
  %s4 = inlined_call_operand.vmem [shape: bf16[256,128], index: 4, kind: input, shape index: {}]
  %s5 = inlined_call_operand.vmem [shape: f32[1,128], index: 5, kind: input, shape index: {}]
  %s6 = inlined_call_operand.vmem [shape: f32[1,128], index: 6, kind: input, shape index: {}]
  %s7 = inlined_call_operand.vmem [shape: f32[1,128], index: 7, kind: input, shape index: {}]
  %s8 = inlined_call_operand.hbm [shape: f32[2,8,128], index: 8, kind: output, shape index: {}]
  %s9 = sld [smem:[#allocation0]]
  $region65: #{_lambda_.33} parent=0
    _
  %s11 = ssub.s32 1, %s9
  %s12 = scalar_select 0, %s11, %s9
  $region1: #{_lambda_.33} parent=0
    #allocation2 [shape = 'u8[8192]{0}', space=vmem, size = 0x2000, scoped, tag = 'output window, operand 0']
    #allocation3 [shape = 's32[2]{0}', space=sflag, size = 0x8, scoped, tag = 'scoped memory for _lambda_.33']
    %13 = vsyncpa [#allocation3], 0
    %s14 = scalar_lea.sflag [#allocation3], 1
    %15 = vsyncpa %s14, 0
    loop: start=0, step=1, limit=4
    $region2: #{_lambda_.33} parent=1 // loop_pre_header
      _
    $region3: #{_lambda_.33} parent=1 // loop_header
      %s17 = sphi 0, %s21
      %p18 = scmp.ge.s32.totalorder %s17, 4
      %s27 = sphi 0, %s29
      %s30 = sphi 0, %s27
      %s31 = sphi 0, %s30
      %s47 = sphi 0, %s31
      %s53 = sphi 0, %s55
      %s56 = sphi 0, %s53
      %s57 = sphi 0, %s56
      %s73 = sphi 0, %s57
      %s77 = sphi 0, %s77
      %s79 = sphi 0, %s77
      %s80 = sphi 0, %s79
      %s94 = sphi 0, %s80
      %s98 = sphi 0, %s98
      %s100 = sphi 0, %s98
      %s101 = sphi 0, %s100
      %s115 = sphi 0, %s101
      %s119 = sphi 0, %s119
      %s121 = sphi 0, %s119
      %s122 = sphi 0, %s121
      %s136 = sphi 0, %s122
      %s140 = sphi 0, %s140
      %s142 = sphi 0, %s140
      %s143 = sphi 0, %s142
      %s157 = sphi 0, %s143
      %s161 = sphi 0, %s161
      %s163 = sphi 0, %s161
      %s164 = sphi 0, %s163
      %s178 = sphi 0, %s164
      %s182 = sphi 0, %s182
      %s184 = sphi 0, %s182
      %s185 = sphi 0, %s184
      %s199 = sphi 0, %s185
      %s205 = sphi 0, %s207
      %s208 = sphi 0, %s205
      %s209 = sphi 0, %s208
      %s225 = sphi 0, %s209
    $region4: #{_lambda_.33} parent=1 // loop_header_branch
      %20 = sbr.rel (%p18) target = $region8
    $region5: #{_lambda_.33} parent=1 // loop_body
      %s22 = ssub.s32 %s17, 1
      %s23 = ssub.s32 %s17, 2
      %s24 = sadd.s32 %s17, 1
      %s25 = ssub.s32 %s17, %s24
      %p26 = scmp.eq.s32.totalorder %s25, 0
      %s28 = sadd.s32 %s27, 1
      %s29 = scalar_select %p26, %s27, %s28
      %p32 = pneg %p26
      %p33 = scmp.eq.s32.totalorder %s17, 1
      %p34 = por %p32, %p33
      %p35 = scmp.ne.s32.totalorder %s27, %s30
      %p36 = scmp.eq.s32.totalorder %s17, 0
      %p37 = por %p35, %p36
      %p38 = scmp.ne.s32.totalorder %s27, %s30
      %p39 = scmp.eq.s32.totalorder %s22, 1
      %p40 = por %p38, %p39
      %p41 = scmp.ne.s32.totalorder %s30, %s31
      %p42 = scmp.eq.s32.totalorder %s22, 0
      %p43 = por %p41, %p42
      %p44 = scmp.ne.s32.totalorder %s30, %s31
      %p45 = scmp.eq.s32.totalorder %s23, 1
      %p46 = por %p44, %p45
      %p48 = scmp.ne.s32.totalorder %s31, %s47
      %p49 = scmp.eq.s32.totalorder %s23, 0
      %p50 = por %p48, %p49
      %s51 = ssub.s32 %s17, %s24
      %p52 = scmp.eq.s32.totalorder %s51, 0
      %s54 = sadd.s32 %s53, 1
      %s55 = scalar_select %p52, %s53, %s54
      %p58 = pneg %p52
      %p59 = scmp.eq.s32.totalorder %s17, 1
      %p60 = por %p58, %p59
      %p61 = scmp.ne.s32.totalorder %s53, %s56
      %p62 = scmp.eq.s32.totalorder %s17, 0
      %p63 = por %p61, %p62
      %p64 = scmp.ne.s32.totalorder %s53, %s56
      %p65 = scmp.eq.s32.totalorder %s22, 1
      %p66 = por %p64, %p65
      %p67 = scmp.ne.s32.totalorder %s56, %s57
      %p68 = scmp.eq.s32.totalorder %s22, 0
      %p69 = por %p67, %p68
      %p70 = scmp.ne.s32.totalorder %s56, %s57
      %p71 = scmp.eq.s32.totalorder %s23, 1
      %p72 = por %p70, %p71
      %p74 = scmp.ne.s32.totalorder %s57, %s73
      %p75 = scmp.eq.s32.totalorder %s23, 0
      %p76 = por %p74, %p75
      %s78 = sadd.s32 %s77, 1
      %p81 = scmp.eq.s32.totalorder %s17, 1
      %p82 = scmp.ne.s32.totalorder %s77, %s79
      %p83 = scmp.eq.s32.totalorder %s17, 0
      %p84 = por %p82, %p83
      %p85 = scmp.ne.s32.totalorder %s77, %s79
      %p86 = scmp.eq.s32.totalorder %s22, 1
      %p87 = por %p85, %p86
      %p88 = scmp.ne.s32.totalorder %s79, %s80
      %p89 = scmp.eq.s32.totalorder %s22, 0
      %p90 = por %p88, %p89
      %p91 = scmp.ne.s32.totalorder %s79, %s80
      %p92 = scmp.eq.s32.totalorder %s23, 1
      %p93 = por %p91, %p92
      %p95 = scmp.ne.s32.totalorder %s80, %s94
      %p96 = scmp.eq.s32.totalorder %s23, 0
      %p97 = por %p95, %p96
      %s99 = sadd.s32 %s98, 1
      %p102 = scmp.eq.s32.totalorder %s17, 1
      %p103 = scmp.ne.s32.totalorder %s98, %s100
      %p104 = scmp.eq.s32.totalorder %s17, 0
      %p105 = por %p103, %p104
      %p106 = scmp.ne.s32.totalorder %s98, %s100
      %p107 = scmp.eq.s32.totalorder %s22, 1
      %p108 = por %p106, %p107
      %p109 = scmp.ne.s32.totalorder %s100, %s101
      %p110 = scmp.eq.s32.totalorder %s22, 0
      %p111 = por %p109, %p110
      %p112 = scmp.ne.s32.totalorder %s100, %s101
      %p113 = scmp.eq.s32.totalorder %s23, 1
      %p114 = por %p112, %p113
      %p116 = scmp.ne.s32.totalorder %s101, %s115
      %p117 = scmp.eq.s32.totalorder %s23, 0
      %p118 = por %p116, %p117
      %s120 = sadd.s32 %s119, 1
      %p123 = scmp.eq.s32.totalorder %s17, 1
      %p124 = scmp.ne.s32.totalorder %s119, %s121
      %p125 = scmp.eq.s32.totalorder %s17, 0
      %p126 = por %p124, %p125
      %p127 = scmp.ne.s32.totalorder %s119, %s121
      %p128 = scmp.eq.s32.totalorder %s22, 1
      %p129 = por %p127, %p128
      %p130 = scmp.ne.s32.totalorder %s121, %s122
      %p131 = scmp.eq.s32.totalorder %s22, 0
      %p132 = por %p130, %p131
      %p133 = scmp.ne.s32.totalorder %s121, %s122
      %p134 = scmp.eq.s32.totalorder %s23, 1
      %p135 = por %p133, %p134
      %p137 = scmp.ne.s32.totalorder %s122, %s136
      %p138 = scmp.eq.s32.totalorder %s23, 0
      %p139 = por %p137, %p138
      %s141 = sadd.s32 %s140, 1
      %p144 = scmp.eq.s32.totalorder %s17, 1
      %p145 = scmp.ne.s32.totalorder %s140, %s142
      %p146 = scmp.eq.s32.totalorder %s17, 0
      %p147 = por %p145, %p146
      %p148 = scmp.ne.s32.totalorder %s140, %s142
      %p149 = scmp.eq.s32.totalorder %s22, 1
      %p150 = por %p148, %p149
      %p151 = scmp.ne.s32.totalorder %s142, %s143
      %p152 = scmp.eq.s32.totalorder %s22, 0
      %p153 = por %p151, %p152
      %p154 = scmp.ne.s32.totalorder %s142, %s143
      %p155 = scmp.eq.s32.totalorder %s23, 1
      %p156 = por %p154, %p155
      %p158 = scmp.ne.s32.totalorder %s143, %s157
      %p159 = scmp.eq.s32.totalorder %s23, 0
      %p160 = por %p158, %p159
      %s162 = sadd.s32 %s161, 1
      %p165 = scmp.eq.s32.totalorder %s17, 1
      %p166 = scmp.ne.s32.totalorder %s161, %s163
      %p167 = scmp.eq.s32.totalorder %s17, 0
      %p168 = por %p166, %p167
      %p169 = scmp.ne.s32.totalorder %s161, %s163
      %p170 = scmp.eq.s32.totalorder %s22, 1
      %p171 = por %p169, %p170
      %p172 = scmp.ne.s32.totalorder %s163, %s164
      %p173 = scmp.eq.s32.totalorder %s22, 0
      %p174 = por %p172, %p173
      %p175 = scmp.ne.s32.totalorder %s163, %s164
      %p176 = scmp.eq.s32.totalorder %s23, 1
      %p177 = por %p175, %p176
      %p179 = scmp.ne.s32.totalorder %s164, %s178
      %p180 = scmp.eq.s32.totalorder %s23, 0
      %p181 = por %p179, %p180
      %s183 = sadd.s32 %s182, 1
      %p186 = scmp.eq.s32.totalorder %s17, 1
      %p187 = scmp.ne.s32.totalorder %s182, %s184
      %p188 = scmp.eq.s32.totalorder %s17, 0
      %p189 = por %p187, %p188
      %p190 = scmp.ne.s32.totalorder %s182, %s184
      %p191 = scmp.eq.s32.totalorder %s22, 1
      %p192 = por %p190, %p191
      %p193 = scmp.ne.s32.totalorder %s184, %s185
      %p194 = scmp.eq.s32.totalorder %s22, 0
      %p195 = por %p193, %p194
      %p196 = scmp.ne.s32.totalorder %s184, %s185
      %p197 = scmp.eq.s32.totalorder %s23, 1
      %p198 = por %p196, %p197
      %p200 = scmp.ne.s32.totalorder %s185, %s199
      %p201 = scmp.eq.s32.totalorder %s23, 0
      %p202 = por %p200, %p201
      %s203 = ssub.s32 %s17, %s24
      %p204 = scmp.eq.s32.totalorder %s203, 0
      %s206 = sadd.s32 %s205, 1
      %s207 = scalar_select %p204, %s205, %s206
      %p210 = pneg %p204
      %p211 = scmp.eq.s32.totalorder %s17, 1
      %p212 = por %p210, %p211
      %p213 = scmp.ne.s32.totalorder %s205, %s208
      %p214 = scmp.eq.s32.totalorder %s17, 0
      %p215 = por %p213, %p214
      %p216 = scmp.ne.s32.totalorder %s205, %s208
      %p217 = scmp.eq.s32.totalorder %s22, 1
      %p218 = por %p216, %p217
      %p219 = scmp.ne.s32.totalorder %s208, %s209
      %p220 = scmp.eq.s32.totalorder %s22, 0
      %p221 = por %p219, %p220
      %p222 = scmp.ne.s32.totalorder %s208, %s209
      %p223 = scmp.eq.s32.totalorder %s23, 1
      %p224 = por %p222, %p223
      %p226 = scmp.ne.s32.totalorder %s209, %s225
      %p227 = scmp.eq.s32.totalorder %s23, 0
      %p228 = por %p226, %p227
      %p229 = scmp.le.s32.totalorder 1, %s17
      %p230 = scmp.lt.s32.totalorder %s17, 3
      %p231 = pnand %p229, %p230
      %p232 = pneg %p231
      // Predicated region
      $region9: #{_lambda_.33} parent=5 // pred_check
        _
      $region10: #{_lambda_.33} parent=5 // pred_check_branch
        %234 = sbr.rel (%p231) target = $region12
      $region11: #{_lambda_.33} parent=5 // pred_region
        %s235 = ssub.s32 %s17, 1
        // Predicated region
        $region13: #{_lambda_.33} parent=11 // pred_check
          %p236 = pneg %p90
        $region14: #{_lambda_.33} parent=11 // pred_check_branch
          %238 = sbr.rel (%p236) target = $region16
        $region15: #{_lambda_.33} parent=11 // pred_region
          _
        $region16: #{_lambda_.33} parent=11 // pred_fallthru
          _
        // Predicated region
        $region17: #{_lambda_.33} parent=11 // pred_check
          %p239 = pneg %p111
        $region18: #{_lambda_.33} parent=11 // pred_check_branch
          %241 = sbr.rel (%p239) target = $region20
        $region19: #{_lambda_.33} parent=11 // pred_region
          _
        $region20: #{_lambda_.33} parent=11 // pred_fallthru
          _
        // Predicated region
        $region21: #{_lambda_.33} parent=11 // pred_check
          %p242 = pneg %p132
        $region22: #{_lambda_.33} parent=11 // pred_check_branch
          %244 = sbr.rel (%p242) target = $region24
        $region23: #{_lambda_.33} parent=11 // pred_region
          _
        $region24: #{_lambda_.33} parent=11 // pred_fallthru
          _
        // Predicated region
        $region25: #{_lambda_.33} parent=11 // pred_check
          %p245 = pneg %p153
        $region26: #{_lambda_.33} parent=11 // pred_check_branch
          %247 = sbr.rel (%p245) target = $region28
        $region27: #{_lambda_.33} parent=11 // pred_region
          _
        $region28: #{_lambda_.33} parent=11 // pred_fallthru
          _
        // Predicated region
        $region29: #{_lambda_.33} parent=11 // pred_check
          %p248 = pneg %p174
        $region30: #{_lambda_.33} parent=11 // pred_check_branch
          %250 = sbr.rel (%p248) target = $region32
        $region31: #{_lambda_.33} parent=11 // pred_region
          _
        $region32: #{_lambda_.33} parent=11 // pred_fallthru
          _
        // Predicated region
        $region33: #{_lambda_.33} parent=11 // pred_check
          %p251 = pneg %p195
        $region34: #{_lambda_.33} parent=11 // pred_check_branch
          %253 = sbr.rel (%p251) target = $region36
        $region35: #{_lambda_.33} parent=11 // pred_region
          _
        $region36: #{_lambda_.33} parent=11 // pred_fallthru
          _
      $region12: #{_lambda_.33} parent=5 // pred_fallthru
        _
      %p254 = scmp.lt.s32.totalorder %s17, 2
      // Predicated region
      $region37: #{_lambda_.33} parent=5 // pred_check
        %p255 = pneg %p254
      $region38: #{_lambda_.33} parent=5 // pred_check_branch
        %257 = sbr.rel (%p255) target = $region40
      $region39: #{_lambda_.33} parent=5 // pred_region
        // Predicated region
        $region41: #{_lambda_.33} parent=39 // pred_check
          %p258 = pneg %p37
        $region42: #{_lambda_.33} parent=39 // pred_check_branch
          %260 = sbr.rel (%p258) target = $region44
        $region43: #{_lambda_.33} parent=39 // pred_region
          %p261 = scmp.lt.s32.totalorder %s17, 1
          %s262 = scalar_select %p261, %s17, 1
          %s263 = smul.addr %s262, 8
          %s264 = scalar_lea.vmem %s0, %s263
        $region44: #{_lambda_.33} parent=39 // pred_fallthru
          _
        // Predicated region
        $region45: #{_lambda_.33} parent=39 // pred_check
          %p265 = pneg %p63
        $region46: #{_lambda_.33} parent=39 // pred_check_branch
          %267 = sbr.rel (%p265) target = $region48
        $region47: #{_lambda_.33} parent=39 // pred_region
          %p268 = scmp.lt.s32.totalorder %s17, 1
          %s269 = scalar_select %p268, %s17, 1
          %s270 = smul.addr %s269, 8
          %s271 = scalar_lea.vmem %s1, %s270
        $region48: #{_lambda_.33} parent=39 // pred_fallthru
          _
      $region40: #{_lambda_.33} parent=5 // pred_fallthru
        _
      %p272 = scmp.le.s32.totalorder 1, %s17
      %p273 = scmp.lt.s32.totalorder %s17, 3
      %p274 = pnand %p272, %p273
      %p275 = pneg %p274
      // Predicated region
      $region49: #{_lambda_.33} parent=5 // pred_check
        _
      $region50: #{_lambda_.33} parent=5 // pred_check_branch
        %277 = sbr.rel (%p274) target = $region52
      $region51: #{_lambda_.33} parent=5 // pred_region
        %s278 = ssub.s32 %s17, 1
        %p279 = scmp.lt.s32.totalorder %s22, 1
        %s280 = scalar_select %p279, %s22, 1
        %s281 = smul.addr %s280, 8
        %s282 = scalar_lea.vmem %s0, %s281
        %p283 = pneg %p43
        %p284 = pneg %p40
        %p285 = scmp.lt.s32.totalorder %s22, 1
        %s286 = scalar_select %p285, %s22, 1
        %s287 = smul.addr %s286, 8
        %s288 = scalar_lea.vmem %s1, %s287
        %p289 = pneg %p69
        %p290 = pneg %p66
        %p291 = pneg %p90
        %p292 = pneg %p87
        %p293 = pneg %p111
        %p294 = pneg %p108
        %p295 = pneg %p132
        %p296 = pneg %p129
        %p297 = pneg %p153
        %p298 = pneg %p150
        %p299 = pneg %p174
        %p300 = pneg %p171
        %p301 = pneg %p195
        %p302 = pneg %p192
        %p303 = pneg %p221
        %p304 = pneg %p218
        %s305 = sand.u32 %s208, 1
        %s306 = scalar_lea.sflag [#allocation3], %s305
        %s307 = sand.u32 %s208, 1
        %s308 = smul.addr %s307, 8
        %s309 = scalar_lea.vmem [#allocation2], %s308
        %p310 = scmp.lt.s32.totalorder %s22, 1
        %s311 = scalar_select %p310, %s22, 1
        %s312 = smul.addr %s311, 8
        %s313 = scalar_lea.vmem %s0, %s312
        %p314 = scmp.lt.s32.totalorder %s22, 1
        %s315 = scalar_select %p314, %s22, 1
        %s316 = smul.addr %s315, 8
        %s317 = scalar_lea.vmem %s1, %s316
        %v319 = vld [vmem:[%s313] sm:$0xff]
        %v320 = vld [vmem:[%s317] sm:$0xff]
        %v321 = vld [vmem:[%s2] sm:$0xff]
        %v322 = vld [vmem:[%s2 + $0x8] sm:$0xff]
        %v323 = vld [vmem:[%s2 + $0x10] sm:$0xff]
        %v324 = vld [vmem:[%s2 + $0x18] sm:$0xff]
        %v325 = vld [vmem:[%s2 + $0x20] sm:$0xff]
        %v326 = vld [vmem:[%s2 + $0x28] sm:$0xff]
        %v327 = vld [vmem:[%s2 + $0x30] sm:$0xff]
        %v328 = vld [vmem:[%s2 + $0x38] sm:$0xff]
        %v329 = vld [vmem:[%s2 + $0x40] sm:$0xff]
        %v330 = vld [vmem:[%s2 + $0x48] sm:$0xff]
        %v331 = vld [vmem:[%s2 + $0x50] sm:$0xff]
        %v332 = vld [vmem:[%s2 + $0x58] sm:$0xff]
        %v333 = vld [vmem:[%s2 + $0x60] sm:$0xff]
        %v334 = vld [vmem:[%s2 + $0x68] sm:$0xff]
        %v335 = vld [vmem:[%s2 + $0x70] sm:$0xff]
        %v336 = vld [vmem:[%s2 + $0x78] sm:$0xff]
        %v337 = vld [vmem:[%s3] sm:$0x3]
        %v338 = vld [vmem:[%s4] sm:$0xf]
        %v339 = vld [vmem:[%s4 + $0x4] sm:$0xf]
        %v340 = vld [vmem:[%s4 + $0x8] sm:$0xf]
        %v341 = vld [vmem:[%s4 + $0xc] sm:$0xf]
        %v342 = vld [vmem:[%s4 + $0x10] sm:$0xf]
        %v343 = vld [vmem:[%s4 + $0x14] sm:$0xf]
        %v344 = vld [vmem:[%s4 + $0x18] sm:$0xf]
        %v345 = vld [vmem:[%s4 + $0x1c] sm:$0xf]
        %v346 = vld [vmem:[%s4 + $0x20] sm:$0xf]
        %v347 = vld [vmem:[%s4 + $0x24] sm:$0xf]
        %v348 = vld [vmem:[%s4 + $0x28] sm:$0xf]
        %v349 = vld [vmem:[%s4 + $0x2c] sm:$0xf]
        %v350 = vld [vmem:[%s4 + $0x30] sm:$0xf]
        %v351 = vld [vmem:[%s4 + $0x34] sm:$0xf]
        %v352 = vld [vmem:[%s4 + $0x38] sm:$0xf]
        %v353 = vld [vmem:[%s4 + $0x3c] sm:$0xf]
        %v354 = vld [vmem:[%s4 + $0x40] sm:$0xf]
        %v355 = vld [vmem:[%s4 + $0x44] sm:$0xf]
        %v356 = vld [vmem:[%s4 + $0x48] sm:$0xf]
        %v357 = vld [vmem:[%s4 + $0x4c] sm:$0xf]
        %v358 = vld [vmem:[%s4 + $0x50] sm:$0xf]
        %v359 = vld [vmem:[%s4 + $0x54] sm:$0xf]
        %v360 = vld [vmem:[%s4 + $0x58] sm:$0xf]
        %v361 = vld [vmem:[%s4 + $0x5c] sm:$0xf]
        %v362 = vld [vmem:[%s4 + $0x60] sm:$0xf]
        %v363 = vld [vmem:[%s4 + $0x64] sm:$0xf]
        %v364 = vld [vmem:[%s4 + $0x68] sm:$0xf]
        %v365 = vld [vmem:[%s4 + $0x6c] sm:$0xf]
        %v366 = vld [vmem:[%s4 + $0x70] sm:$0xf]
        %v367 = vld [vmem:[%s4 + $0x74] sm:$0xf]
        %v368 = vld [vmem:[%s4 + $0x78] sm:$0xf]
        %v369 = vld [vmem:[%s4 + $0x7c] sm:$0xf]
        %v370 = vld [vmem:[%s5] sm:$0x1]
        %v371 = vld [vmem:[%s6] sm:$0x1]
        %v372 = vld [vmem:[%s7] sm:$0x1]
        %v373 = vpack.c.bf16 %v319, %v319
        %v375 = vlaneseq
        %v376 = vshrl.u32 %v375, 7
        %v377 = vsub.s32 0, %v376
        %v378 = vrot.slane %v337, %v377
        %v379 = vlaneseq
        %v380 = vshrl.u32 %v379, 7
        %v381 = vsub.s32 1, %v380
        %v382 = vrot.slane %v337, %v381
        %v401 = vunpack.c.l.b16 %v321
        %v402 = vunpack.c.h.b16 %v321
        %v403 = vunpack.c.l.b16 %v322
        %v404 = vunpack.c.h.b16 %v322
        %v405 = vunpack.c.l.b16 %v323
        %v406 = vunpack.c.h.b16 %v323
        %v407 = vunpack.c.l.b16 %v324
        %v408 = vunpack.c.h.b16 %v324
        %v409 = vunpack.c.l.b16 %v325
        %v410 = vunpack.c.h.b16 %v325
        %v411 = vunpack.c.l.b16 %v326
        %v412 = vunpack.c.h.b16 %v326
        %v413 = vunpack.c.l.b16 %v327
        %v414 = vunpack.c.h.b16 %v327
        %v415 = vunpack.c.l.b16 %v328
        %v416 = vunpack.c.h.b16 %v328
        %v417 = vunpack.c.l.b16 %v329
        %v418 = vunpack.c.h.b16 %v329
        %v419 = vunpack.c.l.b16 %v330
        %v420 = vunpack.c.h.b16 %v330
        %v421 = vunpack.c.l.b16 %v331
        %v422 = vunpack.c.h.b16 %v331
        %v423 = vunpack.c.l.b16 %v332
        %v424 = vunpack.c.h.b16 %v332
        %v425 = vunpack.c.l.b16 %v333
        %v426 = vunpack.c.h.b16 %v333
        %v427 = vunpack.c.l.b16 %v334
        %v428 = vunpack.c.h.b16 %v334
        %v429 = vunpack.c.l.b16 %v335
        %v430 = vunpack.c.h.b16 %v335
        %v431 = vunpack.c.l.b16 %v336
        %v432 = vunpack.c.h.b16 %v336
        %v433 = vpack.c.b16 %v403, %v401
        %v434 = vpack.c.b16 %v404, %v402
        %v435 = vpack.c.b16 %v407, %v405
        %v436 = vpack.c.b16 %v408, %v406
        %v437 = vpack.c.b16 %v411, %v409
        %v438 = vpack.c.b16 %v412, %v410
        %v439 = vpack.c.b16 %v415, %v413
        %v440 = vpack.c.b16 %v416, %v414
        %v441 = vpack.c.b16 %v419, %v417
        %v442 = vpack.c.b16 %v420, %v418
        %v443 = vpack.c.b16 %v423, %v421
        %v444 = vpack.c.b16 %v424, %v422
        %v445 = vpack.c.b16 %v427, %v425
        %v446 = vpack.c.b16 %v428, %v426
        %v447 = vpack.c.b16 %v431, %v429
        %v448 = vpack.c.b16 %v432, %v430
        %465 = vmatprep.subr.bf16.mxu0 %v434
        %466 = vmatpush1.bf16.msra.mxu0 %v433
        %467 = vmatprep.subr.bf16.mxu0 %v436
        %468 = vmatpush1.bf16.msra.mxu0 %v435
        %469 = vmatprep.subr.bf16.mxu0 %v438
        %470 = vmatpush1.bf16.msra.mxu0 %v437
        %471 = vmatprep.subr.bf16.mxu0 %v440
        %472 = vmatpush1.bf16.msra.mxu0 %v439
        %473 = vmatprep.subr.bf16.mxu0 %v442
        %474 = vmatpush1.bf16.msra.mxu0 %v441
        %475 = vmatprep.subr.bf16.mxu0 %v444
        %476 = vmatpush1.bf16.msra.mxu0 %v443
        %477 = vmatprep.subr.bf16.mxu0 %v446
        %478 = vmatpush1.bf16.msra.mxu0 %v445
        %479 = vmatprep.subr.bf16.mxu0 %v448
        %480 = vmatpush1.bf16.msra.mxu0 %v447
        %481 = vmatprep.subr.bf16.mxu0 0
        %482 = vmatpush1.bf16.msra.mxu0 0
        %483 = vmatprep.subr.bf16.mxu0 0
        %484 = vmatpush1.bf16.msra.mxu0 0
        %485 = vmatprep.subr.bf16.mxu0 0
        %486 = vmatpush1.bf16.msra.mxu0 0
        %487 = vmatprep.subr.bf16.mxu0 0
        %488 = vmatpush1.bf16.msra.mxu0 0
        %489 = vmatprep.subr.bf16.mxu0 0
        %490 = vmatpush1.bf16.msra.mxu0 0
        %491 = vmatprep.subr.bf16.mxu0 0
        %492 = vmatpush1.bf16.msra.mxu0 0
        %493 = vmatprep.subr.bf16.mxu0 0
        %494 = vmatpush1.bf16.msra.mxu0 0
        %495 = vmatprep.subr.bf16.mxu0 0
        %496 = vmatpush1.bf16.msra.mxu0 0
        %497 = vmatprep.mubr.bf16.mxu0 0
        %498 = vmatmul.mubr.bf16.gmra.mrb[0].mxu0 %v373
        %v499 = vpop.f32.mrb[0].mxu0
        %v500 = vadd.f32 %v378, %v499
        %v501 = vpop.f32.mrb[0].mxu0
        %v502 = vadd.f32 %v382, %v501
        %v503 = vpop.f32.mrb[0].mxu0
        %v504 = vpop.f32.mrb[0].mxu0
        %505 = vdwg.mxu0
        %v506 = vmax.f32 %v500, 0.0
        %v507 = vmax.f32 %v502, 0.0
        %v508 = vpack.c.bf16 %v506, %v506
        %v509 = vpack.c.bf16 %v507, %v507
        %v511 = vlaneseq
        %v512 = vshrl.u32 %v511, 7
        %v513 = vsub.s32 0, %v512
        %v514 = vrot.slane %v370, %v513
        %v548 = vunpack.c.l.b16 %v338
        %v549 = vunpack.c.l.b16 %v339
        %v550 = vunpack.c.l.b16 %v340
        %v551 = vunpack.c.l.b16 %v341
        %v552 = vunpack.c.l.b16 %v342
        %v553 = vunpack.c.l.b16 %v343
        %v554 = vunpack.c.l.b16 %v344
        %v555 = vunpack.c.l.b16 %v345
        %v556 = vunpack.c.l.b16 %v346
        %v557 = vunpack.c.l.b16 %v347
        %v558 = vunpack.c.l.b16 %v348
        %v559 = vunpack.c.l.b16 %v349
        %v560 = vunpack.c.l.b16 %v350
        %v561 = vunpack.c.l.b16 %v351
        %v562 = vunpack.c.l.b16 %v352
        %v563 = vunpack.c.l.b16 %v353
        %v564 = vunpack.c.l.b16 %v354
        %v565 = vunpack.c.l.b16 %v355
        %v566 = vunpack.c.l.b16 %v356
        %v567 = vunpack.c.l.b16 %v357
        %v568 = vunpack.c.l.b16 %v358
        %v569 = vunpack.c.l.b16 %v359
        %v570 = vunpack.c.l.b16 %v360
        %v571 = vunpack.c.l.b16 %v361
        %v572 = vunpack.c.l.b16 %v362
        %v573 = vunpack.c.l.b16 %v363
        %v574 = vunpack.c.l.b16 %v364
        %v575 = vunpack.c.l.b16 %v365
        %v576 = vunpack.c.l.b16 %v366
        %v577 = vunpack.c.l.b16 %v367
        %v578 = vunpack.c.l.b16 %v368
        %v579 = vunpack.c.l.b16 %v369
        %v580 = vpack.c.b16 %v549, %v548
        %v581 = vpack.c.b16 %v551, %v550
        %v582 = vpack.c.b16 %v553, %v552
        %v583 = vpack.c.b16 %v555, %v554
        %v584 = vpack.c.b16 %v557, %v556
        %v585 = vpack.c.b16 %v559, %v558
        %v586 = vpack.c.b16 %v561, %v560
        %v587 = vpack.c.b16 %v563, %v562
        %v588 = vpack.c.b16 %v565, %v564
        %v589 = vpack.c.b16 %v567, %v566
        %v590 = vpack.c.b16 %v569, %v568
        %v591 = vpack.c.b16 %v571, %v570
        %v592 = vpack.c.b16 %v573, %v572
        %v593 = vpack.c.b16 %v575, %v574
        %v594 = vpack.c.b16 %v577, %v576
        %v595 = vpack.c.b16 %v579, %v578
        %612 = vmatprep.subr.bf16.mxu0 0
        %613 = vmatpush1.bf16.msra.mxu0 %v580
        %614 = vmatprep.subr.bf16.mxu0 0
        %615 = vmatpush1.bf16.msra.mxu0 %v581
        %616 = vmatprep.subr.bf16.mxu0 0
        %617 = vmatpush1.bf16.msra.mxu0 %v582
        %618 = vmatprep.subr.bf16.mxu0 0
        %619 = vmatpush1.bf16.msra.mxu0 %v583
        %620 = vmatprep.subr.bf16.mxu0 0
        %621 = vmatpush1.bf16.msra.mxu0 %v584
        %622 = vmatprep.subr.bf16.mxu0 0
        %623 = vmatpush1.bf16.msra.mxu0 %v585
        %624 = vmatprep.subr.bf16.mxu0 0
        %625 = vmatpush1.bf16.msra.mxu0 %v586
        %626 = vmatprep.subr.bf16.mxu0 0
        %627 = vmatpush1.bf16.msra.mxu0 %v587
        %628 = vmatprep.subr.bf16.mxu0 0
        %629 = vmatpush1.bf16.msra.mxu0 %v588
        %630 = vmatprep.subr.bf16.mxu0 0
        %631 = vmatpush1.bf16.msra.mxu0 %v589
        %632 = vmatprep.subr.bf16.mxu0 0
        %633 = vmatpush1.bf16.msra.mxu0 %v590
        %634 = vmatprep.subr.bf16.mxu0 0
        %635 = vmatpush1.bf16.msra.mxu0 %v591
        %636 = vmatprep.subr.bf16.mxu0 0
        %637 = vmatpush1.bf16.msra.mxu0 %v592
        %638 = vmatprep.subr.bf16.mxu0 0
        %639 = vmatpush1.bf16.msra.mxu0 %v593
        %640 = vmatprep.subr.bf16.mxu0 0
        %641 = vmatpush1.bf16.msra.mxu0 %v594
        %642 = vmatprep.subr.bf16.mxu0 0
        %643 = vmatpush1.bf16.msra.mxu0 %v595
        %644 = vmatprep.mubr.bf16.mxu0 %v509
        %645 = vmatmul.mubr.bf16.gmra.mrb[0].mxu0 %v508
        %v646 = vpop.f32.mrb[0].mxu0
        %v647 = vadd.f32 %v514, %v646
        %v648 = vpop.f32.mrb[0].mxu0
        %v649 = vpop.f32.mrb[0].mxu0
        %v650 = vpop.f32.mrb[0].mxu0
        %651 = vdwg.mxu0
        %v652 = vadd.f32 %v319, %v647
        %653 = vadd.xlane.f32.xlu0 %v652
        %v654 = vpop.xlane.xlu0 %653
        %v655 = vrcp.pop 128.0
        %v656 = vmul.f32 %v654, %v655
        %v657 = vsub.f32 %v652, %v656
        %v658 = vmul.f32 %v657, %v657
        %659 = vadd.xlane.f32.xlu0 %v658
        %v660 = vpop.xlane.xlu0 %659
        %v661 = vmul.f32 %v660, %v655
        %v662 = vadd.f32 %v661, 1e-05
        %v663 = vrsqrt.pop %v662
        %v664 = vmul.f32 %v657, %v663
        %v666 = vlaneseq
        %v667 = vshrl.u32 %v666, 7
        %v668 = vsub.s32 0, %v667
        %v669 = vrot.slane %v371, %v668
        %v671 = vmul.f32 %v664, %v669
        %v673 = vlaneseq
        %v674 = vshrl.u32 %v673, 7
        %v675 = vsub.s32 0, %v674
        %v676 = vrot.slane %v372, %v675
        %v678 = vadd.f32 %v671, %v676
        %680 = vset.pattern.permute.xlu0 0
        %681 = vperm.xlu0 %680, %v320
        %v682 = vpop.permute.xlu0 %681
        %v684 = vmul.f32 %v678, %v682
        %685 = vst [vmem:[%s309] sm:$0xff] %v684
        %s686 = sand.u32 %s208, 1
        %s687 = scalar_lea.sflag [#allocation3], %s686
        %s688 = sand.u32 %s208, 1
        %s689 = smul.addr %s688, 8
        %s690 = scalar_lea.vmem [#allocation2], %s689
        // Predicated region
        $region53: #{_lambda_.33} parent=51 // pred_check
          %p691 = pneg %p218
        $region54: #{_lambda_.33} parent=51 // pred_check_branch
          %693 = sbr.rel (%p691) target = $region56
        $region55: #{_lambda_.33} parent=51 // pred_region
          %s695 = ssub.s32 128, 128
          %696 = vsyncadd %s687, %s695
          %s697 = smul.addr %s22, 128
          %s698 = scalar_lea.hbm %s8, %s697
          %s700 = sshll.u32 %s690, 4
          %s701 = int_to_ptr.vmem [resolvable:$true] %s700
          %703 = dma.vmem_to_hbm [thread:$0]  %s701, 128, %s698, %s687
        $region56: #{_lambda_.33} parent=51 // pred_fallthru
          _
      $region52: #{_lambda_.33} parent=5 // pred_fallthru
        _
      %p704 = scmp.le.s32.totalorder 2, %s17
      // Predicated region
      $region57: #{_lambda_.33} parent=5 // pred_check
        %p705 = pneg %p704
      $region58: #{_lambda_.33} parent=5 // pred_check_branch
        %707 = sbr.rel (%p705) target = $region60
      $region59: #{_lambda_.33} parent=5 // pred_region
        %s708 = ssub.s32 %s17, 2
        // Predicated region
        $region61: #{_lambda_.33} parent=59 // pred_check
          %p709 = pneg %p224
        $region62: #{_lambda_.33} parent=59 // pred_check_branch
          %711 = sbr.rel (%p709) target = $region64
        $region63: #{_lambda_.33} parent=59 // pred_region
          %s712 = sand.u32 %s209, 1
          %s713 = scalar_lea.sflag [#allocation3], %s712
          %s714 = sand.u32 %s209, 1
          %s715 = smul.addr %s714, 8
          %s716 = scalar_lea.vmem [#allocation2], %s715
          %717 = dma.done %s713, 128
        $region64: #{_lambda_.33} parent=59 // pred_fallthru
          _
      $region60: #{_lambda_.33} parent=5 // pred_fallthru
        _
    $region6: #{_lambda_.33} parent=1 // loop_footer
      %s21 = sadd.s32 1, %s17
    $region7: #{_lambda_.33} parent=1 // loop_footer_branch
      %16 = sbr.rel target = $region3
    $region8: #{_lambda_.33} parent=1 // loop_exit
      _
    %718 = vsyncpa [#allocation3], 1
    %s719 = scalar_lea.sflag [#allocation3], 1
    %720 = vsyncpa %s719, 1

</llo_original>
